<compile_context>
chip_gen: v6e
topology: v6e:2x2x1
jax: 0.10.0
libtpu: 0.0.40
codegen_flags: <defaults>
</compile_context>

<pallas_src>
import jax
import jax.numpy as jnp
from jax import lax
from jax.experimental import pallas as pl
from jax.experimental.pallas import tpu as pltpu


def _mish(v):
    return v * jnp.tanh(jax.nn.softplus(v))


def _make_fused_kernel(B_TILE, H, block_meta, mxu_dtype):
    """block_meta: tuple of dicts {'c_in', 'c_out', 'has_res'} (static)."""
    eps = 1e-5
    M = B_TILE * H

    def kernel(*refs):
        x_ref = refs[0]
        out_ref = refs[-1]
        prefs = refs[1:-1]

        # Per-sample conv boundary masks for the flattened (B_TILE*H, C) rows.
        # pos[r] = position of row r inside its own sample (0..H-1).
        pos = lax.broadcasted_iota(jnp.int32, (B_TILE, H, 1), 1).reshape(M, 1)
        not_first = pos != 0        # row has an in-sample "t-1" neighbour
        not_last = pos != H - 1     # row has an in-sample "t+1" neighbour

        def conv3(x2, w_ref, b_ref):
            # Conv1d(kernel=3, padding=1) along the horizon, per sample:
            # three MXU tap matmuls, shifted with XLU rolls + boundary masks.
            xm = x2.astype(mxu_dtype)
            t0 = jnp.dot(xm, w_ref[0], preferred_element_type=jnp.float32)
            t1 = jnp.dot(xm, w_ref[1], preferred_element_type=jnp.float32)
            t2 = jnp.dot(xm, w_ref[2], preferred_element_type=jnp.float32)
            prev = jnp.where(not_first, pltpu.roll(t0, shift=1, axis=0), 0.0)
            nxt = jnp.where(not_last, pltpu.roll(t2, shift=M - 1, axis=0), 0.0)
            return prev + t1 + nxt + b_ref[...]

        def gnorm_mish(h2, c_out, g_ref, bt_ref):
            # GroupNorm(num_groups=1): per-sample stats over (H, C), then Mish.
            # Two-pass variance (mean, then centered) to avoid cancellation.
            # TODO(synk): n_groups > 1 would need per-group (lane-split) stats.
            h3 = h2.reshape(B_TILE, H, c_out)
            inv_n = 1.0 / float(H * c_out)
            mean = jnp.sum(jnp.sum(h3, axis=2, keepdims=True),
                           axis=1, keepdims=True) * inv_n
            cen = h3 - mean
            var = jnp.sum(jnp.sum(cen * cen, axis=2, keepdims=True),
                          axis=1, keepdims=True) * inv_n
            return _mish(cen * lax.rsqrt(var + eps) * g_ref[...] + bt_ref[...])

        h = x_ref[...].astype(jnp.float32).reshape(M, -1)         # (M, c_in0)
        idx = 0
        for meta in block_meta:
            c_out = meta["c_out"]
            (w1, b1, g1, bt1, sc, bi, w2, b2, g2, bt2) = prefs[idx:idx + 10]
            idx += 10
            if meta["has_res"]:
                wr, br = prefs[idx], prefs[idx + 1]
                idx += 2
            else:
                wr = br = None

            x_in = h

            # ---- Conv1dBlock #1: conv -> GroupNorm -> Mish ----
            t = conv3(x_in, w1, b1)

            # Residual path right after the last matmul use of x_in, so its live
            # range ends here (vreg pressure at wide channels).
            if wr is not None:
                res = jnp.dot(x_in.astype(mxu_dtype), wr[...],
                              preferred_element_type=jnp.float32) + br[...]
            else:
                res = x_in                                        # identity skip

            h1 = gnorm_mish(t, c_out, g1, bt1)                    # (B_TILE,H,c_out)

            # ---- FiLM: per-sample scale/bias precomputed in the wrapper ----
            h1 = sc[...] * h1 + bi[...]

            # ---- Conv1dBlock #2: conv -> GroupNorm -> Mish ----
            h2 = gnorm_mish(conv3(h1.reshape(M, c_out), w2, b2), c_out, g2, bt2)

            h = h2.reshape(M, c_out) + res

        out_ref[...] = h.reshape(B_TILE, H, -1).astype(out_ref.dtype)

    return kernel


def film_conditional_residual_block_bhc(x_bhc, cond, params_list, *,
                                        mxu_dtype=jnp.bfloat16):
    """Channels-last entry point: x (B, H, C_in), cond (B, cond_dim) -> (B, H, C_out).

    Keeping the op channels-last end-to-end avoids the two boundary transposes;
    the NCH wrapper below matches the PyTorch module's layout.
    """
    B, H, C_in = x_bhc.shape

    # Batch tile: feed the MXU up to 128 rows per matmul, but keep the parallel
    # batch-tile axis >= 2 iterations when B allows it (both v7x TensorCores).
    max_bt = max(1, 128 // H)
    if H % 8 != 0:
        max_bt = 1   # in-kernel (B_TILE,H,C)<->(B_TILE*H,C) reshape needs H % 8 == 0
    B_TILE = max(1, min(max_bt, pl.cdiv(B, 2)))
    n_tiles = pl.cdiv(B, B_TILE)
    B_pad = n_tiles * B_TILE

    x = x_bhc.astype(jnp.float32)
    if B_pad != B:
        x = jnp.pad(x, ((0, B_pad - B), (0, 0), (0, 0)))

    # FiLM cond encoder (Mish -> Linear) hoisted out of the kernel: one batched
    # XLA matmul per sub-block instead of six M=1 matmuls per grid step.
    mish_cond = _mish(cond.astype(jnp.float32))                   # (B, cond_dim)

    flat_args = [x]
    kinds = ["x"]
    block_meta = []
    c_prev = C_in
    for p in params_list:
        c_out = p["b1"].shape[-1]
        has_res = "wr" in p
        block_meta.append(dict(c_in=c_prev, c_out=c_out, has_res=has_res))

        emb = jnp.einsum("bd,do->bo", mish_cond, p["wc"],
                         precision="highest") + p["bc"]           # (B, 2*c_out)
        # first c_out columns = scale, last c_out = bias (PyTorch reshape order)
        scale = emb[:, :c_out].reshape(B, 1, c_out)
        bias = emb[:, c_out:].reshape(B, 1, c_out)
        if B_pad != B:
            pad = ((0, B_pad - B), (0, 0), (0, 0))
            scale, bias = jnp.pad(scale, pad), jnp.pad(bias, pad)

        blk = [(p["w1"].astype(mxu_dtype), "weight"),
               (p["b1"], "weight"), (p["g1"], "weight"), (p["bt1"], "weight"),
               (scale, "film"), (bias, "film"),
               (p["w2"].astype(mxu_dtype), "weight"),
               (p["b2"], "weight"), (p["g2"], "weight"), (p["bt2"], "weight")]
        if has_res:
            blk += [(p["wr"].astype(mxu_dtype), "weight"), (p["br"], "weight")]
        for a, kind in blk:
            flat_args.append(a)
            kinds.append(kind)
        c_prev = c_out

    kernel = _make_fused_kernel(B_TILE, H, tuple(block_meta), mxu_dtype)

    def _in_specs(single_buffer_weights):
        specs = []
        for a, kind in zip(flat_args, kinds):
            if kind == "x":
                specs.append(pl.BlockSpec((B_TILE, H, C_in), lambda b: (b, 0, 0)))
            elif kind == "film":
                specs.append(pl.BlockSpec((B_TILE, 1, a.shape[-1]),
                                          lambda b: (b, 0, 0)))
            else:  # grid-invariant parameter: resident across every grid step
                imap = (lambda z: (lambda b: z))((0,) * a.ndim)
                if single_buffer_weights:
                    specs.append(pl.BlockSpec(a.shape, imap,
                                              pipeline_mode=pl.Buffered(1)))
                else:
                    specs.append(pl.BlockSpec(a.shape, imap))
        return specs

    # Scoped-VMEM budget from the actual footprint (weights counted twice so the
    # double-buffered fallback also fits), plus headroom over the 16/32 MiB defaults.
    weight_bytes = sum(a.size * a.dtype.itemsize
                       for a, k in zip(flat_args, kinds) if k == "weight")
    stream_bytes = 4 * B_TILE * (H * (C_in + c_prev)
                                 + 2 * sum(m["c_out"] for m in block_meta))
    max_c = max(max(m["c_in"], m["c_out"]) for m in block_meta)
    act_bytes = 8 * B_TILE * H * max_c * 4
    vmem_limit = int(1.25 * (2 * weight_bytes + 2 * stream_bytes + act_bytes))
    vmem_limit = min(max(vmem_limit, 32 * 1024 * 1024), 128 * 1024 * 1024)

    def _call(single_buffer_weights):
        return pl.pallas_call(
            kernel,
            grid=(n_tiles,),
            in_specs=_in_specs(single_buffer_weights),
            out_specs=pl.BlockSpec((B_TILE, H, c_prev), lambda b: (b, 0, 0)),
            out_shape=jax.ShapeDtypeStruct((B_pad, H, c_prev), jnp.float32),
            compiler_params=pltpu.CompilerParams(
                dimension_semantics=("parallel",),
                vmem_limit_bytes=vmem_limit),
        )(*flat_args)

    try:
        out = _call(True)
    except Exception:
        # pl.Buffered(1) not supported by this JAX/Mosaic -> default buffering.
        out = _call(False)

    return out[:B] if B_pad != B else out


def film_conditional_residual_block(x_nch, cond, params_list, *,
                                    mxu_dtype=jnp.bfloat16):
    """PyTorch-layout entry point: x (B, C_in, H) -> (B, C_out, H)."""
    out = film_conditional_residual_block_bhc(
        jnp.transpose(x_nch, (0, 2, 1)), cond, params_list, mxu_dtype=mxu_dtype)
    return jnp.transpose(out, (0, 2, 1))


def init_block1d_params(key, c_in, c_out, cond_dim, scale=0.1):
    # Weight layout (transposed vs. PyTorch):
    #   conv w: (k, c_in, c_out); FiLM linear: (cond_dim, 2*c_out); 1x1: (c_in, c_out)
    ks = jax.random.split(key, 10)
    p = {
        "w1": scale * jax.random.normal(ks[0], (3, c_in, c_out), jnp.float32),
        "b1": scale * jax.random.normal(ks[1], (1, c_out), jnp.float32),
        "g1": 1.0 + scale * jax.random.normal(ks[2], (1, c_out), jnp.float32),
        "bt1": scale * jax.random.normal(ks[3], (1, c_out), jnp.float32),
        "wc": scale * jax.random.normal(ks[4], (cond_dim, 2 * c_out), jnp.float32),
        "bc": scale * jax.random.normal(ks[5], (1, 2 * c_out), jnp.float32),
        "w2": scale * jax.random.normal(ks[6], (3, c_out, c_out), jnp.float32),
        "b2": scale * jax.random.normal(ks[7], (1, c_out), jnp.float32),
        "g2": 1.0 + scale * jax.random.normal(ks[8], (1, c_out), jnp.float32),
        "bt2": scale * jax.random.normal(ks[9], (1, c_out), jnp.float32),
    }
    if c_in != c_out:   # nn.Identity() case omits wr/br; kernel skips the matmul
        kr = jax.random.split(ks[0], 3)
        p["wr"] = scale * jax.random.normal(kr[1], (c_in, c_out), jnp.float32)
        p["br"] = scale * jax.random.normal(kr[2], (1, c_out), jnp.float32)
    return p


# ----------------------- pure-JAX fp32 reference for checking -----------------------
def _ref_block1d(x, cond, p):
    H = x.shape[1]
    eps = 1e-5
    c_out = p["b1"].shape[-1]

    def conv3(xin, w, b):
        xp = jnp.pad(xin, ((0, 0), (1, 1), (0, 0)))
        out = sum(jnp.einsum("bhi,io->bho", xp[:, k:k + H, :], w[k],
                             precision="highest") for k in range(3))
        return out + b

    def gnorm(h, g, bt):
        mean = jnp.mean(h, axis=(1, 2), keepdims=True)
        var = jnp.mean(jnp.square(h - mean), axis=(1, 2), keepdims=True)
        return (h - mean) * lax.rsqrt(var + eps) * g + bt

    h = _mish(gnorm(conv3(x, p["w1"], p["b1"]), p["g1"], p["bt1"]))
    emb = jnp.einsum("bd,do->bo", _mish(cond), p["wc"], precision="highest") + p["bc"]
    h = emb[:, None, :c_out] * h + emb[:, None, c_out:]
    h = _mish(gnorm(conv3(h, p["w2"], p["b2"]), p["g2"], p["bt2"]))
    if "wr" in p:
        res = jnp.einsum("bhi,io->bho", x, p["wr"], precision="highest") + p["br"]
    else:
        res = x
    return h + res


if __name__ == "__main__":
    B, C_in, C_out, H, cond_dim = 2, 4, 4, 16, 8
    mid = C_out * 4  # out_channels * 4 as in FilmConditionalResidualBlock

    key = jax.random.PRNGKey(0)
    k_x, k_c, k0, k1, k2 = jax.random.split(key, 5)
    x = jax.random.normal(k_x, (B, C_in, H), jnp.float32)       # NCH like PyTorch
    cond = jax.random.normal(k_c, (B, cond_dim), jnp.float32)

    params = [
        init_block1d_params(k0, C_in, mid, cond_dim),   # block 0: in    -> 4*out
        init_block1d_params(k1, mid, mid, cond_dim),    # block 1: 4*out -> 4*out (identity)
        init_block1d_params(k2, mid, C_out, cond_dim),  # block 2: 4*out -> out
    ]
    # Use bf16-representable conv/residual weights so the bf16-MXU kernel can be
    # checked tightly against the fp32 reference (only activation rounding left).
    for p in params:
        for name in ("w1", "w2", "wr"):
            if name in p:
                p[name] = p[name].astype(jnp.bfloat16).astype(jnp.float32)

    # NOTE: kept eager (not jitted) so the Buffered(1) capability fallback works.
    out = jax.block_until_ready(film_conditional_residual_block(x, cond, params))
    assert out.shape == (B, C_out, H), out.shape

    # correctness check against a pure-JAX fp32 reference
    ref = jnp.transpose(x, (0, 2, 1))
    for p in params:
        ref = _ref_block1d(ref, cond, p)
    ref = jnp.transpose(ref, (0, 2, 1))
    max_err = float(jnp.max(jnp.abs(out - ref)))
    assert jnp.allclose(out, ref, atol=2e-2, rtol=2e-2), max_err

    print("KERNEL_OK")
</pallas_src>

<mosaic_0001>
module attributes {stable_mosaic.version = 11 : i64} {
  func.func @kernel(%arg0: i32, %arg1: memref<1x16x4xf32, #tpu.memory_space<vmem>>, %arg2: memref<3x4x16xbf16, #tpu.memory_space<vmem>>, %arg3: memref<1x16xf32, #tpu.memory_space<vmem>>, %arg4: memref<1x16xf32, #tpu.memory_space<vmem>>, %arg5: memref<1x16xf32, #tpu.memory_space<vmem>>, %arg6: memref<1x1x16xf32, #tpu.memory_space<vmem>>, %arg7: memref<1x1x16xf32, #tpu.memory_space<vmem>>, %arg8: memref<3x16x16xbf16, #tpu.memory_space<vmem>>, %arg9: memref<1x16xf32, #tpu.memory_space<vmem>>, %arg10: memref<1x16xf32, #tpu.memory_space<vmem>>, %arg11: memref<1x16xf32, #tpu.memory_space<vmem>>, %arg12: memref<4x16xbf16, #tpu.memory_space<vmem>>, %arg13: memref<1x16xf32, #tpu.memory_space<vmem>>, %arg14: memref<3x16x16xbf16, #tpu.memory_space<vmem>>, %arg15: memref<1x16xf32, #tpu.memory_space<vmem>>, %arg16: memref<1x16xf32, #tpu.memory_space<vmem>>, %arg17: memref<1x16xf32, #tpu.memory_space<vmem>>, %arg18: memref<1x1x16xf32, #tpu.memory_space<vmem>>, %arg19: memref<1x1x16xf32, #tpu.memory_space<vmem>>, %arg20: memref<3x16x16xbf16, #tpu.memory_space<vmem>>, %arg21: memref<1x16xf32, #tpu.memory_space<vmem>>, %arg22: memref<1x16xf32, #tpu.memory_space<vmem>>, %arg23: memref<1x16xf32, #tpu.memory_space<vmem>>, %arg24: memref<3x16x4xbf16, #tpu.memory_space<vmem>>, %arg25: memref<1x4xf32, #tpu.memory_space<vmem>>, %arg26: memref<1x4xf32, #tpu.memory_space<vmem>>, %arg27: memref<1x4xf32, #tpu.memory_space<vmem>>, %arg28: memref<1x1x4xf32, #tpu.memory_space<vmem>>, %arg29: memref<1x1x4xf32, #tpu.memory_space<vmem>>, %arg30: memref<3x4x4xbf16, #tpu.memory_space<vmem>>, %arg31: memref<1x4xf32, #tpu.memory_space<vmem>>, %arg32: memref<1x4xf32, #tpu.memory_space<vmem>>, %arg33: memref<1x4xf32, #tpu.memory_space<vmem>>, %arg34: memref<16x4xbf16, #tpu.memory_space<vmem>>, %arg35: memref<1x4xf32, #tpu.memory_space<vmem>>, %arg36: memref<1x16x4xf32, #tpu.memory_space<vmem>>) attributes {dimension_semantics = [#tpu.dimension_semantics<parallel>], iteration_bounds = array<i64: 2>, scalar_prefetch = 0 : i64, scratch_operands = 0 : i64, tpu.core_type = #tpu.core_type<tc>, window_params = [{transform_indices = @transform_0, window_bounds = array<i64: 1, 16, 4>}, {pipeline_mode = #tpu.pipeline_mode<synchronous>, transform_indices = @transform_1, window_bounds = array<i64: 3, 4, 16>}, {pipeline_mode = #tpu.pipeline_mode<synchronous>, transform_indices = @transform_2, window_bounds = array<i64: 1, 16>}, {pipeline_mode = #tpu.pipeline_mode<synchronous>, transform_indices = @transform_3, window_bounds = array<i64: 1, 16>}, {pipeline_mode = #tpu.pipeline_mode<synchronous>, transform_indices = @transform_4, window_bounds = array<i64: 1, 16>}, {transform_indices = @transform_5, window_bounds = array<i64: 1, 1, 16>}, {transform_indices = @transform_6, window_bounds = array<i64: 1, 1, 16>}, {pipeline_mode = #tpu.pipeline_mode<synchronous>, transform_indices = @transform_7, window_bounds = array<i64: 3, 16, 16>}, {pipeline_mode = #tpu.pipeline_mode<synchronous>, transform_indices = @transform_8, window_bounds = array<i64: 1, 16>}, {pipeline_mode = #tpu.pipeline_mode<synchronous>, transform_indices = @transform_9, window_bounds = array<i64: 1, 16>}, {pipeline_mode = #tpu.pipeline_mode<synchronous>, transform_indices = @transform_10, window_bounds = array<i64: 1, 16>}, {pipeline_mode = #tpu.pipeline_mode<synchronous>, transform_indices = @transform_11, window_bounds = array<i64: 4, 16>}, {pipeline_mode = #tpu.pipeline_mode<synchronous>, transform_indices = @transform_12, window_bounds = array<i64: 1, 16>}, {pipeline_mode = #tpu.pipeline_mode<synchronous>, transform_indices = @transform_13, window_bounds = array<i64: 3, 16, 16>}, {pipeline_mode = #tpu.pipeline_mode<synchronous>, transform_indices = @transform_14, window_bounds = array<i64: 1, 16>}, {pipeline_mode = #tpu.pipeline_mode<synchronous>, transform_indices = @transform_15, window_bounds = array<i64: 1, 16>}, {pipeline_mode = #tpu.pipeline_mode<synchronous>, transform_indices = @transform_16, window_bounds = array<i64: 1, 16>}, {transform_indices = @transform_17, window_bounds = array<i64: 1, 1, 16>}, {transform_indices = @transform_18, window_bounds = array<i64: 1, 1, 16>}, {pipeline_mode = #tpu.pipeline_mode<synchronous>, transform_indices = @transform_19, window_bounds = array<i64: 3, 16, 16>}, {pipeline_mode = #tpu.pipeline_mode<synchronous>, transform_indices = @transform_20, window_bounds = array<i64: 1, 16>}, {pipeline_mode = #tpu.pipeline_mode<synchronous>, transform_indices = @transform_21, window_bounds = array<i64: 1, 16>}, {pipeline_mode = #tpu.pipeline_mode<synchronous>, transform_indices = @transform_22, window_bounds = array<i64: 1, 16>}, {pipeline_mode = #tpu.pipeline_mode<synchronous>, transform_indices = @transform_23, window_bounds = array<i64: 3, 16, 4>}, {pipeline_mode = #tpu.pipeline_mode<synchronous>, transform_indices = @transform_24, window_bounds = array<i64: 1, 4>}, {pipeline_mode = #tpu.pipeline_mode<synchronous>, transform_indices = @transform_25, window_bounds = array<i64: 1, 4>}, {pipeline_mode = #tpu.pipeline_mode<synchronous>, transform_indices = @transform_26, window_bounds = array<i64: 1, 4>}, {transform_indices = @transform_27, window_bounds = array<i64: 1, 1, 4>}, {transform_indices = @transform_28, window_bounds = array<i64: 1, 1, 4>}, {pipeline_mode = #tpu.pipeline_mode<synchronous>, transform_indices = @transform_29, window_bounds = array<i64: 3, 4, 4>}, {pipeline_mode = #tpu.pipeline_mode<synchronous>, transform_indices = @transform_30, window_bounds = array<i64: 1, 4>}, {pipeline_mode = #tpu.pipeline_mode<synchronous>, transform_indices = @transform_31, window_bounds = array<i64: 1, 4>}, {pipeline_mode = #tpu.pipeline_mode<synchronous>, transform_indices = @transform_32, window_bounds = array<i64: 1, 4>}, {pipeline_mode = #tpu.pipeline_mode<synchronous>, transform_indices = @transform_33, window_bounds = array<i64: 16, 4>}, {pipeline_mode = #tpu.pipeline_mode<synchronous>, transform_indices = @transform_34, window_bounds = array<i64: 1, 4>}, {transform_indices = @transform_35, window_bounds = array<i64: 1, 16, 4>}]} {
    %0 = tpu.iota {dimensions = array<i32: 1>} : vector<1x16x1xi32>
    %1 = vector.shape_cast %0 : vector<1x16x1xi32> to vector<16x1xi32>
    %c0_i32 = arith.constant 0 : i32
    %2 = vector.broadcast %c0_i32 : i32 to vector<16x1xi32>
    %3 = arith.cmpi ne, %1, %2 : vector<16x1xi32>
    %c15_i32 = arith.constant 15 : i32
    %4 = vector.broadcast %c15_i32 : i32 to vector<16x1xi32>
    %5 = arith.cmpi ne, %1, %4 : vector<16x1xi32>
    %c0 = arith.constant 0 : index
    %c0_0 = arith.constant 0 : index
    %c0_1 = arith.constant 0 : index
    %6 = vector.load %arg1[%c0, %c0_0, %c0_1] : memref<1x16x4xf32, #tpu.memory_space<vmem>>, vector<1x16x4xf32>
    %7 = vector.shape_cast %6 : vector<1x16x4xf32> to vector<16x4xf32>
    %8 = arith.truncf %7 : vector<16x4xf32> to vector<16x4xbf16>
    %c0_2 = arith.constant 0 : index
    %c0_3 = arith.constant 0 : index
    %c0_4 = arith.constant 0 : index
    %9 = vector.load %arg2[%c0_2, %c0_3, %c0_4] : memref<3x4x16xbf16, #tpu.memory_space<vmem>>, vector<1x4x16xbf16>
    %10 = vector.shape_cast %9 : vector<1x4x16xbf16> to vector<4x16xbf16>
    %cst = arith.constant dense<0.000000e+00> : vector<16x16xf32>
    %11 = tpu.matmul %8, %10, %cst {dimension_numbers = #tpu.dot_dimension_numbers<[1], [0], [0], [1], [0, 0, 1, 1], [], []>} : vector<16x4xbf16>, vector<4x16xbf16>, vector<16x16xf32> -> vector<16x16xf32>
    %c1 = arith.constant 1 : index
    %c0_5 = arith.constant 0 : index
    %c0_6 = arith.constant 0 : index
    %12 = vector.load %arg2[%c1, %c0_5, %c0_6] : memref<3x4x16xbf16, #tpu.memory_space<vmem>>, vector<1x4x16xbf16>
    %13 = vector.shape_cast %12 : vector<1x4x16xbf16> to vector<4x16xbf16>
    %cst_7 = arith.constant dense<0.000000e+00> : vector<16x16xf32>
    %14 = tpu.matmul %8, %13, %cst_7 {dimension_numbers = #tpu.dot_dimension_numbers<[1], [0], [0], [1], [0, 0, 1, 1], [], []>} : vector<16x4xbf16>, vector<4x16xbf16>, vector<16x16xf32> -> vector<16x16xf32>
    %c2 = arith.constant 2 : index
    %c0_8 = arith.constant 0 : index
    %c0_9 = arith.constant 0 : index
    %15 = vector.load %arg2[%c2, %c0_8, %c0_9] : memref<3x4x16xbf16, #tpu.memory_space<vmem>>, vector<1x4x16xbf16>
    %16 = vector.shape_cast %15 : vector<1x4x16xbf16> to vector<4x16xbf16>
    %cst_10 = arith.constant dense<0.000000e+00> : vector<16x16xf32>
    %17 = tpu.matmul %8, %16, %cst_10 {dimension_numbers = #tpu.dot_dimension_numbers<[1], [0], [0], [1], [0, 0, 1, 1], [], []>} : vector<16x4xbf16>, vector<4x16xbf16>, vector<16x16xf32> -> vector<16x16xf32>
    %c1_i32 = arith.constant 1 : i32
    %18 = tpu.dynamic_rotate %11 by %c1_i32 dim 0 : vector<16x16xf32>, i32 -> vector<16x16xf32>
    %cst_11 = arith.constant 0.000000e+00 : f32
    %19 = vector.shape_cast %3 : vector<16x1xi1> to vector<16x1xi1>
    %20 = vector.broadcast %19 : vector<16x1xi1> to vector<16x16xi1>
    %21 = vector.broadcast %cst_11 : f32 to vector<16x16xf32>
    %22 = arith.select %20, %18, %21 : vector<16x16xi1>, vector<16x16xf32>
    %c15_i32_12 = arith.constant 15 : i32
    %23 = tpu.dynamic_rotate %17 by %c15_i32_12 dim 0 : vector<16x16xf32>, i32 -> vector<16x16xf32>
    %cst_13 = arith.constant 0.000000e+00 : f32
    %24 = vector.shape_cast %5 : vector<16x1xi1> to vector<16x1xi1>
    %25 = vector.broadcast %24 : vector<16x1xi1> to vector<16x16xi1>
    %26 = vector.broadcast %cst_13 : f32 to vector<16x16xf32>
    %27 = arith.select %25, %23, %26 : vector<16x16xi1>, vector<16x16xf32>
    %28 = arith.addf %22, %14 : vector<16x16xf32>
    %29 = arith.addf %28, %27 : vector<16x16xf32>
    %c0_14 = arith.constant 0 : index
    %c0_15 = arith.constant 0 : index
    %30 = vector.load %arg3[%c0_14, %c0_15] : memref<1x16xf32, #tpu.memory_space<vmem>>, vector<1x16xf32>
    %31 = vector.broadcast %30 : vector<1x16xf32> to vector<16x16xf32>
    %32 = arith.addf %29, %31 : vector<16x16xf32>
    %33 = arith.truncf %7 : vector<16x4xf32> to vector<16x4xbf16>
    %c0_16 = arith.constant 0 : index
    %c0_17 = arith.constant 0 : index
    %34 = vector.load %arg12[%c0_16, %c0_17] : memref<4x16xbf16, #tpu.memory_space<vmem>>, vector<4x16xbf16>
    %cst_18 = arith.constant dense<0.000000e+00> : vector<16x16xf32>
    %35 = tpu.matmul %33, %34, %cst_18 {dimension_numbers = #tpu.dot_dimension_numbers<[1], [0], [0], [1], [0, 0, 1, 1], [], []>} : vector<16x4xbf16>, vector<4x16xbf16>, vector<16x16xf32> -> vector<16x16xf32>
    %c0_19 = arith.constant 0 : index
    %c0_20 = arith.constant 0 : index
    %36 = vector.load %arg13[%c0_19, %c0_20] : memref<1x16xf32, #tpu.memory_space<vmem>>, vector<1x16xf32>
    %37 = vector.broadcast %36 : vector<1x16xf32> to vector<16x16xf32>
    %38 = arith.addf %35, %37 : vector<16x16xf32>
    %39 = vector.shape_cast %32 : vector<16x16xf32> to vector<1x16x16xf32>
    %cst_21 = arith.constant dense<0.000000e+00> : vector<1x16xf32>
    %40 = vector.multi_reduction <add>, %39, %cst_21 [2] : vector<1x16x16xf32> to vector<1x16xf32>
    %41 = vector.shape_cast %40 : vector<1x16xf32> to vector<1x16x1xf32>
    %cst_22 = arith.constant dense<0.000000e+00> : vector<1x1xf32>
    %42 = vector.multi_reduction <add>, %41, %cst_22 [1] : vector<1x16x1xf32> to vector<1x1xf32>
    %43 = vector.shape_cast %42 : vector<1x1xf32> to vector<1x1x1xf32>
    %cst_23 = arith.constant 3.906250e-03 : f32
    %44 = vector.broadcast %cst_23 : f32 to vector<1x1x1xf32>
    %45 = arith.mulf %43, %44 : vector<1x1x1xf32>
    %46 = vector.broadcast %45 : vector<1x1x1xf32> to vector<1x16x16xf32>
    %47 = arith.subf %39, %46 : vector<1x16x16xf32>
    %48 = arith.mulf %47, %47 : vector<1x16x16xf32>
    %cst_24 = arith.constant dense<0.000000e+00> : vector<1x16xf32>
    %49 = vector.multi_reduction <add>, %48, %cst_24 [2] : vector<1x16x16xf32> to vector<1x16xf32>
    %50 = vector.shape_cast %49 : vector<1x16xf32> to vector<1x16x1xf32>
    %cst_25 = arith.constant dense<0.000000e+00> : vector<1x1xf32>
    %51 = vector.multi_reduction <add>, %50, %cst_25 [1] : vector<1x16x1xf32> to vector<1x1xf32>
    %52 = vector.shape_cast %51 : vector<1x1xf32> to vector<1x1x1xf32>
    %cst_26 = arith.constant 3.906250e-03 : f32
    %53 = vector.broadcast %cst_26 : f32 to vector<1x1x1xf32>
    %54 = arith.mulf %52, %53 : vector<1x1x1xf32>
    %cst_27 = arith.constant 9.99999974E-6 : f32
    %55 = vector.broadcast %cst_27 : f32 to vector<1x1x1xf32>
    %56 = arith.addf %54, %55 : vector<1x1x1xf32>
    %57 = math.rsqrt %56 : vector<1x1x1xf32>
    %58 = vector.broadcast %57 : vector<1x1x1xf32> to vector<1x16x16xf32>
    %59 = arith.mulf %47, %58 : vector<1x16x16xf32>
    %c0_28 = arith.constant 0 : index
    %c0_29 = arith.constant 0 : index
    %60 = vector.load %arg4[%c0_28, %c0_29] : memref<1x16xf32, #tpu.memory_space<vmem>>, vector<1x16xf32>
    %61 = vector.shape_cast %60 : vector<1x16xf32> to vector<1x1x16xf32>
    %62 = vector.broadcast %61 : vector<1x1x16xf32> to vector<1x16x16xf32>
    %63 = arith.mulf %59, %62 : vector<1x16x16xf32>
    %c0_30 = arith.constant 0 : index
    %c0_31 = arith.constant 0 : index
    %64 = vector.load %arg5[%c0_30, %c0_31] : memref<1x16xf32, #tpu.memory_space<vmem>>, vector<1x16xf32>
    %65 = vector.shape_cast %64 : vector<1x16xf32> to vector<1x1x16xf32>
    %66 = vector.broadcast %65 : vector<1x1x16xf32> to vector<1x16x16xf32>
    %67 = arith.addf %63, %66 : vector<1x16x16xf32>
    %cst_32 = arith.constant 0.000000e+00 : f32
    %68 = vector.broadcast %cst_32 : f32 to vector<1x16x16xf32>
    %69 = arith.maximumf %67, %68 : vector<1x16x16xf32>
    %70 = vector.broadcast %cst_32 : f32 to vector<1x16x16xf32>
    %71 = arith.subf %67, %70 : vector<1x16x16xf32>
    %72 = arith.cmpf one, %71, %71 : vector<1x16x16xf32>
    %73 = vector.broadcast %cst_32 : f32 to vector<1x16x16xf32>
    %74 = arith.addf %67, %73 : vector<1x16x16xf32>
    %75 = math.absf %71 : vector<1x16x16xf32>
    %cst_33 = arith.constant 0.000000e+00 : f32
    %76 = vector.broadcast %cst_33 : f32 to vector<1x16x16xf32>
    %77 = arith.subf %76, %75 : vector<1x16x16xf32>
    %78 = math.exp %77 : vector<1x16x16xf32>
    %79 = math.log1p %78 : vector<1x16x16xf32>
    %80 = arith.addf %69, %79 : vector<1x16x16xf32>
    %81 = arith.select %72, %74, %80 : vector<1x16x16xi1>, vector<1x16x16xf32>
    %82 = math.tanh %81 : vector<1x16x16xf32>
    %83 = arith.mulf %67, %82 : vector<1x16x16xf32>
    %c0_34 = arith.constant 0 : index
    %c0_35 = arith.constant 0 : index
    %c0_36 = arith.constant 0 : index
    %84 = vector.load %arg6[%c0_34, %c0_35, %c0_36] : memref<1x1x16xf32, #tpu.memory_space<vmem>>, vector<1x1x16xf32>
    %85 = vector.broadcast %84 : vector<1x1x16xf32> to vector<1x16x16xf32>
    %86 = arith.mulf %85, %83 : vector<1x16x16xf32>
    %c0_37 = arith.constant 0 : index
    %c0_38 = arith.constant 0 : index
    %c0_39 = arith.constant 0 : index
    %87 = vector.load %arg7[%c0_37, %c0_38, %c0_39] : memref<1x1x16xf32, #tpu.memory_space<vmem>>, vector<1x1x16xf32>
    %88 = vector.broadcast %87 : vector<1x1x16xf32> to vector<1x16x16xf32>
    %89 = arith.addf %86, %88 : vector<1x16x16xf32>
    %90 = vector.shape_cast %89 : vector<1x16x16xf32> to vector<16x16xf32>
    %91 = arith.truncf %90 : vector<16x16xf32> to vector<16x16xbf16>
    %c0_40 = arith.constant 0 : index
    %c0_41 = arith.constant 0 : index
    %c0_42 = arith.constant 0 : index
    %92 = vector.load %arg8[%c0_40, %c0_41, %c0_42] : memref<3x16x16xbf16, #tpu.memory_space<vmem>>, vector<1x16x16xbf16>
    %93 = vector.shape_cast %92 : vector<1x16x16xbf16> to vector<16x16xbf16>
    %cst_43 = arith.constant dense<0.000000e+00> : vector<16x16xf32>
    %94 = tpu.matmul %91, %93, %cst_43 {dimension_numbers = #tpu.dot_dimension_numbers<[1], [0], [0], [1], [0, 0, 1, 1], [], []>} : vector<16x16xbf16>, vector<16x16xbf16>, vector<16x16xf32> -> vector<16x16xf32>
    %c1_44 = arith.constant 1 : index
    %c0_45 = arith.constant 0 : index
    %c0_46 = arith.constant 0 : index
    %95 = vector.load %arg8[%c1_44, %c0_45, %c0_46] : memref<3x16x16xbf16, #tpu.memory_space<vmem>>, vector<1x16x16xbf16>
    %96 = vector.shape_cast %95 : vector<1x16x16xbf16> to vector<16x16xbf16>
    %cst_47 = arith.constant dense<0.000000e+00> : vector<16x16xf32>
    %97 = tpu.matmul %91, %96, %cst_47 {dimension_numbers = #tpu.dot_dimension_numbers<[1], [0], [0], [1], [0, 0, 1, 1], [], []>} : vector<16x16xbf16>, vector<16x16xbf16>, vector<16x16xf32> -> vector<16x16xf32>
    %c2_48 = arith.constant 2 : index
    %c0_49 = arith.constant 0 : index
    %c0_50 = arith.constant 0 : index
    %98 = vector.load %arg8[%c2_48, %c0_49, %c0_50] : memref<3x16x16xbf16, #tpu.memory_space<vmem>>, vector<1x16x16xbf16>
    %99 = vector.shape_cast %98 : vector<1x16x16xbf16> to vector<16x16xbf16>
    %cst_51 = arith.constant dense<0.000000e+00> : vector<16x16xf32>
    %100 = tpu.matmul %91, %99, %cst_51 {dimension_numbers = #tpu.dot_dimension_numbers<[1], [0], [0], [1], [0, 0, 1, 1], [], []>} : vector<16x16xbf16>, vector<16x16xbf16>, vector<16x16xf32> -> vector<16x16xf32>
    %c1_i32_52 = arith.constant 1 : i32
    %101 = tpu.dynamic_rotate %94 by %c1_i32_52 dim 0 : vector<16x16xf32>, i32 -> vector<16x16xf32>
    %cst_53 = arith.constant 0.000000e+00 : f32
    %102 = vector.shape_cast %3 : vector<16x1xi1> to vector<16x1xi1>
    %103 = vector.broadcast %102 : vector<16x1xi1> to vector<16x16xi1>
    %104 = vector.broadcast %cst_53 : f32 to vector<16x16xf32>
    %105 = arith.select %103, %101, %104 : vector<16x16xi1>, vector<16x16xf32>
    %c15_i32_54 = arith.constant 15 : i32
    %106 = tpu.dynamic_rotate %100 by %c15_i32_54 dim 0 : vector<16x16xf32>, i32 -> vector<16x16xf32>
    %cst_55 = arith.constant 0.000000e+00 : f32
    %107 = vector.shape_cast %5 : vector<16x1xi1> to vector<16x1xi1>
    %108 = vector.broadcast %107 : vector<16x1xi1> to vector<16x16xi1>
    %109 = vector.broadcast %cst_55 : f32 to vector<16x16xf32>
    %110 = arith.select %108, %106, %109 : vector<16x16xi1>, vector<16x16xf32>
    %111 = arith.addf %105, %97 : vector<16x16xf32>
    %112 = arith.addf %111, %110 : vector<16x16xf32>
    %c0_56 = arith.constant 0 : index
    %c0_57 = arith.constant 0 : index
    %113 = vector.load %arg9[%c0_56, %c0_57] : memref<1x16xf32, #tpu.memory_space<vmem>>, vector<1x16xf32>
    %114 = vector.broadcast %113 : vector<1x16xf32> to vector<16x16xf32>
    %115 = arith.addf %112, %114 : vector<16x16xf32>
    %116 = vector.shape_cast %115 : vector<16x16xf32> to vector<1x16x16xf32>
    %cst_58 = arith.constant dense<0.000000e+00> : vector<1x16xf32>
    %117 = vector.multi_reduction <add>, %116, %cst_58 [2] : vector<1x16x16xf32> to vector<1x16xf32>
    %118 = vector.shape_cast %117 : vector<1x16xf32> to vector<1x16x1xf32>
    %cst_59 = arith.constant dense<0.000000e+00> : vector<1x1xf32>
    %119 = vector.multi_reduction <add>, %118, %cst_59 [1] : vector<1x16x1xf32> to vector<1x1xf32>
    %120 = vector.shape_cast %119 : vector<1x1xf32> to vector<1x1x1xf32>
    %cst_60 = arith.constant 3.906250e-03 : f32
    %121 = vector.broadcast %cst_60 : f32 to vector<1x1x1xf32>
    %122 = arith.mulf %120, %121 : vector<1x1x1xf32>
    %123 = vector.broadcast %122 : vector<1x1x1xf32> to vector<1x16x16xf32>
    %124 = arith.subf %116, %123 : vector<1x16x16xf32>
    %125 = arith.mulf %124, %124 : vector<1x16x16xf32>
    %cst_61 = arith.constant dense<0.000000e+00> : vector<1x16xf32>
    %126 = vector.multi_reduction <add>, %125, %cst_61 [2] : vector<1x16x16xf32> to vector<1x16xf32>
    %127 = vector.shape_cast %126 : vector<1x16xf32> to vector<1x16x1xf32>
    %cst_62 = arith.constant dense<0.000000e+00> : vector<1x1xf32>
    %128 = vector.multi_reduction <add>, %127, %cst_62 [1] : vector<1x16x1xf32> to vector<1x1xf32>
    %129 = vector.shape_cast %128 : vector<1x1xf32> to vector<1x1x1xf32>
    %cst_63 = arith.constant 3.906250e-03 : f32
    %130 = vector.broadcast %cst_63 : f32 to vector<1x1x1xf32>
    %131 = arith.mulf %129, %130 : vector<1x1x1xf32>
    %cst_64 = arith.constant 9.99999974E-6 : f32
    %132 = vector.broadcast %cst_64 : f32 to vector<1x1x1xf32>
    %133 = arith.addf %131, %132 : vector<1x1x1xf32>
    %134 = math.rsqrt %133 : vector<1x1x1xf32>
    %135 = vector.broadcast %134 : vector<1x1x1xf32> to vector<1x16x16xf32>
    %136 = arith.mulf %124, %135 : vector<1x16x16xf32>
    %c0_65 = arith.constant 0 : index
    %c0_66 = arith.constant 0 : index
    %137 = vector.load %arg10[%c0_65, %c0_66] : memref<1x16xf32, #tpu.memory_space<vmem>>, vector<1x16xf32>
    %138 = vector.shape_cast %137 : vector<1x16xf32> to vector<1x1x16xf32>
    %139 = vector.broadcast %138 : vector<1x1x16xf32> to vector<1x16x16xf32>
    %140 = arith.mulf %136, %139 : vector<1x16x16xf32>
    %c0_67 = arith.constant 0 : index
    %c0_68 = arith.constant 0 : index
    %141 = vector.load %arg11[%c0_67, %c0_68] : memref<1x16xf32, #tpu.memory_space<vmem>>, vector<1x16xf32>
    %142 = vector.shape_cast %141 : vector<1x16xf32> to vector<1x1x16xf32>
    %143 = vector.broadcast %142 : vector<1x1x16xf32> to vector<1x16x16xf32>
    %144 = arith.addf %140, %143 : vector<1x16x16xf32>
    %cst_69 = arith.constant 0.000000e+00 : f32
    %145 = vector.broadcast %cst_69 : f32 to vector<1x16x16xf32>
    %146 = arith.maximumf %144, %145 : vector<1x16x16xf32>
    %147 = vector.broadcast %cst_69 : f32 to vector<1x16x16xf32>
    %148 = arith.subf %144, %147 : vector<1x16x16xf32>
    %149 = arith.cmpf one, %148, %148 : vector<1x16x16xf32>
    %150 = vector.broadcast %cst_69 : f32 to vector<1x16x16xf32>
    %151 = arith.addf %144, %150 : vector<1x16x16xf32>
    %152 = math.absf %148 : vector<1x16x16xf32>
    %cst_70 = arith.constant 0.000000e+00 : f32
    %153 = vector.broadcast %cst_70 : f32 to vector<1x16x16xf32>
    %154 = arith.subf %153, %152 : vector<1x16x16xf32>
    %155 = math.exp %154 : vector<1x16x16xf32>
    %156 = math.log1p %155 : vector<1x16x16xf32>
    %157 = arith.addf %146, %156 : vector<1x16x16xf32>
    %158 = arith.select %149, %151, %157 : vector<1x16x16xi1>, vector<1x16x16xf32>
    %159 = math.tanh %158 : vector<1x16x16xf32>
    %160 = arith.mulf %144, %159 : vector<1x16x16xf32>
    %161 = vector.shape_cast %160 : vector<1x16x16xf32> to vector<16x16xf32>
    %162 = arith.addf %161, %38 : vector<16x16xf32>
    %163 = arith.truncf %162 : vector<16x16xf32> to vector<16x16xbf16>
    %c0_71 = arith.constant 0 : index
    %c0_72 = arith.constant 0 : index
    %c0_73 = arith.constant 0 : index
    %164 = vector.load %arg14[%c0_71, %c0_72, %c0_73] : memref<3x16x16xbf16, #tpu.memory_space<vmem>>, vector<1x16x16xbf16>
    %165 = vector.shape_cast %164 : vector<1x16x16xbf16> to vector<16x16xbf16>
    %cst_74 = arith.constant dense<0.000000e+00> : vector<16x16xf32>
    %166 = tpu.matmul %163, %165, %cst_74 {dimension_numbers = #tpu.dot_dimension_numbers<[1], [0], [0], [1], [0, 0, 1, 1], [], []>} : vector<16x16xbf16>, vector<16x16xbf16>, vector<16x16xf32> -> vector<16x16xf32>
    %c1_75 = arith.constant 1 : index
    %c0_76 = arith.constant 0 : index
    %c0_77 = arith.constant 0 : index
    %167 = vector.load %arg14[%c1_75, %c0_76, %c0_77] : memref<3x16x16xbf16, #tpu.memory_space<vmem>>, vector<1x16x16xbf16>
    %168 = vector.shape_cast %167 : vector<1x16x16xbf16> to vector<16x16xbf16>
    %cst_78 = arith.constant dense<0.000000e+00> : vector<16x16xf32>
    %169 = tpu.matmul %163, %168, %cst_78 {dimension_numbers = #tpu.dot_dimension_numbers<[1], [0], [0], [1], [0, 0, 1, 1], [], []>} : vector<16x16xbf16>, vector<16x16xbf16>, vector<16x16xf32> -> vector<16x16xf32>
    %c2_79 = arith.constant 2 : index
    %c0_80 = arith.constant 0 : index
    %c0_81 = arith.constant 0 : index
    %170 = vector.load %arg14[%c2_79, %c0_80, %c0_81] : memref<3x16x16xbf16, #tpu.memory_space<vmem>>, vector<1x16x16xbf16>
    %171 = vector.shape_cast %170 : vector<1x16x16xbf16> to vector<16x16xbf16>
    %cst_82 = arith.constant dense<0.000000e+00> : vector<16x16xf32>
    %172 = tpu.matmul %163, %171, %cst_82 {dimension_numbers = #tpu.dot_dimension_numbers<[1], [0], [0], [1], [0, 0, 1, 1], [], []>} : vector<16x16xbf16>, vector<16x16xbf16>, vector<16x16xf32> -> vector<16x16xf32>
    %c1_i32_83 = arith.constant 1 : i32
    %173 = tpu.dynamic_rotate %166 by %c1_i32_83 dim 0 : vector<16x16xf32>, i32 -> vector<16x16xf32>
    %cst_84 = arith.constant 0.000000e+00 : f32
    %174 = vector.shape_cast %3 : vector<16x1xi1> to vector<16x1xi1>
    %175 = vector.broadcast %174 : vector<16x1xi1> to vector<16x16xi1>
    %176 = vector.broadcast %cst_84 : f32 to vector<16x16xf32>
    %177 = arith.select %175, %173, %176 : vector<16x16xi1>, vector<16x16xf32>
    %c15_i32_85 = arith.constant 15 : i32
    %178 = tpu.dynamic_rotate %172 by %c15_i32_85 dim 0 : vector<16x16xf32>, i32 -> vector<16x16xf32>
    %cst_86 = arith.constant 0.000000e+00 : f32
    %179 = vector.shape_cast %5 : vector<16x1xi1> to vector<16x1xi1>
    %180 = vector.broadcast %179 : vector<16x1xi1> to vector<16x16xi1>
    %181 = vector.broadcast %cst_86 : f32 to vector<16x16xf32>
    %182 = arith.select %180, %178, %181 : vector<16x16xi1>, vector<16x16xf32>
    %183 = arith.addf %177, %169 : vector<16x16xf32>
    %184 = arith.addf %183, %182 : vector<16x16xf32>
    %c0_87 = arith.constant 0 : index
    %c0_88 = arith.constant 0 : index
    %185 = vector.load %arg15[%c0_87, %c0_88] : memref<1x16xf32, #tpu.memory_space<vmem>>, vector<1x16xf32>
    %186 = vector.broadcast %185 : vector<1x16xf32> to vector<16x16xf32>
    %187 = arith.addf %184, %186 : vector<16x16xf32>
    %188 = vector.shape_cast %187 : vector<16x16xf32> to vector<1x16x16xf32>
    %cst_89 = arith.constant dense<0.000000e+00> : vector<1x16xf32>
    %189 = vector.multi_reduction <add>, %188, %cst_89 [2] : vector<1x16x16xf32> to vector<1x16xf32>
    %190 = vector.shape_cast %189 : vector<1x16xf32> to vector<1x16x1xf32>
    %cst_90 = arith.constant dense<0.000000e+00> : vector<1x1xf32>
    %191 = vector.multi_reduction <add>, %190, %cst_90 [1] : vector<1x16x1xf32> to vector<1x1xf32>
    %192 = vector.shape_cast %191 : vector<1x1xf32> to vector<1x1x1xf32>
    %cst_91 = arith.constant 3.906250e-03 : f32
    %193 = vector.broadcast %cst_91 : f32 to vector<1x1x1xf32>
    %194 = arith.mulf %192, %193 : vector<1x1x1xf32>
    %195 = vector.broadcast %194 : vector<1x1x1xf32> to vector<1x16x16xf32>
    %196 = arith.subf %188, %195 : vector<1x16x16xf32>
    %197 = arith.mulf %196, %196 : vector<1x16x16xf32>
    %cst_92 = arith.constant dense<0.000000e+00> : vector<1x16xf32>
    %198 = vector.multi_reduction <add>, %197, %cst_92 [2] : vector<1x16x16xf32> to vector<1x16xf32>
    %199 = vector.shape_cast %198 : vector<1x16xf32> to vector<1x16x1xf32>
    %cst_93 = arith.constant dense<0.000000e+00> : vector<1x1xf32>
    %200 = vector.multi_reduction <add>, %199, %cst_93 [1] : vector<1x16x1xf32> to vector<1x1xf32>
    %201 = vector.shape_cast %200 : vector<1x1xf32> to vector<1x1x1xf32>
    %cst_94 = arith.constant 3.906250e-03 : f32
    %202 = vector.broadcast %cst_94 : f32 to vector<1x1x1xf32>
    %203 = arith.mulf %201, %202 : vector<1x1x1xf32>
    %cst_95 = arith.constant 9.99999974E-6 : f32
    %204 = vector.broadcast %cst_95 : f32 to vector<1x1x1xf32>
    %205 = arith.addf %203, %204 : vector<1x1x1xf32>
    %206 = math.rsqrt %205 : vector<1x1x1xf32>
    %207 = vector.broadcast %206 : vector<1x1x1xf32> to vector<1x16x16xf32>
    %208 = arith.mulf %196, %207 : vector<1x16x16xf32>
    %c0_96 = arith.constant 0 : index
    %c0_97 = arith.constant 0 : index
    %209 = vector.load %arg16[%c0_96, %c0_97] : memref<1x16xf32, #tpu.memory_space<vmem>>, vector<1x16xf32>
    %210 = vector.shape_cast %209 : vector<1x16xf32> to vector<1x1x16xf32>
    %211 = vector.broadcast %210 : vector<1x1x16xf32> to vector<1x16x16xf32>
    %212 = arith.mulf %208, %211 : vector<1x16x16xf32>
    %c0_98 = arith.constant 0 : index
    %c0_99 = arith.constant 0 : index
    %213 = vector.load %arg17[%c0_98, %c0_99] : memref<1x16xf32, #tpu.memory_space<vmem>>, vector<1x16xf32>
    %214 = vector.shape_cast %213 : vector<1x16xf32> to vector<1x1x16xf32>
    %215 = vector.broadcast %214 : vector<1x1x16xf32> to vector<1x16x16xf32>
    %216 = arith.addf %212, %215 : vector<1x16x16xf32>
    %cst_100 = arith.constant 0.000000e+00 : f32
    %217 = vector.broadcast %cst_100 : f32 to vector<1x16x16xf32>
    %218 = arith.maximumf %216, %217 : vector<1x16x16xf32>
    %219 = vector.broadcast %cst_100 : f32 to vector<1x16x16xf32>
    %220 = arith.subf %216, %219 : vector<1x16x16xf32>
    %221 = arith.cmpf one, %220, %220 : vector<1x16x16xf32>
    %222 = vector.broadcast %cst_100 : f32 to vector<1x16x16xf32>
    %223 = arith.addf %216, %222 : vector<1x16x16xf32>
    %224 = math.absf %220 : vector<1x16x16xf32>
    %cst_101 = arith.constant 0.000000e+00 : f32
    %225 = vector.broadcast %cst_101 : f32 to vector<1x16x16xf32>
    %226 = arith.subf %225, %224 : vector<1x16x16xf32>
    %227 = math.exp %226 : vector<1x16x16xf32>
    %228 = math.log1p %227 : vector<1x16x16xf32>
    %229 = arith.addf %218, %228 : vector<1x16x16xf32>
    %230 = arith.select %221, %223, %229 : vector<1x16x16xi1>, vector<1x16x16xf32>
    %231 = math.tanh %230 : vector<1x16x16xf32>
    %232 = arith.mulf %216, %231 : vector<1x16x16xf32>
    %c0_102 = arith.constant 0 : index
    %c0_103 = arith.constant 0 : index
    %c0_104 = arith.constant 0 : index
    %233 = vector.load %arg18[%c0_102, %c0_103, %c0_104] : memref<1x1x16xf32, #tpu.memory_space<vmem>>, vector<1x1x16xf32>
    %234 = vector.broadcast %233 : vector<1x1x16xf32> to vector<1x16x16xf32>
    %235 = arith.mulf %234, %232 : vector<1x16x16xf32>
    %c0_105 = arith.constant 0 : index
    %c0_106 = arith.constant 0 : index
    %c0_107 = arith.constant 0 : index
    %236 = vector.load %arg19[%c0_105, %c0_106, %c0_107] : memref<1x1x16xf32, #tpu.memory_space<vmem>>, vector<1x1x16xf32>
    %237 = vector.broadcast %236 : vector<1x1x16xf32> to vector<1x16x16xf32>
    %238 = arith.addf %235, %237 : vector<1x16x16xf32>
    %239 = vector.shape_cast %238 : vector<1x16x16xf32> to vector<16x16xf32>
    %240 = arith.truncf %239 : vector<16x16xf32> to vector<16x16xbf16>
    %c0_108 = arith.constant 0 : index
    %c0_109 = arith.constant 0 : index
    %c0_110 = arith.constant 0 : index
    %241 = vector.load %arg20[%c0_108, %c0_109, %c0_110] : memref<3x16x16xbf16, #tpu.memory_space<vmem>>, vector<1x16x16xbf16>
    %242 = vector.shape_cast %241 : vector<1x16x16xbf16> to vector<16x16xbf16>
    %cst_111 = arith.constant dense<0.000000e+00> : vector<16x16xf32>
    %243 = tpu.matmul %240, %242, %cst_111 {dimension_numbers = #tpu.dot_dimension_numbers<[1], [0], [0], [1], [0, 0, 1, 1], [], []>} : vector<16x16xbf16>, vector<16x16xbf16>, vector<16x16xf32> -> vector<16x16xf32>
    %c1_112 = arith.constant 1 : index
    %c0_113 = arith.constant 0 : index
    %c0_114 = arith.constant 0 : index
    %244 = vector.load %arg20[%c1_112, %c0_113, %c0_114] : memref<3x16x16xbf16, #tpu.memory_space<vmem>>, vector<1x16x16xbf16>
    %245 = vector.shape_cast %244 : vector<1x16x16xbf16> to vector<16x16xbf16>
    %cst_115 = arith.constant dense<0.000000e+00> : vector<16x16xf32>
    %246 = tpu.matmul %240, %245, %cst_115 {dimension_numbers = #tpu.dot_dimension_numbers<[1], [0], [0], [1], [0, 0, 1, 1], [], []>} : vector<16x16xbf16>, vector<16x16xbf16>, vector<16x16xf32> -> vector<16x16xf32>
    %c2_116 = arith.constant 2 : index
    %c0_117 = arith.constant 0 : index
    %c0_118 = arith.constant 0 : index
    %247 = vector.load %arg20[%c2_116, %c0_117, %c0_118] : memref<3x16x16xbf16, #tpu.memory_space<vmem>>, vector<1x16x16xbf16>
    %248 = vector.shape_cast %247 : vector<1x16x16xbf16> to vector<16x16xbf16>
    %cst_119 = arith.constant dense<0.000000e+00> : vector<16x16xf32>
    %249 = tpu.matmul %240, %248, %cst_119 {dimension_numbers = #tpu.dot_dimension_numbers<[1], [0], [0], [1], [0, 0, 1, 1], [], []>} : vector<16x16xbf16>, vector<16x16xbf16>, vector<16x16xf32> -> vector<16x16xf32>
    %c1_i32_120 = arith.constant 1 : i32
    %250 = tpu.dynamic_rotate %243 by %c1_i32_120 dim 0 : vector<16x16xf32>, i32 -> vector<16x16xf32>
    %cst_121 = arith.constant 0.000000e+00 : f32
    %251 = vector.shape_cast %3 : vector<16x1xi1> to vector<16x1xi1>
    %252 = vector.broadcast %251 : vector<16x1xi1> to vector<16x16xi1>
    %253 = vector.broadcast %cst_121 : f32 to vector<16x16xf32>
    %254 = arith.select %252, %250, %253 : vector<16x16xi1>, vector<16x16xf32>
    %c15_i32_122 = arith.constant 15 : i32
    %255 = tpu.dynamic_rotate %249 by %c15_i32_122 dim 0 : vector<16x16xf32>, i32 -> vector<16x16xf32>
    %cst_123 = arith.constant 0.000000e+00 : f32
    %256 = vector.shape_cast %5 : vector<16x1xi1> to vector<16x1xi1>
    %257 = vector.broadcast %256 : vector<16x1xi1> to vector<16x16xi1>
    %258 = vector.broadcast %cst_123 : f32 to vector<16x16xf32>
    %259 = arith.select %257, %255, %258 : vector<16x16xi1>, vector<16x16xf32>
    %260 = arith.addf %254, %246 : vector<16x16xf32>
    %261 = arith.addf %260, %259 : vector<16x16xf32>
    %c0_124 = arith.constant 0 : index
    %c0_125 = arith.constant 0 : index
    %262 = vector.load %arg21[%c0_124, %c0_125] : memref<1x16xf32, #tpu.memory_space<vmem>>, vector<1x16xf32>
    %263 = vector.broadcast %262 : vector<1x16xf32> to vector<16x16xf32>
    %264 = arith.addf %261, %263 : vector<16x16xf32>
    %265 = vector.shape_cast %264 : vector<16x16xf32> to vector<1x16x16xf32>
    %cst_126 = arith.constant dense<0.000000e+00> : vector<1x16xf32>
    %266 = vector.multi_reduction <add>, %265, %cst_126 [2] : vector<1x16x16xf32> to vector<1x16xf32>
    %267 = vector.shape_cast %266 : vector<1x16xf32> to vector<1x16x1xf32>
    %cst_127 = arith.constant dense<0.000000e+00> : vector<1x1xf32>
    %268 = vector.multi_reduction <add>, %267, %cst_127 [1] : vector<1x16x1xf32> to vector<1x1xf32>
    %269 = vector.shape_cast %268 : vector<1x1xf32> to vector<1x1x1xf32>
    %cst_128 = arith.constant 3.906250e-03 : f32
    %270 = vector.broadcast %cst_128 : f32 to vector<1x1x1xf32>
    %271 = arith.mulf %269, %270 : vector<1x1x1xf32>
    %272 = vector.broadcast %271 : vector<1x1x1xf32> to vector<1x16x16xf32>
    %273 = arith.subf %265, %272 : vector<1x16x16xf32>
    %274 = arith.mulf %273, %273 : vector<1x16x16xf32>
    %cst_129 = arith.constant dense<0.000000e+00> : vector<1x16xf32>
    %275 = vector.multi_reduction <add>, %274, %cst_129 [2] : vector<1x16x16xf32> to vector<1x16xf32>
    %276 = vector.shape_cast %275 : vector<1x16xf32> to vector<1x16x1xf32>
    %cst_130 = arith.constant dense<0.000000e+00> : vector<1x1xf32>
    %277 = vector.multi_reduction <add>, %276, %cst_130 [1] : vector<1x16x1xf32> to vector<1x1xf32>
    %278 = vector.shape_cast %277 : vector<1x1xf32> to vector<1x1x1xf32>
    %cst_131 = arith.constant 3.906250e-03 : f32
    %279 = vector.broadcast %cst_131 : f32 to vector<1x1x1xf32>
    %280 = arith.mulf %278, %279 : vector<1x1x1xf32>
    %cst_132 = arith.constant 9.99999974E-6 : f32
    %281 = vector.broadcast %cst_132 : f32 to vector<1x1x1xf32>
    %282 = arith.addf %280, %281 : vector<1x1x1xf32>
    %283 = math.rsqrt %282 : vector<1x1x1xf32>
    %284 = vector.broadcast %283 : vector<1x1x1xf32> to vector<1x16x16xf32>
    %285 = arith.mulf %273, %284 : vector<1x16x16xf32>
    %c0_133 = arith.constant 0 : index
    %c0_134 = arith.constant 0 : index
    %286 = vector.load %arg22[%c0_133, %c0_134] : memref<1x16xf32, #tpu.memory_space<vmem>>, vector<1x16xf32>
    %287 = vector.shape_cast %286 : vector<1x16xf32> to vector<1x1x16xf32>
    %288 = vector.broadcast %287 : vector<1x1x16xf32> to vector<1x16x16xf32>
    %289 = arith.mulf %285, %288 : vector<1x16x16xf32>
    %c0_135 = arith.constant 0 : index
    %c0_136 = arith.constant 0 : index
    %290 = vector.load %arg23[%c0_135, %c0_136] : memref<1x16xf32, #tpu.memory_space<vmem>>, vector<1x16xf32>
    %291 = vector.shape_cast %290 : vector<1x16xf32> to vector<1x1x16xf32>
    %292 = vector.broadcast %291 : vector<1x1x16xf32> to vector<1x16x16xf32>
    %293 = arith.addf %289, %292 : vector<1x16x16xf32>
    %cst_137 = arith.constant 0.000000e+00 : f32
    %294 = vector.broadcast %cst_137 : f32 to vector<1x16x16xf32>
    %295 = arith.maximumf %293, %294 : vector<1x16x16xf32>
    %296 = vector.broadcast %cst_137 : f32 to vector<1x16x16xf32>
    %297 = arith.subf %293, %296 : vector<1x16x16xf32>
    %298 = arith.cmpf one, %297, %297 : vector<1x16x16xf32>
    %299 = vector.broadcast %cst_137 : f32 to vector<1x16x16xf32>
    %300 = arith.addf %293, %299 : vector<1x16x16xf32>
    %301 = math.absf %297 : vector<1x16x16xf32>
    %cst_138 = arith.constant 0.000000e+00 : f32
    %302 = vector.broadcast %cst_138 : f32 to vector<1x16x16xf32>
    %303 = arith.subf %302, %301 : vector<1x16x16xf32>
    %304 = math.exp %303 : vector<1x16x16xf32>
    %305 = math.log1p %304 : vector<1x16x16xf32>
    %306 = arith.addf %295, %305 : vector<1x16x16xf32>
    %307 = arith.select %298, %300, %306 : vector<1x16x16xi1>, vector<1x16x16xf32>
    %308 = math.tanh %307 : vector<1x16x16xf32>
    %309 = arith.mulf %293, %308 : vector<1x16x16xf32>
    %310 = vector.shape_cast %309 : vector<1x16x16xf32> to vector<16x16xf32>
    %311 = arith.addf %310, %162 : vector<16x16xf32>
    %312 = arith.truncf %311 : vector<16x16xf32> to vector<16x16xbf16>
    %c0_139 = arith.constant 0 : index
    %c0_140 = arith.constant 0 : index
    %c0_141 = arith.constant 0 : index
    %313 = vector.load %arg24[%c0_139, %c0_140, %c0_141] : memref<3x16x4xbf16, #tpu.memory_space<vmem>>, vector<1x16x4xbf16>
    %314 = vector.shape_cast %313 : vector<1x16x4xbf16> to vector<16x4xbf16>
    %cst_142 = arith.constant dense<0.000000e+00> : vector<16x4xf32>
    %315 = tpu.matmul %312, %314, %cst_142 {dimension_numbers = #tpu.dot_dimension_numbers<[1], [0], [0], [1], [0, 0, 1, 1], [], []>} : vector<16x16xbf16>, vector<16x4xbf16>, vector<16x4xf32> -> vector<16x4xf32>
    %c1_143 = arith.constant 1 : index
    %c0_144 = arith.constant 0 : index
    %c0_145 = arith.constant 0 : index
    %316 = vector.load %arg24[%c1_143, %c0_144, %c0_145] : memref<3x16x4xbf16, #tpu.memory_space<vmem>>, vector<1x16x4xbf16>
    %317 = vector.shape_cast %316 : vector<1x16x4xbf16> to vector<16x4xbf16>
    %cst_146 = arith.constant dense<0.000000e+00> : vector<16x4xf32>
    %318 = tpu.matmul %312, %317, %cst_146 {dimension_numbers = #tpu.dot_dimension_numbers<[1], [0], [0], [1], [0, 0, 1, 1], [], []>} : vector<16x16xbf16>, vector<16x4xbf16>, vector<16x4xf32> -> vector<16x4xf32>
    %c2_147 = arith.constant 2 : index
    %c0_148 = arith.constant 0 : index
    %c0_149 = arith.constant 0 : index
    %319 = vector.load %arg24[%c2_147, %c0_148, %c0_149] : memref<3x16x4xbf16, #tpu.memory_space<vmem>>, vector<1x16x4xbf16>
    %320 = vector.shape_cast %319 : vector<1x16x4xbf16> to vector<16x4xbf16>
    %cst_150 = arith.constant dense<0.000000e+00> : vector<16x4xf32>
    %321 = tpu.matmul %312, %320, %cst_150 {dimension_numbers = #tpu.dot_dimension_numbers<[1], [0], [0], [1], [0, 0, 1, 1], [], []>} : vector<16x16xbf16>, vector<16x4xbf16>, vector<16x4xf32> -> vector<16x4xf32>
    %c1_i32_151 = arith.constant 1 : i32
    %322 = tpu.dynamic_rotate %315 by %c1_i32_151 dim 0 : vector<16x4xf32>, i32 -> vector<16x4xf32>
    %cst_152 = arith.constant 0.000000e+00 : f32
    %323 = vector.shape_cast %3 : vector<16x1xi1> to vector<16x1xi1>
    %324 = vector.broadcast %323 : vector<16x1xi1> to vector<16x4xi1>
    %325 = vector.broadcast %cst_152 : f32 to vector<16x4xf32>
    %326 = arith.select %324, %322, %325 : vector<16x4xi1>, vector<16x4xf32>
    %c15_i32_153 = arith.constant 15 : i32
    %327 = tpu.dynamic_rotate %321 by %c15_i32_153 dim 0 : vector<16x4xf32>, i32 -> vector<16x4xf32>
    %cst_154 = arith.constant 0.000000e+00 : f32
    %328 = vector.shape_cast %5 : vector<16x1xi1> to vector<16x1xi1>
    %329 = vector.broadcast %328 : vector<16x1xi1> to vector<16x4xi1>
    %330 = vector.broadcast %cst_154 : f32 to vector<16x4xf32>
    %331 = arith.select %329, %327, %330 : vector<16x4xi1>, vector<16x4xf32>
    %332 = arith.addf %326, %318 : vector<16x4xf32>
    %333 = arith.addf %332, %331 : vector<16x4xf32>
    %c0_155 = arith.constant 0 : index
    %c0_156 = arith.constant 0 : index
    %334 = vector.load %arg25[%c0_155, %c0_156] : memref<1x4xf32, #tpu.memory_space<vmem>>, vector<1x4xf32>
    %335 = vector.broadcast %334 : vector<1x4xf32> to vector<16x4xf32>
    %336 = arith.addf %333, %335 : vector<16x4xf32>
    %337 = arith.truncf %311 : vector<16x16xf32> to vector<16x16xbf16>
    %c0_157 = arith.constant 0 : index
    %c0_158 = arith.constant 0 : index
    %338 = vector.load %arg34[%c0_157, %c0_158] : memref<16x4xbf16, #tpu.memory_space<vmem>>, vector<16x4xbf16>
    %cst_159 = arith.constant dense<0.000000e+00> : vector<16x4xf32>
    %339 = tpu.matmul %337, %338, %cst_159 {dimension_numbers = #tpu.dot_dimension_numbers<[1], [0], [0], [1], [0, 0, 1, 1], [], []>} : vector<16x16xbf16>, vector<16x4xbf16>, vector<16x4xf32> -> vector<16x4xf32>
    %c0_160 = arith.constant 0 : index
    %c0_161 = arith.constant 0 : index
    %340 = vector.load %arg35[%c0_160, %c0_161] : memref<1x4xf32, #tpu.memory_space<vmem>>, vector<1x4xf32>
    %341 = vector.broadcast %340 : vector<1x4xf32> to vector<16x4xf32>
    %342 = arith.addf %339, %341 : vector<16x4xf32>
    %343 = vector.shape_cast %336 : vector<16x4xf32> to vector<1x16x4xf32>
    %cst_162 = arith.constant dense<0.000000e+00> : vector<1x16xf32>
    %344 = vector.multi_reduction <add>, %343, %cst_162 [2] : vector<1x16x4xf32> to vector<1x16xf32>
    %345 = vector.shape_cast %344 : vector<1x16xf32> to vector<1x16x1xf32>
    %cst_163 = arith.constant dense<0.000000e+00> : vector<1x1xf32>
    %346 = vector.multi_reduction <add>, %345, %cst_163 [1] : vector<1x16x1xf32> to vector<1x1xf32>
    %347 = vector.shape_cast %346 : vector<1x1xf32> to vector<1x1x1xf32>
    %cst_164 = arith.constant 1.562500e-02 : f32
    %348 = vector.broadcast %cst_164 : f32 to vector<1x1x1xf32>
    %349 = arith.mulf %347, %348 : vector<1x1x1xf32>
    %350 = vector.broadcast %349 : vector<1x1x1xf32> to vector<1x16x4xf32>
    %351 = arith.subf %343, %350 : vector<1x16x4xf32>
    %352 = arith.mulf %351, %351 : vector<1x16x4xf32>
    %cst_165 = arith.constant dense<0.000000e+00> : vector<1x16xf32>
    %353 = vector.multi_reduction <add>, %352, %cst_165 [2] : vector<1x16x4xf32> to vector<1x16xf32>
    %354 = vector.shape_cast %353 : vector<1x16xf32> to vector<1x16x1xf32>
    %cst_166 = arith.constant dense<0.000000e+00> : vector<1x1xf32>
    %355 = vector.multi_reduction <add>, %354, %cst_166 [1] : vector<1x16x1xf32> to vector<1x1xf32>
    %356 = vector.shape_cast %355 : vector<1x1xf32> to vector<1x1x1xf32>
    %cst_167 = arith.constant 1.562500e-02 : f32
    %357 = vector.broadcast %cst_167 : f32 to vector<1x1x1xf32>
    %358 = arith.mulf %356, %357 : vector<1x1x1xf32>
    %cst_168 = arith.constant 9.99999974E-6 : f32
    %359 = vector.broadcast %cst_168 : f32 to vector<1x1x1xf32>
    %360 = arith.addf %358, %359 : vector<1x1x1xf32>
    %361 = math.rsqrt %360 : vector<1x1x1xf32>
    %362 = vector.broadcast %361 : vector<1x1x1xf32> to vector<1x16x4xf32>
    %363 = arith.mulf %351, %362 : vector<1x16x4xf32>
    %c0_169 = arith.constant 0 : index
    %c0_170 = arith.constant 0 : index
    %364 = vector.load %arg26[%c0_169, %c0_170] : memref<1x4xf32, #tpu.memory_space<vmem>>, vector<1x4xf32>
    %365 = vector.shape_cast %364 : vector<1x4xf32> to vector<1x1x4xf32>
    %366 = vector.broadcast %365 : vector<1x1x4xf32> to vector<1x16x4xf32>
    %367 = arith.mulf %363, %366 : vector<1x16x4xf32>
    %c0_171 = arith.constant 0 : index
    %c0_172 = arith.constant 0 : index
    %368 = vector.load %arg27[%c0_171, %c0_172] : memref<1x4xf32, #tpu.memory_space<vmem>>, vector<1x4xf32>
    %369 = vector.shape_cast %368 : vector<1x4xf32> to vector<1x1x4xf32>
    %370 = vector.broadcast %369 : vector<1x1x4xf32> to vector<1x16x4xf32>
    %371 = arith.addf %367, %370 : vector<1x16x4xf32>
    %cst_173 = arith.constant 0.000000e+00 : f32
    %372 = vector.broadcast %cst_173 : f32 to vector<1x16x4xf32>
    %373 = arith.maximumf %371, %372 : vector<1x16x4xf32>
    %374 = vector.broadcast %cst_173 : f32 to vector<1x16x4xf32>
    %375 = arith.subf %371, %374 : vector<1x16x4xf32>
    %376 = arith.cmpf one, %375, %375 : vector<1x16x4xf32>
    %377 = vector.broadcast %cst_173 : f32 to vector<1x16x4xf32>
    %378 = arith.addf %371, %377 : vector<1x16x4xf32>
    %379 = math.absf %375 : vector<1x16x4xf32>
    %cst_174 = arith.constant 0.000000e+00 : f32
    %380 = vector.broadcast %cst_174 : f32 to vector<1x16x4xf32>
    %381 = arith.subf %380, %379 : vector<1x16x4xf32>
    %382 = math.exp %381 : vector<1x16x4xf32>
    %383 = math.log1p %382 : vector<1x16x4xf32>
    %384 = arith.addf %373, %383 : vector<1x16x4xf32>
    %385 = arith.select %376, %378, %384 : vector<1x16x4xi1>, vector<1x16x4xf32>
    %386 = math.tanh %385 : vector<1x16x4xf32>
    %387 = arith.mulf %371, %386 : vector<1x16x4xf32>
    %c0_175 = arith.constant 0 : index
    %c0_176 = arith.constant 0 : index
    %c0_177 = arith.constant 0 : index
    %388 = vector.load %arg28[%c0_175, %c0_176, %c0_177] : memref<1x1x4xf32, #tpu.memory_space<vmem>>, vector<1x1x4xf32>
    %389 = vector.broadcast %388 : vector<1x1x4xf32> to vector<1x16x4xf32>
    %390 = arith.mulf %389, %387 : vector<1x16x4xf32>
    %c0_178 = arith.constant 0 : index
    %c0_179 = arith.constant 0 : index
    %c0_180 = arith.constant 0 : index
    %391 = vector.load %arg29[%c0_178, %c0_179, %c0_180] : memref<1x1x4xf32, #tpu.memory_space<vmem>>, vector<1x1x4xf32>
    %392 = vector.broadcast %391 : vector<1x1x4xf32> to vector<1x16x4xf32>
    %393 = arith.addf %390, %392 : vector<1x16x4xf32>
    %394 = vector.shape_cast %393 : vector<1x16x4xf32> to vector<16x4xf32>
    %395 = arith.truncf %394 : vector<16x4xf32> to vector<16x4xbf16>
    %c0_181 = arith.constant 0 : index
    %c0_182 = arith.constant 0 : index
    %c0_183 = arith.constant 0 : index
    %396 = vector.load %arg30[%c0_181, %c0_182, %c0_183] : memref<3x4x4xbf16, #tpu.memory_space<vmem>>, vector<1x4x4xbf16>
    %397 = vector.shape_cast %396 : vector<1x4x4xbf16> to vector<4x4xbf16>
    %cst_184 = arith.constant dense<0.000000e+00> : vector<16x4xf32>
    %398 = tpu.matmul %395, %397, %cst_184 {dimension_numbers = #tpu.dot_dimension_numbers<[1], [0], [0], [1], [0, 0, 1, 1], [], []>} : vector<16x4xbf16>, vector<4x4xbf16>, vector<16x4xf32> -> vector<16x4xf32>
    %c1_185 = arith.constant 1 : index
    %c0_186 = arith.constant 0 : index
    %c0_187 = arith.constant 0 : index
    %399 = vector.load %arg30[%c1_185, %c0_186, %c0_187] : memref<3x4x4xbf16, #tpu.memory_space<vmem>>, vector<1x4x4xbf16>
    %400 = vector.shape_cast %399 : vector<1x4x4xbf16> to vector<4x4xbf16>
    %cst_188 = arith.constant dense<0.000000e+00> : vector<16x4xf32>
    %401 = tpu.matmul %395, %400, %cst_188 {dimension_numbers = #tpu.dot_dimension_numbers<[1], [0], [0], [1], [0, 0, 1, 1], [], []>} : vector<16x4xbf16>, vector<4x4xbf16>, vector<16x4xf32> -> vector<16x4xf32>
    %c2_189 = arith.constant 2 : index
    %c0_190 = arith.constant 0 : index
    %c0_191 = arith.constant 0 : index
    %402 = vector.load %arg30[%c2_189, %c0_190, %c0_191] : memref<3x4x4xbf16, #tpu.memory_space<vmem>>, vector<1x4x4xbf16>
    %403 = vector.shape_cast %402 : vector<1x4x4xbf16> to vector<4x4xbf16>
    %cst_192 = arith.constant dense<0.000000e+00> : vector<16x4xf32>
    %404 = tpu.matmul %395, %403, %cst_192 {dimension_numbers = #tpu.dot_dimension_numbers<[1], [0], [0], [1], [0, 0, 1, 1], [], []>} : vector<16x4xbf16>, vector<4x4xbf16>, vector<16x4xf32> -> vector<16x4xf32>
    %c1_i32_193 = arith.constant 1 : i32
    %405 = tpu.dynamic_rotate %398 by %c1_i32_193 dim 0 : vector<16x4xf32>, i32 -> vector<16x4xf32>
    %cst_194 = arith.constant 0.000000e+00 : f32
    %406 = vector.shape_cast %3 : vector<16x1xi1> to vector<16x1xi1>
    %407 = vector.broadcast %406 : vector<16x1xi1> to vector<16x4xi1>
    %408 = vector.broadcast %cst_194 : f32 to vector<16x4xf32>
    %409 = arith.select %407, %405, %408 : vector<16x4xi1>, vector<16x4xf32>
    %c15_i32_195 = arith.constant 15 : i32
    %410 = tpu.dynamic_rotate %404 by %c15_i32_195 dim 0 : vector<16x4xf32>, i32 -> vector<16x4xf32>
    %cst_196 = arith.constant 0.000000e+00 : f32
    %411 = vector.shape_cast %5 : vector<16x1xi1> to vector<16x1xi1>
    %412 = vector.broadcast %411 : vector<16x1xi1> to vector<16x4xi1>
    %413 = vector.broadcast %cst_196 : f32 to vector<16x4xf32>
    %414 = arith.select %412, %410, %413 : vector<16x4xi1>, vector<16x4xf32>
    %415 = arith.addf %409, %401 : vector<16x4xf32>
    %416 = arith.addf %415, %414 : vector<16x4xf32>
    %c0_197 = arith.constant 0 : index
    %c0_198 = arith.constant 0 : index
    %417 = vector.load %arg31[%c0_197, %c0_198] : memref<1x4xf32, #tpu.memory_space<vmem>>, vector<1x4xf32>
    %418 = vector.broadcast %417 : vector<1x4xf32> to vector<16x4xf32>
    %419 = arith.addf %416, %418 : vector<16x4xf32>
    %420 = vector.shape_cast %419 : vector<16x4xf32> to vector<1x16x4xf32>
    %cst_199 = arith.constant dense<0.000000e+00> : vector<1x16xf32>
    %421 = vector.multi_reduction <add>, %420, %cst_199 [2] : vector<1x16x4xf32> to vector<1x16xf32>
    %422 = vector.shape_cast %421 : vector<1x16xf32> to vector<1x16x1xf32>
    %cst_200 = arith.constant dense<0.000000e+00> : vector<1x1xf32>
    %423 = vector.multi_reduction <add>, %422, %cst_200 [1] : vector<1x16x1xf32> to vector<1x1xf32>
    %424 = vector.shape_cast %423 : vector<1x1xf32> to vector<1x1x1xf32>
    %cst_201 = arith.constant 1.562500e-02 : f32
    %425 = vector.broadcast %cst_201 : f32 to vector<1x1x1xf32>
    %426 = arith.mulf %424, %425 : vector<1x1x1xf32>
    %427 = vector.broadcast %426 : vector<1x1x1xf32> to vector<1x16x4xf32>
    %428 = arith.subf %420, %427 : vector<1x16x4xf32>
    %429 = arith.mulf %428, %428 : vector<1x16x4xf32>
    %cst_202 = arith.constant dense<0.000000e+00> : vector<1x16xf32>
    %430 = vector.multi_reduction <add>, %429, %cst_202 [2] : vector<1x16x4xf32> to vector<1x16xf32>
    %431 = vector.shape_cast %430 : vector<1x16xf32> to vector<1x16x1xf32>
    %cst_203 = arith.constant dense<0.000000e+00> : vector<1x1xf32>
    %432 = vector.multi_reduction <add>, %431, %cst_203 [1] : vector<1x16x1xf32> to vector<1x1xf32>
    %433 = vector.shape_cast %432 : vector<1x1xf32> to vector<1x1x1xf32>
    %cst_204 = arith.constant 1.562500e-02 : f32
    %434 = vector.broadcast %cst_204 : f32 to vector<1x1x1xf32>
    %435 = arith.mulf %433, %434 : vector<1x1x1xf32>
    %cst_205 = arith.constant 9.99999974E-6 : f32
    %436 = vector.broadcast %cst_205 : f32 to vector<1x1x1xf32>
    %437 = arith.addf %435, %436 : vector<1x1x1xf32>
    %438 = math.rsqrt %437 : vector<1x1x1xf32>
    %439 = vector.broadcast %438 : vector<1x1x1xf32> to vector<1x16x4xf32>
    %440 = arith.mulf %428, %439 : vector<1x16x4xf32>
    %c0_206 = arith.constant 0 : index
    %c0_207 = arith.constant 0 : index
    %441 = vector.load %arg32[%c0_206, %c0_207] : memref<1x4xf32, #tpu.memory_space<vmem>>, vector<1x4xf32>
    %442 = vector.shape_cast %441 : vector<1x4xf32> to vector<1x1x4xf32>
    %443 = vector.broadcast %442 : vector<1x1x4xf32> to vector<1x16x4xf32>
    %444 = arith.mulf %440, %443 : vector<1x16x4xf32>
    %c0_208 = arith.constant 0 : index
    %c0_209 = arith.constant 0 : index
    %445 = vector.load %arg33[%c0_208, %c0_209] : memref<1x4xf32, #tpu.memory_space<vmem>>, vector<1x4xf32>
    %446 = vector.shape_cast %445 : vector<1x4xf32> to vector<1x1x4xf32>
    %447 = vector.broadcast %446 : vector<1x1x4xf32> to vector<1x16x4xf32>
    %448 = arith.addf %444, %447 : vector<1x16x4xf32>
    %cst_210 = arith.constant 0.000000e+00 : f32
    %449 = vector.broadcast %cst_210 : f32 to vector<1x16x4xf32>
    %450 = arith.maximumf %448, %449 : vector<1x16x4xf32>
    %451 = vector.broadcast %cst_210 : f32 to vector<1x16x4xf32>
    %452 = arith.subf %448, %451 : vector<1x16x4xf32>
    %453 = arith.cmpf one, %452, %452 : vector<1x16x4xf32>
    %454 = vector.broadcast %cst_210 : f32 to vector<1x16x4xf32>
    %455 = arith.addf %448, %454 : vector<1x16x4xf32>
    %456 = math.absf %452 : vector<1x16x4xf32>
    %cst_211 = arith.constant 0.000000e+00 : f32
    %457 = vector.broadcast %cst_211 : f32 to vector<1x16x4xf32>
    %458 = arith.subf %457, %456 : vector<1x16x4xf32>
    %459 = math.exp %458 : vector<1x16x4xf32>
    %460 = math.log1p %459 : vector<1x16x4xf32>
    %461 = arith.addf %450, %460 : vector<1x16x4xf32>
    %462 = arith.select %453, %455, %461 : vector<1x16x4xi1>, vector<1x16x4xf32>
    %463 = math.tanh %462 : vector<1x16x4xf32>
    %464 = arith.mulf %448, %463 : vector<1x16x4xf32>
    %465 = vector.shape_cast %464 : vector<1x16x4xf32> to vector<16x4xf32>
    %466 = arith.addf %465, %342 : vector<16x4xf32>
    %467 = vector.shape_cast %466 : vector<16x4xf32> to vector<1x16x4xf32>
    %c0_212 = arith.constant 0 : index
    %c0_213 = arith.constant 0 : index
    %c0_214 = arith.constant 0 : index
    %468 = vector.load %arg36[%c0_212, %c0_213, %c0_214] : memref<1x16x4xf32, #tpu.memory_space<vmem>>, vector<1x16x4xf32>
    tpu.vector_store %arg36[%c0_212, %c0_213, %c0_214], %467 {strides = array<i32>} : memref<1x16x4xf32, #tpu.memory_space<vmem>>, vector<1x16x4xf32>,
    return
  }
  func.func @transform_0(%arg0: i32) -> (i32, i32, i32) {
    %c0_i32 = arith.constant 0 : i32
    %c0_i32_0 = arith.constant 0 : i32
    %c0_i32_1 = arith.constant 0 : i32
    return %arg0, %c0_i32, %c0_i32_0 : i32, i32, i32
  }
  func.func @transform_1(%arg0: i32) -> (i32, i32, i32) {
    %c0_i32 = arith.constant 0 : i32
    %c0_i32_0 = arith.constant 0 : i32
    %c0_i32_1 = arith.constant 0 : i32
    %c0_i32_2 = arith.constant 0 : i32
    return %c0_i32, %c0_i32_0, %c0_i32_1 : i32, i32, i32
  }
  func.func @transform_2(%arg0: i32) -> (i32, i32) {
    %c0_i32 = arith.constant 0 : i32
    %c0_i32_0 = arith.constant 0 : i32
    %c0_i32_1 = arith.constant 0 : i32
    return %c0_i32, %c0_i32_0 : i32, i32
  }
  func.func @transform_3(%arg0: i32) -> (i32, i32) {
    %c0_i32 = arith.constant 0 : i32
    %c0_i32_0 = arith.constant 0 : i32
    %c0_i32_1 = arith.constant 0 : i32
    return %c0_i32, %c0_i32_0 : i32, i32
  }
  func.func @transform_4(%arg0: i32) -> (i32, i32) {
    %c0_i32 = arith.constant 0 : i32
    %c0_i32_0 = arith.constant 0 : i32
    %c0_i32_1 = arith.constant 0 : i32
    return %c0_i32, %c0_i32_0 : i32, i32
  }
  func.func @transform_5(%arg0: i32) -> (i32, i32, i32) {
    %c0_i32 = arith.constant 0 : i32
    %c0_i32_0 = arith.constant 0 : i32
    %c0_i32_1 = arith.constant 0 : i32
    return %arg0, %c0_i32, %c0_i32_0 : i32, i32, i32
  }
  func.func @transform_6(%arg0: i32) -> (i32, i32, i32) {
    %c0_i32 = arith.constant 0 : i32
    %c0_i32_0 = arith.constant 0 : i32
    %c0_i32_1 = arith.constant 0 : i32
    return %arg0, %c0_i32, %c0_i32_0 : i32, i32, i32
  }
  func.func @transform_7(%arg0: i32) -> (i32, i32, i32) {
    %c0_i32 = arith.constant 0 : i32
    %c0_i32_0 = arith.constant 0 : i32
    %c0_i32_1 = arith.constant 0 : i32
    %c0_i32_2 = arith.constant 0 : i32
    return %c0_i32, %c0_i32_0, %c0_i32_1 : i32, i32, i32
  }
  func.func @transform_8(%arg0: i32) -> (i32, i32) {
    %c0_i32 = arith.constant 0 : i32
    %c0_i32_0 = arith.constant 0 : i32
    %c0_i32_1 = arith.constant 0 : i32
    return %c0_i32, %c0_i32_0 : i32, i32
  }
  func.func @transform_9(%arg0: i32) -> (i32, i32) {
    %c0_i32 = arith.constant 0 : i32
    %c0_i32_0 = arith.constant 0 : i32
    %c0_i32_1 = arith.constant 0 : i32
    return %c0_i32, %c0_i32_0 : i32, i32
  }
  func.func @transform_10(%arg0: i32) -> (i32, i32) {
    %c0_i32 = arith.constant 0 : i32
    %c0_i32_0 = arith.constant 0 : i32
    %c0_i32_1 = arith.constant 0 : i32
    return %c0_i32, %c0_i32_0 : i32, i32
  }
  func.func @transform_11(%arg0: i32) -> (i32, i32) {
    %c0_i32 = arith.constant 0 : i32
    %c0_i32_0 = arith.constant 0 : i32
    %c0_i32_1 = arith.constant 0 : i32
    return %c0_i32, %c0_i32_0 : i32, i32
  }
  func.func @transform_12(%arg0: i32) -> (i32, i32) {
    %c0_i32 = arith.constant 0 : i32
    %c0_i32_0 = arith.constant 0 : i32
    %c0_i32_1 = arith.constant 0 : i32
    return %c0_i32, %c0_i32_0 : i32, i32
  }
  func.func @transform_13(%arg0: i32) -> (i32, i32, i32) {
    %c0_i32 = arith.constant 0 : i32
    %c0_i32_0 = arith.constant 0 : i32
    %c0_i32_1 = arith.constant 0 : i32
    %c0_i32_2 = arith.constant 0 : i32
    return %c0_i32, %c0_i32_0, %c0_i32_1 : i32, i32, i32
  }
  func.func @transform_14(%arg0: i32) -> (i32, i32) {
    %c0_i32 = arith.constant 0 : i32
    %c0_i32_0 = arith.constant 0 : i32
    %c0_i32_1 = arith.constant 0 : i32
    return %c0_i32, %c0_i32_0 : i32, i32
  }
  func.func @transform_15(%arg0: i32) -> (i32, i32) {
    %c0_i32 = arith.constant 0 : i32
    %c0_i32_0 = arith.constant 0 : i32
    %c0_i32_1 = arith.constant 0 : i32
    return %c0_i32, %c0_i32_0 : i32, i32
  }
  func.func @transform_16(%arg0: i32) -> (i32, i32) {
    %c0_i32 = arith.constant 0 : i32
    %c0_i32_0 = arith.constant 0 : i32
    %c0_i32_1 = arith.constant 0 : i32
    return %c0_i32, %c0_i32_0 : i32, i32
  }
  func.func @transform_17(%arg0: i32) -> (i32, i32, i32) {
    %c0_i32 = arith.constant 0 : i32
    %c0_i32_0 = arith.constant 0 : i32
    %c0_i32_1 = arith.constant 0 : i32
    return %arg0, %c0_i32, %c0_i32_0 : i32, i32, i32
  }
  func.func @transform_18(%arg0: i32) -> (i32, i32, i32) {
    %c0_i32 = arith.constant 0 : i32
    %c0_i32_0 = arith.constant 0 : i32
    %c0_i32_1 = arith.constant 0 : i32
    return %arg0, %c0_i32, %c0_i32_0 : i32, i32, i32
  }
  func.func @transform_19(%arg0: i32) -> (i32, i32, i32) {
    %c0_i32 = arith.constant 0 : i32
    %c0_i32_0 = arith.constant 0 : i32
    %c0_i32_1 = arith.constant 0 : i32
    %c0_i32_2 = arith.constant 0 : i32
    return %c0_i32, %c0_i32_0, %c0_i32_1 : i32, i32, i32
  }
  func.func @transform_20(%arg0: i32) -> (i32, i32) {
    %c0_i32 = arith.constant 0 : i32
    %c0_i32_0 = arith.constant 0 : i32
    %c0_i32_1 = arith.constant 0 : i32
    return %c0_i32, %c0_i32_0 : i32, i32
  }
  func.func @transform_21(%arg0: i32) -> (i32, i32) {
    %c0_i32 = arith.constant 0 : i32
    %c0_i32_0 = arith.constant 0 : i32
    %c0_i32_1 = arith.constant 0 : i32
    return %c0_i32, %c0_i32_0 : i32, i32
  }
  func.func @transform_22(%arg0: i32) -> (i32, i32) {
    %c0_i32 = arith.constant 0 : i32
    %c0_i32_0 = arith.constant 0 : i32
    %c0_i32_1 = arith.constant 0 : i32
    return %c0_i32, %c0_i32_0 : i32, i32
  }
  func.func @transform_23(%arg0: i32) -> (i32, i32, i32) {
    %c0_i32 = arith.constant 0 : i32
    %c0_i32_0 = arith.constant 0 : i32
    %c0_i32_1 = arith.constant 0 : i32
    %c0_i32_2 = arith.constant 0 : i32
    return %c0_i32, %c0_i32_0, %c0_i32_1 : i32, i32, i32
  }
  func.func @transform_24(%arg0: i32) -> (i32, i32) {
    %c0_i32 = arith.constant 0 : i32
    %c0_i32_0 = arith.constant 0 : i32
    %c0_i32_1 = arith.constant 0 : i32
    return %c0_i32, %c0_i32_0 : i32, i32
  }
  func.func @transform_25(%arg0: i32) -> (i32, i32) {
    %c0_i32 = arith.constant 0 : i32
    %c0_i32_0 = arith.constant 0 : i32
    %c0_i32_1 = arith.constant 0 : i32
    return %c0_i32, %c0_i32_0 : i32, i32
  }
  func.func @transform_26(%arg0: i32) -> (i32, i32) {
    %c0_i32 = arith.constant 0 : i32
    %c0_i32_0 = arith.constant 0 : i32
    %c0_i32_1 = arith.constant 0 : i32
    return %c0_i32, %c0_i32_0 : i32, i32
  }
  func.func @transform_27(%arg0: i32) -> (i32, i32, i32) {
    %c0_i32 = arith.constant 0 : i32
    %c0_i32_0 = arith.constant 0 : i32
    %c0_i32_1 = arith.constant 0 : i32
    return %arg0, %c0_i32, %c0_i32_0 : i32, i32, i32
  }
  func.func @transform_28(%arg0: i32) -> (i32, i32, i32) {
    %c0_i32 = arith.constant 0 : i32
    %c0_i32_0 = arith.constant 0 : i32
    %c0_i32_1 = arith.constant 0 : i32
    return %arg0, %c0_i32, %c0_i32_0 : i32, i32, i32
  }
  func.func @transform_29(%arg0: i32) -> (i32, i32, i32) {
    %c0_i32 = arith.constant 0 : i32
    %c0_i32_0 = arith.constant 0 : i32
    %c0_i32_1 = arith.constant 0 : i32
    %c0_i32_2 = arith.constant 0 : i32
    return %c0_i32, %c0_i32_0, %c0_i32_1 : i32, i32, i32
  }
  func.func @transform_30(%arg0: i32) -> (i32, i32) {
    %c0_i32 = arith.constant 0 : i32
    %c0_i32_0 = arith.constant 0 : i32
    %c0_i32_1 = arith.constant 0 : i32
    return %c0_i32, %c0_i32_0 : i32, i32
  }
  func.func @transform_31(%arg0: i32) -> (i32, i32) {
    %c0_i32 = arith.constant 0 : i32
    %c0_i32_0 = arith.constant 0 : i32
    %c0_i32_1 = arith.constant 0 : i32
    return %c0_i32, %c0_i32_0 : i32, i32
  }
  func.func @transform_32(%arg0: i32) -> (i32, i32) {
    %c0_i32 = arith.constant 0 : i32
    %c0_i32_0 = arith.constant 0 : i32
    %c0_i32_1 = arith.constant 0 : i32
    return %c0_i32, %c0_i32_0 : i32, i32
  }
  func.func @transform_33(%arg0: i32) -> (i32, i32) {
    %c0_i32 = arith.constant 0 : i32
    %c0_i32_0 = arith.constant 0 : i32
    %c0_i32_1 = arith.constant 0 : i32
    return %c0_i32, %c0_i32_0 : i32, i32
  }
  func.func @transform_34(%arg0: i32) -> (i32, i32) {
    %c0_i32 = arith.constant 0 : i32
    %c0_i32_0 = arith.constant 0 : i32
    %c0_i32_1 = arith.constant 0 : i32
    return %c0_i32, %c0_i32_0 : i32, i32
  }
  func.func @transform_35(%arg0: i32) -> (i32, i32, i32) {
    %c0_i32 = arith.constant 0 : i32
    %c0_i32_0 = arith.constant 0 : i32
    %c0_i32_1 = arith.constant 0 : i32
    return %arg0, %c0_i32, %c0_i32_0 : i32, i32, i32
  }
}

module attributes {stable_mosaic.version = 11 : i64} {
  func.func @kernel(%arg0: i32, %arg1: memref<1x16x4xf32, #tpu.memory_space<vmem>>, %arg2: memref<3x4x16xbf16, #tpu.memory_space<vmem>>, %arg3: memref<1x16xf32, #tpu.memory_space<vmem>>, %arg4: memref<1x16xf32, #tpu.memory_space<vmem>>, %arg5: memref<1x16xf32, #tpu.memory_space<vmem>>, %arg6: memref<1x1x16xf32, #tpu.memory_space<vmem>>, %arg7: memref<1x1x16xf32, #tpu.memory_space<vmem>>, %arg8: memref<3x16x16xbf16, #tpu.memory_space<vmem>>, %arg9: memref<1x16xf32, #tpu.memory_space<vmem>>, %arg10: memref<1x16xf32, #tpu.memory_space<vmem>>, %arg11: memref<1x16xf32, #tpu.memory_space<vmem>>, %arg12: memref<4x16xbf16, #tpu.memory_space<vmem>>, %arg13: memref<1x16xf32, #tpu.memory_space<vmem>>, %arg14: memref<3x16x16xbf16, #tpu.memory_space<vmem>>, %arg15: memref<1x16xf32, #tpu.memory_space<vmem>>, %arg16: memref<1x16xf32, #tpu.memory_space<vmem>>, %arg17: memref<1x16xf32, #tpu.memory_space<vmem>>, %arg18: memref<1x1x16xf32, #tpu.memory_space<vmem>>, %arg19: memref<1x1x16xf32, #tpu.memory_space<vmem>>, %arg20: memref<3x16x16xbf16, #tpu.memory_space<vmem>>, %arg21: memref<1x16xf32, #tpu.memory_space<vmem>>, %arg22: memref<1x16xf32, #tpu.memory_space<vmem>>, %arg23: memref<1x16xf32, #tpu.memory_space<vmem>>, %arg24: memref<3x16x4xbf16, #tpu.memory_space<vmem>>, %arg25: memref<1x4xf32, #tpu.memory_space<vmem>>, %arg26: memref<1x4xf32, #tpu.memory_space<vmem>>, %arg27: memref<1x4xf32, #tpu.memory_space<vmem>>, %arg28: memref<1x1x4xf32, #tpu.memory_space<vmem>>, %arg29: memref<1x1x4xf32, #tpu.memory_space<vmem>>, %arg30: memref<3x4x4xbf16, #tpu.memory_space<vmem>>, %arg31: memref<1x4xf32, #tpu.memory_space<vmem>>, %arg32: memref<1x4xf32, #tpu.memory_space<vmem>>, %arg33: memref<1x4xf32, #tpu.memory_space<vmem>>, %arg34: memref<16x4xbf16, #tpu.memory_space<vmem>>, %arg35: memref<1x4xf32, #tpu.memory_space<vmem>>, %arg36: memref<1x16x4xf32, #tpu.memory_space<vmem>>) attributes {dimension_semantics = [#tpu.dimension_semantics<parallel>], iteration_bounds = array<i64: 2>, scalar_prefetch = 0 : i64, scratch_operands = 0 : i64, tpu.core_type = #tpu.core_type<tc>, window_params = [{transform_indices = @transform_0, window_bounds = array<i64: 1, 16, 4>}, {pipeline_mode = #tpu.pipeline_mode<synchronous>, transform_indices = @transform_1, window_bounds = array<i64: 3, 4, 16>}, {pipeline_mode = #tpu.pipeline_mode<synchronous>, transform_indices = @transform_2, window_bounds = array<i64: 1, 16>}, {pipeline_mode = #tpu.pipeline_mode<synchronous>, transform_indices = @transform_3, window_bounds = array<i64: 1, 16>}, {pipeline_mode = #tpu.pipeline_mode<synchronous>, transform_indices = @transform_4, window_bounds = array<i64: 1, 16>}, {transform_indices = @transform_5, window_bounds = array<i64: 1, 1, 16>}, {transform_indices = @transform_6, window_bounds = array<i64: 1, 1, 16>}, {pipeline_mode = #tpu.pipeline_mode<synchronous>, transform_indices = @transform_7, window_bounds = array<i64: 3, 16, 16>}, {pipeline_mode = #tpu.pipeline_mode<synchronous>, transform_indices = @transform_8, window_bounds = array<i64: 1, 16>}, {pipeline_mode = #tpu.pipeline_mode<synchronous>, transform_indices = @transform_9, window_bounds = array<i64: 1, 16>}, {pipeline_mode = #tpu.pipeline_mode<synchronous>, transform_indices = @transform_10, window_bounds = array<i64: 1, 16>}, {pipeline_mode = #tpu.pipeline_mode<synchronous>, transform_indices = @transform_11, window_bounds = array<i64: 4, 16>}, {pipeline_mode = #tpu.pipeline_mode<synchronous>, transform_indices = @transform_12, window_bounds = array<i64: 1, 16>}, {pipeline_mode = #tpu.pipeline_mode<synchronous>, transform_indices = @transform_13, window_bounds = array<i64: 3, 16, 16>}, {pipeline_mode = #tpu.pipeline_mode<synchronous>, transform_indices = @transform_14, window_bounds = array<i64: 1, 16>}, {pipeline_mode = #tpu.pipeline_mode<synchronous>, transform_indices = @transform_15, window_bounds = array<i64: 1, 16>}, {pipeline_mode = #tpu.pipeline_mode<synchronous>, transform_indices = @transform_16, window_bounds = array<i64: 1, 16>}, {transform_indices = @transform_17, window_bounds = array<i64: 1, 1, 16>}, {transform_indices = @transform_18, window_bounds = array<i64: 1, 1, 16>}, {pipeline_mode = #tpu.pipeline_mode<synchronous>, transform_indices = @transform_19, window_bounds = array<i64: 3, 16, 16>}, {pipeline_mode = #tpu.pipeline_mode<synchronous>, transform_indices = @transform_20, window_bounds = array<i64: 1, 16>}, {pipeline_mode = #tpu.pipeline_mode<synchronous>, transform_indices = @transform_21, window_bounds = array<i64: 1, 16>}, {pipeline_mode = #tpu.pipeline_mode<synchronous>, transform_indices = @transform_22, window_bounds = array<i64: 1, 16>}, {pipeline_mode = #tpu.pipeline_mode<synchronous>, transform_indices = @transform_23, window_bounds = array<i64: 3, 16, 4>}, {pipeline_mode = #tpu.pipeline_mode<synchronous>, transform_indices = @transform_24, window_bounds = array<i64: 1, 4>}, {pipeline_mode = #tpu.pipeline_mode<synchronous>, transform_indices = @transform_25, window_bounds = array<i64: 1, 4>}, {pipeline_mode = #tpu.pipeline_mode<synchronous>, transform_indices = @transform_26, window_bounds = array<i64: 1, 4>}, {transform_indices = @transform_27, window_bounds = array<i64: 1, 1, 4>}, {transform_indices = @transform_28, window_bounds = array<i64: 1, 1, 4>}, {pipeline_mode = #tpu.pipeline_mode<synchronous>, transform_indices = @transform_29, window_bounds = array<i64: 3, 4, 4>}, {pipeline_mode = #tpu.pipeline_mode<synchronous>, transform_indices = @transform_30, window_bounds = array<i64: 1, 4>}, {pipeline_mode = #tpu.pipeline_mode<synchronous>, transform_indices = @transform_31, window_bounds = array<i64: 1, 4>}, {pipeline_mode = #tpu.pipeline_mode<synchronous>, transform_indices = @transform_32, window_bounds = array<i64: 1, 4>}, {pipeline_mode = #tpu.pipeline_mode<synchronous>, transform_indices = @transform_33, window_bounds = array<i64: 16, 4>}, {pipeline_mode = #tpu.pipeline_mode<synchronous>, transform_indices = @transform_34, window_bounds = array<i64: 1, 4>}, {transform_indices = @transform_35, window_bounds = array<i64: 1, 16, 4>}]} {
    %0 = tpu.iota {dimensions = array<i32: 1>} : vector<1x16x1xi32>
    %1 = vector.shape_cast %0 : vector<1x16x1xi32> to vector<16x1xi32>
    %c0_i32 = arith.constant 0 : i32
    %2 = vector.broadcast %c0_i32 : i32 to vector<16x1xi32>
    %3 = arith.cmpi ne, %1, %2 : vector<16x1xi32>
    %c15_i32 = arith.constant 15 : i32
    %4 = vector.broadcast %c15_i32 : i32 to vector<16x1xi32>
    %5 = arith.cmpi ne, %1, %4 : vector<16x1xi32>
    %c0 = arith.constant 0 : index
    %c0_0 = arith.constant 0 : index
    %c0_1 = arith.constant 0 : index
    %6 = vector.load %arg1[%c0, %c0_0, %c0_1] : memref<1x16x4xf32, #tpu.memory_space<vmem>>, vector<1x16x4xf32>
    %7 = vector.shape_cast %6 : vector<1x16x4xf32> to vector<16x4xf32>
    %8 = arith.truncf %7 : vector<16x4xf32> to vector<16x4xbf16>
    %c0_2 = arith.constant 0 : index
    %c0_3 = arith.constant 0 : index
    %c0_4 = arith.constant 0 : index
    %9 = vector.load %arg2[%c0_2, %c0_3, %c0_4] : memref<3x4x16xbf16, #tpu.memory_space<vmem>>, vector<1x4x16xbf16>
    %10 = vector.shape_cast %9 : vector<1x4x16xbf16> to vector<4x16xbf16>
    %cst = arith.constant dense<0.000000e+00> : vector<16x16xf32>
    %11 = tpu.matmul %8, %10, %cst {dimension_numbers = #tpu.dot_dimension_numbers<[1], [0], [0], [1], [0, 0, 1, 1], [], []>} : vector<16x4xbf16>, vector<4x16xbf16>, vector<16x16xf32> -> vector<16x16xf32>
    %c1 = arith.constant 1 : index
    %c0_5 = arith.constant 0 : index
    %c0_6 = arith.constant 0 : index
    %12 = vector.load %arg2[%c1, %c0_5, %c0_6] : memref<3x4x16xbf16, #tpu.memory_space<vmem>>, vector<1x4x16xbf16>
    %13 = vector.shape_cast %12 : vector<1x4x16xbf16> to vector<4x16xbf16>
    %cst_7 = arith.constant dense<0.000000e+00> : vector<16x16xf32>
    %14 = tpu.matmul %8, %13, %cst_7 {dimension_numbers = #tpu.dot_dimension_numbers<[1], [0], [0], [1], [0, 0, 1, 1], [], []>} : vector<16x4xbf16>, vector<4x16xbf16>, vector<16x16xf32> -> vector<16x16xf32>
    %c2 = arith.constant 2 : index
    %c0_8 = arith.constant 0 : index
    %c0_9 = arith.constant 0 : index
    %15 = vector.load %arg2[%c2, %c0_8, %c0_9] : memref<3x4x16xbf16, #tpu.memory_space<vmem>>, vector<1x4x16xbf16>
    %16 = vector.shape_cast %15 : vector<1x4x16xbf16> to vector<4x16xbf16>
    %cst_10 = arith.constant dense<0.000000e+00> : vector<16x16xf32>
    %17 = tpu.matmul %8, %16, %cst_10 {dimension_numbers = #tpu.dot_dimension_numbers<[1], [0], [0], [1], [0, 0, 1, 1], [], []>} : vector<16x4xbf16>, vector<4x16xbf16>, vector<16x16xf32> -> vector<16x16xf32>
    %c1_i32 = arith.constant 1 : i32
    %18 = tpu.dynamic_rotate %11 by %c1_i32 dim 0 : vector<16x16xf32>, i32 -> vector<16x16xf32>
    %cst_11 = arith.constant 0.000000e+00 : f32
    %19 = vector.shape_cast %3 : vector<16x1xi1> to vector<16x1xi1>
    %20 = vector.broadcast %19 : vector<16x1xi1> to vector<16x16xi1>
    %21 = vector.broadcast %cst_11 : f32 to vector<16x16xf32>
    %22 = arith.select %20, %18, %21 : vector<16x16xi1>, vector<16x16xf32>
    %c15_i32_12 = arith.constant 15 : i32
    %23 = tpu.dynamic_rotate %17 by %c15_i32_12 dim 0 : vector<16x16xf32>, i32 -> vector<16x16xf32>
    %cst_13 = arith.constant 0.000000e+00 : f32
    %24 = vector.shape_cast %5 : vector<16x1xi1> to vector<16x1xi1>
    %25 = vector.broadcast %24 : vector<16x1xi1> to vector<16x16xi1>
    %26 = vector.broadcast %cst_13 : f32 to vector<16x16xf32>
    %27 = arith.select %25, %23, %26 : vector<16x16xi1>, vector<16x16xf32>
    %28 = arith.addf %22, %14 : vector<16x16xf32>
    %29 = arith.addf %28, %27 : vector<16x16xf32>
    %c0_14 = arith.constant 0 : index
    %c0_15 = arith.constant 0 : index
    %30 = vector.load %arg3[%c0_14, %c0_15] : memref<1x16xf32, #tpu.memory_space<vmem>>, vector<1x16xf32>
    %31 = vector.broadcast %30 : vector<1x16xf32> to vector<16x16xf32>
    %32 = arith.addf %29, %31 : vector<16x16xf32>
    %33 = arith.truncf %7 : vector<16x4xf32> to vector<16x4xbf16>
    %c0_16 = arith.constant 0 : index
    %c0_17 = arith.constant 0 : index
    %34 = vector.load %arg12[%c0_16, %c0_17] : memref<4x16xbf16, #tpu.memory_space<vmem>>, vector<4x16xbf16>
    %cst_18 = arith.constant dense<0.000000e+00> : vector<16x16xf32>
    %35 = tpu.matmul %33, %34, %cst_18 {dimension_numbers = #tpu.dot_dimension_numbers<[1], [0], [0], [1], [0, 0, 1, 1], [], []>} : vector<16x4xbf16>, vector<4x16xbf16>, vector<16x16xf32> -> vector<16x16xf32>
    %c0_19 = arith.constant 0 : index
    %c0_20 = arith.constant 0 : index
    %36 = vector.load %arg13[%c0_19, %c0_20] : memref<1x16xf32, #tpu.memory_space<vmem>>, vector<1x16xf32>
    %37 = vector.broadcast %36 : vector<1x16xf32> to vector<16x16xf32>
    %38 = arith.addf %35, %37 : vector<16x16xf32>
    %39 = vector.shape_cast %32 : vector<16x16xf32> to vector<1x16x16xf32>
    %cst_21 = arith.constant dense<0.000000e+00> : vector<1x16xf32>
    %40 = vector.multi_reduction <add>, %39, %cst_21 [2] : vector<1x16x16xf32> to vector<1x16xf32>
    %41 = vector.shape_cast %40 : vector<1x16xf32> to vector<1x16x1xf32>
    %cst_22 = arith.constant dense<0.000000e+00> : vector<1x1xf32>
    %42 = vector.multi_reduction <add>, %41, %cst_22 [1] : vector<1x16x1xf32> to vector<1x1xf32>
    %43 = vector.shape_cast %42 : vector<1x1xf32> to vector<1x1x1xf32>
    %cst_23 = arith.constant 3.906250e-03 : f32
    %44 = vector.broadcast %cst_23 : f32 to vector<1x1x1xf32>
    %45 = arith.mulf %43, %44 : vector<1x1x1xf32>
    %46 = vector.broadcast %45 : vector<1x1x1xf32> to vector<1x16x16xf32>
    %47 = arith.subf %39, %46 : vector<1x16x16xf32>
    %48 = arith.mulf %47, %47 : vector<1x16x16xf32>
    %cst_24 = arith.constant dense<0.000000e+00> : vector<1x16xf32>
    %49 = vector.multi_reduction <add>, %48, %cst_24 [2] : vector<1x16x16xf32> to vector<1x16xf32>
    %50 = vector.shape_cast %49 : vector<1x16xf32> to vector<1x16x1xf32>
    %cst_25 = arith.constant dense<0.000000e+00> : vector<1x1xf32>
    %51 = vector.multi_reduction <add>, %50, %cst_25 [1] : vector<1x16x1xf32> to vector<1x1xf32>
    %52 = vector.shape_cast %51 : vector<1x1xf32> to vector<1x1x1xf32>
    %cst_26 = arith.constant 3.906250e-03 : f32
    %53 = vector.broadcast %cst_26 : f32 to vector<1x1x1xf32>
    %54 = arith.mulf %52, %53 : vector<1x1x1xf32>
    %cst_27 = arith.constant 9.99999974E-6 : f32
    %55 = vector.broadcast %cst_27 : f32 to vector<1x1x1xf32>
    %56 = arith.addf %54, %55 : vector<1x1x1xf32>
    %57 = math.rsqrt %56 : vector<1x1x1xf32>
    %58 = vector.broadcast %57 : vector<1x1x1xf32> to vector<1x16x16xf32>
    %59 = arith.mulf %47, %58 : vector<1x16x16xf32>
    %c0_28 = arith.constant 0 : index
    %c0_29 = arith.constant 0 : index
    %60 = vector.load %arg4[%c0_28, %c0_29] : memref<1x16xf32, #tpu.memory_space<vmem>>, vector<1x16xf32>
    %61 = vector.shape_cast %60 : vector<1x16xf32> to vector<1x1x16xf32>
    %62 = vector.broadcast %61 : vector<1x1x16xf32> to vector<1x16x16xf32>
    %63 = arith.mulf %59, %62 : vector<1x16x16xf32>
    %c0_30 = arith.constant 0 : index
    %c0_31 = arith.constant 0 : index
    %64 = vector.load %arg5[%c0_30, %c0_31] : memref<1x16xf32, #tpu.memory_space<vmem>>, vector<1x16xf32>
    %65 = vector.shape_cast %64 : vector<1x16xf32> to vector<1x1x16xf32>
    %66 = vector.broadcast %65 : vector<1x1x16xf32> to vector<1x16x16xf32>
    %67 = arith.addf %63, %66 : vector<1x16x16xf32>
    %cst_32 = arith.constant 0.000000e+00 : f32
    %68 = vector.broadcast %cst_32 : f32 to vector<1x16x16xf32>
    %69 = arith.maximumf %67, %68 : vector<1x16x16xf32>
    %70 = vector.broadcast %cst_32 : f32 to vector<1x16x16xf32>
    %71 = arith.subf %67, %70 : vector<1x16x16xf32>
    %72 = arith.cmpf one, %71, %71 : vector<1x16x16xf32>
    %73 = vector.broadcast %cst_32 : f32 to vector<1x16x16xf32>
    %74 = arith.addf %67, %73 : vector<1x16x16xf32>
    %75 = math.absf %71 : vector<1x16x16xf32>
    %cst_33 = arith.constant 0.000000e+00 : f32
    %76 = vector.broadcast %cst_33 : f32 to vector<1x16x16xf32>
    %77 = arith.subf %76, %75 : vector<1x16x16xf32>
    %78 = math.exp %77 : vector<1x16x16xf32>
    %79 = math.log1p %78 : vector<1x16x16xf32>
    %80 = arith.addf %69, %79 : vector<1x16x16xf32>
    %81 = arith.select %72, %74, %80 : vector<1x16x16xi1>, vector<1x16x16xf32>
    %82 = math.tanh %81 : vector<1x16x16xf32>
    %83 = arith.mulf %67, %82 : vector<1x16x16xf32>
    %c0_34 = arith.constant 0 : index
    %c0_35 = arith.constant 0 : index
    %c0_36 = arith.constant 0 : index
    %84 = vector.load %arg6[%c0_34, %c0_35, %c0_36] : memref<1x1x16xf32, #tpu.memory_space<vmem>>, vector<1x1x16xf32>
    %85 = vector.broadcast %84 : vector<1x1x16xf32> to vector<1x16x16xf32>
    %86 = arith.mulf %85, %83 : vector<1x16x16xf32>
    %c0_37 = arith.constant 0 : index
    %c0_38 = arith.constant 0 : index
    %c0_39 = arith.constant 0 : index
    %87 = vector.load %arg7[%c0_37, %c0_38, %c0_39] : memref<1x1x16xf32, #tpu.memory_space<vmem>>, vector<1x1x16xf32>
    %88 = vector.broadcast %87 : vector<1x1x16xf32> to vector<1x16x16xf32>
    %89 = arith.addf %86, %88 : vector<1x16x16xf32>
    %90 = vector.shape_cast %89 : vector<1x16x16xf32> to vector<16x16xf32>
    %91 = arith.truncf %90 : vector<16x16xf32> to vector<16x16xbf16>
    %c0_40 = arith.constant 0 : index
    %c0_41 = arith.constant 0 : index
    %c0_42 = arith.constant 0 : index
    %92 = vector.load %arg8[%c0_40, %c0_41, %c0_42] : memref<3x16x16xbf16, #tpu.memory_space<vmem>>, vector<1x16x16xbf16>
    %93 = vector.shape_cast %92 : vector<1x16x16xbf16> to vector<16x16xbf16>
    %cst_43 = arith.constant dense<0.000000e+00> : vector<16x16xf32>
    %94 = tpu.matmul %91, %93, %cst_43 {dimension_numbers = #tpu.dot_dimension_numbers<[1], [0], [0], [1], [0, 0, 1, 1], [], []>} : vector<16x16xbf16>, vector<16x16xbf16>, vector<16x16xf32> -> vector<16x16xf32>
    %c1_44 = arith.constant 1 : index
    %c0_45 = arith.constant 0 : index
    %c0_46 = arith.constant 0 : index
    %95 = vector.load %arg8[%c1_44, %c0_45, %c0_46] : memref<3x16x16xbf16, #tpu.memory_space<vmem>>, vector<1x16x16xbf16>
    %96 = vector.shape_cast %95 : vector<1x16x16xbf16> to vector<16x16xbf16>
    %cst_47 = arith.constant dense<0.000000e+00> : vector<16x16xf32>
    %97 = tpu.matmul %91, %96, %cst_47 {dimension_numbers = #tpu.dot_dimension_numbers<[1], [0], [0], [1], [0, 0, 1, 1], [], []>} : vector<16x16xbf16>, vector<16x16xbf16>, vector<16x16xf32> -> vector<16x16xf32>
    %c2_48 = arith.constant 2 : index
    %c0_49 = arith.constant 0 : index
    %c0_50 = arith.constant 0 : index
    %98 = vector.load %arg8[%c2_48, %c0_49, %c0_50] : memref<3x16x16xbf16, #tpu.memory_space<vmem>>, vector<1x16x16xbf16>
    %99 = vector.shape_cast %98 : vector<1x16x16xbf16> to vector<16x16xbf16>
    %cst_51 = arith.constant dense<0.000000e+00> : vector<16x16xf32>
    %100 = tpu.matmul %91, %99, %cst_51 {dimension_numbers = #tpu.dot_dimension_numbers<[1], [0], [0], [1], [0, 0, 1, 1], [], []>} : vector<16x16xbf16>, vector<16x16xbf16>, vector<16x16xf32> -> vector<16x16xf32>
    %c1_i32_52 = arith.constant 1 : i32
    %101 = tpu.dynamic_rotate %94 by %c1_i32_52 dim 0 : vector<16x16xf32>, i32 -> vector<16x16xf32>
    %cst_53 = arith.constant 0.000000e+00 : f32
    %102 = vector.shape_cast %3 : vector<16x1xi1> to vector<16x1xi1>
    %103 = vector.broadcast %102 : vector<16x1xi1> to vector<16x16xi1>
    %104 = vector.broadcast %cst_53 : f32 to vector<16x16xf32>
    %105 = arith.select %103, %101, %104 : vector<16x16xi1>, vector<16x16xf32>
    %c15_i32_54 = arith.constant 15 : i32
    %106 = tpu.dynamic_rotate %100 by %c15_i32_54 dim 0 : vector<16x16xf32>, i32 -> vector<16x16xf32>
    %cst_55 = arith.constant 0.000000e+00 : f32
    %107 = vector.shape_cast %5 : vector<16x1xi1> to vector<16x1xi1>
    %108 = vector.broadcast %107 : vector<16x1xi1> to vector<16x16xi1>
    %109 = vector.broadcast %cst_55 : f32 to vector<16x16xf32>
    %110 = arith.select %108, %106, %109 : vector<16x16xi1>, vector<16x16xf32>
    %111 = arith.addf %105, %97 : vector<16x16xf32>
    %112 = arith.addf %111, %110 : vector<16x16xf32>
    %c0_56 = arith.constant 0 : index
    %c0_57 = arith.constant 0 : index
    %113 = vector.load %arg9[%c0_56, %c0_57] : memref<1x16xf32, #tpu.memory_space<vmem>>, vector<1x16xf32>
    %114 = vector.broadcast %113 : vector<1x16xf32> to vector<16x16xf32>
    %115 = arith.addf %112, %114 : vector<16x16xf32>
    %116 = vector.shape_cast %115 : vector<16x16xf32> to vector<1x16x16xf32>
    %cst_58 = arith.constant dense<0.000000e+00> : vector<1x16xf32>
    %117 = vector.multi_reduction <add>, %116, %cst_58 [2] : vector<1x16x16xf32> to vector<1x16xf32>
    %118 = vector.shape_cast %117 : vector<1x16xf32> to vector<1x16x1xf32>
    %cst_59 = arith.constant dense<0.000000e+00> : vector<1x1xf32>
    %119 = vector.multi_reduction <add>, %118, %cst_59 [1] : vector<1x16x1xf32> to vector<1x1xf32>
    %120 = vector.shape_cast %119 : vector<1x1xf32> to vector<1x1x1xf32>
    %cst_60 = arith.constant 3.906250e-03 : f32
    %121 = vector.broadcast %cst_60 : f32 to vector<1x1x1xf32>
    %122 = arith.mulf %120, %121 : vector<1x1x1xf32>
    %123 = vector.broadcast %122 : vector<1x1x1xf32> to vector<1x16x16xf32>
    %124 = arith.subf %116, %123 : vector<1x16x16xf32>
    %125 = arith.mulf %124, %124 : vector<1x16x16xf32>
    %cst_61 = arith.constant dense<0.000000e+00> : vector<1x16xf32>
    %126 = vector.multi_reduction <add>, %125, %cst_61 [2] : vector<1x16x16xf32> to vector<1x16xf32>
    %127 = vector.shape_cast %126 : vector<1x16xf32> to vector<1x16x1xf32>
    %cst_62 = arith.constant dense<0.000000e+00> : vector<1x1xf32>
    %128 = vector.multi_reduction <add>, %127, %cst_62 [1] : vector<1x16x1xf32> to vector<1x1xf32>
    %129 = vector.shape_cast %128 : vector<1x1xf32> to vector<1x1x1xf32>
    %cst_63 = arith.constant 3.906250e-03 : f32
    %130 = vector.broadcast %cst_63 : f32 to vector<1x1x1xf32>
    %131 = arith.mulf %129, %130 : vector<1x1x1xf32>
    %cst_64 = arith.constant 9.99999974E-6 : f32
    %132 = vector.broadcast %cst_64 : f32 to vector<1x1x1xf32>
    %133 = arith.addf %131, %132 : vector<1x1x1xf32>
    %134 = math.rsqrt %133 : vector<1x1x1xf32>
    %135 = vector.broadcast %134 : vector<1x1x1xf32> to vector<1x16x16xf32>
    %136 = arith.mulf %124, %135 : vector<1x16x16xf32>
    %c0_65 = arith.constant 0 : index
    %c0_66 = arith.constant 0 : index
    %137 = vector.load %arg10[%c0_65, %c0_66] : memref<1x16xf32, #tpu.memory_space<vmem>>, vector<1x16xf32>
    %138 = vector.shape_cast %137 : vector<1x16xf32> to vector<1x1x16xf32>
    %139 = vector.broadcast %138 : vector<1x1x16xf32> to vector<1x16x16xf32>
    %140 = arith.mulf %136, %139 : vector<1x16x16xf32>
    %c0_67 = arith.constant 0 : index
    %c0_68 = arith.constant 0 : index
    %141 = vector.load %arg11[%c0_67, %c0_68] : memref<1x16xf32, #tpu.memory_space<vmem>>, vector<1x16xf32>
    %142 = vector.shape_cast %141 : vector<1x16xf32> to vector<1x1x16xf32>
    %143 = vector.broadcast %142 : vector<1x1x16xf32> to vector<1x16x16xf32>
    %144 = arith.addf %140, %143 : vector<1x16x16xf32>
    %cst_69 = arith.constant 0.000000e+00 : f32
    %145 = vector.broadcast %cst_69 : f32 to vector<1x16x16xf32>
    %146 = arith.maximumf %144, %145 : vector<1x16x16xf32>
    %147 = vector.broadcast %cst_69 : f32 to vector<1x16x16xf32>
    %148 = arith.subf %144, %147 : vector<1x16x16xf32>
    %149 = arith.cmpf one, %148, %148 : vector<1x16x16xf32>
    %150 = vector.broadcast %cst_69 : f32 to vector<1x16x16xf32>
    %151 = arith.addf %144, %150 : vector<1x16x16xf32>
    %152 = math.absf %148 : vector<1x16x16xf32>
    %cst_70 = arith.constant 0.000000e+00 : f32
    %153 = vector.broadcast %cst_70 : f32 to vector<1x16x16xf32>
    %154 = arith.subf %153, %152 : vector<1x16x16xf32>
    %155 = math.exp %154 : vector<1x16x16xf32>
    %156 = math.log1p %155 : vector<1x16x16xf32>
    %157 = arith.addf %146, %156 : vector<1x16x16xf32>
    %158 = arith.select %149, %151, %157 : vector<1x16x16xi1>, vector<1x16x16xf32>
    %159 = math.tanh %158 : vector<1x16x16xf32>
    %160 = arith.mulf %144, %159 : vector<1x16x16xf32>
    %161 = vector.shape_cast %160 : vector<1x16x16xf32> to vector<16x16xf32>
    %162 = arith.addf %161, %38 : vector<16x16xf32>
    %163 = arith.truncf %162 : vector<16x16xf32> to vector<16x16xbf16>
    %c0_71 = arith.constant 0 : index
    %c0_72 = arith.constant 0 : index
    %c0_73 = arith.constant 0 : index
    %164 = vector.load %arg14[%c0_71, %c0_72, %c0_73] : memref<3x16x16xbf16, #tpu.memory_space<vmem>>, vector<1x16x16xbf16>
    %165 = vector.shape_cast %164 : vector<1x16x16xbf16> to vector<16x16xbf16>
    %cst_74 = arith.constant dense<0.000000e+00> : vector<16x16xf32>
    %166 = tpu.matmul %163, %165, %cst_74 {dimension_numbers = #tpu.dot_dimension_numbers<[1], [0], [0], [1], [0, 0, 1, 1], [], []>} : vector<16x16xbf16>, vector<16x16xbf16>, vector<16x16xf32> -> vector<16x16xf32>
    %c1_75 = arith.constant 1 : index
    %c0_76 = arith.constant 0 : index
    %c0_77 = arith.constant 0 : index
    %167 = vector.load %arg14[%c1_75, %c0_76, %c0_77] : memref<3x16x16xbf16, #tpu.memory_space<vmem>>, vector<1x16x16xbf16>
    %168 = vector.shape_cast %167 : vector<1x16x16xbf16> to vector<16x16xbf16>
    %cst_78 = arith.constant dense<0.000000e+00> : vector<16x16xf32>
    %169 = tpu.matmul %163, %168, %cst_78 {dimension_numbers = #tpu.dot_dimension_numbers<[1], [0], [0], [1], [0, 0, 1, 1], [], []>} : vector<16x16xbf16>, vector<16x16xbf16>, vector<16x16xf32> -> vector<16x16xf32>
    %c2_79 = arith.constant 2 : index
    %c0_80 = arith.constant 0 : index
    %c0_81 = arith.constant 0 : index
    %170 = vector.load %arg14[%c2_79, %c0_80, %c0_81] : memref<3x16x16xbf16, #tpu.memory_space<vmem>>, vector<1x16x16xbf16>
    %171 = vector.shape_cast %170 : vector<1x16x16xbf16> to vector<16x16xbf16>
    %cst_82 = arith.constant dense<0.000000e+00> : vector<16x16xf32>
    %172 = tpu.matmul %163, %171, %cst_82 {dimension_numbers = #tpu.dot_dimension_numbers<[1], [0], [0], [1], [0, 0, 1, 1], [], []>} : vector<16x16xbf16>, vector<16x16xbf16>, vector<16x16xf32> -> vector<16x16xf32>
    %c1_i32_83 = arith.constant 1 : i32
    %173 = tpu.dynamic_rotate %166 by %c1_i32_83 dim 0 : vector<16x16xf32>, i32 -> vector<16x16xf32>
    %cst_84 = arith.constant 0.000000e+00 : f32
    %174 = vector.shape_cast %3 : vector<16x1xi1> to vector<16x1xi1>
    %175 = vector.broadcast %174 : vector<16x1xi1> to vector<16x16xi1>
    %176 = vector.broadcast %cst_84 : f32 to vector<16x16xf32>
    %177 = arith.select %175, %173, %176 : vector<16x16xi1>, vector<16x16xf32>
    %c15_i32_85 = arith.constant 15 : i32
    %178 = tpu.dynamic_rotate %172 by %c15_i32_85 dim 0 : vector<16x16xf32>, i32 -> vector<16x16xf32>
    %cst_86 = arith.constant 0.000000e+00 : f32
    %179 = vector.shape_cast %5 : vector<16x1xi1> to vector<16x1xi1>
    %180 = vector.broadcast %179 : vector<16x1xi1> to vector<16x16xi1>
    %181 = vector.broadcast %cst_86 : f32 to vector<16x16xf32>
    %182 = arith.select %180, %178, %181 : vector<16x16xi1>, vector<16x16xf32>
    %183 = arith.addf %177, %169 : vector<16x16xf32>
    %184 = arith.addf %183, %182 : vector<16x16xf32>
    %c0_87 = arith.constant 0 : index
    %c0_88 = arith.constant 0 : index
    %185 = vector.load %arg15[%c0_87, %c0_88] : memref<1x16xf32, #tpu.memory_space<vmem>>, vector<1x16xf32>
    %186 = vector.broadcast %185 : vector<1x16xf32> to vector<16x16xf32>
    %187 = arith.addf %184, %186 : vector<16x16xf32>
    %188 = vector.shape_cast %187 : vector<16x16xf32> to vector<1x16x16xf32>
    %cst_89 = arith.constant dense<0.000000e+00> : vector<1x16xf32>
    %189 = vector.multi_reduction <add>, %188, %cst_89 [2] : vector<1x16x16xf32> to vector<1x16xf32>
    %190 = vector.shape_cast %189 : vector<1x16xf32> to vector<1x16x1xf32>
    %cst_90 = arith.constant dense<0.000000e+00> : vector<1x1xf32>
    %191 = vector.multi_reduction <add>, %190, %cst_90 [1] : vector<1x16x1xf32> to vector<1x1xf32>
    %192 = vector.shape_cast %191 : vector<1x1xf32> to vector<1x1x1xf32>
    %cst_91 = arith.constant 3.906250e-03 : f32
    %193 = vector.broadcast %cst_91 : f32 to vector<1x1x1xf32>
    %194 = arith.mulf %192, %193 : vector<1x1x1xf32>
    %195 = vector.broadcast %194 : vector<1x1x1xf32> to vector<1x16x16xf32>
    %196 = arith.subf %188, %195 : vector<1x16x16xf32>
    %197 = arith.mulf %196, %196 : vector<1x16x16xf32>
    %cst_92 = arith.constant dense<0.000000e+00> : vector<1x16xf32>
    %198 = vector.multi_reduction <add>, %197, %cst_92 [2] : vector<1x16x16xf32> to vector<1x16xf32>
    %199 = vector.shape_cast %198 : vector<1x16xf32> to vector<1x16x1xf32>
    %cst_93 = arith.constant dense<0.000000e+00> : vector<1x1xf32>
    %200 = vector.multi_reduction <add>, %199, %cst_93 [1] : vector<1x16x1xf32> to vector<1x1xf32>
    %201 = vector.shape_cast %200 : vector<1x1xf32> to vector<1x1x1xf32>
    %cst_94 = arith.constant 3.906250e-03 : f32
    %202 = vector.broadcast %cst_94 : f32 to vector<1x1x1xf32>
    %203 = arith.mulf %201, %202 : vector<1x1x1xf32>
    %cst_95 = arith.constant 9.99999974E-6 : f32
    %204 = vector.broadcast %cst_95 : f32 to vector<1x1x1xf32>
    %205 = arith.addf %203, %204 : vector<1x1x1xf32>
    %206 = math.rsqrt %205 : vector<1x1x1xf32>
    %207 = vector.broadcast %206 : vector<1x1x1xf32> to vector<1x16x16xf32>
    %208 = arith.mulf %196, %207 : vector<1x16x16xf32>
    %c0_96 = arith.constant 0 : index
    %c0_97 = arith.constant 0 : index
    %209 = vector.load %arg16[%c0_96, %c0_97] : memref<1x16xf32, #tpu.memory_space<vmem>>, vector<1x16xf32>
    %210 = vector.shape_cast %209 : vector<1x16xf32> to vector<1x1x16xf32>
    %211 = vector.broadcast %210 : vector<1x1x16xf32> to vector<1x16x16xf32>
    %212 = arith.mulf %208, %211 : vector<1x16x16xf32>
    %c0_98 = arith.constant 0 : index
    %c0_99 = arith.constant 0 : index
    %213 = vector.load %arg17[%c0_98, %c0_99] : memref<1x16xf32, #tpu.memory_space<vmem>>, vector<1x16xf32>
    %214 = vector.shape_cast %213 : vector<1x16xf32> to vector<1x1x16xf32>
    %215 = vector.broadcast %214 : vector<1x1x16xf32> to vector<1x16x16xf32>
    %216 = arith.addf %212, %215 : vector<1x16x16xf32>
    %cst_100 = arith.constant 0.000000e+00 : f32
    %217 = vector.broadcast %cst_100 : f32 to vector<1x16x16xf32>
    %218 = arith.maximumf %216, %217 : vector<1x16x16xf32>
    %219 = vector.broadcast %cst_100 : f32 to vector<1x16x16xf32>
    %220 = arith.subf %216, %219 : vector<1x16x16xf32>
    %221 = arith.cmpf one, %220, %220 : vector<1x16x16xf32>
    %222 = vector.broadcast %cst_100 : f32 to vector<1x16x16xf32>
    %223 = arith.addf %216, %222 : vector<1x16x16xf32>
    %224 = math.absf %220 : vector<1x16x16xf32>
    %cst_101 = arith.constant 0.000000e+00 : f32
    %225 = vector.broadcast %cst_101 : f32 to vector<1x16x16xf32>
    %226 = arith.subf %225, %224 : vector<1x16x16xf32>
    %227 = math.exp %226 : vector<1x16x16xf32>
    %228 = math.log1p %227 : vector<1x16x16xf32>
    %229 = arith.addf %218, %228 : vector<1x16x16xf32>
    %230 = arith.select %221, %223, %229 : vector<1x16x16xi1>, vector<1x16x16xf32>
    %231 = math.tanh %230 : vector<1x16x16xf32>
    %232 = arith.mulf %216, %231 : vector<1x16x16xf32>
    %c0_102 = arith.constant 0 : index
    %c0_103 = arith.constant 0 : index
    %c0_104 = arith.constant 0 : index
    %233 = vector.load %arg18[%c0_102, %c0_103, %c0_104] : memref<1x1x16xf32, #tpu.memory_space<vmem>>, vector<1x1x16xf32>
    %234 = vector.broadcast %233 : vector<1x1x16xf32> to vector<1x16x16xf32>
    %235 = arith.mulf %234, %232 : vector<1x16x16xf32>
    %c0_105 = arith.constant 0 : index
    %c0_106 = arith.constant 0 : index
    %c0_107 = arith.constant 0 : index
    %236 = vector.load %arg19[%c0_105, %c0_106, %c0_107] : memref<1x1x16xf32, #tpu.memory_space<vmem>>, vector<1x1x16xf32>
    %237 = vector.broadcast %236 : vector<1x1x16xf32> to vector<1x16x16xf32>
    %238 = arith.addf %235, %237 : vector<1x16x16xf32>
    %239 = vector.shape_cast %238 : vector<1x16x16xf32> to vector<16x16xf32>
    %240 = arith.truncf %239 : vector<16x16xf32> to vector<16x16xbf16>
    %c0_108 = arith.constant 0 : index
    %c0_109 = arith.constant 0 : index
    %c0_110 = arith.constant 0 : index
    %241 = vector.load %arg20[%c0_108, %c0_109, %c0_110] : memref<3x16x16xbf16, #tpu.memory_space<vmem>>, vector<1x16x16xbf16>
    %242 = vector.shape_cast %241 : vector<1x16x16xbf16> to vector<16x16xbf16>
    %cst_111 = arith.constant dense<0.000000e+00> : vector<16x16xf32>
    %243 = tpu.matmul %240, %242, %cst_111 {dimension_numbers = #tpu.dot_dimension_numbers<[1], [0], [0], [1], [0, 0, 1, 1], [], []>} : vector<16x16xbf16>, vector<16x16xbf16>, vector<16x16xf32> -> vector<16x16xf32>
    %c1_112 = arith.constant 1 : index
    %c0_113 = arith.constant 0 : index
    %c0_114 = arith.constant 0 : index
    %244 = vector.load %arg20[%c1_112, %c0_113, %c0_114] : memref<3x16x16xbf16, #tpu.memory_space<vmem>>, vector<1x16x16xbf16>
    %245 = vector.shape_cast %244 : vector<1x16x16xbf16> to vector<16x16xbf16>
    %cst_115 = arith.constant dense<0.000000e+00> : vector<16x16xf32>
    %246 = tpu.matmul %240, %245, %cst_115 {dimension_numbers = #tpu.dot_dimension_numbers<[1], [0], [0], [1], [0, 0, 1, 1], [], []>} : vector<16x16xbf16>, vector<16x16xbf16>, vector<16x16xf32> -> vector<16x16xf32>
    %c2_116 = arith.constant 2 : index
    %c0_117 = arith.constant 0 : index
    %c0_118 = arith.constant 0 : index
    %247 = vector.load %arg20[%c2_116, %c0_117, %c0_118] : memref<3x16x16xbf16, #tpu.memory_space<vmem>>, vector<1x16x16xbf16>
    %248 = vector.shape_cast %247 : vector<1x16x16xbf16> to vector<16x16xbf16>
    %cst_119 = arith.constant dense<0.000000e+00> : vector<16x16xf32>
    %249 = tpu.matmul %240, %248, %cst_119 {dimension_numbers = #tpu.dot_dimension_numbers<[1], [0], [0], [1], [0, 0, 1, 1], [], []>} : vector<16x16xbf16>, vector<16x16xbf16>, vector<16x16xf32> -> vector<16x16xf32>
    %c1_i32_120 = arith.constant 1 : i32
    %250 = tpu.dynamic_rotate %243 by %c1_i32_120 dim 0 : vector<16x16xf32>, i32 -> vector<16x16xf32>
    %cst_121 = arith.constant 0.000000e+00 : f32
    %251 = vector.shape_cast %3 : vector<16x1xi1> to vector<16x1xi1>
    %252 = vector.broadcast %251 : vector<16x1xi1> to vector<16x16xi1>
    %253 = vector.broadcast %cst_121 : f32 to vector<16x16xf32>
    %254 = arith.select %252, %250, %253 : vector<16x16xi1>, vector<16x16xf32>
    %c15_i32_122 = arith.constant 15 : i32
    %255 = tpu.dynamic_rotate %249 by %c15_i32_122 dim 0 : vector<16x16xf32>, i32 -> vector<16x16xf32>
    %cst_123 = arith.constant 0.000000e+00 : f32
    %256 = vector.shape_cast %5 : vector<16x1xi1> to vector<16x1xi1>
    %257 = vector.broadcast %256 : vector<16x1xi1> to vector<16x16xi1>
    %258 = vector.broadcast %cst_123 : f32 to vector<16x16xf32>
    %259 = arith.select %257, %255, %258 : vector<16x16xi1>, vector<16x16xf32>
    %260 = arith.addf %254, %246 : vector<16x16xf32>
    %261 = arith.addf %260, %259 : vector<16x16xf32>
    %c0_124 = arith.constant 0 : index
    %c0_125 = arith.constant 0 : index
    %262 = vector.load %arg21[%c0_124, %c0_125] : memref<1x16xf32, #tpu.memory_space<vmem>>, vector<1x16xf32>
    %263 = vector.broadcast %262 : vector<1x16xf32> to vector<16x16xf32>
    %264 = arith.addf %261, %263 : vector<16x16xf32>
    %265 = vector.shape_cast %264 : vector<16x16xf32> to vector<1x16x16xf32>
    %cst_126 = arith.constant dense<0.000000e+00> : vector<1x16xf32>
    %266 = vector.multi_reduction <add>, %265, %cst_126 [2] : vector<1x16x16xf32> to vector<1x16xf32>
    %267 = vector.shape_cast %266 : vector<1x16xf32> to vector<1x16x1xf32>
    %cst_127 = arith.constant dense<0.000000e+00> : vector<1x1xf32>
    %268 = vector.multi_reduction <add>, %267, %cst_127 [1] : vector<1x16x1xf32> to vector<1x1xf32>
    %269 = vector.shape_cast %268 : vector<1x1xf32> to vector<1x1x1xf32>
    %cst_128 = arith.constant 3.906250e-03 : f32
    %270 = vector.broadcast %cst_128 : f32 to vector<1x1x1xf32>
    %271 = arith.mulf %269, %270 : vector<1x1x1xf32>
    %272 = vector.broadcast %271 : vector<1x1x1xf32> to vector<1x16x16xf32>
    %273 = arith.subf %265, %272 : vector<1x16x16xf32>
    %274 = arith.mulf %273, %273 : vector<1x16x16xf32>
    %cst_129 = arith.constant dense<0.000000e+00> : vector<1x16xf32>
    %275 = vector.multi_reduction <add>, %274, %cst_129 [2] : vector<1x16x16xf32> to vector<1x16xf32>
    %276 = vector.shape_cast %275 : vector<1x16xf32> to vector<1x16x1xf32>
    %cst_130 = arith.constant dense<0.000000e+00> : vector<1x1xf32>
    %277 = vector.multi_reduction <add>, %276, %cst_130 [1] : vector<1x16x1xf32> to vector<1x1xf32>
    %278 = vector.shape_cast %277 : vector<1x1xf32> to vector<1x1x1xf32>
    %cst_131 = arith.constant 3.906250e-03 : f32
    %279 = vector.broadcast %cst_131 : f32 to vector<1x1x1xf32>
    %280 = arith.mulf %278, %279 : vector<1x1x1xf32>
    %cst_132 = arith.constant 9.99999974E-6 : f32
    %281 = vector.broadcast %cst_132 : f32 to vector<1x1x1xf32>
    %282 = arith.addf %280, %281 : vector<1x1x1xf32>
    %283 = math.rsqrt %282 : vector<1x1x1xf32>
    %284 = vector.broadcast %283 : vector<1x1x1xf32> to vector<1x16x16xf32>
    %285 = arith.mulf %273, %284 : vector<1x16x16xf32>
    %c0_133 = arith.constant 0 : index
    %c0_134 = arith.constant 0 : index
    %286 = vector.load %arg22[%c0_133, %c0_134] : memref<1x16xf32, #tpu.memory_space<vmem>>, vector<1x16xf32>
    %287 = vector.shape_cast %286 : vector<1x16xf32> to vector<1x1x16xf32>
    %288 = vector.broadcast %287 : vector<1x1x16xf32> to vector<1x16x16xf32>
    %289 = arith.mulf %285, %288 : vector<1x16x16xf32>
    %c0_135 = arith.constant 0 : index
    %c0_136 = arith.constant 0 : index
    %290 = vector.load %arg23[%c0_135, %c0_136] : memref<1x16xf32, #tpu.memory_space<vmem>>, vector<1x16xf32>
    %291 = vector.shape_cast %290 : vector<1x16xf32> to vector<1x1x16xf32>
    %292 = vector.broadcast %291 : vector<1x1x16xf32> to vector<1x16x16xf32>
    %293 = arith.addf %289, %292 : vector<1x16x16xf32>
    %cst_137 = arith.constant 0.000000e+00 : f32
    %294 = vector.broadcast %cst_137 : f32 to vector<1x16x16xf32>
    %295 = arith.maximumf %293, %294 : vector<1x16x16xf32>
    %296 = vector.broadcast %cst_137 : f32 to vector<1x16x16xf32>
    %297 = arith.subf %293, %296 : vector<1x16x16xf32>
    %298 = arith.cmpf one, %297, %297 : vector<1x16x16xf32>
    %299 = vector.broadcast %cst_137 : f32 to vector<1x16x16xf32>
    %300 = arith.addf %293, %299 : vector<1x16x16xf32>
    %301 = math.absf %297 : vector<1x16x16xf32>
    %cst_138 = arith.constant 0.000000e+00 : f32
    %302 = vector.broadcast %cst_138 : f32 to vector<1x16x16xf32>
    %303 = arith.subf %302, %301 : vector<1x16x16xf32>
    %304 = math.exp %303 : vector<1x16x16xf32>
    %305 = math.log1p %304 : vector<1x16x16xf32>
    %306 = arith.addf %295, %305 : vector<1x16x16xf32>
    %307 = arith.select %298, %300, %306 : vector<1x16x16xi1>, vector<1x16x16xf32>
    %308 = math.tanh %307 : vector<1x16x16xf32>
    %309 = arith.mulf %293, %308 : vector<1x16x16xf32>
    %310 = vector.shape_cast %309 : vector<1x16x16xf32> to vector<16x16xf32>
    %311 = arith.addf %310, %162 : vector<16x16xf32>
    %312 = arith.truncf %311 : vector<16x16xf32> to vector<16x16xbf16>
    %c0_139 = arith.constant 0 : index
    %c0_140 = arith.constant 0 : index
    %c0_141 = arith.constant 0 : index
    %313 = vector.load %arg24[%c0_139, %c0_140, %c0_141] : memref<3x16x4xbf16, #tpu.memory_space<vmem>>, vector<1x16x4xbf16>
    %314 = vector.shape_cast %313 : vector<1x16x4xbf16> to vector<16x4xbf16>
    %cst_142 = arith.constant dense<0.000000e+00> : vector<16x4xf32>
    %315 = tpu.matmul %312, %314, %cst_142 {dimension_numbers = #tpu.dot_dimension_numbers<[1], [0], [0], [1], [0, 0, 1, 1], [], []>} : vector<16x16xbf16>, vector<16x4xbf16>, vector<16x4xf32> -> vector<16x4xf32>
    %c1_143 = arith.constant 1 : index
    %c0_144 = arith.constant 0 : index
    %c0_145 = arith.constant 0 : index
    %316 = vector.load %arg24[%c1_143, %c0_144, %c0_145] : memref<3x16x4xbf16, #tpu.memory_space<vmem>>, vector<1x16x4xbf16>
    %317 = vector.shape_cast %316 : vector<1x16x4xbf16> to vector<16x4xbf16>
    %cst_146 = arith.constant dense<0.000000e+00> : vector<16x4xf32>
    %318 = tpu.matmul %312, %317, %cst_146 {dimension_numbers = #tpu.dot_dimension_numbers<[1], [0], [0], [1], [0, 0, 1, 1], [], []>} : vector<16x16xbf16>, vector<16x4xbf16>, vector<16x4xf32> -> vector<16x4xf32>
    %c2_147 = arith.constant 2 : index
    %c0_148 = arith.constant 0 : index
    %c0_149 = arith.constant 0 : index
    %319 = vector.load %arg24[%c2_147, %c0_148, %c0_149] : memref<3x16x4xbf16, #tpu.memory_space<vmem>>, vector<1x16x4xbf16>
    %320 = vector.shape_cast %319 : vector<1x16x4xbf16> to vector<16x4xbf16>
    %cst_150 = arith.constant dense<0.000000e+00> : vector<16x4xf32>
    %321 = tpu.matmul %312, %320, %cst_150 {dimension_numbers = #tpu.dot_dimension_numbers<[1], [0], [0], [1], [0, 0, 1, 1], [], []>} : vector<16x16xbf16>, vector<16x4xbf16>, vector<16x4xf32> -> vector<16x4xf32>
    %c1_i32_151 = arith.constant 1 : i32
    %322 = tpu.dynamic_rotate %315 by %c1_i32_151 dim 0 : vector<16x4xf32>, i32 -> vector<16x4xf32>
    %cst_152 = arith.constant 0.000000e+00 : f32
    %323 = vector.shape_cast %3 : vector<16x1xi1> to vector<16x1xi1>
    %324 = vector.broadcast %323 : vector<16x1xi1> to vector<16x4xi1>
    %325 = vector.broadcast %cst_152 : f32 to vector<16x4xf32>
    %326 = arith.select %324, %322, %325 : vector<16x4xi1>, vector<16x4xf32>
    %c15_i32_153 = arith.constant 15 : i32
    %327 = tpu.dynamic_rotate %321 by %c15_i32_153 dim 0 : vector<16x4xf32>, i32 -> vector<16x4xf32>
    %cst_154 = arith.constant 0.000000e+00 : f32
    %328 = vector.shape_cast %5 : vector<16x1xi1> to vector<16x1xi1>
    %329 = vector.broadcast %328 : vector<16x1xi1> to vector<16x4xi1>
    %330 = vector.broadcast %cst_154 : f32 to vector<16x4xf32>
    %331 = arith.select %329, %327, %330 : vector<16x4xi1>, vector<16x4xf32>
    %332 = arith.addf %326, %318 : vector<16x4xf32>
    %333 = arith.addf %332, %331 : vector<16x4xf32>
    %c0_155 = arith.constant 0 : index
    %c0_156 = arith.constant 0 : index
    %334 = vector.load %arg25[%c0_155, %c0_156] : memref<1x4xf32, #tpu.memory_space<vmem>>, vector<1x4xf32>
    %335 = vector.broadcast %334 : vector<1x4xf32> to vector<16x4xf32>
    %336 = arith.addf %333, %335 : vector<16x4xf32>
    %337 = arith.truncf %311 : vector<16x16xf32> to vector<16x16xbf16>
    %c0_157 = arith.constant 0 : index
    %c0_158 = arith.constant 0 : index
    %338 = vector.load %arg34[%c0_157, %c0_158] : memref<16x4xbf16, #tpu.memory_space<vmem>>, vector<16x4xbf16>
    %cst_159 = arith.constant dense<0.000000e+00> : vector<16x4xf32>
    %339 = tpu.matmul %337, %338, %cst_159 {dimension_numbers = #tpu.dot_dimension_numbers<[1], [0], [0], [1], [0, 0, 1, 1], [], []>} : vector<16x16xbf16>, vector<16x4xbf16>, vector<16x4xf32> -> vector<16x4xf32>
    %c0_160 = arith.constant 0 : index
    %c0_161 = arith.constant 0 : index
    %340 = vector.load %arg35[%c0_160, %c0_161] : memref<1x4xf32, #tpu.memory_space<vmem>>, vector<1x4xf32>
    %341 = vector.broadcast %340 : vector<1x4xf32> to vector<16x4xf32>
    %342 = arith.addf %339, %341 : vector<16x4xf32>
    %343 = vector.shape_cast %336 : vector<16x4xf32> to vector<1x16x4xf32>
    %cst_162 = arith.constant dense<0.000000e+00> : vector<1x16xf32>
    %344 = vector.multi_reduction <add>, %343, %cst_162 [2] : vector<1x16x4xf32> to vector<1x16xf32>
    %345 = vector.shape_cast %344 : vector<1x16xf32> to vector<1x16x1xf32>
    %cst_163 = arith.constant dense<0.000000e+00> : vector<1x1xf32>
    %346 = vector.multi_reduction <add>, %345, %cst_163 [1] : vector<1x16x1xf32> to vector<1x1xf32>
    %347 = vector.shape_cast %346 : vector<1x1xf32> to vector<1x1x1xf32>
    %cst_164 = arith.constant 1.562500e-02 : f32
    %348 = vector.broadcast %cst_164 : f32 to vector<1x1x1xf32>
    %349 = arith.mulf %347, %348 : vector<1x1x1xf32>
    %350 = vector.broadcast %349 : vector<1x1x1xf32> to vector<1x16x4xf32>
    %351 = arith.subf %343, %350 : vector<1x16x4xf32>
    %352 = arith.mulf %351, %351 : vector<1x16x4xf32>
    %cst_165 = arith.constant dense<0.000000e+00> : vector<1x16xf32>
    %353 = vector.multi_reduction <add>, %352, %cst_165 [2] : vector<1x16x4xf32> to vector<1x16xf32>
    %354 = vector.shape_cast %353 : vector<1x16xf32> to vector<1x16x1xf32>
    %cst_166 = arith.constant dense<0.000000e+00> : vector<1x1xf32>
    %355 = vector.multi_reduction <add>, %354, %cst_166 [1] : vector<1x16x1xf32> to vector<1x1xf32>
    %356 = vector.shape_cast %355 : vector<1x1xf32> to vector<1x1x1xf32>
    %cst_167 = arith.constant 1.562500e-02 : f32
    %357 = vector.broadcast %cst_167 : f32 to vector<1x1x1xf32>
    %358 = arith.mulf %356, %357 : vector<1x1x1xf32>
    %cst_168 = arith.constant 9.99999974E-6 : f32
    %359 = vector.broadcast %cst_168 : f32 to vector<1x1x1xf32>
    %360 = arith.addf %358, %359 : vector<1x1x1xf32>
    %361 = math.rsqrt %360 : vector<1x1x1xf32>
    %362 = vector.broadcast %361 : vector<1x1x1xf32> to vector<1x16x4xf32>
    %363 = arith.mulf %351, %362 : vector<1x16x4xf32>
    %c0_169 = arith.constant 0 : index
    %c0_170 = arith.constant 0 : index
    %364 = vector.load %arg26[%c0_169, %c0_170] : memref<1x4xf32, #tpu.memory_space<vmem>>, vector<1x4xf32>
    %365 = vector.shape_cast %364 : vector<1x4xf32> to vector<1x1x4xf32>
    %366 = vector.broadcast %365 : vector<1x1x4xf32> to vector<1x16x4xf32>
    %367 = arith.mulf %363, %366 : vector<1x16x4xf32>
    %c0_171 = arith.constant 0 : index
    %c0_172 = arith.constant 0 : index
    %368 = vector.load %arg27[%c0_171, %c0_172] : memref<1x4xf32, #tpu.memory_space<vmem>>, vector<1x4xf32>
    %369 = vector.shape_cast %368 : vector<1x4xf32> to vector<1x1x4xf32>
    %370 = vector.broadcast %369 : vector<1x1x4xf32> to vector<1x16x4xf32>
    %371 = arith.addf %367, %370 : vector<1x16x4xf32>
    %cst_173 = arith.constant 0.000000e+00 : f32
    %372 = vector.broadcast %cst_173 : f32 to vector<1x16x4xf32>
    %373 = arith.maximumf %371, %372 : vector<1x16x4xf32>
    %374 = vector.broadcast %cst_173 : f32 to vector<1x16x4xf32>
    %375 = arith.subf %371, %374 : vector<1x16x4xf32>
    %376 = arith.cmpf one, %375, %375 : vector<1x16x4xf32>
    %377 = vector.broadcast %cst_173 : f32 to vector<1x16x4xf32>
    %378 = arith.addf %371, %377 : vector<1x16x4xf32>
    %379 = math.absf %375 : vector<1x16x4xf32>
    %cst_174 = arith.constant 0.000000e+00 : f32
    %380 = vector.broadcast %cst_174 : f32 to vector<1x16x4xf32>
    %381 = arith.subf %380, %379 : vector<1x16x4xf32>
    %382 = math.exp %381 : vector<1x16x4xf32>
    %383 = math.log1p %382 : vector<1x16x4xf32>
    %384 = arith.addf %373, %383 : vector<1x16x4xf32>
    %385 = arith.select %376, %378, %384 : vector<1x16x4xi1>, vector<1x16x4xf32>
    %386 = math.tanh %385 : vector<1x16x4xf32>
    %387 = arith.mulf %371, %386 : vector<1x16x4xf32>
    %c0_175 = arith.constant 0 : index
    %c0_176 = arith.constant 0 : index
    %c0_177 = arith.constant 0 : index
    %388 = vector.load %arg28[%c0_175, %c0_176, %c0_177] : memref<1x1x4xf32, #tpu.memory_space<vmem>>, vector<1x1x4xf32>
    %389 = vector.broadcast %388 : vector<1x1x4xf32> to vector<1x16x4xf32>
    %390 = arith.mulf %389, %387 : vector<1x16x4xf32>
    %c0_178 = arith.constant 0 : index
    %c0_179 = arith.constant 0 : index
    %c0_180 = arith.constant 0 : index
    %391 = vector.load %arg29[%c0_178, %c0_179, %c0_180] : memref<1x1x4xf32, #tpu.memory_space<vmem>>, vector<1x1x4xf32>
    %392 = vector.broadcast %391 : vector<1x1x4xf32> to vector<1x16x4xf32>
    %393 = arith.addf %390, %392 : vector<1x16x4xf32>
    %394 = vector.shape_cast %393 : vector<1x16x4xf32> to vector<16x4xf32>
    %395 = arith.truncf %394 : vector<16x4xf32> to vector<16x4xbf16>
    %c0_181 = arith.constant 0 : index
    %c0_182 = arith.constant 0 : index
    %c0_183 = arith.constant 0 : index
    %396 = vector.load %arg30[%c0_181, %c0_182, %c0_183] : memref<3x4x4xbf16, #tpu.memory_space<vmem>>, vector<1x4x4xbf16>
    %397 = vector.shape_cast %396 : vector<1x4x4xbf16> to vector<4x4xbf16>
    %cst_184 = arith.constant dense<0.000000e+00> : vector<16x4xf32>
    %398 = tpu.matmul %395, %397, %cst_184 {dimension_numbers = #tpu.dot_dimension_numbers<[1], [0], [0], [1], [0, 0, 1, 1], [], []>} : vector<16x4xbf16>, vector<4x4xbf16>, vector<16x4xf32> -> vector<16x4xf32>
    %c1_185 = arith.constant 1 : index
    %c0_186 = arith.constant 0 : index
    %c0_187 = arith.constant 0 : index
    %399 = vector.load %arg30[%c1_185, %c0_186, %c0_187] : memref<3x4x4xbf16, #tpu.memory_space<vmem>>, vector<1x4x4xbf16>
    %400 = vector.shape_cast %399 : vector<1x4x4xbf16> to vector<4x4xbf16>
    %cst_188 = arith.constant dense<0.000000e+00> : vector<16x4xf32>
    %401 = tpu.matmul %395, %400, %cst_188 {dimension_numbers = #tpu.dot_dimension_numbers<[1], [0], [0], [1], [0, 0, 1, 1], [], []>} : vector<16x4xbf16>, vector<4x4xbf16>, vector<16x4xf32> -> vector<16x4xf32>
    %c2_189 = arith.constant 2 : index
    %c0_190 = arith.constant 0 : index
    %c0_191 = arith.constant 0 : index
    %402 = vector.load %arg30[%c2_189, %c0_190, %c0_191] : memref<3x4x4xbf16, #tpu.memory_space<vmem>>, vector<1x4x4xbf16>
    %403 = vector.shape_cast %402 : vector<1x4x4xbf16> to vector<4x4xbf16>
    %cst_192 = arith.constant dense<0.000000e+00> : vector<16x4xf32>
    %404 = tpu.matmul %395, %403, %cst_192 {dimension_numbers = #tpu.dot_dimension_numbers<[1], [0], [0], [1], [0, 0, 1, 1], [], []>} : vector<16x4xbf16>, vector<4x4xbf16>, vector<16x4xf32> -> vector<16x4xf32>
    %c1_i32_193 = arith.constant 1 : i32
    %405 = tpu.dynamic_rotate %398 by %c1_i32_193 dim 0 : vector<16x4xf32>, i32 -> vector<16x4xf32>
    %cst_194 = arith.constant 0.000000e+00 : f32
    %406 = vector.shape_cast %3 : vector<16x1xi1> to vector<16x1xi1>
    %407 = vector.broadcast %406 : vector<16x1xi1> to vector<16x4xi1>
    %408 = vector.broadcast %cst_194 : f32 to vector<16x4xf32>
    %409 = arith.select %407, %405, %408 : vector<16x4xi1>, vector<16x4xf32>
    %c15_i32_195 = arith.constant 15 : i32
    %410 = tpu.dynamic_rotate %404 by %c15_i32_195 dim 0 : vector<16x4xf32>, i32 -> vector<16x4xf32>
    %cst_196 = arith.constant 0.000000e+00 : f32
    %411 = vector.shape_cast %5 : vector<16x1xi1> to vector<16x1xi1>
    %412 = vector.broadcast %411 : vector<16x1xi1> to vector<16x4xi1>
    %413 = vector.broadcast %cst_196 : f32 to vector<16x4xf32>
    %414 = arith.select %412, %410, %413 : vector<16x4xi1>, vector<16x4xf32>
    %415 = arith.addf %409, %401 : vector<16x4xf32>
    %416 = arith.addf %415, %414 : vector<16x4xf32>
    %c0_197 = arith.constant 0 : index
    %c0_198 = arith.constant 0 : index
    %417 = vector.load %arg31[%c0_197, %c0_198] : memref<1x4xf32, #tpu.memory_space<vmem>>, vector<1x4xf32>
    %418 = vector.broadcast %417 : vector<1x4xf32> to vector<16x4xf32>
    %419 = arith.addf %416, %418 : vector<16x4xf32>
    %420 = vector.shape_cast %419 : vector<16x4xf32> to vector<1x16x4xf32>
    %cst_199 = arith.constant dense<0.000000e+00> : vector<1x16xf32>
    %421 = vector.multi_reduction <add>, %420, %cst_199 [2] : vector<1x16x4xf32> to vector<1x16xf32>
    %422 = vector.shape_cast %421 : vector<1x16xf32> to vector<1x16x1xf32>
    %cst_200 = arith.constant dense<0.000000e+00> : vector<1x1xf32>
    %423 = vector.multi_reduction <add>, %422, %cst_200 [1] : vector<1x16x1xf32> to vector<1x1xf32>
    %424 = vector.shape_cast %423 : vector<1x1xf32> to vector<1x1x1xf32>
    %cst_201 = arith.constant 1.562500e-02 : f32
    %425 = vector.broadcast %cst_201 : f32 to vector<1x1x1xf32>
    %426 = arith.mulf %424, %425 : vector<1x1x1xf32>
    %427 = vector.broadcast %426 : vector<1x1x1xf32> to vector<1x16x4xf32>
    %428 = arith.subf %420, %427 : vector<1x16x4xf32>
    %429 = arith.mulf %428, %428 : vector<1x16x4xf32>
    %cst_202 = arith.constant dense<0.000000e+00> : vector<1x16xf32>
    %430 = vector.multi_reduction <add>, %429, %cst_202 [2] : vector<1x16x4xf32> to vector<1x16xf32>
    %431 = vector.shape_cast %430 : vector<1x16xf32> to vector<1x16x1xf32>
    %cst_203 = arith.constant dense<0.000000e+00> : vector<1x1xf32>
    %432 = vector.multi_reduction <add>, %431, %cst_203 [1] : vector<1x16x1xf32> to vector<1x1xf32>
    %433 = vector.shape_cast %432 : vector<1x1xf32> to vector<1x1x1xf32>
    %cst_204 = arith.constant 1.562500e-02 : f32
    %434 = vector.broadcast %cst_204 : f32 to vector<1x1x1xf32>
    %435 = arith.mulf %433, %434 : vector<1x1x1xf32>
    %cst_205 = arith.constant 9.99999974E-6 : f32
    %436 = vector.broadcast %cst_205 : f32 to vector<1x1x1xf32>
    %437 = arith.addf %435, %436 : vector<1x1x1xf32>
    %438 = math.rsqrt %437 : vector<1x1x1xf32>
    %439 = vector.broadcast %438 : vector<1x1x1xf32> to vector<1x16x4xf32>
    %440 = arith.mulf %428, %439 : vector<1x16x4xf32>
    %c0_206 = arith.constant 0 : index
    %c0_207 = arith.constant 0 : index
    %441 = vector.load %arg32[%c0_206, %c0_207] : memref<1x4xf32, #tpu.memory_space<vmem>>, vector<1x4xf32>
    %442 = vector.shape_cast %441 : vector<1x4xf32> to vector<1x1x4xf32>
    %443 = vector.broadcast %442 : vector<1x1x4xf32> to vector<1x16x4xf32>
    %444 = arith.mulf %440, %443 : vector<1x16x4xf32>
    %c0_208 = arith.constant 0 : index
    %c0_209 = arith.constant 0 : index
    %445 = vector.load %arg33[%c0_208, %c0_209] : memref<1x4xf32, #tpu.memory_space<vmem>>, vector<1x4xf32>
    %446 = vector.shape_cast %445 : vector<1x4xf32> to vector<1x1x4xf32>
    %447 = vector.broadcast %446 : vector<1x1x4xf32> to vector<1x16x4xf32>
    %448 = arith.addf %444, %447 : vector<1x16x4xf32>
    %cst_210 = arith.constant 0.000000e+00 : f32
    %449 = vector.broadcast %cst_210 : f32 to vector<1x16x4xf32>
    %450 = arith.maximumf %448, %449 : vector<1x16x4xf32>
    %451 = vector.broadcast %cst_210 : f32 to vector<1x16x4xf32>
    %452 = arith.subf %448, %451 : vector<1x16x4xf32>
    %453 = arith.cmpf one, %452, %452 : vector<1x16x4xf32>
    %454 = vector.broadcast %cst_210 : f32 to vector<1x16x4xf32>
    %455 = arith.addf %448, %454 : vector<1x16x4xf32>
    %456 = math.absf %452 : vector<1x16x4xf32>
    %cst_211 = arith.constant 0.000000e+00 : f32
    %457 = vector.broadcast %cst_211 : f32 to vector<1x16x4xf32>
    %458 = arith.subf %457, %456 : vector<1x16x4xf32>
    %459 = math.exp %458 : vector<1x16x4xf32>
    %460 = math.log1p %459 : vector<1x16x4xf32>
    %461 = arith.addf %450, %460 : vector<1x16x4xf32>
    %462 = arith.select %453, %455, %461 : vector<1x16x4xi1>, vector<1x16x4xf32>
    %463 = math.tanh %462 : vector<1x16x4xf32>
    %464 = arith.mulf %448, %463 : vector<1x16x4xf32>
    %465 = vector.shape_cast %464 : vector<1x16x4xf32> to vector<16x4xf32>
    %466 = arith.addf %465, %342 : vector<16x4xf32>
    %467 = vector.shape_cast %466 : vector<16x4xf32> to vector<1x16x4xf32>
    %c0_212 = arith.constant 0 : index
    %c0_213 = arith.constant 0 : index
    %c0_214 = arith.constant 0 : index
    %468 = vector.load %arg36[%c0_212, %c0_213, %c0_214] : memref<1x16x4xf32, #tpu.memory_space<vmem>>, vector<1x16x4xf32>
    tpu.vector_store %arg36[%c0_212, %c0_213, %c0_214], %467 {strides = array<i32>} : memref<1x16x4xf32, #tpu.memory_space<vmem>>, vector<1x16x4xf32>,
    return
  }
  func.func @transform_0(%arg0: i32) -> (i32, i32, i32) {
    %c0_i32 = arith.constant 0 : i32
    %c0_i32_0 = arith.constant 0 : i32
    %c0_i32_1 = arith.constant 0 : i32
    return %arg0, %c0_i32, %c0_i32_0 : i32, i32, i32
  }
  func.func @transform_1(%arg0: i32) -> (i32, i32, i32) {
    %c0_i32 = arith.constant 0 : i32
    %c0_i32_0 = arith.constant 0 : i32
    %c0_i32_1 = arith.constant 0 : i32
    %c0_i32_2 = arith.constant 0 : i32
    return %c0_i32, %c0_i32_0, %c0_i32_1 : i32, i32, i32
  }
  func.func @transform_2(%arg0: i32) -> (i32, i32) {
    %c0_i32 = arith.constant 0 : i32
    %c0_i32_0 = arith.constant 0 : i32
    %c0_i32_1 = arith.constant 0 : i32
    return %c0_i32, %c0_i32_0 : i32, i32
  }
  func.func @transform_3(%arg0: i32) -> (i32, i32) {
    %c0_i32 = arith.constant 0 : i32
    %c0_i32_0 = arith.constant 0 : i32
    %c0_i32_1 = arith.constant 0 : i32
    return %c0_i32, %c0_i32_0 : i32, i32
  }
  func.func @transform_4(%arg0: i32) -> (i32, i32) {
    %c0_i32 = arith.constant 0 : i32
    %c0_i32_0 = arith.constant 0 : i32
    %c0_i32_1 = arith.constant 0 : i32
    return %c0_i32, %c0_i32_0 : i32, i32
  }
  func.func @transform_5(%arg0: i32) -> (i32, i32, i32) {
    %c0_i32 = arith.constant 0 : i32
    %c0_i32_0 = arith.constant 0 : i32
    %c0_i32_1 = arith.constant 0 : i32
    return %arg0, %c0_i32, %c0_i32_0 : i32, i32, i32
  }
  func.func @transform_6(%arg0: i32) -> (i32, i32, i32) {
    %c0_i32 = arith.constant 0 : i32
    %c0_i32_0 = arith.constant 0 : i32
    %c0_i32_1 = arith.constant 0 : i32
    return %arg0, %c0_i32, %c0_i32_0 : i32, i32, i32
  }
  func.func @transform_7(%arg0: i32) -> (i32, i32, i32) {
    %c0_i32 = arith.constant 0 : i32
    %c0_i32_0 = arith.constant 0 : i32
    %c0_i32_1 = arith.constant 0 : i32
    %c0_i32_2 = arith.constant 0 : i32
    return %c0_i32, %c0_i32_0, %c0_i32_1 : i32, i32, i32
  }
  func.func @transform_8(%arg0: i32) -> (i32, i32) {
    %c0_i32 = arith.constant 0 : i32
    %c0_i32_0 = arith.constant 0 : i32
    %c0_i32_1 = arith.constant 0 : i32
    return %c0_i32, %c0_i32_0 : i32, i32
  }
  func.func @transform_9(%arg0: i32) -> (i32, i32) {
    %c0_i32 = arith.constant 0 : i32
    %c0_i32_0 = arith.constant 0 : i32
    %c0_i32_1 = arith.constant 0 : i32
    return %c0_i32, %c0_i32_0 : i32, i32
  }
  func.func @transform_10(%arg0: i32) -> (i32, i32) {
    %c0_i32 = arith.constant 0 : i32
    %c0_i32_0 = arith.constant 0 : i32
    %c0_i32_1 = arith.constant 0 : i32
    return %c0_i32, %c0_i32_0 : i32, i32
  }
  func.func @transform_11(%arg0: i32) -> (i32, i32) {
    %c0_i32 = arith.constant 0 : i32
    %c0_i32_0 = arith.constant 0 : i32
    %c0_i32_1 = arith.constant 0 : i32
    return %c0_i32, %c0_i32_0 : i32, i32
  }
  func.func @transform_12(%arg0: i32) -> (i32, i32) {
    %c0_i32 = arith.constant 0 : i32
    %c0_i32_0 = arith.constant 0 : i32
    %c0_i32_1 = arith.constant 0 : i32
    return %c0_i32, %c0_i32_0 : i32, i32
  }
  func.func @transform_13(%arg0: i32) -> (i32, i32, i32) {
    %c0_i32 = arith.constant 0 : i32
    %c0_i32_0 = arith.constant 0 : i32
    %c0_i32_1 = arith.constant 0 : i32
    %c0_i32_2 = arith.constant 0 : i32
    return %c0_i32, %c0_i32_0, %c0_i32_1 : i32, i32, i32
  }
  func.func @transform_14(%arg0: i32) -> (i32, i32) {
    %c0_i32 = arith.constant 0 : i32
    %c0_i32_0 = arith.constant 0 : i32
    %c0_i32_1 = arith.constant 0 : i32
    return %c0_i32, %c0_i32_0 : i32, i32
  }
  func.func @transform_15(%arg0: i32) -> (i32, i32) {
    %c0_i32 = arith.constant 0 : i32
    %c0_i32_0 = arith.constant 0 : i32
    %c0_i32_1 = arith.constant 0 : i32
    return %c0_i32, %c0_i32_0 : i32, i32
  }
  func.func @transform_16(%arg0: i32) -> (i32, i32) {
    %c0_i32 = arith.constant 0 : i32
    %c0_i32_0 = arith.constant 0 : i32
    %c0_i32_1 = arith.constant 0 : i32
    return %c0_i32, %c0_i32_0 : i32, i32
  }
  func.func @transform_17(%arg0: i32) -> (i32, i32, i32) {
    %c0_i32 = arith.constant 0 : i32
    %c0_i32_0 = arith.constant 0 : i32
    %c0_i32_1 = arith.constant 0 : i32
    return %arg0, %c0_i32, %c0_i32_0 : i32, i32, i32
  }
  func.func @transform_18(%arg0: i32) -> (i32, i32, i32) {
    %c0_i32 = arith.constant 0 : i32
    %c0_i32_0 = arith.constant 0 : i32
    %c0_i32_1 = arith.constant 0 : i32
    return %arg0, %c0_i32, %c0_i32_0 : i32, i32, i32
  }
  func.func @transform_19(%arg0: i32) -> (i32, i32, i32) {
    %c0_i32 = arith.constant 0 : i32
    %c0_i32_0 = arith.constant 0 : i32
    %c0_i32_1 = arith.constant 0 : i32
    %c0_i32_2 = arith.constant 0 : i32
    return %c0_i32, %c0_i32_0, %c0_i32_1 : i32, i32, i32
  }
  func.func @transform_20(%arg0: i32) -> (i32, i32) {
    %c0_i32 = arith.constant 0 : i32
    %c0_i32_0 = arith.constant 0 : i32
    %c0_i32_1 = arith.constant 0 : i32
    return %c0_i32, %c0_i32_0 : i32, i32
  }
  func.func @transform_21(%arg0: i32) -> (i32, i32) {
    %c0_i32 = arith.constant 0 : i32
    %c0_i32_0 = arith.constant 0 : i32
    %c0_i32_1 = arith.constant 0 : i32
    return %c0_i32, %c0_i32_0 : i32, i32
  }
  func.func @transform_22(%arg0: i32) -> (i32, i32) {
    %c0_i32 = arith.constant 0 : i32
    %c0_i32_0 = arith.constant 0 : i32
    %c0_i32_1 = arith.constant 0 : i32
    return %c0_i32, %c0_i32_0 : i32, i32
  }
  func.func @transform_23(%arg0: i32) -> (i32, i32, i32) {
    %c0_i32 = arith.constant 0 : i32
    %c0_i32_0 = arith.constant 0 : i32
    %c0_i32_1 = arith.constant 0 : i32
    %c0_i32_2 = arith.constant 0 : i32
    return %c0_i32, %c0_i32_0, %c0_i32_1 : i32, i32, i32
  }
  func.func @transform_24(%arg0: i32) -> (i32, i32) {
    %c0_i32 = arith.constant 0 : i32
    %c0_i32_0 = arith.constant 0 : i32
    %c0_i32_1 = arith.constant 0 : i32
    return %c0_i32, %c0_i32_0 : i32, i32
  }
  func.func @transform_25(%arg0: i32) -> (i32, i32) {
    %c0_i32 = arith.constant 0 : i32
    %c0_i32_0 = arith.constant 0 : i32
    %c0_i32_1 = arith.constant 0 : i32
    return %c0_i32, %c0_i32_0 : i32, i32
  }
  func.func @transform_26(%arg0: i32) -> (i32, i32) {
    %c0_i32 = arith.constant 0 : i32
    %c0_i32_0 = arith.constant 0 : i32
    %c0_i32_1 = arith.constant 0 : i32
    return %c0_i32, %c0_i32_0 : i32, i32
  }
  func.func @transform_27(%arg0: i32) -> (i32, i32, i32) {
    %c0_i32 = arith.constant 0 : i32
    %c0_i32_0 = arith.constant 0 : i32
    %c0_i32_1 = arith.constant 0 : i32
    return %arg0, %c0_i32, %c0_i32_0 : i32, i32, i32
  }
  func.func @transform_28(%arg0: i32) -> (i32, i32, i32) {
    %c0_i32 = arith.constant 0 : i32
    %c0_i32_0 = arith.constant 0 : i32
    %c0_i32_1 = arith.constant 0 : i32
    return %arg0, %c0_i32, %c0_i32_0 : i32, i32, i32
  }
  func.func @transform_29(%arg0: i32) -> (i32, i32, i32) {
    %c0_i32 = arith.constant 0 : i32
    %c0_i32_0 = arith.constant 0 : i32
    %c0_i32_1 = arith.constant 0 : i32
    %c0_i32_2 = arith.constant 0 : i32
    return %c0_i32, %c0_i32_0, %c0_i32_1 : i32, i32, i32
  }
  func.func @transform_30(%arg0: i32) -> (i32, i32) {
    %c0_i32 = arith.constant 0 : i32
    %c0_i32_0 = arith.constant 0 : i32
    %c0_i32_1 = arith.constant 0 : i32
    return %c0_i32, %c0_i32_0 : i32, i32
  }
  func.func @transform_31(%arg0: i32) -> (i32, i32) {
    %c0_i32 = arith.constant 0 : i32
    %c0_i32_0 = arith.constant 0 : i32
    %c0_i32_1 = arith.constant 0 : i32
    return %c0_i32, %c0_i32_0 : i32, i32
  }
  func.func @transform_32(%arg0: i32) -> (i32, i32) {
    %c0_i32 = arith.constant 0 : i32
    %c0_i32_0 = arith.constant 0 : i32
    %c0_i32_1 = arith.constant 0 : i32
    return %c0_i32, %c0_i32_0 : i32, i32
  }
  func.func @transform_33(%arg0: i32) -> (i32, i32) {
    %c0_i32 = arith.constant 0 : i32
    %c0_i32_0 = arith.constant 0 : i32
    %c0_i32_1 = arith.constant 0 : i32
    return %c0_i32, %c0_i32_0 : i32, i32
  }
  func.func @transform_34(%arg0: i32) -> (i32, i32) {
    %c0_i32 = arith.constant 0 : i32
    %c0_i32_0 = arith.constant 0 : i32
    %c0_i32_1 = arith.constant 0 : i32
    return %c0_i32, %c0_i32_0 : i32, i32
  }
  func.func @transform_35(%arg0: i32) -> (i32, i32, i32) {
    %c0_i32 = arith.constant 0 : i32
    %c0_i32_0 = arith.constant 0 : i32
    %c0_i32_1 = arith.constant 0 : i32
    return %arg0, %c0_i32, %c0_i32_0 : i32, i32, i32
  }
}

</mosaic_0001>

<llo_original>
// kernel: tpu_custom_call.1
$region0: #{tpu_custom_call.1}
  #allocation0 [shape = 'u32[]', space=smem, size = 0x4, offset = 0x4, fixed_abs, tag = 'smem constant byte address 0x4 - core index']
  #allocation1 [shape = 'u32[144,128]{1,0:T(1,128)}', space=vmem, size = 0x12000, scoped, tag = 'internal scratch']
  %s0 = inlined_call_operand.smem [shape: u32[36], index: -1, kind: input, shape index: {}]
  %s1 = sld [smem:[%s0]]
  %s2 = scalar_lea.smem %s0, 1
  %s3 = sld [smem:[%s2]]
  %s4 = scalar_lea.smem %s0, 2
  %s5 = sld [smem:[%s4]]
  %s6 = scalar_lea.smem %s0, 3
  %s7 = sld [smem:[%s6]]
  %s8 = scalar_lea.smem %s0, 4
  %s9 = sld [smem:[%s8]]
  %s10 = scalar_lea.smem %s0, 5
  %s11 = sld [smem:[%s10]]
  %s12 = scalar_lea.smem %s0, 6
  %s13 = sld [smem:[%s12]]
  %s14 = scalar_lea.smem %s0, 7
  %s15 = sld [smem:[%s14]]
  %s16 = scalar_lea.smem %s0, 8
  %s17 = sld [smem:[%s16]]
  %s18 = scalar_lea.smem %s0, 9
  %s19 = sld [smem:[%s18]]
  %s20 = scalar_lea.smem %s0, 10
  %s21 = sld [smem:[%s20]]
  %s22 = scalar_lea.smem %s0, 11
  %s23 = sld [smem:[%s22]]
  %s24 = scalar_lea.smem %s0, 12
  %s25 = sld [smem:[%s24]]
  %s26 = scalar_lea.smem %s0, 13
  %s27 = sld [smem:[%s26]]
  %s28 = scalar_lea.smem %s0, 14
  %s29 = sld [smem:[%s28]]
  %s30 = scalar_lea.smem %s0, 15
  %s31 = sld [smem:[%s30]]
  %s32 = scalar_lea.smem %s0, 16
  %s33 = sld [smem:[%s32]]
  %s34 = scalar_lea.smem %s0, 17
  %s35 = sld [smem:[%s34]]
  %s36 = scalar_lea.smem %s0, 18
  %s37 = sld [smem:[%s36]]
  %s38 = scalar_lea.smem %s0, 19
  %s39 = sld [smem:[%s38]]
  %s40 = scalar_lea.smem %s0, 20
  %s41 = sld [smem:[%s40]]
  %s42 = scalar_lea.smem %s0, 21
  %s43 = sld [smem:[%s42]]
  %s44 = scalar_lea.smem %s0, 22
  %s45 = sld [smem:[%s44]]
  %s46 = scalar_lea.smem %s0, 23
  %s47 = sld [smem:[%s46]]
  %s48 = scalar_lea.smem %s0, 24
  %s49 = sld [smem:[%s48]]
  %s50 = scalar_lea.smem %s0, 25
  %s51 = sld [smem:[%s50]]
  %s52 = scalar_lea.smem %s0, 26
  %s53 = sld [smem:[%s52]]
  %s54 = scalar_lea.smem %s0, 27
  %s55 = sld [smem:[%s54]]
  %s56 = scalar_lea.smem %s0, 28
  %s57 = sld [smem:[%s56]]
  %s58 = scalar_lea.smem %s0, 29
  %s59 = sld [smem:[%s58]]
  %s60 = scalar_lea.smem %s0, 30
  %s61 = sld [smem:[%s60]]
  %s62 = scalar_lea.smem %s0, 31
  %s63 = sld [smem:[%s62]]
  %s64 = scalar_lea.smem %s0, 32
  %s65 = sld [smem:[%s64]]
  %s66 = scalar_lea.smem %s0, 33
  %s67 = sld [smem:[%s66]]
  %s68 = scalar_lea.smem %s0, 34
  %s69 = sld [smem:[%s68]]
  %s70 = scalar_lea.smem %s0, 35
  %s71 = sld [smem:[%s70]]
  %s72 = sld [smem:[#allocation0]]
  $region213: #{tpu_custom_call.1} parent=0
    _
  %s74 = ssub.s32 1, %s72
  %s75 = scalar_select 0, %s74, %s72
  $region1: #{tpu_custom_call.1} parent=0
    #allocation2 [shape = 'u8[3072]{0}', space=vmem, size = 0xc00, scoped, tag = 'input window, operand 1, single buffered']
    #allocation3 [shape = 's32[2]{0}', space=sflag, size = 0x8, scoped, tag = 'scoped memory for tpu_custom_call.1']
    #allocation4 [shape = 'u8[512]{0}', space=vmem, size = 0x400, scoped, tag = 'input window, operand 2, single buffered']
    #allocation5 [shape = 's32[1]{0}', space=sflag, size = 0x4, scoped, tag = 'scoped memory for tpu_custom_call.1']
    #allocation6 [shape = 'u8[512]{0}', space=vmem, size = 0x400, scoped, tag = 'input window, operand 3, single buffered']
    #allocation7 [shape = 'u8[512]{0}', space=vmem, size = 0x400, scoped, tag = 'input window, operand 4, single buffered']
    #allocation8 [shape = 's32[1]{0}', space=sflag, size = 0x4, scoped, tag = 'scoped memory for tpu_custom_call.1']
    #allocation9 [shape = 'u8[1024]{0}', space=vmem, size = 0x400, scoped, tag = 'input window, operand 5']
    #allocation10 [shape = 'u8[1024]{0}', space=vmem, size = 0x400, scoped, tag = 'input window, operand 6']
    #allocation11 [shape = 'u8[512]{0}', space=vmem, size = 0x400, scoped, tag = 'input window, operand 8, single buffered']
    #allocation12 [shape = 'u8[512]{0}', space=vmem, size = 0x400, scoped, tag = 'input window, operand 9, single buffered']
    #allocation13 [shape = 'u8[512]{0}', space=vmem, size = 0x400, scoped, tag = 'input window, operand 10, single buffered']
    #allocation14 [shape = 's32[1]{0}', space=sflag, size = 0x4, scoped, tag = 'scoped memory for tpu_custom_call.1']
    #allocation15 [shape = 'u8[512]{0}', space=vmem, size = 0x400, scoped, tag = 'input window, operand 14, single buffered']
    %76 = vsyncpa [#allocation3], 0
    %77 = vsyncpa [#allocation5], 0
    %78 = vsyncpa [#allocation8], 0
    %79 = vsyncpa [#allocation14], 0
    loop: start=0, step=1, limit=4
    $region2: #{tpu_custom_call.1} parent=1 // loop_pre_header
      _
    $region3: #{tpu_custom_call.1} parent=1 // loop_header
      %s81 = sphi 0, %s85
      %p82 = scmp.ge.s32.totalorder %s81, 4
      %s91 = sphi 0, %s93
      %s94 = sphi 0, %s91
      %s95 = sphi 0, %s94
      %s111 = sphi 0, %s95
      %s115 = sphi 0, %s115
      %s117 = sphi 0, %s115
      %s118 = sphi 0, %s117
      %s132 = sphi 0, %s118
      %s136 = sphi 0, %s136
      %s138 = sphi 0, %s136
      %s139 = sphi 0, %s138
      %s153 = sphi 0, %s139
      %s157 = sphi 0, %s157
      %s159 = sphi 0, %s157
      %s160 = sphi 0, %s159
      %s174 = sphi 0, %s160
      %s178 = sphi 0, %s178
      %s180 = sphi 0, %s178
      %s181 = sphi 0, %s180
      %s195 = sphi 0, %s181
      %s201 = sphi 0, %s203
      %s204 = sphi 0, %s201
      %s205 = sphi 0, %s204
      %s221 = sphi 0, %s205
      %s227 = sphi 0, %s229
      %s230 = sphi 0, %s227
      %s231 = sphi 0, %s230
      %s247 = sphi 0, %s231
      %s251 = sphi 0, %s251
      %s253 = sphi 0, %s251
      %s254 = sphi 0, %s253
      %s268 = sphi 0, %s254
      %s272 = sphi 0, %s272
      %s274 = sphi 0, %s272
      %s275 = sphi 0, %s274
      %s289 = sphi 0, %s275
      %s293 = sphi 0, %s293
      %s295 = sphi 0, %s293
      %s296 = sphi 0, %s295
      %s310 = sphi 0, %s296
      %s314 = sphi 0, %s314
      %s316 = sphi 0, %s314
      %s317 = sphi 0, %s316
      %s331 = sphi 0, %s317
      %s335 = sphi 0, %s335
      %s337 = sphi 0, %s335
      %s338 = sphi 0, %s337
      %s352 = sphi 0, %s338
      %s356 = sphi 0, %s356
      %s358 = sphi 0, %s356
      %s359 = sphi 0, %s358
      %s373 = sphi 0, %s359
      %s377 = sphi 0, %s377
      %s379 = sphi 0, %s377
      %s380 = sphi 0, %s379
      %s394 = sphi 0, %s380
      %s398 = sphi 0, %s398
      %s400 = sphi 0, %s398
      %s401 = sphi 0, %s400
      %s415 = sphi 0, %s401
      %s419 = sphi 0, %s419
      %s421 = sphi 0, %s419
      %s422 = sphi 0, %s421
      %s436 = sphi 0, %s422
      %s440 = sphi 0, %s440
      %s442 = sphi 0, %s440
      %s443 = sphi 0, %s442
      %s457 = sphi 0, %s443
      %s463 = sphi 0, %s465
      %s466 = sphi 0, %s463
      %s467 = sphi 0, %s466
      %s483 = sphi 0, %s467
      %s489 = sphi 0, %s491
      %s492 = sphi 0, %s489
      %s493 = sphi 0, %s492
      %s509 = sphi 0, %s493
      %s513 = sphi 0, %s513
      %s515 = sphi 0, %s513
      %s516 = sphi 0, %s515
      %s530 = sphi 0, %s516
      %s534 = sphi 0, %s534
      %s536 = sphi 0, %s534
      %s537 = sphi 0, %s536
      %s551 = sphi 0, %s537
      %s555 = sphi 0, %s555
      %s557 = sphi 0, %s555
      %s558 = sphi 0, %s557
      %s572 = sphi 0, %s558
      %s576 = sphi 0, %s576
      %s578 = sphi 0, %s576
      %s579 = sphi 0, %s578
      %s593 = sphi 0, %s579
      %s597 = sphi 0, %s597
      %s599 = sphi 0, %s597
      %s600 = sphi 0, %s599
      %s614 = sphi 0, %s600
      %s618 = sphi 0, %s618
      %s620 = sphi 0, %s618
      %s621 = sphi 0, %s620
      %s635 = sphi 0, %s621
      %s639 = sphi 0, %s639
      %s641 = sphi 0, %s639
      %s642 = sphi 0, %s641
      %s656 = sphi 0, %s642
      %s660 = sphi 0, %s660
      %s662 = sphi 0, %s660
      %s663 = sphi 0, %s662
      %s677 = sphi 0, %s663
      %s683 = sphi 0, %s685
      %s686 = sphi 0, %s683
      %s687 = sphi 0, %s686
      %s703 = sphi 0, %s687
      %s709 = sphi 0, %s711
      %s712 = sphi 0, %s709
      %s713 = sphi 0, %s712
      %s729 = sphi 0, %s713
      %s733 = sphi 0, %s733
      %s735 = sphi 0, %s733
      %s736 = sphi 0, %s735
      %s750 = sphi 0, %s736
      %s754 = sphi 0, %s754
      %s756 = sphi 0, %s754
      %s757 = sphi 0, %s756
      %s771 = sphi 0, %s757
      %s775 = sphi 0, %s775
      %s777 = sphi 0, %s775
      %s778 = sphi 0, %s777
      %s792 = sphi 0, %s778
      %s796 = sphi 0, %s796
      %s798 = sphi 0, %s796
      %s799 = sphi 0, %s798
      %s813 = sphi 0, %s799
      %s817 = sphi 0, %s817
      %s819 = sphi 0, %s817
      %s820 = sphi 0, %s819
      %s834 = sphi 0, %s820
      %s838 = sphi 0, %s838
      %s840 = sphi 0, %s838
      %s841 = sphi 0, %s840
      %s855 = sphi 0, %s841
      %s861 = sphi 0, %s863
      %s864 = sphi 0, %s861
      %s865 = sphi 0, %s864
      %s881 = sphi 0, %s865
    $region4: #{tpu_custom_call.1} parent=1 // loop_header_branch
      %84 = sbr.rel (%p82) target = $region8
    $region5: #{tpu_custom_call.1} parent=1 // loop_body
      %s86 = ssub.s32 %s81, 1
      %s87 = ssub.s32 %s81, 2
      %s88 = sadd.s32 %s81, 1
      %s89 = ssub.s32 %s81, %s88
      %p90 = scmp.eq.s32.totalorder %s89, 0
      %s92 = sadd.s32 %s91, 1
      %s93 = scalar_select %p90, %s91, %s92
      %p96 = pneg %p90
      %p97 = scmp.eq.s32.totalorder %s81, 1
      %p98 = por %p96, %p97
      %p99 = scmp.ne.s32.totalorder %s91, %s94
      %p100 = scmp.eq.s32.totalorder %s81, 0
      %p101 = por %p99, %p100
      %p102 = scmp.ne.s32.totalorder %s91, %s94
      %p103 = scmp.eq.s32.totalorder %s86, 1
      %p104 = por %p102, %p103
      %p105 = scmp.ne.s32.totalorder %s94, %s95
      %p106 = scmp.eq.s32.totalorder %s86, 0
      %p107 = por %p105, %p106
      %p108 = scmp.ne.s32.totalorder %s94, %s95
      %p109 = scmp.eq.s32.totalorder %s87, 1
      %p110 = por %p108, %p109
      %p112 = scmp.ne.s32.totalorder %s95, %s111
      %p113 = scmp.eq.s32.totalorder %s87, 0
      %p114 = por %p112, %p113
      %s116 = sadd.s32 %s115, 1
      %p119 = scmp.eq.s32.totalorder %s81, 1
      %p120 = scmp.ne.s32.totalorder %s115, %s117
      %p121 = scmp.eq.s32.totalorder %s81, 0
      %p122 = por %p120, %p121
      %p123 = scmp.ne.s32.totalorder %s115, %s117
      %p124 = scmp.eq.s32.totalorder %s86, 1
      %p125 = por %p123, %p124
      %p126 = scmp.ne.s32.totalorder %s117, %s118
      %p127 = scmp.eq.s32.totalorder %s86, 0
      %p128 = por %p126, %p127
      %p129 = scmp.ne.s32.totalorder %s117, %s118
      %p130 = scmp.eq.s32.totalorder %s87, 1
      %p131 = por %p129, %p130
      %p133 = scmp.ne.s32.totalorder %s118, %s132
      %p134 = scmp.eq.s32.totalorder %s87, 0
      %p135 = por %p133, %p134
      %s137 = sadd.s32 %s136, 1
      %p140 = scmp.eq.s32.totalorder %s81, 1
      %p141 = scmp.ne.s32.totalorder %s136, %s138
      %p142 = scmp.eq.s32.totalorder %s81, 0
      %p143 = por %p141, %p142
      %p144 = scmp.ne.s32.totalorder %s136, %s138
      %p145 = scmp.eq.s32.totalorder %s86, 1
      %p146 = por %p144, %p145
      %p147 = scmp.ne.s32.totalorder %s138, %s139
      %p148 = scmp.eq.s32.totalorder %s86, 0
      %p149 = por %p147, %p148
      %p150 = scmp.ne.s32.totalorder %s138, %s139
      %p151 = scmp.eq.s32.totalorder %s87, 1
      %p152 = por %p150, %p151
      %p154 = scmp.ne.s32.totalorder %s139, %s153
      %p155 = scmp.eq.s32.totalorder %s87, 0
      %p156 = por %p154, %p155
      %s158 = sadd.s32 %s157, 1
      %p161 = scmp.eq.s32.totalorder %s81, 1
      %p162 = scmp.ne.s32.totalorder %s157, %s159
      %p163 = scmp.eq.s32.totalorder %s81, 0
      %p164 = por %p162, %p163
      %p165 = scmp.ne.s32.totalorder %s157, %s159
      %p166 = scmp.eq.s32.totalorder %s86, 1
      %p167 = por %p165, %p166
      %p168 = scmp.ne.s32.totalorder %s159, %s160
      %p169 = scmp.eq.s32.totalorder %s86, 0
      %p170 = por %p168, %p169
      %p171 = scmp.ne.s32.totalorder %s159, %s160
      %p172 = scmp.eq.s32.totalorder %s87, 1
      %p173 = por %p171, %p172
      %p175 = scmp.ne.s32.totalorder %s160, %s174
      %p176 = scmp.eq.s32.totalorder %s87, 0
      %p177 = por %p175, %p176
      %s179 = sadd.s32 %s178, 1
      %p182 = scmp.eq.s32.totalorder %s81, 1
      %p183 = scmp.ne.s32.totalorder %s178, %s180
      %p184 = scmp.eq.s32.totalorder %s81, 0
      %p185 = por %p183, %p184
      %p186 = scmp.ne.s32.totalorder %s178, %s180
      %p187 = scmp.eq.s32.totalorder %s86, 1
      %p188 = por %p186, %p187
      %p189 = scmp.ne.s32.totalorder %s180, %s181
      %p190 = scmp.eq.s32.totalorder %s86, 0
      %p191 = por %p189, %p190
      %p192 = scmp.ne.s32.totalorder %s180, %s181
      %p193 = scmp.eq.s32.totalorder %s87, 1
      %p194 = por %p192, %p193
      %p196 = scmp.ne.s32.totalorder %s181, %s195
      %p197 = scmp.eq.s32.totalorder %s87, 0
      %p198 = por %p196, %p197
      %s199 = ssub.s32 %s81, %s88
      %p200 = scmp.eq.s32.totalorder %s199, 0
      %s202 = sadd.s32 %s201, 1
      %s203 = scalar_select %p200, %s201, %s202
      %p206 = pneg %p200
      %p207 = scmp.eq.s32.totalorder %s81, 1
      %p208 = por %p206, %p207
      %p209 = scmp.ne.s32.totalorder %s201, %s204
      %p210 = scmp.eq.s32.totalorder %s81, 0
      %p211 = por %p209, %p210
      %p212 = scmp.ne.s32.totalorder %s201, %s204
      %p213 = scmp.eq.s32.totalorder %s86, 1
      %p214 = por %p212, %p213
      %p215 = scmp.ne.s32.totalorder %s204, %s205
      %p216 = scmp.eq.s32.totalorder %s86, 0
      %p217 = por %p215, %p216
      %p218 = scmp.ne.s32.totalorder %s204, %s205
      %p219 = scmp.eq.s32.totalorder %s87, 1
      %p220 = por %p218, %p219
      %p222 = scmp.ne.s32.totalorder %s205, %s221
      %p223 = scmp.eq.s32.totalorder %s87, 0
      %p224 = por %p222, %p223
      %s225 = ssub.s32 %s81, %s88
      %p226 = scmp.eq.s32.totalorder %s225, 0
      %s228 = sadd.s32 %s227, 1
      %s229 = scalar_select %p226, %s227, %s228
      %p232 = pneg %p226
      %p233 = scmp.eq.s32.totalorder %s81, 1
      %p234 = por %p232, %p233
      %p235 = scmp.ne.s32.totalorder %s227, %s230
      %p236 = scmp.eq.s32.totalorder %s81, 0
      %p237 = por %p235, %p236
      %p238 = scmp.ne.s32.totalorder %s227, %s230
      %p239 = scmp.eq.s32.totalorder %s86, 1
      %p240 = por %p238, %p239
      %p241 = scmp.ne.s32.totalorder %s230, %s231
      %p242 = scmp.eq.s32.totalorder %s86, 0
      %p243 = por %p241, %p242
      %p244 = scmp.ne.s32.totalorder %s230, %s231
      %p245 = scmp.eq.s32.totalorder %s87, 1
      %p246 = por %p244, %p245
      %p248 = scmp.ne.s32.totalorder %s231, %s247
      %p249 = scmp.eq.s32.totalorder %s87, 0
      %p250 = por %p248, %p249
      %s252 = sadd.s32 %s251, 1
      %p255 = scmp.eq.s32.totalorder %s81, 1
      %p256 = scmp.ne.s32.totalorder %s251, %s253
      %p257 = scmp.eq.s32.totalorder %s81, 0
      %p258 = por %p256, %p257
      %p259 = scmp.ne.s32.totalorder %s251, %s253
      %p260 = scmp.eq.s32.totalorder %s86, 1
      %p261 = por %p259, %p260
      %p262 = scmp.ne.s32.totalorder %s253, %s254
      %p263 = scmp.eq.s32.totalorder %s86, 0
      %p264 = por %p262, %p263
      %p265 = scmp.ne.s32.totalorder %s253, %s254
      %p266 = scmp.eq.s32.totalorder %s87, 1
      %p267 = por %p265, %p266
      %p269 = scmp.ne.s32.totalorder %s254, %s268
      %p270 = scmp.eq.s32.totalorder %s87, 0
      %p271 = por %p269, %p270
      %s273 = sadd.s32 %s272, 1
      %p276 = scmp.eq.s32.totalorder %s81, 1
      %p277 = scmp.ne.s32.totalorder %s272, %s274
      %p278 = scmp.eq.s32.totalorder %s81, 0
      %p279 = por %p277, %p278
      %p280 = scmp.ne.s32.totalorder %s272, %s274
      %p281 = scmp.eq.s32.totalorder %s86, 1
      %p282 = por %p280, %p281
      %p283 = scmp.ne.s32.totalorder %s274, %s275
      %p284 = scmp.eq.s32.totalorder %s86, 0
      %p285 = por %p283, %p284
      %p286 = scmp.ne.s32.totalorder %s274, %s275
      %p287 = scmp.eq.s32.totalorder %s87, 1
      %p288 = por %p286, %p287
      %p290 = scmp.ne.s32.totalorder %s275, %s289
      %p291 = scmp.eq.s32.totalorder %s87, 0
      %p292 = por %p290, %p291
      %s294 = sadd.s32 %s293, 1
      %p297 = scmp.eq.s32.totalorder %s81, 1
      %p298 = scmp.ne.s32.totalorder %s293, %s295
      %p299 = scmp.eq.s32.totalorder %s81, 0
      %p300 = por %p298, %p299
      %p301 = scmp.ne.s32.totalorder %s293, %s295
      %p302 = scmp.eq.s32.totalorder %s86, 1
      %p303 = por %p301, %p302
      %p304 = scmp.ne.s32.totalorder %s295, %s296
      %p305 = scmp.eq.s32.totalorder %s86, 0
      %p306 = por %p304, %p305
      %p307 = scmp.ne.s32.totalorder %s295, %s296
      %p308 = scmp.eq.s32.totalorder %s87, 1
      %p309 = por %p307, %p308
      %p311 = scmp.ne.s32.totalorder %s296, %s310
      %p312 = scmp.eq.s32.totalorder %s87, 0
      %p313 = por %p311, %p312
      %s315 = sadd.s32 %s314, 1
      %p318 = scmp.eq.s32.totalorder %s81, 1
      %p319 = scmp.ne.s32.totalorder %s314, %s316
      %p320 = scmp.eq.s32.totalorder %s81, 0
      %p321 = por %p319, %p320
      %p322 = scmp.ne.s32.totalorder %s314, %s316
      %p323 = scmp.eq.s32.totalorder %s86, 1
      %p324 = por %p322, %p323
      %p325 = scmp.ne.s32.totalorder %s316, %s317
      %p326 = scmp.eq.s32.totalorder %s86, 0
      %p327 = por %p325, %p326
      %p328 = scmp.ne.s32.totalorder %s316, %s317
      %p329 = scmp.eq.s32.totalorder %s87, 1
      %p330 = por %p328, %p329
      %p332 = scmp.ne.s32.totalorder %s317, %s331
      %p333 = scmp.eq.s32.totalorder %s87, 0
      %p334 = por %p332, %p333
      %s336 = sadd.s32 %s335, 1
      %p339 = scmp.eq.s32.totalorder %s81, 1
      %p340 = scmp.ne.s32.totalorder %s335, %s337
      %p341 = scmp.eq.s32.totalorder %s81, 0
      %p342 = por %p340, %p341
      %p343 = scmp.ne.s32.totalorder %s335, %s337
      %p344 = scmp.eq.s32.totalorder %s86, 1
      %p345 = por %p343, %p344
      %p346 = scmp.ne.s32.totalorder %s337, %s338
      %p347 = scmp.eq.s32.totalorder %s86, 0
      %p348 = por %p346, %p347
      %p349 = scmp.ne.s32.totalorder %s337, %s338
      %p350 = scmp.eq.s32.totalorder %s87, 1
      %p351 = por %p349, %p350
      %p353 = scmp.ne.s32.totalorder %s338, %s352
      %p354 = scmp.eq.s32.totalorder %s87, 0
      %p355 = por %p353, %p354
      %s357 = sadd.s32 %s356, 1
      %p360 = scmp.eq.s32.totalorder %s81, 1
      %p361 = scmp.ne.s32.totalorder %s356, %s358
      %p362 = scmp.eq.s32.totalorder %s81, 0
      %p363 = por %p361, %p362
      %p364 = scmp.ne.s32.totalorder %s356, %s358
      %p365 = scmp.eq.s32.totalorder %s86, 1
      %p366 = por %p364, %p365
      %p367 = scmp.ne.s32.totalorder %s358, %s359
      %p368 = scmp.eq.s32.totalorder %s86, 0
      %p369 = por %p367, %p368
      %p370 = scmp.ne.s32.totalorder %s358, %s359
      %p371 = scmp.eq.s32.totalorder %s87, 1
      %p372 = por %p370, %p371
      %p374 = scmp.ne.s32.totalorder %s359, %s373
      %p375 = scmp.eq.s32.totalorder %s87, 0
      %p376 = por %p374, %p375
      %s378 = sadd.s32 %s377, 1
      %p381 = scmp.eq.s32.totalorder %s81, 1
      %p382 = scmp.ne.s32.totalorder %s377, %s379
      %p383 = scmp.eq.s32.totalorder %s81, 0
      %p384 = por %p382, %p383
      %p385 = scmp.ne.s32.totalorder %s377, %s379
      %p386 = scmp.eq.s32.totalorder %s86, 1
      %p387 = por %p385, %p386
      %p388 = scmp.ne.s32.totalorder %s379, %s380
      %p389 = scmp.eq.s32.totalorder %s86, 0
      %p390 = por %p388, %p389
      %p391 = scmp.ne.s32.totalorder %s379, %s380
      %p392 = scmp.eq.s32.totalorder %s87, 1
      %p393 = por %p391, %p392
      %p395 = scmp.ne.s32.totalorder %s380, %s394
      %p396 = scmp.eq.s32.totalorder %s87, 0
      %p397 = por %p395, %p396
      %s399 = sadd.s32 %s398, 1
      %p402 = scmp.eq.s32.totalorder %s81, 1
      %p403 = scmp.ne.s32.totalorder %s398, %s400
      %p404 = scmp.eq.s32.totalorder %s81, 0
      %p405 = por %p403, %p404
      %p406 = scmp.ne.s32.totalorder %s398, %s400
      %p407 = scmp.eq.s32.totalorder %s86, 1
      %p408 = por %p406, %p407
      %p409 = scmp.ne.s32.totalorder %s400, %s401
      %p410 = scmp.eq.s32.totalorder %s86, 0
      %p411 = por %p409, %p410
      %p412 = scmp.ne.s32.totalorder %s400, %s401
      %p413 = scmp.eq.s32.totalorder %s87, 1
      %p414 = por %p412, %p413
      %p416 = scmp.ne.s32.totalorder %s401, %s415
      %p417 = scmp.eq.s32.totalorder %s87, 0
      %p418 = por %p416, %p417
      %s420 = sadd.s32 %s419, 1
      %p423 = scmp.eq.s32.totalorder %s81, 1
      %p424 = scmp.ne.s32.totalorder %s419, %s421
      %p425 = scmp.eq.s32.totalorder %s81, 0
      %p426 = por %p424, %p425
      %p427 = scmp.ne.s32.totalorder %s419, %s421
      %p428 = scmp.eq.s32.totalorder %s86, 1
      %p429 = por %p427, %p428
      %p430 = scmp.ne.s32.totalorder %s421, %s422
      %p431 = scmp.eq.s32.totalorder %s86, 0
      %p432 = por %p430, %p431
      %p433 = scmp.ne.s32.totalorder %s421, %s422
      %p434 = scmp.eq.s32.totalorder %s87, 1
      %p435 = por %p433, %p434
      %p437 = scmp.ne.s32.totalorder %s422, %s436
      %p438 = scmp.eq.s32.totalorder %s87, 0
      %p439 = por %p437, %p438
      %s441 = sadd.s32 %s440, 1
      %p444 = scmp.eq.s32.totalorder %s81, 1
      %p445 = scmp.ne.s32.totalorder %s440, %s442
      %p446 = scmp.eq.s32.totalorder %s81, 0
      %p447 = por %p445, %p446
      %p448 = scmp.ne.s32.totalorder %s440, %s442
      %p449 = scmp.eq.s32.totalorder %s86, 1
      %p450 = por %p448, %p449
      %p451 = scmp.ne.s32.totalorder %s442, %s443
      %p452 = scmp.eq.s32.totalorder %s86, 0
      %p453 = por %p451, %p452
      %p454 = scmp.ne.s32.totalorder %s442, %s443
      %p455 = scmp.eq.s32.totalorder %s87, 1
      %p456 = por %p454, %p455
      %p458 = scmp.ne.s32.totalorder %s443, %s457
      %p459 = scmp.eq.s32.totalorder %s87, 0
      %p460 = por %p458, %p459
      %s461 = ssub.s32 %s81, %s88
      %p462 = scmp.eq.s32.totalorder %s461, 0
      %s464 = sadd.s32 %s463, 1
      %s465 = scalar_select %p462, %s463, %s464
      %p468 = pneg %p462
      %p469 = scmp.eq.s32.totalorder %s81, 1
      %p470 = por %p468, %p469
      %p471 = scmp.ne.s32.totalorder %s463, %s466
      %p472 = scmp.eq.s32.totalorder %s81, 0
      %p473 = por %p471, %p472
      %p474 = scmp.ne.s32.totalorder %s463, %s466
      %p475 = scmp.eq.s32.totalorder %s86, 1
      %p476 = por %p474, %p475
      %p477 = scmp.ne.s32.totalorder %s466, %s467
      %p478 = scmp.eq.s32.totalorder %s86, 0
      %p479 = por %p477, %p478
      %p480 = scmp.ne.s32.totalorder %s466, %s467
      %p481 = scmp.eq.s32.totalorder %s87, 1
      %p482 = por %p480, %p481
      %p484 = scmp.ne.s32.totalorder %s467, %s483
      %p485 = scmp.eq.s32.totalorder %s87, 0
      %p486 = por %p484, %p485
      %s487 = ssub.s32 %s81, %s88
      %p488 = scmp.eq.s32.totalorder %s487, 0
      %s490 = sadd.s32 %s489, 1
      %s491 = scalar_select %p488, %s489, %s490
      %p494 = pneg %p488
      %p495 = scmp.eq.s32.totalorder %s81, 1
      %p496 = por %p494, %p495
      %p497 = scmp.ne.s32.totalorder %s489, %s492
      %p498 = scmp.eq.s32.totalorder %s81, 0
      %p499 = por %p497, %p498
      %p500 = scmp.ne.s32.totalorder %s489, %s492
      %p501 = scmp.eq.s32.totalorder %s86, 1
      %p502 = por %p500, %p501
      %p503 = scmp.ne.s32.totalorder %s492, %s493
      %p504 = scmp.eq.s32.totalorder %s86, 0
      %p505 = por %p503, %p504
      %p506 = scmp.ne.s32.totalorder %s492, %s493
      %p507 = scmp.eq.s32.totalorder %s87, 1
      %p508 = por %p506, %p507
      %p510 = scmp.ne.s32.totalorder %s493, %s509
      %p511 = scmp.eq.s32.totalorder %s87, 0
      %p512 = por %p510, %p511
      %s514 = sadd.s32 %s513, 1
      %p517 = scmp.eq.s32.totalorder %s81, 1
      %p518 = scmp.ne.s32.totalorder %s513, %s515
      %p519 = scmp.eq.s32.totalorder %s81, 0
      %p520 = por %p518, %p519
      %p521 = scmp.ne.s32.totalorder %s513, %s515
      %p522 = scmp.eq.s32.totalorder %s86, 1
      %p523 = por %p521, %p522
      %p524 = scmp.ne.s32.totalorder %s515, %s516
      %p525 = scmp.eq.s32.totalorder %s86, 0
      %p526 = por %p524, %p525
      %p527 = scmp.ne.s32.totalorder %s515, %s516
      %p528 = scmp.eq.s32.totalorder %s87, 1
      %p529 = por %p527, %p528
      %p531 = scmp.ne.s32.totalorder %s516, %s530
      %p532 = scmp.eq.s32.totalorder %s87, 0
      %p533 = por %p531, %p532
      %s535 = sadd.s32 %s534, 1
      %p538 = scmp.eq.s32.totalorder %s81, 1
      %p539 = scmp.ne.s32.totalorder %s534, %s536
      %p540 = scmp.eq.s32.totalorder %s81, 0
      %p541 = por %p539, %p540
      %p542 = scmp.ne.s32.totalorder %s534, %s536
      %p543 = scmp.eq.s32.totalorder %s86, 1
      %p544 = por %p542, %p543
      %p545 = scmp.ne.s32.totalorder %s536, %s537
      %p546 = scmp.eq.s32.totalorder %s86, 0
      %p547 = por %p545, %p546
      %p548 = scmp.ne.s32.totalorder %s536, %s537
      %p549 = scmp.eq.s32.totalorder %s87, 1
      %p550 = por %p548, %p549
      %p552 = scmp.ne.s32.totalorder %s537, %s551
      %p553 = scmp.eq.s32.totalorder %s87, 0
      %p554 = por %p552, %p553
      %s556 = sadd.s32 %s555, 1
      %p559 = scmp.eq.s32.totalorder %s81, 1
      %p560 = scmp.ne.s32.totalorder %s555, %s557
      %p561 = scmp.eq.s32.totalorder %s81, 0
      %p562 = por %p560, %p561
      %p563 = scmp.ne.s32.totalorder %s555, %s557
      %p564 = scmp.eq.s32.totalorder %s86, 1
      %p565 = por %p563, %p564
      %p566 = scmp.ne.s32.totalorder %s557, %s558
      %p567 = scmp.eq.s32.totalorder %s86, 0
      %p568 = por %p566, %p567
      %p569 = scmp.ne.s32.totalorder %s557, %s558
      %p570 = scmp.eq.s32.totalorder %s87, 1
      %p571 = por %p569, %p570
      %p573 = scmp.ne.s32.totalorder %s558, %s572
      %p574 = scmp.eq.s32.totalorder %s87, 0
      %p575 = por %p573, %p574
      %s577 = sadd.s32 %s576, 1
      %p580 = scmp.eq.s32.totalorder %s81, 1
      %p581 = scmp.ne.s32.totalorder %s576, %s578
      %p582 = scmp.eq.s32.totalorder %s81, 0
      %p583 = por %p581, %p582
      %p584 = scmp.ne.s32.totalorder %s576, %s578
      %p585 = scmp.eq.s32.totalorder %s86, 1
      %p586 = por %p584, %p585
      %p587 = scmp.ne.s32.totalorder %s578, %s579
      %p588 = scmp.eq.s32.totalorder %s86, 0
      %p589 = por %p587, %p588
      %p590 = scmp.ne.s32.totalorder %s578, %s579
      %p591 = scmp.eq.s32.totalorder %s87, 1
      %p592 = por %p590, %p591
      %p594 = scmp.ne.s32.totalorder %s579, %s593
      %p595 = scmp.eq.s32.totalorder %s87, 0
      %p596 = por %p594, %p595
      %s598 = sadd.s32 %s597, 1
      %p601 = scmp.eq.s32.totalorder %s81, 1
      %p602 = scmp.ne.s32.totalorder %s597, %s599
      %p603 = scmp.eq.s32.totalorder %s81, 0
      %p604 = por %p602, %p603
      %p605 = scmp.ne.s32.totalorder %s597, %s599
      %p606 = scmp.eq.s32.totalorder %s86, 1
      %p607 = por %p605, %p606
      %p608 = scmp.ne.s32.totalorder %s599, %s600
      %p609 = scmp.eq.s32.totalorder %s86, 0
      %p610 = por %p608, %p609
      %p611 = scmp.ne.s32.totalorder %s599, %s600
      %p612 = scmp.eq.s32.totalorder %s87, 1
      %p613 = por %p611, %p612
      %p615 = scmp.ne.s32.totalorder %s600, %s614
      %p616 = scmp.eq.s32.totalorder %s87, 0
      %p617 = por %p615, %p616
      %s619 = sadd.s32 %s618, 1
      %p622 = scmp.eq.s32.totalorder %s81, 1
      %p623 = scmp.ne.s32.totalorder %s618, %s620
      %p624 = scmp.eq.s32.totalorder %s81, 0
      %p625 = por %p623, %p624
      %p626 = scmp.ne.s32.totalorder %s618, %s620
      %p627 = scmp.eq.s32.totalorder %s86, 1
      %p628 = por %p626, %p627
      %p629 = scmp.ne.s32.totalorder %s620, %s621
      %p630 = scmp.eq.s32.totalorder %s86, 0
      %p631 = por %p629, %p630
      %p632 = scmp.ne.s32.totalorder %s620, %s621
      %p633 = scmp.eq.s32.totalorder %s87, 1
      %p634 = por %p632, %p633
      %p636 = scmp.ne.s32.totalorder %s621, %s635
      %p637 = scmp.eq.s32.totalorder %s87, 0
      %p638 = por %p636, %p637
      %s640 = sadd.s32 %s639, 1
      %p643 = scmp.eq.s32.totalorder %s81, 1
      %p644 = scmp.ne.s32.totalorder %s639, %s641
      %p645 = scmp.eq.s32.totalorder %s81, 0
      %p646 = por %p644, %p645
      %p647 = scmp.ne.s32.totalorder %s639, %s641
      %p648 = scmp.eq.s32.totalorder %s86, 1
      %p649 = por %p647, %p648
      %p650 = scmp.ne.s32.totalorder %s641, %s642
      %p651 = scmp.eq.s32.totalorder %s86, 0
      %p652 = por %p650, %p651
      %p653 = scmp.ne.s32.totalorder %s641, %s642
      %p654 = scmp.eq.s32.totalorder %s87, 1
      %p655 = por %p653, %p654
      %p657 = scmp.ne.s32.totalorder %s642, %s656
      %p658 = scmp.eq.s32.totalorder %s87, 0
      %p659 = por %p657, %p658
      %s661 = sadd.s32 %s660, 1
      %p664 = scmp.eq.s32.totalorder %s81, 1
      %p665 = scmp.ne.s32.totalorder %s660, %s662
      %p666 = scmp.eq.s32.totalorder %s81, 0
      %p667 = por %p665, %p666
      %p668 = scmp.ne.s32.totalorder %s660, %s662
      %p669 = scmp.eq.s32.totalorder %s86, 1
      %p670 = por %p668, %p669
      %p671 = scmp.ne.s32.totalorder %s662, %s663
      %p672 = scmp.eq.s32.totalorder %s86, 0
      %p673 = por %p671, %p672
      %p674 = scmp.ne.s32.totalorder %s662, %s663
      %p675 = scmp.eq.s32.totalorder %s87, 1
      %p676 = por %p674, %p675
      %p678 = scmp.ne.s32.totalorder %s663, %s677
      %p679 = scmp.eq.s32.totalorder %s87, 0
      %p680 = por %p678, %p679
      %s681 = ssub.s32 %s81, %s88
      %p682 = scmp.eq.s32.totalorder %s681, 0
      %s684 = sadd.s32 %s683, 1
      %s685 = scalar_select %p682, %s683, %s684
      %p688 = pneg %p682
      %p689 = scmp.eq.s32.totalorder %s81, 1
      %p690 = por %p688, %p689
      %p691 = scmp.ne.s32.totalorder %s683, %s686
      %p692 = scmp.eq.s32.totalorder %s81, 0
      %p693 = por %p691, %p692
      %p694 = scmp.ne.s32.totalorder %s683, %s686
      %p695 = scmp.eq.s32.totalorder %s86, 1
      %p696 = por %p694, %p695
      %p697 = scmp.ne.s32.totalorder %s686, %s687
      %p698 = scmp.eq.s32.totalorder %s86, 0
      %p699 = por %p697, %p698
      %p700 = scmp.ne.s32.totalorder %s686, %s687
      %p701 = scmp.eq.s32.totalorder %s87, 1
      %p702 = por %p700, %p701
      %p704 = scmp.ne.s32.totalorder %s687, %s703
      %p705 = scmp.eq.s32.totalorder %s87, 0
      %p706 = por %p704, %p705
      %s707 = ssub.s32 %s81, %s88
      %p708 = scmp.eq.s32.totalorder %s707, 0
      %s710 = sadd.s32 %s709, 1
      %s711 = scalar_select %p708, %s709, %s710
      %p714 = pneg %p708
      %p715 = scmp.eq.s32.totalorder %s81, 1
      %p716 = por %p714, %p715
      %p717 = scmp.ne.s32.totalorder %s709, %s712
      %p718 = scmp.eq.s32.totalorder %s81, 0
      %p719 = por %p717, %p718
      %p720 = scmp.ne.s32.totalorder %s709, %s712
      %p721 = scmp.eq.s32.totalorder %s86, 1
      %p722 = por %p720, %p721
      %p723 = scmp.ne.s32.totalorder %s712, %s713
      %p724 = scmp.eq.s32.totalorder %s86, 0
      %p725 = por %p723, %p724
      %p726 = scmp.ne.s32.totalorder %s712, %s713
      %p727 = scmp.eq.s32.totalorder %s87, 1
      %p728 = por %p726, %p727
      %p730 = scmp.ne.s32.totalorder %s713, %s729
      %p731 = scmp.eq.s32.totalorder %s87, 0
      %p732 = por %p730, %p731
      %s734 = sadd.s32 %s733, 1
      %p737 = scmp.eq.s32.totalorder %s81, 1
      %p738 = scmp.ne.s32.totalorder %s733, %s735
      %p739 = scmp.eq.s32.totalorder %s81, 0
      %p740 = por %p738, %p739
      %p741 = scmp.ne.s32.totalorder %s733, %s735
      %p742 = scmp.eq.s32.totalorder %s86, 1
      %p743 = por %p741, %p742
      %p744 = scmp.ne.s32.totalorder %s735, %s736
      %p745 = scmp.eq.s32.totalorder %s86, 0
      %p746 = por %p744, %p745
      %p747 = scmp.ne.s32.totalorder %s735, %s736
      %p748 = scmp.eq.s32.totalorder %s87, 1
      %p749 = por %p747, %p748
      %p751 = scmp.ne.s32.totalorder %s736, %s750
      %p752 = scmp.eq.s32.totalorder %s87, 0
      %p753 = por %p751, %p752
      %s755 = sadd.s32 %s754, 1
      %p758 = scmp.eq.s32.totalorder %s81, 1
      %p759 = scmp.ne.s32.totalorder %s754, %s756
      %p760 = scmp.eq.s32.totalorder %s81, 0
      %p761 = por %p759, %p760
      %p762 = scmp.ne.s32.totalorder %s754, %s756
      %p763 = scmp.eq.s32.totalorder %s86, 1
      %p764 = por %p762, %p763
      %p765 = scmp.ne.s32.totalorder %s756, %s757
      %p766 = scmp.eq.s32.totalorder %s86, 0
      %p767 = por %p765, %p766
      %p768 = scmp.ne.s32.totalorder %s756, %s757
      %p769 = scmp.eq.s32.totalorder %s87, 1
      %p770 = por %p768, %p769
      %p772 = scmp.ne.s32.totalorder %s757, %s771
      %p773 = scmp.eq.s32.totalorder %s87, 0
      %p774 = por %p772, %p773
      %s776 = sadd.s32 %s775, 1
      %p779 = scmp.eq.s32.totalorder %s81, 1
      %p780 = scmp.ne.s32.totalorder %s775, %s777
      %p781 = scmp.eq.s32.totalorder %s81, 0
      %p782 = por %p780, %p781
      %p783 = scmp.ne.s32.totalorder %s775, %s777
      %p784 = scmp.eq.s32.totalorder %s86, 1
      %p785 = por %p783, %p784
      %p786 = scmp.ne.s32.totalorder %s777, %s778
      %p787 = scmp.eq.s32.totalorder %s86, 0
      %p788 = por %p786, %p787
      %p789 = scmp.ne.s32.totalorder %s777, %s778
      %p790 = scmp.eq.s32.totalorder %s87, 1
      %p791 = por %p789, %p790
      %p793 = scmp.ne.s32.totalorder %s778, %s792
      %p794 = scmp.eq.s32.totalorder %s87, 0
      %p795 = por %p793, %p794
      %s797 = sadd.s32 %s796, 1
      %p800 = scmp.eq.s32.totalorder %s81, 1
      %p801 = scmp.ne.s32.totalorder %s796, %s798
      %p802 = scmp.eq.s32.totalorder %s81, 0
      %p803 = por %p801, %p802
      %p804 = scmp.ne.s32.totalorder %s796, %s798
      %p805 = scmp.eq.s32.totalorder %s86, 1
      %p806 = por %p804, %p805
      %p807 = scmp.ne.s32.totalorder %s798, %s799
      %p808 = scmp.eq.s32.totalorder %s86, 0
      %p809 = por %p807, %p808
      %p810 = scmp.ne.s32.totalorder %s798, %s799
      %p811 = scmp.eq.s32.totalorder %s87, 1
      %p812 = por %p810, %p811
      %p814 = scmp.ne.s32.totalorder %s799, %s813
      %p815 = scmp.eq.s32.totalorder %s87, 0
      %p816 = por %p814, %p815
      %s818 = sadd.s32 %s817, 1
      %p821 = scmp.eq.s32.totalorder %s81, 1
      %p822 = scmp.ne.s32.totalorder %s817, %s819
      %p823 = scmp.eq.s32.totalorder %s81, 0
      %p824 = por %p822, %p823
      %p825 = scmp.ne.s32.totalorder %s817, %s819
      %p826 = scmp.eq.s32.totalorder %s86, 1
      %p827 = por %p825, %p826
      %p828 = scmp.ne.s32.totalorder %s819, %s820
      %p829 = scmp.eq.s32.totalorder %s86, 0
      %p830 = por %p828, %p829
      %p831 = scmp.ne.s32.totalorder %s819, %s820
      %p832 = scmp.eq.s32.totalorder %s87, 1
      %p833 = por %p831, %p832
      %p835 = scmp.ne.s32.totalorder %s820, %s834
      %p836 = scmp.eq.s32.totalorder %s87, 0
      %p837 = por %p835, %p836
      %s839 = sadd.s32 %s838, 1
      %p842 = scmp.eq.s32.totalorder %s81, 1
      %p843 = scmp.ne.s32.totalorder %s838, %s840
      %p844 = scmp.eq.s32.totalorder %s81, 0
      %p845 = por %p843, %p844
      %p846 = scmp.ne.s32.totalorder %s838, %s840
      %p847 = scmp.eq.s32.totalorder %s86, 1
      %p848 = por %p846, %p847
      %p849 = scmp.ne.s32.totalorder %s840, %s841
      %p850 = scmp.eq.s32.totalorder %s86, 0
      %p851 = por %p849, %p850
      %p852 = scmp.ne.s32.totalorder %s840, %s841
      %p853 = scmp.eq.s32.totalorder %s87, 1
      %p854 = por %p852, %p853
      %p856 = scmp.ne.s32.totalorder %s841, %s855
      %p857 = scmp.eq.s32.totalorder %s87, 0
      %p858 = por %p856, %p857
      %s859 = ssub.s32 %s81, %s88
      %p860 = scmp.eq.s32.totalorder %s859, 0
      %s862 = sadd.s32 %s861, 1
      %s863 = scalar_select %p860, %s861, %s862
      %p866 = pneg %p860
      %p867 = scmp.eq.s32.totalorder %s81, 1
      %p868 = por %p866, %p867
      %p869 = scmp.ne.s32.totalorder %s861, %s864
      %p870 = scmp.eq.s32.totalorder %s81, 0
      %p871 = por %p869, %p870
      %p872 = scmp.ne.s32.totalorder %s861, %s864
      %p873 = scmp.eq.s32.totalorder %s86, 1
      %p874 = por %p872, %p873
      %p875 = scmp.ne.s32.totalorder %s864, %s865
      %p876 = scmp.eq.s32.totalorder %s86, 0
      %p877 = por %p875, %p876
      %p878 = scmp.ne.s32.totalorder %s864, %s865
      %p879 = scmp.eq.s32.totalorder %s87, 1
      %p880 = por %p878, %p879
      %p882 = scmp.ne.s32.totalorder %s865, %s881
      %p883 = scmp.eq.s32.totalorder %s87, 0
      %p884 = por %p882, %p883
      %p885 = scmp.le.s32.totalorder 1, %s81
      %p886 = scmp.lt.s32.totalorder %s81, 3
      %p887 = pnand %p885, %p886
      %p888 = pneg %p887
      // Predicated region
      $region9: #{tpu_custom_call.1} parent=5 // pred_check
        _
      $region10: #{tpu_custom_call.1} parent=5 // pred_check_branch
        %890 = sbr.rel (%p887) target = $region12
      $region11: #{tpu_custom_call.1} parent=5 // pred_region
        %s891 = ssub.s32 %s81, 1
        // Predicated region
        $region13: #{tpu_custom_call.1} parent=11 // pred_check
          %p892 = pneg %p128
        $region14: #{tpu_custom_call.1} parent=11 // pred_check_branch
          %894 = sbr.rel (%p892) target = $region16
        $region15: #{tpu_custom_call.1} parent=11 // pred_region
          %s896 = ssub.s32 96, 96
          %897 = vsyncadd [#allocation3], %s896
          %s898 = sshll.u32 [#allocation2], 4
          %s899 = int_to_ptr.vmem [resolvable:$true] %s898
          %904 = dma.hbm_to_vmem [thread:$0]  %s3, 96, %s899, [#allocation3], 32, 32, 2
        $region16: #{tpu_custom_call.1} parent=11 // pred_fallthru
          _
        // Predicated region
        $region17: #{tpu_custom_call.1} parent=11 // pred_check
          %p905 = pneg %p149
        $region18: #{tpu_custom_call.1} parent=11 // pred_check_branch
          %907 = sbr.rel (%p905) target = $region20
        $region19: #{tpu_custom_call.1} parent=11 // pred_region
          %s909 = ssub.s32 16, 16
          %910 = vsyncadd [#allocation5], %s909
          %s912 = sshll.u32 [#allocation4], 4
          %s913 = int_to_ptr.vmem [resolvable:$true] %s912
          %915 = dma.hbm_to_vmem [thread:$0]  %s5, 16, %s913, [#allocation5]
        $region20: #{tpu_custom_call.1} parent=11 // pred_fallthru
          _
        // Predicated region
        $region21: #{tpu_custom_call.1} parent=11 // pred_check
          %p916 = pneg %p170
        $region22: #{tpu_custom_call.1} parent=11 // pred_check_branch
          %918 = sbr.rel (%p916) target = $region24
        $region23: #{tpu_custom_call.1} parent=11 // pred_region
          %s920 = ssub.s32 16, 16
          %921 = vsyncadd [#allocation5], %s920
          %s923 = sshll.u32 [#allocation6], 4
          %s924 = int_to_ptr.vmem [resolvable:$true] %s923
          %926 = dma.hbm_to_vmem [thread:$0]  %s7, 16, %s924, [#allocation5]
        $region24: #{tpu_custom_call.1} parent=11 // pred_fallthru
          _
        // Predicated region
        $region25: #{tpu_custom_call.1} parent=11 // pred_check
          %p927 = pneg %p191
        $region26: #{tpu_custom_call.1} parent=11 // pred_check_branch
          %929 = sbr.rel (%p927) target = $region28
        $region27: #{tpu_custom_call.1} parent=11 // pred_region
          %s931 = ssub.s32 16, 16
          %932 = vsyncadd [#allocation8], %s931
          %s934 = sshll.u32 [#allocation7], 4
          %s935 = int_to_ptr.vmem [resolvable:$true] %s934
          %937 = dma.hbm_to_vmem [thread:$0]  %s9, 16, %s935, [#allocation8]
        $region28: #{tpu_custom_call.1} parent=11 // pred_fallthru
          _
        // Predicated region
        $region29: #{tpu_custom_call.1} parent=11 // pred_check
          %p938 = pneg %p264
        $region30: #{tpu_custom_call.1} parent=11 // pred_check_branch
          %940 = sbr.rel (%p938) target = $region32
        $region31: #{tpu_custom_call.1} parent=11 // pred_region
          _
        $region32: #{tpu_custom_call.1} parent=11 // pred_fallthru
          _
        // Predicated region
        $region33: #{tpu_custom_call.1} parent=11 // pred_check
          %p941 = pneg %p285
        $region34: #{tpu_custom_call.1} parent=11 // pred_check_branch
          %943 = sbr.rel (%p941) target = $region36
        $region35: #{tpu_custom_call.1} parent=11 // pred_region
          %s945 = ssub.s32 16, 16
          %946 = vsyncadd [#allocation5], %s945
          %s948 = sshll.u32 [#allocation11], 4
          %s949 = int_to_ptr.vmem [resolvable:$true] %s948
          %951 = dma.hbm_to_vmem [thread:$0]  %s17, 16, %s949, [#allocation5]
        $region36: #{tpu_custom_call.1} parent=11 // pred_fallthru
          _
        // Predicated region
        $region37: #{tpu_custom_call.1} parent=11 // pred_check
          %p952 = pneg %p306
        $region38: #{tpu_custom_call.1} parent=11 // pred_check_branch
          %954 = sbr.rel (%p952) target = $region40
        $region39: #{tpu_custom_call.1} parent=11 // pred_region
          %s956 = ssub.s32 16, 16
          %957 = vsyncadd [#allocation8], %s956
          %s959 = sshll.u32 [#allocation12], 4
          %s960 = int_to_ptr.vmem [resolvable:$true] %s959
          %962 = dma.hbm_to_vmem [thread:$0]  %s19, 16, %s960, [#allocation8]
        $region40: #{tpu_custom_call.1} parent=11 // pred_fallthru
          _
        // Predicated region
        $region41: #{tpu_custom_call.1} parent=11 // pred_check
          %p963 = pneg %p327
        $region42: #{tpu_custom_call.1} parent=11 // pred_check_branch
          %965 = sbr.rel (%p963) target = $region44
        $region43: #{tpu_custom_call.1} parent=11 // pred_region
          %s967 = ssub.s32 16, 16
          %968 = vsyncadd [#allocation14], %s967
          %s970 = sshll.u32 [#allocation13], 4
          %s971 = int_to_ptr.vmem [resolvable:$true] %s970
          %973 = dma.hbm_to_vmem [thread:$0]  %s21, 16, %s971, [#allocation14]
        $region44: #{tpu_custom_call.1} parent=11 // pred_fallthru
          _
        // Predicated region
        $region45: #{tpu_custom_call.1} parent=11 // pred_check
          %p974 = pneg %p348
        $region46: #{tpu_custom_call.1} parent=11 // pred_check_branch
          %976 = sbr.rel (%p974) target = $region48
        $region47: #{tpu_custom_call.1} parent=11 // pred_region
          _
        $region48: #{tpu_custom_call.1} parent=11 // pred_fallthru
          _
        // Predicated region
        $region49: #{tpu_custom_call.1} parent=11 // pred_check
          %p977 = pneg %p369
        $region50: #{tpu_custom_call.1} parent=11 // pred_check_branch
          %979 = sbr.rel (%p977) target = $region52
        $region51: #{tpu_custom_call.1} parent=11 // pred_region
          _
        $region52: #{tpu_custom_call.1} parent=11 // pred_fallthru
          _
        // Predicated region
        $region53: #{tpu_custom_call.1} parent=11 // pred_check
          %p980 = pneg %p390
        $region54: #{tpu_custom_call.1} parent=11 // pred_check_branch
          %982 = sbr.rel (%p980) target = $region56
        $region55: #{tpu_custom_call.1} parent=11 // pred_region
          _
        $region56: #{tpu_custom_call.1} parent=11 // pred_fallthru
          _
        // Predicated region
        $region57: #{tpu_custom_call.1} parent=11 // pred_check
          %p983 = pneg %p411
        $region58: #{tpu_custom_call.1} parent=11 // pred_check_branch
          %985 = sbr.rel (%p983) target = $region60
        $region59: #{tpu_custom_call.1} parent=11 // pred_region
          %s987 = ssub.s32 16, 16
          %988 = vsyncadd [#allocation14], %s987
          %s990 = sshll.u32 [#allocation15], 4
          %s991 = int_to_ptr.vmem [resolvable:$true] %s990
          %993 = dma.hbm_to_vmem [thread:$0]  %s29, 16, %s991, [#allocation14]
        $region60: #{tpu_custom_call.1} parent=11 // pred_fallthru
          _
        // Predicated region
        $region61: #{tpu_custom_call.1} parent=11 // pred_check
          %p994 = pneg %p432
        $region62: #{tpu_custom_call.1} parent=11 // pred_check_branch
          %996 = sbr.rel (%p994) target = $region64
        $region63: #{tpu_custom_call.1} parent=11 // pred_region
          _
        $region64: #{tpu_custom_call.1} parent=11 // pred_fallthru
          _
        // Predicated region
        $region65: #{tpu_custom_call.1} parent=11 // pred_check
          %p997 = pneg %p453
        $region66: #{tpu_custom_call.1} parent=11 // pred_check_branch
          %999 = sbr.rel (%p997) target = $region68
        $region67: #{tpu_custom_call.1} parent=11 // pred_region
          _
        $region68: #{tpu_custom_call.1} parent=11 // pred_fallthru
          _
        // Predicated region
        $region69: #{tpu_custom_call.1} parent=11 // pred_check
          %p1000 = pneg %p526
        $region70: #{tpu_custom_call.1} parent=11 // pred_check_branch
          %1002 = sbr.rel (%p1000) target = $region72
        $region71: #{tpu_custom_call.1} parent=11 // pred_region
          _
        $region72: #{tpu_custom_call.1} parent=11 // pred_fallthru
          _
        // Predicated region
        $region73: #{tpu_custom_call.1} parent=11 // pred_check
          %p1003 = pneg %p547
        $region74: #{tpu_custom_call.1} parent=11 // pred_check_branch
          %1005 = sbr.rel (%p1003) target = $region76
        $region75: #{tpu_custom_call.1} parent=11 // pred_region
          _
        $region76: #{tpu_custom_call.1} parent=11 // pred_fallthru
          _
        // Predicated region
        $region77: #{tpu_custom_call.1} parent=11 // pred_check
          %p1006 = pneg %p568
        $region78: #{tpu_custom_call.1} parent=11 // pred_check_branch
          %1008 = sbr.rel (%p1006) target = $region80
        $region79: #{tpu_custom_call.1} parent=11 // pred_region
          _
        $region80: #{tpu_custom_call.1} parent=11 // pred_fallthru
          _
        // Predicated region
        $region81: #{tpu_custom_call.1} parent=11 // pred_check
          %p1009 = pneg %p589
        $region82: #{tpu_custom_call.1} parent=11 // pred_check_branch
          %1011 = sbr.rel (%p1009) target = $region84
        $region83: #{tpu_custom_call.1} parent=11 // pred_region
          _
        $region84: #{tpu_custom_call.1} parent=11 // pred_fallthru
          _
        // Predicated region
        $region85: #{tpu_custom_call.1} parent=11 // pred_check
          %p1012 = pneg %p610
        $region86: #{tpu_custom_call.1} parent=11 // pred_check_branch
          %1014 = sbr.rel (%p1012) target = $region88
        $region87: #{tpu_custom_call.1} parent=11 // pred_region
          _
        $region88: #{tpu_custom_call.1} parent=11 // pred_fallthru
          _
        // Predicated region
        $region89: #{tpu_custom_call.1} parent=11 // pred_check
          %p1015 = pneg %p631
        $region90: #{tpu_custom_call.1} parent=11 // pred_check_branch
          %1017 = sbr.rel (%p1015) target = $region92
        $region91: #{tpu_custom_call.1} parent=11 // pred_region
          _
        $region92: #{tpu_custom_call.1} parent=11 // pred_fallthru
          _
        // Predicated region
        $region93: #{tpu_custom_call.1} parent=11 // pred_check
          %p1018 = pneg %p652
        $region94: #{tpu_custom_call.1} parent=11 // pred_check_branch
          %1020 = sbr.rel (%p1018) target = $region96
        $region95: #{tpu_custom_call.1} parent=11 // pred_region
          _
        $region96: #{tpu_custom_call.1} parent=11 // pred_fallthru
          _
        // Predicated region
        $region97: #{tpu_custom_call.1} parent=11 // pred_check
          %p1021 = pneg %p673
        $region98: #{tpu_custom_call.1} parent=11 // pred_check_branch
          %1023 = sbr.rel (%p1021) target = $region100
        $region99: #{tpu_custom_call.1} parent=11 // pred_region
          _
        $region100: #{tpu_custom_call.1} parent=11 // pred_fallthru
          _
        // Predicated region
        $region101: #{tpu_custom_call.1} parent=11 // pred_check
          %p1024 = pneg %p746
        $region102: #{tpu_custom_call.1} parent=11 // pred_check_branch
          %1026 = sbr.rel (%p1024) target = $region104
        $region103: #{tpu_custom_call.1} parent=11 // pred_region
          _
        $region104: #{tpu_custom_call.1} parent=11 // pred_fallthru
          _
        // Predicated region
        $region105: #{tpu_custom_call.1} parent=11 // pred_check
          %p1027 = pneg %p767
        $region106: #{tpu_custom_call.1} parent=11 // pred_check_branch
          %1029 = sbr.rel (%p1027) target = $region108
        $region107: #{tpu_custom_call.1} parent=11 // pred_region
          _
        $region108: #{tpu_custom_call.1} parent=11 // pred_fallthru
          _
        // Predicated region
        $region109: #{tpu_custom_call.1} parent=11 // pred_check
          %p1030 = pneg %p788
        $region110: #{tpu_custom_call.1} parent=11 // pred_check_branch
          %1032 = sbr.rel (%p1030) target = $region112
        $region111: #{tpu_custom_call.1} parent=11 // pred_region
          _
        $region112: #{tpu_custom_call.1} parent=11 // pred_fallthru
          _
        // Predicated region
        $region113: #{tpu_custom_call.1} parent=11 // pred_check
          %p1033 = pneg %p809
        $region114: #{tpu_custom_call.1} parent=11 // pred_check_branch
          %1035 = sbr.rel (%p1033) target = $region116
        $region115: #{tpu_custom_call.1} parent=11 // pred_region
          _
        $region116: #{tpu_custom_call.1} parent=11 // pred_fallthru
          _
        // Predicated region
        $region117: #{tpu_custom_call.1} parent=11 // pred_check
          %p1036 = pneg %p830
        $region118: #{tpu_custom_call.1} parent=11 // pred_check_branch
          %1038 = sbr.rel (%p1036) target = $region120
        $region119: #{tpu_custom_call.1} parent=11 // pred_region
          _
        $region120: #{tpu_custom_call.1} parent=11 // pred_fallthru
          _
        // Predicated region
        $region121: #{tpu_custom_call.1} parent=11 // pred_check
          %p1039 = pneg %p851
        $region122: #{tpu_custom_call.1} parent=11 // pred_check_branch
          %1041 = sbr.rel (%p1039) target = $region124
        $region123: #{tpu_custom_call.1} parent=11 // pred_region
          _
        $region124: #{tpu_custom_call.1} parent=11 // pred_fallthru
          _
      $region12: #{tpu_custom_call.1} parent=5 // pred_fallthru
        _
      %p1042 = scmp.lt.s32.totalorder %s81, 2
      // Predicated region
      $region125: #{tpu_custom_call.1} parent=5 // pred_check
        %p1043 = pneg %p1042
      $region126: #{tpu_custom_call.1} parent=5 // pred_check_branch
        %1045 = sbr.rel (%p1043) target = $region128
      $region127: #{tpu_custom_call.1} parent=5 // pred_region
        // Predicated region
        $region129: #{tpu_custom_call.1} parent=127 // pred_check
          %p1046 = pneg %p101
        $region130: #{tpu_custom_call.1} parent=127 // pred_check_branch
          %1048 = sbr.rel (%p1046) target = $region132
        $region131: #{tpu_custom_call.1} parent=127 // pred_region
          %p1049 = scmp.lt.s32.totalorder %s81, 1
          %s1050 = scalar_select %p1049, %s81, 1
          %s1051 = smul.addr %s1050, 2
          %s1052 = smul.addr %s1051, 8
          %s1053 = scalar_lea.vmem %s1, %s1052
        $region132: #{tpu_custom_call.1} parent=127 // pred_fallthru
          _
        // Predicated region
        $region133: #{tpu_custom_call.1} parent=127 // pred_check
          %p1054 = pneg %p211
        $region134: #{tpu_custom_call.1} parent=127 // pred_check_branch
          %1056 = sbr.rel (%p1054) target = $region136
        $region135: #{tpu_custom_call.1} parent=127 // pred_region
          %s1057 = sand.u32 %s81, 1
          %s1058 = scalar_lea.sflag [#allocation3], %s1057
          %s1059 = sand.u32 %s201, 1
          %s1060 = scalar_lea.vmem [#allocation9], %s1059
          %s1062 = ssub.s32 16, 16
          %1063 = vsyncadd %s1058, %s1062
          %s1064 = smul.addr %s81, 16
          %s1065 = scalar_lea.hbm %s11, %s1064
          %s1067 = sshll.u32 %s1060, 4
          %s1068 = int_to_ptr.vmem [resolvable:$true] %s1067
          %1070 = dma.hbm_to_vmem [thread:$0]  %s1065, 16, %s1068, %s1058
        $region136: #{tpu_custom_call.1} parent=127 // pred_fallthru
          _
        // Predicated region
        $region137: #{tpu_custom_call.1} parent=127 // pred_check
          %p1071 = pneg %p237
        $region138: #{tpu_custom_call.1} parent=127 // pred_check_branch
          %1073 = sbr.rel (%p1071) target = $region140
        $region139: #{tpu_custom_call.1} parent=127 // pred_region
          %s1074 = sand.u32 %s81, 1
          %s1075 = scalar_lea.sflag [#allocation3], %s1074
          %s1076 = sand.u32 %s227, 1
          %s1077 = scalar_lea.vmem [#allocation10], %s1076
          %s1079 = ssub.s32 16, 16
          %1080 = vsyncadd %s1075, %s1079
          %s1081 = smul.addr %s81, 16
          %s1082 = scalar_lea.hbm %s13, %s1081
          %s1084 = sshll.u32 %s1077, 4
          %s1085 = int_to_ptr.vmem [resolvable:$true] %s1084
          %1087 = dma.hbm_to_vmem [thread:$0]  %s1082, 16, %s1085, %s1075
        $region140: #{tpu_custom_call.1} parent=127 // pred_fallthru
          _
        // Predicated region
        $region141: #{tpu_custom_call.1} parent=127 // pred_check
          %p1088 = pneg %p473
        $region142: #{tpu_custom_call.1} parent=127 // pred_check_branch
          %1090 = sbr.rel (%p1088) target = $region144
        $region143: #{tpu_custom_call.1} parent=127 // pred_region
          %p1091 = scmp.lt.s32.totalorder %s81, 1
          %s1092 = scalar_select %p1091, %s81, 1
          %s1093 = scalar_lea.vmem %s35, %s1092
        $region144: #{tpu_custom_call.1} parent=127 // pred_fallthru
          _
        // Predicated region
        $region145: #{tpu_custom_call.1} parent=127 // pred_check
          %p1094 = pneg %p499
        $region146: #{tpu_custom_call.1} parent=127 // pred_check_branch
          %1096 = sbr.rel (%p1094) target = $region148
        $region147: #{tpu_custom_call.1} parent=127 // pred_region
          %p1097 = scmp.lt.s32.totalorder %s81, 1
          %s1098 = scalar_select %p1097, %s81, 1
          %s1099 = scalar_lea.vmem %s37, %s1098
        $region148: #{tpu_custom_call.1} parent=127 // pred_fallthru
          _
        // Predicated region
        $region149: #{tpu_custom_call.1} parent=127 // pred_check
          %p1100 = pneg %p693
        $region150: #{tpu_custom_call.1} parent=127 // pred_check_branch
          %1102 = sbr.rel (%p1100) target = $region152
        $region151: #{tpu_custom_call.1} parent=127 // pred_region
          %p1103 = scmp.lt.s32.totalorder %s81, 1
          %s1104 = scalar_select %p1103, %s81, 1
          %s1105 = scalar_lea.vmem %s55, %s1104
        $region152: #{tpu_custom_call.1} parent=127 // pred_fallthru
          _
        // Predicated region
        $region153: #{tpu_custom_call.1} parent=127 // pred_check
          %p1106 = pneg %p719
        $region154: #{tpu_custom_call.1} parent=127 // pred_check_branch
          %1108 = sbr.rel (%p1106) target = $region156
        $region155: #{tpu_custom_call.1} parent=127 // pred_region
          %p1109 = scmp.lt.s32.totalorder %s81, 1
          %s1110 = scalar_select %p1109, %s81, 1
          %s1111 = scalar_lea.vmem %s57, %s1110
        $region156: #{tpu_custom_call.1} parent=127 // pred_fallthru
          _
      $region128: #{tpu_custom_call.1} parent=5 // pred_fallthru
        _
      %p1112 = scmp.le.s32.totalorder 1, %s81
      %p1113 = scmp.lt.s32.totalorder %s81, 3
      %p1114 = pnand %p1112, %p1113
      %p1115 = pneg %p1114
      // Predicated region
      $region157: #{tpu_custom_call.1} parent=5 // pred_check
        _
      $region158: #{tpu_custom_call.1} parent=5 // pred_check_branch
        %1117 = sbr.rel (%p1114) target = $region160
      $region159: #{tpu_custom_call.1} parent=5 // pred_region
        %s1118 = ssub.s32 %s81, 1
        // Predicated region
        $region161: #{tpu_custom_call.1} parent=159 // pred_check
          %p1119 = pneg %p128
        $region162: #{tpu_custom_call.1} parent=159 // pred_check_branch
          %1121 = sbr.rel (%p1119) target = $region164
        $region163: #{tpu_custom_call.1} parent=159 // pred_region
          %1122 = dma.done [#allocation3], 96
        $region164: #{tpu_custom_call.1} parent=159 // pred_fallthru
          _
        // Predicated region
        $region165: #{tpu_custom_call.1} parent=159 // pred_check
          %p1123 = pneg %p149
        $region166: #{tpu_custom_call.1} parent=159 // pred_check_branch
          %1125 = sbr.rel (%p1123) target = $region168
        $region167: #{tpu_custom_call.1} parent=159 // pred_region
          %1126 = dma.done [#allocation5], 16
        $region168: #{tpu_custom_call.1} parent=159 // pred_fallthru
          _
        // Predicated region
        $region169: #{tpu_custom_call.1} parent=159 // pred_check
          %p1127 = pneg %p170
        $region170: #{tpu_custom_call.1} parent=159 // pred_check_branch
          %1129 = sbr.rel (%p1127) target = $region172
        $region171: #{tpu_custom_call.1} parent=159 // pred_region
          %1130 = dma.done [#allocation5], 16
        $region172: #{tpu_custom_call.1} parent=159 // pred_fallthru
          _
        // Predicated region
        $region173: #{tpu_custom_call.1} parent=159 // pred_check
          %p1131 = pneg %p191
        $region174: #{tpu_custom_call.1} parent=159 // pred_check_branch
          %1133 = sbr.rel (%p1131) target = $region176
        $region175: #{tpu_custom_call.1} parent=159 // pred_region
          %1134 = dma.done [#allocation8], 16
        $region176: #{tpu_custom_call.1} parent=159 // pred_fallthru
          _
        %s1135 = sand.u32 %s86, 1
        %s1136 = scalar_lea.sflag [#allocation3], %s1135
        %s1137 = sand.u32 %s204, 1
        %s1138 = scalar_lea.vmem [#allocation9], %s1137
        // Predicated region
        $region177: #{tpu_custom_call.1} parent=159 // pred_check
          %p1139 = pneg %p217
        $region178: #{tpu_custom_call.1} parent=159 // pred_check_branch
          %1141 = sbr.rel (%p1139) target = $region180
        $region179: #{tpu_custom_call.1} parent=159 // pred_region
          %1142 = dma.done %s1136, 16
        $region180: #{tpu_custom_call.1} parent=159 // pred_fallthru
          _
        %s1143 = sand.u32 %s86, 1
        %s1144 = scalar_lea.sflag [#allocation3], %s1143
        %s1145 = sand.u32 %s230, 1
        %s1146 = scalar_lea.vmem [#allocation10], %s1145
        // Predicated region
        $region181: #{tpu_custom_call.1} parent=159 // pred_check
          %p1147 = pneg %p243
        $region182: #{tpu_custom_call.1} parent=159 // pred_check_branch
          %1149 = sbr.rel (%p1147) target = $region184
        $region183: #{tpu_custom_call.1} parent=159 // pred_region
          %1150 = dma.done %s1144, 16
        $region184: #{tpu_custom_call.1} parent=159 // pred_fallthru
          _
        // Predicated region
        $region185: #{tpu_custom_call.1} parent=159 // pred_check
          %p1151 = pneg %p285
        $region186: #{tpu_custom_call.1} parent=159 // pred_check_branch
          %1153 = sbr.rel (%p1151) target = $region188
        $region187: #{tpu_custom_call.1} parent=159 // pred_region
          %1154 = dma.done [#allocation5], 16
        $region188: #{tpu_custom_call.1} parent=159 // pred_fallthru
          _
        // Predicated region
        $region189: #{tpu_custom_call.1} parent=159 // pred_check
          %p1155 = pneg %p306
        $region190: #{tpu_custom_call.1} parent=159 // pred_check_branch
          %1157 = sbr.rel (%p1155) target = $region192
        $region191: #{tpu_custom_call.1} parent=159 // pred_region
          %1158 = dma.done [#allocation8], 16
        $region192: #{tpu_custom_call.1} parent=159 // pred_fallthru
          _
        // Predicated region
        $region193: #{tpu_custom_call.1} parent=159 // pred_check
          %p1159 = pneg %p327
        $region194: #{tpu_custom_call.1} parent=159 // pred_check_branch
          %1161 = sbr.rel (%p1159) target = $region196
        $region195: #{tpu_custom_call.1} parent=159 // pred_region
          %1162 = dma.done [#allocation14], 16
        $region196: #{tpu_custom_call.1} parent=159 // pred_fallthru
          _
        // Predicated region
        $region197: #{tpu_custom_call.1} parent=159 // pred_check
          %p1163 = pneg %p411
        $region198: #{tpu_custom_call.1} parent=159 // pred_check_branch
          %1165 = sbr.rel (%p1163) target = $region200
        $region199: #{tpu_custom_call.1} parent=159 // pred_region
          %1166 = dma.done [#allocation14], 16
        $region200: #{tpu_custom_call.1} parent=159 // pred_fallthru
          _
        %p1167 = scmp.lt.s32.totalorder %s86, 1
        %s1168 = scalar_select %p1167, %s86, 1
        %s1169 = smul.addr %s1168, 2
        %s1170 = smul.addr %s1169, 8
        %s1171 = scalar_lea.vmem %s1, %s1170
        %p1172 = pneg %p107
        %p1173 = pneg %p104
        %p1174 = pneg %p128
        %p1175 = pneg %p125
        %p1176 = pneg %p149
        %p1177 = pneg %p146
        %p1178 = pneg %p170
        %p1179 = pneg %p167
        %p1180 = pneg %p191
        %p1181 = pneg %p188
        %s1182 = sand.u32 %s86, 1
        %s1183 = scalar_lea.sflag [#allocation3], %s1182
        %s1184 = sand.u32 %s204, 1
        %s1185 = scalar_lea.vmem [#allocation9], %s1184
        %p1186 = pneg %p217
        %p1187 = pneg %p214
        %s1188 = sand.u32 %s86, 1
        %s1189 = scalar_lea.sflag [#allocation3], %s1188
        %s1190 = sand.u32 %s230, 1
        %s1191 = scalar_lea.vmem [#allocation10], %s1190
        %p1192 = pneg %p243
        %p1193 = pneg %p240
        %p1194 = pneg %p264
        %p1195 = pneg %p261
        %p1196 = pneg %p285
        %p1197 = pneg %p282
        %p1198 = pneg %p306
        %p1199 = pneg %p303
        %p1200 = pneg %p327
        %p1201 = pneg %p324
        %p1202 = pneg %p348
        %p1203 = pneg %p345
        %p1204 = pneg %p369
        %p1205 = pneg %p366
        %p1206 = pneg %p390
        %p1207 = pneg %p387
        %p1208 = pneg %p411
        %p1209 = pneg %p408
        %p1210 = pneg %p432
        %p1211 = pneg %p429
        %p1212 = pneg %p453
        %p1213 = pneg %p450
        %p1214 = scmp.lt.s32.totalorder %s86, 1
        %s1215 = scalar_select %p1214, %s86, 1
        %s1216 = scalar_lea.vmem %s35, %s1215
        %p1217 = pneg %p479
        %p1218 = pneg %p476
        %p1219 = scmp.lt.s32.totalorder %s86, 1
        %s1220 = scalar_select %p1219, %s86, 1
        %s1221 = scalar_lea.vmem %s37, %s1220
        %p1222 = pneg %p505
        %p1223 = pneg %p502
        %p1224 = pneg %p526
        %p1225 = pneg %p523
        %p1226 = pneg %p547
        %p1227 = pneg %p544
        %p1228 = pneg %p568
        %p1229 = pneg %p565
        %p1230 = pneg %p589
        %p1231 = pneg %p586
        %p1232 = pneg %p610
        %p1233 = pneg %p607
        %p1234 = pneg %p631
        %p1235 = pneg %p628
        %p1236 = pneg %p652
        %p1237 = pneg %p649
        %p1238 = pneg %p673
        %p1239 = pneg %p670
        %p1240 = scmp.lt.s32.totalorder %s86, 1
        %s1241 = scalar_select %p1240, %s86, 1
        %s1242 = scalar_lea.vmem %s55, %s1241
        %p1243 = pneg %p699
        %p1244 = pneg %p696
        %p1245 = scmp.lt.s32.totalorder %s86, 1
        %s1246 = scalar_select %p1245, %s86, 1
        %s1247 = scalar_lea.vmem %s57, %s1246
        %p1248 = pneg %p725
        %p1249 = pneg %p722
        %p1250 = pneg %p746
        %p1251 = pneg %p743
        %p1252 = pneg %p767
        %p1253 = pneg %p764
        %p1254 = pneg %p788
        %p1255 = pneg %p785
        %p1256 = pneg %p809
        %p1257 = pneg %p806
        %p1258 = pneg %p830
        %p1259 = pneg %p827
        %p1260 = pneg %p851
        %p1261 = pneg %p848
        %p1262 = pneg %p877
        %p1263 = pneg %p874
        %p1264 = scmp.lt.s32.totalorder %s86, 1
        %s1265 = scalar_select %p1264, %s86, 1
        %s1266 = smul.addr %s1265, 2
        %s1267 = smul.addr %s1266, 8
        %s1268 = scalar_lea.vmem %s71, %s1267
        %p1269 = scmp.lt.s32.totalorder %s86, 1
        %s1270 = scalar_select %p1269, %s86, 1
        %s1271 = smul.addr %s1270, 2
        %s1272 = smul.addr %s1271, 8
        %s1273 = scalar_lea.vmem %s1, %s1272
        %p1274 = scmp.lt.s32.totalorder %s86, 1
        %s1275 = scalar_select %p1274, %s86, 1
        %s1276 = scalar_lea.vmem %s35, %s1275
        %p1277 = scmp.lt.s32.totalorder %s86, 1
        %s1278 = scalar_select %p1277, %s86, 1
        %s1279 = scalar_lea.vmem %s37, %s1278
        %p1280 = scmp.lt.s32.totalorder %s86, 1
        %s1281 = scalar_select %p1280, %s86, 1
        %s1282 = scalar_lea.vmem %s55, %s1281
        %p1283 = scmp.lt.s32.totalorder %s86, 1
        %s1284 = scalar_select %p1283, %s86, 1
        %s1285 = scalar_lea.vmem %s57, %s1284
        %p1286 = scmp.lt.s32.totalorder %s86, 1
        %s1287 = scalar_select %p1286, %s86, 1
        %s1288 = smul.addr %s1287, 2
        %s1289 = smul.addr %s1288, 8
        %s1290 = scalar_lea.vmem %s71, %s1289
        %v1292 = vlaneseq
        %v1293 = vshrl.u32 %v1292, 7
        %v1294 = vadd.s32 %v1293, 8
        %vm1295 = vcmp.ne.s32.totalorder %v1293, 0
        %vm1296 = vcmp.ne.s32.totalorder %v1294, 0
        %vm1297 = vcmp.ne.s32.totalorder %v1293, 15
        %vm1298 = vcmp.ne.s32.totalorder %v1294, 15
        %v1299 = vld [vmem:[%s1273] sm:$0xff]
        %v1300 = vld [vmem:[%s1273 + $0x8] sm:$0xff]
        %v1301 = vpack.c.bf16 %v1300, %v1299
        %v1302 = vld [vmem:[#allocation2] sm:$0x3]
        %vm1303 = vcmask 31744
        %v1305 = vsel %vm1303, %v1301, 0
        %vm1307 = vcmask 1041408
        %v1309 = vsel %vm1307, %v1302, 0
        %1311 = vmatprep.subr.bf16.mxu0 0
        %1312 = vmatpush1.bf16.msra.mxu0 0
        %1313 = vmatprep.subr.bf16.mxu0 0
        %1314 = vmatpush1.bf16.msra.mxu0 0
        %1315 = vmatprep.subr.bf16.mxu0 0
        %1316 = vmatpush1.bf16.msra.mxu0 0
        %1317 = vmatprep.subr.bf16.mxu0 0
        %1318 = vmatpush1.bf16.msra.mxu0 0
        %1319 = vmatprep.subr.bf16.mxu0 0
        %1320 = vmatpush1.bf16.msra.mxu0 0
        %1321 = vmatprep.subr.bf16.mxu0 0
        %1322 = vmatpush1.bf16.msra.mxu0 0
        %1323 = vmatprep.subr.bf16.mxu0 0
        %1324 = vmatpush1.bf16.msra.mxu0 0
        %1325 = vmatprep.subr.bf16.mxu0 0
        %1326 = vmatpush1.bf16.msra.mxu0 %v1309
        %1327 = vmatprep.subr.bf16.mxu0 0
        %1328 = vmatpush2.bf16.msra.mxu0 0
        %1329 = vmatprep.subr.bf16.mxu0 0
        %1330 = vmatpush2.bf16.msra.mxu0 0
        %1331 = vmatprep.subr.bf16.mxu0 0
        %1332 = vmatpush2.bf16.msra.mxu0 0
        %1333 = vmatprep.subr.bf16.mxu0 0
        %1334 = vmatpush2.bf16.msra.mxu0 0
        %1335 = vmatprep.subr.bf16.mxu0 0
        %1336 = vmatpush2.bf16.msra.mxu0 0
        %1337 = vmatprep.subr.bf16.mxu0 0
        %1338 = vmatpush2.bf16.msra.mxu0 0
        %1339 = vmatprep.subr.bf16.mxu0 0
        %1340 = vmatpush2.bf16.msra.mxu0 0
        %1341 = vmatprep.subr.bf16.mxu0 0
        %1342 = vmatpush2.bf16.msra.mxu0 0
        %1343 = vmatprep.mubr.bf16.mxu0 0
        %1344 = vmatmul.mubr.bf16.gmra.mxu0 %v1305
        %v1345 = vpop.f32.mrf.mxu0
        %v1346 = vadd.f32 0.0, %v1345
        %v1347 = vpop.f32.mrf.mxu0
        %v1348 = vpop.f32.mrf.mxu0
        %v1349 = vadd.f32 0.0, %v1348
        %v1350 = vpop.f32.mrf.mxu0
        %1351 = vdwg.mxu0
        %s1352 = scalar_lea.vmem [#allocation2], 2
        %v1353 = vld [vmem:[%s1352] sm:$0x3]
        %v1355 = vsel %vm1307, %v1353, 0
        %1357 = vmatprep.subr.bf16.mxu0 0
        %1358 = vmatpush1.bf16.msra.mxu0 0
        %1359 = vmatprep.subr.bf16.mxu0 0
        %1360 = vmatpush1.bf16.msra.mxu0 0
        %1361 = vmatprep.subr.bf16.mxu0 0
        %1362 = vmatpush1.bf16.msra.mxu0 0
        %1363 = vmatprep.subr.bf16.mxu0 0
        %1364 = vmatpush1.bf16.msra.mxu0 0
        %1365 = vmatprep.subr.bf16.mxu0 0
        %1366 = vmatpush1.bf16.msra.mxu0 0
        %1367 = vmatprep.subr.bf16.mxu0 0
        %1368 = vmatpush1.bf16.msra.mxu0 0
        %1369 = vmatprep.subr.bf16.mxu0 0
        %1370 = vmatpush1.bf16.msra.mxu0 0
        %1371 = vmatprep.subr.bf16.mxu0 0
        %1372 = vmatpush1.bf16.msra.mxu0 %v1355
        %1373 = vmatprep.subr.bf16.mxu0 0
        %1374 = vmatpush2.bf16.msra.mxu0 0
        %1375 = vmatprep.subr.bf16.mxu0 0
        %1376 = vmatpush2.bf16.msra.mxu0 0
        %1377 = vmatprep.subr.bf16.mxu0 0
        %1378 = vmatpush2.bf16.msra.mxu0 0
        %1379 = vmatprep.subr.bf16.mxu0 0
        %1380 = vmatpush2.bf16.msra.mxu0 0
        %1381 = vmatprep.subr.bf16.mxu0 0
        %1382 = vmatpush2.bf16.msra.mxu0 0
        %1383 = vmatprep.subr.bf16.mxu0 0
        %1384 = vmatpush2.bf16.msra.mxu0 0
        %1385 = vmatprep.subr.bf16.mxu0 0
        %1386 = vmatpush2.bf16.msra.mxu0 0
        %1387 = vmatprep.subr.bf16.mxu0 0
        %1388 = vmatpush2.bf16.msra.mxu0 0
        %1389 = vmatprep.mubr.bf16.mxu0 0
        %1390 = vmatmul.mubr.bf16.gmra.mxu0 %v1305
        %v1391 = vpop.f32.mrf.mxu0
        %v1392 = vadd.f32 0.0, %v1391
        %v1393 = vpop.f32.mrf.mxu0
        %v1394 = vpop.f32.mrf.mxu0
        %v1395 = vadd.f32 0.0, %v1394
        %v1396 = vpop.f32.mrf.mxu0
        %1397 = vdwg.mxu0
        %s1398 = scalar_lea.vmem [#allocation2], 4
        %v1399 = vld [vmem:[%s1398] sm:$0x3]
        %v1401 = vsel %vm1307, %v1399, 0
        %1403 = vmatprep.subr.bf16.mxu0 0
        %1404 = vmatpush1.bf16.msra.mxu0 0
        %1405 = vmatprep.subr.bf16.mxu0 0
        %1406 = vmatpush1.bf16.msra.mxu0 0
        %1407 = vmatprep.subr.bf16.mxu0 0
        %1408 = vmatpush1.bf16.msra.mxu0 0
        %1409 = vmatprep.subr.bf16.mxu0 0
        %1410 = vmatpush1.bf16.msra.mxu0 0
        %1411 = vmatprep.subr.bf16.mxu0 0
        %1412 = vmatpush1.bf16.msra.mxu0 0
        %1413 = vmatprep.subr.bf16.mxu0 0
        %1414 = vmatpush1.bf16.msra.mxu0 0
        %1415 = vmatprep.subr.bf16.mxu0 0
        %1416 = vmatpush1.bf16.msra.mxu0 0
        %1417 = vmatprep.subr.bf16.mxu0 0
        %1418 = vmatpush1.bf16.msra.mxu0 %v1401
        %1419 = vmatprep.subr.bf16.mxu0 0
        %1420 = vmatpush2.bf16.msra.mxu0 0
        %1421 = vmatprep.subr.bf16.mxu0 0
        %1422 = vmatpush2.bf16.msra.mxu0 0
        %1423 = vmatprep.subr.bf16.mxu0 0
        %1424 = vmatpush2.bf16.msra.mxu0 0
        %1425 = vmatprep.subr.bf16.mxu0 0
        %1426 = vmatpush2.bf16.msra.mxu0 0
        %1427 = vmatprep.subr.bf16.mxu0 0
        %1428 = vmatpush2.bf16.msra.mxu0 0
        %1429 = vmatprep.subr.bf16.mxu0 0
        %1430 = vmatpush2.bf16.msra.mxu0 0
        %1431 = vmatprep.subr.bf16.mxu0 0
        %1432 = vmatpush2.bf16.msra.mxu0 0
        %1433 = vmatprep.subr.bf16.mxu0 0
        %1434 = vmatpush2.bf16.msra.mxu0 0
        %1435 = vmatprep.mubr.bf16.mxu0 0
        %1436 = vmatmul.mubr.bf16.gmra.mxu0 %v1305
        %v1437 = vpop.f32.mrf.mxu0
        %v1438 = vadd.f32 0.0, %v1437
        %v1439 = vpop.f32.mrf.mxu0
        %v1440 = vpop.f32.mrf.mxu0
        %v1441 = vadd.f32 0.0, %v1440
        %v1442 = vpop.f32.mrf.mxu0
        %1443 = vdwg.mxu0
        %v1444 = vrot.slane %v1346, 7
        %v1445 = vrot.slane %v1349, 7
        %vm1446 = vcmp.lt.s32.totalorder %v1293, 1
        %v1447 = vsel %vm1446, %v1444, %v1445
        %v1448 = vsel %vm1446, %v1445, %v1444
        %v1449 = vsel %vm1295, 1, 0
        %v1450 = vsel %vm1296, 1, 0
        %vm1451 = vcmp.eq.s32.totalorder %v1449, 1
        %vm1452 = vcmp.eq.s32.totalorder %v1450, 1
        %v1453 = vsel %vm1451, %v1448, 0.0
        %v1454 = vsel %vm1452, %v1447, 0.0
        %v1455 = vrot.slane %v1438, 1
        %v1456 = vrot.slane %v1441, 1
        %vm1457 = vcmp.lt.s32.totalorder %v1293, 7
        %v1458 = vsel %vm1457, %v1455, %v1456
        %v1459 = vsel %vm1457, %v1456, %v1455
        %v1460 = vsel %vm1297, 1, 0
        %v1461 = vsel %vm1298, 1, 0
        %vm1462 = vcmp.eq.s32.totalorder %v1460, 1
        %vm1463 = vcmp.eq.s32.totalorder %v1461, 1
        %v1464 = vsel %vm1462, %v1458, 0.0
        %v1465 = vsel %vm1463, %v1459, 0.0
        %v1466 = vadd.f32 %v1453, %v1392
        %v1467 = vadd.f32 %v1454, %v1395
        %v1468 = vadd.f32 %v1466, %v1464
        %v1469 = vadd.f32 %v1467, %v1465
        %v1470 = vld [vmem:[#allocation4] sm:$0x1]
        %v1472 = vlaneseq
        %v1473 = vshrl.u32 %v1472, 7
        %v1474 = vsub.s32 0, %v1473
        %v1475 = vrot.slane %v1470, %v1474
        %v1477 = vadd.f32 %v1468, %v1475
        %v1478 = vadd.f32 %v1469, %v1475
        %v1479 = vld [vmem:[%s23] sm:$0x3]
        %v1480 = vld [vmem:[%s25] sm:$0x1]
        %v1482 = vlaneseq
        %v1483 = vshrl.u32 %v1482, 7
        %v1484 = vsub.s32 0, %v1483
        %v1485 = vrot.slane %v1480, %v1484
        %v1488 = vsel %vm1307, %v1479, 0
        %1490 = vmatprep.subr.bf16.mxu0 0
        %1491 = vmatpush1.bf16.msra.mxu0 0
        %1492 = vmatprep.subr.bf16.mxu0 0
        %1493 = vmatpush1.bf16.msra.mxu0 0
        %1494 = vmatprep.subr.bf16.mxu0 0
        %1495 = vmatpush1.bf16.msra.mxu0 0
        %1496 = vmatprep.subr.bf16.mxu0 0
        %1497 = vmatpush1.bf16.msra.mxu0 0
        %1498 = vmatprep.subr.bf16.mxu0 0
        %1499 = vmatpush1.bf16.msra.mxu0 0
        %1500 = vmatprep.subr.bf16.mxu0 0
        %1501 = vmatpush1.bf16.msra.mxu0 0
        %1502 = vmatprep.subr.bf16.mxu0 0
        %1503 = vmatpush1.bf16.msra.mxu0 0
        %1504 = vmatprep.subr.bf16.mxu0 0
        %1505 = vmatpush1.bf16.msra.mxu0 %v1488
        %1506 = vmatprep.subr.bf16.mxu0 0
        %1507 = vmatpush2.bf16.msra.mxu0 0
        %1508 = vmatprep.subr.bf16.mxu0 0
        %1509 = vmatpush2.bf16.msra.mxu0 0
        %1510 = vmatprep.subr.bf16.mxu0 0
        %1511 = vmatpush2.bf16.msra.mxu0 0
        %1512 = vmatprep.subr.bf16.mxu0 0
        %1513 = vmatpush2.bf16.msra.mxu0 0
        %1514 = vmatprep.subr.bf16.mxu0 0
        %1515 = vmatpush2.bf16.msra.mxu0 0
        %1516 = vmatprep.subr.bf16.mxu0 0
        %1517 = vmatpush2.bf16.msra.mxu0 0
        %1518 = vmatprep.subr.bf16.mxu0 0
        %1519 = vmatpush2.bf16.msra.mxu0 0
        %1520 = vmatprep.subr.bf16.mxu0 0
        %1521 = vmatpush2.bf16.msra.mxu0 0
        %1522 = vmatprep.mubr.bf16.mxu0 0
        %1523 = vmatmul.mubr.bf16.gmra.mxu0 %v1305
        %v1524 = vpop.f32.mrf.mxu0
        %v1525 = vadd.f32 %v1485, %v1524
        %v1526 = vpop.f32.mrf.mxu0
        %v1527 = vpop.f32.mrf.mxu0
        %v1528 = vadd.f32 %v1485, %v1527
        %v1529 = vpop.f32.mrf.mxu0
        %1530 = vdwg.mxu0
        %vm1531 = vcmask 130048
        %v1532 = vsel %vm1531, %v1477, 0.0
        %1533 = vadd.xlane.f32.xlu0 %v1532
        %v1534 = vpop.xlane.xlu0 %1533
        %v1535 = vsel %vm1531, %v1478, 0.0
        %1536 = vadd.xlane.f32.xlu0 %v1535
        %v1537 = vpop.xlane.xlu0 %1536
        %v1538 = vadd.f32 %v1534, %v1537
        %v1539 = vrot.slane %v1538, 4
        %v1540 = vadd.f32 %v1538, %v1539
        %v1541 = vrot.slane %v1540, 2
        %v1542 = vadd.f32 %v1540, %v1541
        %v1543 = vrot.slane %v1542, 1
        %v1544 = vadd.f32 %v1542, %v1543
        %v1545 = vmul.f32 %v1544, 0.00390625
        %v1546 = vsub.f32 %v1477, %v1545
        %v1547 = vsub.f32 %v1478, %v1545
        %v1548 = vmul.f32 %v1546, %v1546
        %v1549 = vmul.f32 %v1547, %v1547
        %v1550 = vsel %vm1531, %v1548, 0.0
        %1551 = vadd.xlane.f32.xlu0 %v1550
        %v1552 = vpop.xlane.xlu0 %1551
        %v1553 = vsel %vm1531, %v1549, 0.0
        %1554 = vadd.xlane.f32.xlu0 %v1553
        %v1555 = vpop.xlane.xlu0 %1554
        %v1556 = vadd.f32 %v1552, %v1555
        %v1557 = vrot.slane %v1556, 4
        %v1558 = vadd.f32 %v1556, %v1557
        %v1559 = vrot.slane %v1558, 2
        %v1560 = vadd.f32 %v1558, %v1559
        %v1561 = vrot.slane %v1560, 1
        %v1562 = vadd.f32 %v1560, %v1561
        %v1563 = vmul.f32 %v1562, 0.00390625
        %v1564 = vadd.f32 %v1563, 1e-05
        %v1565 = vrsqrt.pop %v1564
        %v1566 = vmul.f32 %v1546, %v1565
        %v1567 = vmul.f32 %v1547, %v1565
        %v1568 = vld [vmem:[#allocation6] sm:$0x1]
        %v1570 = vlaneseq
        %v1571 = vshrl.u32 %v1570, 7
        %v1572 = vsub.s32 0, %v1571
        %v1573 = vrot.slane %v1568, %v1572
        %v1575 = vmul.f32 %v1566, %v1573
        %v1576 = vmul.f32 %v1567, %v1573
        %v1577 = vld [vmem:[#allocation7] sm:$0x1]
        %v1579 = vlaneseq
        %v1580 = vshrl.u32 %v1579, 7
        %v1581 = vsub.s32 0, %v1580
        %v1582 = vrot.slane %v1577, %v1581
        %v1584 = vadd.f32 %v1575, %v1582
        %v1585 = vadd.f32 %v1576, %v1582
        %v1586 = vmax.f32 %v1584, 0.0
        %v1587 = vmax.f32 %v1585, 0.0
        %vm1588 = vcmp.ne.f32.partialorder %v1584, %v1584
        %vm1589 = vcmp.ne.f32.partialorder %v1585, %v1585
        %v1590 = vadd.f32 %v1584, 0.0
        %v1591 = vadd.f32 %v1585, 0.0
        %v1592 = vand.u32 2147483647, %v1584
        %v1593 = vand.u32 2147483647, %v1585
        %v1594 = vsub.f32 0.0, %v1592
        %v1595 = vsub.f32 0.0, %v1593
        %v1596 = vmul.f32 %v1594, 1.442695
        %v1597 = vpow.pop %v1596
        %v1598 = vmul.f32 %v1595, 1.442695
        %v1599 = vpow.pop %v1598
        %v1600 = vadd.f32 %v1597, 1.0
        %v1601 = vlog2.pop %v1600
        %v1602 = vmul.f32 %v1601, 0.6931472
        %v1603 = vmul.f32 -0.5, %v1597
        %v1604 = vadd.f32 %v1603, 1.0
        %v1605 = vmul.f32 %v1604, %v1597
        %v1606 = vand.u32 2147483647, %v1597
        %vm1607 = vcmp.lt.f32.partialorder %v1606, 0.0004427343
        %v1608 = vsel %vm1607, %v1605, %v1602
        %v1609 = vadd.f32 %v1599, 1.0
        %v1610 = vlog2.pop %v1609
        %v1611 = vmul.f32 %v1610, 0.6931472
        %v1612 = vmul.f32 -0.5, %v1599
        %v1613 = vadd.f32 %v1612, 1.0
        %v1614 = vmul.f32 %v1613, %v1599
        %v1615 = vand.u32 2147483647, %v1599
        %vm1616 = vcmp.lt.f32.partialorder %v1615, 0.0004427343
        %v1617 = vsel %vm1616, %v1614, %v1611
        %v1618 = vadd.f32 %v1586, %v1608
        %v1619 = vadd.f32 %v1587, %v1617
        %v1620 = vsel %vm1588, %v1590, %v1618
        %v1621 = vsel %vm1589, %v1591, %v1619
        %v1622 = vtanh.pop %v1620
        %v1623 = vtanh.pop %v1621
        %v1624 = vmul.f32 %v1584, %v1622
        %v1625 = vmul.f32 %v1585, %v1623
        %v1626 = vld [vmem:[%s1138] sm:$0x1]
        %v1628 = vlaneseq
        %v1629 = vshrl.u32 %v1628, 7
        %v1630 = vsub.s32 0, %v1629
        %v1631 = vrot.slane %v1626, %v1630
        %v1633 = vmul.f32 %v1631, %v1624
        %v1634 = vmul.f32 %v1631, %v1625
        %v1635 = vld [vmem:[%s1146] sm:$0x1]
        %v1637 = vlaneseq
        %v1638 = vshrl.u32 %v1637, 7
        %v1639 = vsub.s32 0, %v1638
        %v1640 = vrot.slane %v1635, %v1639
        %v1642 = vadd.f32 %v1633, %v1640
        %v1643 = vadd.f32 %v1634, %v1640
        %v1644 = vpack.c.bf16 %v1643, %v1642
        %v1645 = vld [vmem:[%s15] sm:$0xf]
        %v1646 = vld [vmem:[%s15 + $0x4] sm:$0xf]
        %v1649 = vunpack.c.l.b16 %v1645
        %v1650 = vunpack.c.l.b16 %v1646
        %v1651 = vpack.c.b16 %v1650, %v1649
        %v1654 = vsel %vm1531, %v1644, 0
        %1656 = vmatprep.subr.bf16.mxu0 0
        %1657 = vmatpush1.bf16.msra.mxu0 0
        %1658 = vmatprep.subr.bf16.mxu0 0
        %1659 = vmatpush1.bf16.msra.mxu0 0
        %1660 = vmatprep.subr.bf16.mxu0 0
        %1661 = vmatpush1.bf16.msra.mxu0 0
        %1662 = vmatprep.subr.bf16.mxu0 0
        %1663 = vmatpush1.bf16.msra.mxu0 0
        %1664 = vmatprep.subr.bf16.mxu0 0
        %1665 = vmatpush1.bf16.msra.mxu0 0
        %1666 = vmatprep.subr.bf16.mxu0 0
        %1667 = vmatpush1.bf16.msra.mxu0 0
        %1668 = vmatprep.subr.bf16.mxu0 0
        %1669 = vmatpush1.bf16.msra.mxu0 0
        %1670 = vmatprep.subr.bf16.mxu0 0
        %1671 = vmatpush1.bf16.msra.mxu0 %v1651
        %1672 = vmatprep.subr.bf16.mxu0 0
        %1673 = vmatpush2.bf16.msra.mxu0 0
        %1674 = vmatprep.subr.bf16.mxu0 0
        %1675 = vmatpush2.bf16.msra.mxu0 0
        %1676 = vmatprep.subr.bf16.mxu0 0
        %1677 = vmatpush2.bf16.msra.mxu0 0
        %1678 = vmatprep.subr.bf16.mxu0 0
        %1679 = vmatpush2.bf16.msra.mxu0 0
        %1680 = vmatprep.subr.bf16.mxu0 0
        %1681 = vmatpush2.bf16.msra.mxu0 0
        %1682 = vmatprep.subr.bf16.mxu0 0
        %1683 = vmatpush2.bf16.msra.mxu0 0
        %1684 = vmatprep.subr.bf16.mxu0 0
        %1685 = vmatpush2.bf16.msra.mxu0 0
        %1686 = vmatprep.subr.bf16.mxu0 0
        %1687 = vmatpush2.bf16.msra.mxu0 0
        %1688 = vmatprep.mubr.bf16.mxu0 0
        %1689 = vmatmul.mubr.bf16.gmra.mxu0 %v1654
        %v1690 = vpop.f32.mrf.mxu0
        %v1691 = vadd.f32 0.0, %v1690
        %v1692 = vpop.f32.mrf.mxu0
        %v1693 = vpop.f32.mrf.mxu0
        %v1694 = vadd.f32 0.0, %v1693
        %v1695 = vpop.f32.mrf.mxu0
        %1696 = vdwg.mxu0
        %s1697 = scalar_lea.vmem %s15, 8
        %v1698 = vld [vmem:[%s1697] sm:$0xf]
        %v1699 = vld [vmem:[%s1697 + $0x4] sm:$0xf]
        %v1702 = vunpack.c.l.b16 %v1698
        %v1703 = vunpack.c.l.b16 %v1699
        %v1704 = vpack.c.b16 %v1703, %v1702
        %1706 = vmatprep.subr.bf16.mxu0 0
        %1707 = vmatpush1.bf16.msra.mxu0 0
        %1708 = vmatprep.subr.bf16.mxu0 0
        %1709 = vmatpush1.bf16.msra.mxu0 0
        %1710 = vmatprep.subr.bf16.mxu0 0
        %1711 = vmatpush1.bf16.msra.mxu0 0
        %1712 = vmatprep.subr.bf16.mxu0 0
        %1713 = vmatpush1.bf16.msra.mxu0 0
        %1714 = vmatprep.subr.bf16.mxu0 0
        %1715 = vmatpush1.bf16.msra.mxu0 0
        %1716 = vmatprep.subr.bf16.mxu0 0
        %1717 = vmatpush1.bf16.msra.mxu0 0
        %1718 = vmatprep.subr.bf16.mxu0 0
        %1719 = vmatpush1.bf16.msra.mxu0 0
        %1720 = vmatprep.subr.bf16.mxu0 0
        %1721 = vmatpush1.bf16.msra.mxu0 %v1704
        %1722 = vmatprep.subr.bf16.mxu0 0
        %1723 = vmatpush2.bf16.msra.mxu0 0
        %1724 = vmatprep.subr.bf16.mxu0 0
        %1725 = vmatpush2.bf16.msra.mxu0 0
        %1726 = vmatprep.subr.bf16.mxu0 0
        %1727 = vmatpush2.bf16.msra.mxu0 0
        %1728 = vmatprep.subr.bf16.mxu0 0
        %1729 = vmatpush2.bf16.msra.mxu0 0
        %1730 = vmatprep.subr.bf16.mxu0 0
        %1731 = vmatpush2.bf16.msra.mxu0 0
        %1732 = vmatprep.subr.bf16.mxu0 0
        %1733 = vmatpush2.bf16.msra.mxu0 0
        %1734 = vmatprep.subr.bf16.mxu0 0
        %1735 = vmatpush2.bf16.msra.mxu0 0
        %1736 = vmatprep.subr.bf16.mxu0 0
        %1737 = vmatpush2.bf16.msra.mxu0 0
        %1738 = vmatprep.mubr.bf16.mxu0 0
        %1739 = vmatmul.mubr.bf16.gmra.mxu0 %v1654
        %v1740 = vpop.f32.mrf.mxu0
        %v1741 = vadd.f32 0.0, %v1740
        %v1742 = vpop.f32.mrf.mxu0
        %v1743 = vpop.f32.mrf.mxu0
        %v1744 = vadd.f32 0.0, %v1743
        %v1745 = vpop.f32.mrf.mxu0
        %1746 = vdwg.mxu0
        %s1747 = scalar_lea.vmem %s15, 16
        %v1748 = vld [vmem:[%s1747] sm:$0xf]
        %v1749 = vld [vmem:[%s1747 + $0x4] sm:$0xf]
        %v1752 = vunpack.c.l.b16 %v1748
        %v1753 = vunpack.c.l.b16 %v1749
        %v1754 = vpack.c.b16 %v1753, %v1752
        %1756 = vmatprep.subr.bf16.mxu0 0
        %1757 = vmatpush1.bf16.msra.mxu0 0
        %1758 = vmatprep.subr.bf16.mxu0 0
        %1759 = vmatpush1.bf16.msra.mxu0 0
        %1760 = vmatprep.subr.bf16.mxu0 0
        %1761 = vmatpush1.bf16.msra.mxu0 0
        %1762 = vmatprep.subr.bf16.mxu0 0
        %1763 = vmatpush1.bf16.msra.mxu0 0
        %1764 = vmatprep.subr.bf16.mxu0 0
        %1765 = vmatpush1.bf16.msra.mxu0 0
        %1766 = vmatprep.subr.bf16.mxu0 0
        %1767 = vmatpush1.bf16.msra.mxu0 0
        %1768 = vmatprep.subr.bf16.mxu0 0
        %1769 = vmatpush1.bf16.msra.mxu0 0
        %1770 = vmatprep.subr.bf16.mxu0 0
        %1771 = vmatpush1.bf16.msra.mxu0 %v1754
        %1772 = vmatprep.subr.bf16.mxu0 0
        %1773 = vmatpush2.bf16.msra.mxu0 0
        %1774 = vmatprep.subr.bf16.mxu0 0
        %1775 = vmatpush2.bf16.msra.mxu0 0
        %1776 = vmatprep.subr.bf16.mxu0 0
        %1777 = vmatpush2.bf16.msra.mxu0 0
        %1778 = vmatprep.subr.bf16.mxu0 0
        %1779 = vmatpush2.bf16.msra.mxu0 0
        %1780 = vmatprep.subr.bf16.mxu0 0
        %1781 = vmatpush2.bf16.msra.mxu0 0
        %1782 = vmatprep.subr.bf16.mxu0 0
        %1783 = vmatpush2.bf16.msra.mxu0 0
        %1784 = vmatprep.subr.bf16.mxu0 0
        %1785 = vmatpush2.bf16.msra.mxu0 0
        %1786 = vmatprep.subr.bf16.mxu0 0
        %1787 = vmatpush2.bf16.msra.mxu0 0
        %1788 = vmatprep.mubr.bf16.mxu0 0
        %1789 = vmatmul.mubr.bf16.gmra.mxu0 %v1654
        %v1790 = vpop.f32.mrf.mxu0
        %v1791 = vadd.f32 0.0, %v1790
        %v1792 = vpop.f32.mrf.mxu0
        %v1793 = vpop.f32.mrf.mxu0
        %v1794 = vadd.f32 0.0, %v1793
        %v1795 = vpop.f32.mrf.mxu0
        %1796 = vdwg.mxu0
        %v1797 = vrot.slane %v1691, 7
        %v1798 = vrot.slane %v1694, 7
        %v1799 = vsel %vm1446, %v1797, %v1798
        %v1800 = vsel %vm1446, %v1798, %v1797
        %v1801 = vsel %vm1451, %v1800, 0.0
        %v1802 = vsel %vm1452, %v1799, 0.0
        %v1803 = vrot.slane %v1791, 1
        %v1804 = vrot.slane %v1794, 1
        %v1805 = vsel %vm1457, %v1803, %v1804
        %v1806 = vsel %vm1457, %v1804, %v1803
        %v1807 = vsel %vm1462, %v1805, 0.0
        %v1808 = vsel %vm1463, %v1806, 0.0
        %v1809 = vadd.f32 %v1801, %v1741
        %v1810 = vadd.f32 %v1802, %v1744
        %v1811 = vadd.f32 %v1809, %v1807
        %v1812 = vadd.f32 %v1810, %v1808
        %v1813 = vld [vmem:[#allocation11] sm:$0x1]
        %v1815 = vlaneseq
        %v1816 = vshrl.u32 %v1815, 7
        %v1817 = vsub.s32 0, %v1816
        %v1818 = vrot.slane %v1813, %v1817
        %v1820 = vadd.f32 %v1811, %v1818
        %v1821 = vadd.f32 %v1812, %v1818
        %v1822 = vsel %vm1531, %v1820, 0.0
        %1823 = vadd.xlane.f32.xlu0 %v1822
        %v1824 = vpop.xlane.xlu0 %1823
        %v1825 = vsel %vm1531, %v1821, 0.0
        %1826 = vadd.xlane.f32.xlu0 %v1825
        %v1827 = vpop.xlane.xlu0 %1826
        %v1828 = vadd.f32 %v1824, %v1827
        %v1829 = vrot.slane %v1828, 4
        %v1830 = vadd.f32 %v1828, %v1829
        %v1831 = vrot.slane %v1830, 2
        %v1832 = vadd.f32 %v1830, %v1831
        %v1833 = vrot.slane %v1832, 1
        %v1834 = vadd.f32 %v1832, %v1833
        %v1835 = vmul.f32 %v1834, 0.00390625
        %v1836 = vsub.f32 %v1820, %v1835
        %v1837 = vsub.f32 %v1821, %v1835
        %v1838 = vmul.f32 %v1836, %v1836
        %v1839 = vmul.f32 %v1837, %v1837
        %v1840 = vsel %vm1531, %v1838, 0.0
        %1841 = vadd.xlane.f32.xlu0 %v1840
        %v1842 = vpop.xlane.xlu0 %1841
        %v1843 = vsel %vm1531, %v1839, 0.0
        %1844 = vadd.xlane.f32.xlu0 %v1843
        %v1845 = vpop.xlane.xlu0 %1844
        %v1846 = vadd.f32 %v1842, %v1845
        %v1847 = vrot.slane %v1846, 4
        %v1848 = vadd.f32 %v1846, %v1847
        %v1849 = vrot.slane %v1848, 2
        %v1850 = vadd.f32 %v1848, %v1849
        %v1851 = vrot.slane %v1850, 1
        %v1852 = vadd.f32 %v1850, %v1851
        %v1853 = vmul.f32 %v1852, 0.00390625
        %v1854 = vadd.f32 %v1853, 1e-05
        %v1855 = vrsqrt.pop %v1854
        %v1856 = vmul.f32 %v1836, %v1855
        %v1857 = vmul.f32 %v1837, %v1855
        %v1858 = vld [vmem:[#allocation12] sm:$0x1]
        %v1860 = vlaneseq
        %v1861 = vshrl.u32 %v1860, 7
        %v1862 = vsub.s32 0, %v1861
        %v1863 = vrot.slane %v1858, %v1862
        %v1865 = vmul.f32 %v1856, %v1863
        %v1866 = vmul.f32 %v1857, %v1863
        %v1867 = vld [vmem:[#allocation13] sm:$0x1]
        %v1869 = vlaneseq
        %v1870 = vshrl.u32 %v1869, 7
        %v1871 = vsub.s32 0, %v1870
        %v1872 = vrot.slane %v1867, %v1871
        %v1874 = vadd.f32 %v1865, %v1872
        %v1875 = vadd.f32 %v1866, %v1872
        %v1876 = vmax.f32 %v1874, 0.0
        %v1877 = vmax.f32 %v1875, 0.0
        %vm1878 = vcmp.ne.f32.partialorder %v1874, %v1874
        %vm1879 = vcmp.ne.f32.partialorder %v1875, %v1875
        %v1880 = vadd.f32 %v1874, 0.0
        %v1881 = vadd.f32 %v1875, 0.0
        %v1882 = vand.u32 2147483647, %v1874
        %v1883 = vand.u32 2147483647, %v1875
        %v1884 = vsub.f32 0.0, %v1882
        %v1885 = vsub.f32 0.0, %v1883
        %v1886 = vmul.f32 %v1884, 1.442695
        %v1887 = vpow.pop %v1886
        %v1888 = vmul.f32 %v1885, 1.442695
        %v1889 = vpow.pop %v1888
        %v1890 = vadd.f32 %v1887, 1.0
        %v1891 = vlog2.pop %v1890
        %v1892 = vmul.f32 %v1891, 0.6931472
        %v1893 = vmul.f32 -0.5, %v1887
        %v1894 = vadd.f32 %v1893, 1.0
        %v1895 = vmul.f32 %v1894, %v1887
        %v1896 = vand.u32 2147483647, %v1887
        %vm1897 = vcmp.lt.f32.partialorder %v1896, 0.0004427343
        %v1898 = vsel %vm1897, %v1895, %v1892
        %v1899 = vadd.f32 %v1889, 1.0
        %v1900 = vlog2.pop %v1899
        %v1901 = vmul.f32 %v1900, 0.6931472
        %v1902 = vmul.f32 -0.5, %v1889
        %v1903 = vadd.f32 %v1902, 1.0
        %v1904 = vmul.f32 %v1903, %v1889
        %v1905 = vand.u32 2147483647, %v1889
        %vm1906 = vcmp.lt.f32.partialorder %v1905, 0.0004427343
        %v1907 = vsel %vm1906, %v1904, %v1901
        %v1908 = vadd.f32 %v1876, %v1898
        %v1909 = vadd.f32 %v1877, %v1907
        %v1910 = vsel %vm1878, %v1880, %v1908
        %v1911 = vsel %vm1879, %v1881, %v1909
        %v1912 = vtanh.pop %v1910
        %v1913 = vtanh.pop %v1911
        %v1914 = vmul.f32 %v1874, %v1912
        %v1915 = vmul.f32 %v1875, %v1913
        %v1916 = vadd.f32 %v1914, %v1525
        %v1917 = vadd.f32 %v1915, %v1528
        %v1918 = vpack.c.bf16 %v1917, %v1916
        %v1919 = vld [vmem:[%s27] sm:$0xf]
        %v1920 = vld [vmem:[%s27 + $0x4] sm:$0xf]
        %v1923 = vunpack.c.l.b16 %v1919
        %v1924 = vunpack.c.l.b16 %v1920
        %v1925 = vpack.c.b16 %v1924, %v1923
        %v1928 = vsel %vm1531, %v1918, 0
        %1930 = vmatprep.subr.bf16.mxu0 0
        %1931 = vmatpush1.bf16.msra.mxu0 0
        %1932 = vmatprep.subr.bf16.mxu0 0
        %1933 = vmatpush1.bf16.msra.mxu0 0
        %1934 = vmatprep.subr.bf16.mxu0 0
        %1935 = vmatpush1.bf16.msra.mxu0 0
        %1936 = vmatprep.subr.bf16.mxu0 0
        %1937 = vmatpush1.bf16.msra.mxu0 0
        %1938 = vmatprep.subr.bf16.mxu0 0
        %1939 = vmatpush1.bf16.msra.mxu0 0
        %1940 = vmatprep.subr.bf16.mxu0 0
        %1941 = vmatpush1.bf16.msra.mxu0 0
        %1942 = vmatprep.subr.bf16.mxu0 0
        %1943 = vmatpush1.bf16.msra.mxu0 0
        %1944 = vmatprep.subr.bf16.mxu0 0
        %1945 = vmatpush1.bf16.msra.mxu0 %v1925
        %1946 = vmatprep.subr.bf16.mxu0 0
        %1947 = vmatpush2.bf16.msra.mxu0 0
        %1948 = vmatprep.subr.bf16.mxu0 0
        %1949 = vmatpush2.bf16.msra.mxu0 0
        %1950 = vmatprep.subr.bf16.mxu0 0
        %1951 = vmatpush2.bf16.msra.mxu0 0
        %1952 = vmatprep.subr.bf16.mxu0 0
        %1953 = vmatpush2.bf16.msra.mxu0 0
        %1954 = vmatprep.subr.bf16.mxu0 0
        %1955 = vmatpush2.bf16.msra.mxu0 0
        %1956 = vmatprep.subr.bf16.mxu0 0
        %1957 = vmatpush2.bf16.msra.mxu0 0
        %1958 = vmatprep.subr.bf16.mxu0 0
        %1959 = vmatpush2.bf16.msra.mxu0 0
        %1960 = vmatprep.subr.bf16.mxu0 0
        %1961 = vmatpush2.bf16.msra.mxu0 0
        %1962 = vmatprep.mubr.bf16.mxu0 0
        %1963 = vmatmul.mubr.bf16.gmra.mxu0 %v1928
        %v1964 = vpop.f32.mrf.mxu0
        %v1965 = vadd.f32 0.0, %v1964
        %v1966 = vpop.f32.mrf.mxu0
        %v1967 = vpop.f32.mrf.mxu0
        %v1968 = vadd.f32 0.0, %v1967
        %v1969 = vpop.f32.mrf.mxu0
        %1970 = vdwg.mxu0
        %s1971 = scalar_lea.vmem %s27, 8
        %v1972 = vld [vmem:[%s1971] sm:$0xf]
        %v1973 = vld [vmem:[%s1971 + $0x4] sm:$0xf]
        %v1976 = vunpack.c.l.b16 %v1972
        %v1977 = vunpack.c.l.b16 %v1973
        %v1978 = vpack.c.b16 %v1977, %v1976
        %1980 = vmatprep.subr.bf16.mxu0 0
        %1981 = vmatpush1.bf16.msra.mxu0 0
        %1982 = vmatprep.subr.bf16.mxu0 0
        %1983 = vmatpush1.bf16.msra.mxu0 0
        %1984 = vmatprep.subr.bf16.mxu0 0
        %1985 = vmatpush1.bf16.msra.mxu0 0
        %1986 = vmatprep.subr.bf16.mxu0 0
        %1987 = vmatpush1.bf16.msra.mxu0 0
        %1988 = vmatprep.subr.bf16.mxu0 0
        %1989 = vmatpush1.bf16.msra.mxu0 0
        %1990 = vmatprep.subr.bf16.mxu0 0
        %1991 = vmatpush1.bf16.msra.mxu0 0
        %1992 = vmatprep.subr.bf16.mxu0 0
        %1993 = vmatpush1.bf16.msra.mxu0 0
        %1994 = vmatprep.subr.bf16.mxu0 0
        %1995 = vmatpush1.bf16.msra.mxu0 %v1978
        %1996 = vmatprep.subr.bf16.mxu0 0
        %1997 = vmatpush2.bf16.msra.mxu0 0
        %1998 = vmatprep.subr.bf16.mxu0 0
        %1999 = vmatpush2.bf16.msra.mxu0 0
        %2000 = vmatprep.subr.bf16.mxu0 0
        %2001 = vmatpush2.bf16.msra.mxu0 0
        %2002 = vmatprep.subr.bf16.mxu0 0
        %2003 = vmatpush2.bf16.msra.mxu0 0
        %2004 = vmatprep.subr.bf16.mxu0 0
        %2005 = vmatpush2.bf16.msra.mxu0 0
        %2006 = vmatprep.subr.bf16.mxu0 0
        %2007 = vmatpush2.bf16.msra.mxu0 0
        %2008 = vmatprep.subr.bf16.mxu0 0
        %2009 = vmatpush2.bf16.msra.mxu0 0
        %2010 = vmatprep.subr.bf16.mxu0 0
        %2011 = vmatpush2.bf16.msra.mxu0 0
        %2012 = vmatprep.mubr.bf16.mxu0 0
        %2013 = vmatmul.mubr.bf16.gmra.mxu0 %v1928
        %v2014 = vpop.f32.mrf.mxu0
        %v2015 = vadd.f32 0.0, %v2014
        %v2016 = vpop.f32.mrf.mxu0
        %v2017 = vpop.f32.mrf.mxu0
        %v2018 = vadd.f32 0.0, %v2017
        %v2019 = vpop.f32.mrf.mxu0
        %2020 = vdwg.mxu0
        %s2021 = scalar_lea.vmem %s27, 16
        %v2022 = vld [vmem:[%s2021] sm:$0xf]
        %v2023 = vld [vmem:[%s2021 + $0x4] sm:$0xf]
        %v2026 = vunpack.c.l.b16 %v2022
        %v2027 = vunpack.c.l.b16 %v2023
        %v2028 = vpack.c.b16 %v2027, %v2026
        %2030 = vmatprep.subr.bf16.mxu0 0
        %2031 = vmatpush1.bf16.msra.mxu0 0
        %2032 = vmatprep.subr.bf16.mxu0 0
        %2033 = vmatpush1.bf16.msra.mxu0 0
        %2034 = vmatprep.subr.bf16.mxu0 0
        %2035 = vmatpush1.bf16.msra.mxu0 0
        %2036 = vmatprep.subr.bf16.mxu0 0
        %2037 = vmatpush1.bf16.msra.mxu0 0
        %2038 = vmatprep.subr.bf16.mxu0 0
        %2039 = vmatpush1.bf16.msra.mxu0 0
        %2040 = vmatprep.subr.bf16.mxu0 0
        %2041 = vmatpush1.bf16.msra.mxu0 0
        %2042 = vmatprep.subr.bf16.mxu0 0
        %2043 = vmatpush1.bf16.msra.mxu0 0
        %2044 = vmatprep.subr.bf16.mxu0 0
        %2045 = vmatpush1.bf16.msra.mxu0 %v2028
        %2046 = vmatprep.subr.bf16.mxu0 0
        %2047 = vmatpush2.bf16.msra.mxu0 0
        %2048 = vmatprep.subr.bf16.mxu0 0
        %2049 = vmatpush2.bf16.msra.mxu0 0
        %2050 = vmatprep.subr.bf16.mxu0 0
        %2051 = vmatpush2.bf16.msra.mxu0 0
        %2052 = vmatprep.subr.bf16.mxu0 0
        %2053 = vmatpush2.bf16.msra.mxu0 0
        %2054 = vmatprep.subr.bf16.mxu0 0
        %2055 = vmatpush2.bf16.msra.mxu0 0
        %2056 = vmatprep.subr.bf16.mxu0 0
        %2057 = vmatpush2.bf16.msra.mxu0 0
        %2058 = vmatprep.subr.bf16.mxu0 0
        %2059 = vmatpush2.bf16.msra.mxu0 0
        %2060 = vmatprep.subr.bf16.mxu0 0
        %2061 = vmatpush2.bf16.msra.mxu0 0
        %2062 = vmatprep.mubr.bf16.mxu0 0
        %2063 = vmatmul.mubr.bf16.gmra.mxu0 %v1928
        %v2064 = vpop.f32.mrf.mxu0
        %v2065 = vadd.f32 0.0, %v2064
        %v2066 = vpop.f32.mrf.mxu0
        %v2067 = vpop.f32.mrf.mxu0
        %v2068 = vadd.f32 0.0, %v2067
        %v2069 = vpop.f32.mrf.mxu0
        %2070 = vdwg.mxu0
        %v2071 = vrot.slane %v1965, 7
        %v2072 = vrot.slane %v1968, 7
        %v2073 = vsel %vm1446, %v2071, %v2072
        %v2074 = vsel %vm1446, %v2072, %v2071
        %v2075 = vsel %vm1451, %v2074, 0.0
        %v2076 = vsel %vm1452, %v2073, 0.0
        %v2077 = vrot.slane %v2065, 1
        %v2078 = vrot.slane %v2068, 1
        %v2079 = vsel %vm1457, %v2077, %v2078
        %v2080 = vsel %vm1457, %v2078, %v2077
        %v2081 = vsel %vm1462, %v2079, 0.0
        %v2082 = vsel %vm1463, %v2080, 0.0
        %v2083 = vadd.f32 %v2075, %v2015
        %v2084 = vadd.f32 %v2076, %v2018
        %v2085 = vadd.f32 %v2083, %v2081
        %v2086 = vadd.f32 %v2084, %v2082
        %v2087 = vld [vmem:[#allocation15] sm:$0x1]
        %v2089 = vlaneseq
        %v2090 = vshrl.u32 %v2089, 7
        %v2091 = vsub.s32 0, %v2090
        %v2092 = vrot.slane %v2087, %v2091
        %v2094 = vadd.f32 %v2085, %v2092
        %v2095 = vadd.f32 %v2086, %v2092
        %v2096 = vsel %vm1531, %v2094, 0.0
        %2097 = vadd.xlane.f32.xlu0 %v2096
        %v2098 = vpop.xlane.xlu0 %2097
        %v2099 = vsel %vm1531, %v2095, 0.0
        %2100 = vadd.xlane.f32.xlu0 %v2099
        %v2101 = vpop.xlane.xlu0 %2100
        %v2102 = vadd.f32 %v2098, %v2101
        %v2103 = vrot.slane %v2102, 4
        %v2104 = vadd.f32 %v2102, %v2103
        %v2105 = vrot.slane %v2104, 2
        %v2106 = vadd.f32 %v2104, %v2105
        %v2107 = vrot.slane %v2106, 1
        %v2108 = vadd.f32 %v2106, %v2107
        %v2109 = vmul.f32 %v2108, 0.00390625
        %v2110 = vsub.f32 %v2094, %v2109
        %v2111 = vsub.f32 %v2095, %v2109
        %v2112 = vmul.f32 %v2110, %v2110
        %v2113 = vmul.f32 %v2111, %v2111
        %v2114 = vsel %vm1531, %v2112, 0.0
        %2115 = vadd.xlane.f32.xlu0 %v2114
        %v2116 = vpop.xlane.xlu0 %2115
        %v2117 = vsel %vm1531, %v2113, 0.0
        %2118 = vadd.xlane.f32.xlu0 %v2117
        %v2119 = vpop.xlane.xlu0 %2118
        %v2120 = vadd.f32 %v2116, %v2119
        %v2121 = vrot.slane %v2120, 4
        %v2122 = vadd.f32 %v2120, %v2121
        %v2123 = vrot.slane %v2122, 2
        %v2124 = vadd.f32 %v2122, %v2123
        %v2125 = vrot.slane %v2124, 1
        %v2126 = vadd.f32 %v2124, %v2125
        %v2127 = vmul.f32 %v2126, 0.00390625
        %v2128 = vadd.f32 %v2127, 1e-05
        %v2129 = vrsqrt.pop %v2128
        %v2130 = vmul.f32 %v2110, %v2129
        %v2131 = vmul.f32 %v2111, %v2129
        %v2132 = vld [vmem:[%s31] sm:$0x1]
        %v2134 = vlaneseq
        %v2135 = vshrl.u32 %v2134, 7
        %v2136 = vsub.s32 0, %v2135
        %v2137 = vrot.slane %v2132, %v2136
        %v2139 = vmul.f32 %v2130, %v2137
        %v2140 = vmul.f32 %v2131, %v2137
        %v2141 = vld [vmem:[%s33] sm:$0x1]
        %v2143 = vlaneseq
        %v2144 = vshrl.u32 %v2143, 7
        %v2145 = vsub.s32 0, %v2144
        %v2146 = vrot.slane %v2141, %v2145
        %v2148 = vadd.f32 %v2139, %v2146
        %v2149 = vadd.f32 %v2140, %v2146
        %v2150 = vmax.f32 %v2148, 0.0
        %v2151 = vmax.f32 %v2149, 0.0
        %vm2152 = vcmp.ne.f32.partialorder %v2148, %v2148
        %vm2153 = vcmp.ne.f32.partialorder %v2149, %v2149
        %v2154 = vadd.f32 %v2148, 0.0
        %v2155 = vadd.f32 %v2149, 0.0
        %v2156 = vand.u32 2147483647, %v2148
        %v2157 = vand.u32 2147483647, %v2149
        %v2158 = vsub.f32 0.0, %v2156
        %v2159 = vsub.f32 0.0, %v2157
        %v2160 = vmul.f32 %v2158, 1.442695
        %v2161 = vpow.pop %v2160
        %v2162 = vmul.f32 %v2159, 1.442695
        %v2163 = vpow.pop %v2162
        %v2164 = vadd.f32 %v2161, 1.0
        %v2165 = vlog2.pop %v2164
        %v2166 = vmul.f32 %v2165, 0.6931472
        %v2167 = vmul.f32 -0.5, %v2161
        %v2168 = vadd.f32 %v2167, 1.0
        %v2169 = vmul.f32 %v2168, %v2161
        %v2170 = vand.u32 2147483647, %v2161
        %vm2171 = vcmp.lt.f32.partialorder %v2170, 0.0004427343
        %v2172 = vsel %vm2171, %v2169, %v2166
        %v2173 = vadd.f32 %v2163, 1.0
        %v2174 = vlog2.pop %v2173
        %v2175 = vmul.f32 %v2174, 0.6931472
        %v2176 = vmul.f32 -0.5, %v2163
        %v2177 = vadd.f32 %v2176, 1.0
        %v2178 = vmul.f32 %v2177, %v2163
        %v2179 = vand.u32 2147483647, %v2163
        %vm2180 = vcmp.lt.f32.partialorder %v2179, 0.0004427343
        %v2181 = vsel %vm2180, %v2178, %v2175
        %v2182 = vadd.f32 %v2150, %v2172
        %v2183 = vadd.f32 %v2151, %v2181
        %v2184 = vsel %vm2152, %v2154, %v2182
        %v2185 = vsel %vm2153, %v2155, %v2183
        %v2186 = vtanh.pop %v2184
        %v2187 = vtanh.pop %v2185
        %v2188 = vmul.f32 %v2148, %v2186
        %v2189 = vmul.f32 %v2149, %v2187
        %v2190 = vld [vmem:[%s1276] sm:$0x1]
        %v2192 = vlaneseq
        %v2193 = vshrl.u32 %v2192, 7
        %v2194 = vsub.s32 0, %v2193
        %v2195 = vrot.slane %v2190, %v2194
        %v2197 = vmul.f32 %v2195, %v2188
        %v2198 = vmul.f32 %v2195, %v2189
        %v2199 = vld [vmem:[%s1279] sm:$0x1]
        %v2201 = vlaneseq
        %v2202 = vshrl.u32 %v2201, 7
        %v2203 = vsub.s32 0, %v2202
        %v2204 = vrot.slane %v2199, %v2203
        %v2206 = vadd.f32 %v2197, %v2204
        %v2207 = vadd.f32 %v2198, %v2204
        %v2208 = vpack.c.bf16 %v2207, %v2206
        %v2209 = vld [vmem:[%s39] sm:$0xf]
        %v2210 = vld [vmem:[%s39 + $0x4] sm:$0xf]
        %v2213 = vunpack.c.l.b16 %v2209
        %v2214 = vunpack.c.l.b16 %v2210
        %v2215 = vpack.c.b16 %v2214, %v2213
        %v2218 = vsel %vm1531, %v2208, 0
        %2220 = vmatprep.subr.bf16.mxu0 0
        %2221 = vmatpush1.bf16.msra.mxu0 0
        %2222 = vmatprep.subr.bf16.mxu0 0
        %2223 = vmatpush1.bf16.msra.mxu0 0
        %2224 = vmatprep.subr.bf16.mxu0 0
        %2225 = vmatpush1.bf16.msra.mxu0 0
        %2226 = vmatprep.subr.bf16.mxu0 0
        %2227 = vmatpush1.bf16.msra.mxu0 0
        %2228 = vmatprep.subr.bf16.mxu0 0
        %2229 = vmatpush1.bf16.msra.mxu0 0
        %2230 = vmatprep.subr.bf16.mxu0 0
        %2231 = vmatpush1.bf16.msra.mxu0 0
        %2232 = vmatprep.subr.bf16.mxu0 0
        %2233 = vmatpush1.bf16.msra.mxu0 0
        %2234 = vmatprep.subr.bf16.mxu0 0
        %2235 = vmatpush1.bf16.msra.mxu0 %v2215
        %2236 = vmatprep.subr.bf16.mxu0 0
        %2237 = vmatpush2.bf16.msra.mxu0 0
        %2238 = vmatprep.subr.bf16.mxu0 0
        %2239 = vmatpush2.bf16.msra.mxu0 0
        %2240 = vmatprep.subr.bf16.mxu0 0
        %2241 = vmatpush2.bf16.msra.mxu0 0
        %2242 = vmatprep.subr.bf16.mxu0 0
        %2243 = vmatpush2.bf16.msra.mxu0 0
        %2244 = vmatprep.subr.bf16.mxu0 0
        %2245 = vmatpush2.bf16.msra.mxu0 0
        %2246 = vmatprep.subr.bf16.mxu0 0
        %2247 = vmatpush2.bf16.msra.mxu0 0
        %2248 = vmatprep.subr.bf16.mxu0 0
        %2249 = vmatpush2.bf16.msra.mxu0 0
        %2250 = vmatprep.subr.bf16.mxu0 0
        %2251 = vmatpush2.bf16.msra.mxu0 0
        %2252 = vmatprep.mubr.bf16.mxu0 0
        %2253 = vmatmul.mubr.bf16.gmra.mxu0 %v2218
        %v2254 = vpop.f32.mrf.mxu0
        %v2255 = vadd.f32 0.0, %v2254
        %v2256 = vpop.f32.mrf.mxu0
        %v2257 = vpop.f32.mrf.mxu0
        %v2258 = vadd.f32 0.0, %v2257
        %v2259 = vpop.f32.mrf.mxu0
        %2260 = vdwg.mxu0
        %s2261 = scalar_lea.vmem %s39, 8
        %v2262 = vld [vmem:[%s2261] sm:$0xf]
        %v2263 = vld [vmem:[%s2261 + $0x4] sm:$0xf]
        %v2266 = vunpack.c.l.b16 %v2262
        %v2267 = vunpack.c.l.b16 %v2263
        %v2268 = vpack.c.b16 %v2267, %v2266
        %2270 = vmatprep.subr.bf16.mxu0 0
        %2271 = vmatpush1.bf16.msra.mxu0 0
        %2272 = vmatprep.subr.bf16.mxu0 0
        %2273 = vmatpush1.bf16.msra.mxu0 0
        %2274 = vmatprep.subr.bf16.mxu0 0
        %2275 = vmatpush1.bf16.msra.mxu0 0
        %2276 = vmatprep.subr.bf16.mxu0 0
        %2277 = vmatpush1.bf16.msra.mxu0 0
        %2278 = vmatprep.subr.bf16.mxu0 0
        %2279 = vmatpush1.bf16.msra.mxu0 0
        %2280 = vmatprep.subr.bf16.mxu0 0
        %2281 = vmatpush1.bf16.msra.mxu0 0
        %2282 = vmatprep.subr.bf16.mxu0 0
        %2283 = vmatpush1.bf16.msra.mxu0 0
        %2284 = vmatprep.subr.bf16.mxu0 0
        %2285 = vmatpush1.bf16.msra.mxu0 %v2268
        %2286 = vmatprep.subr.bf16.mxu0 0
        %2287 = vmatpush2.bf16.msra.mxu0 0
        %2288 = vmatprep.subr.bf16.mxu0 0
        %2289 = vmatpush2.bf16.msra.mxu0 0
        %2290 = vmatprep.subr.bf16.mxu0 0
        %2291 = vmatpush2.bf16.msra.mxu0 0
        %2292 = vmatprep.subr.bf16.mxu0 0
        %2293 = vmatpush2.bf16.msra.mxu0 0
        %2294 = vmatprep.subr.bf16.mxu0 0
        %2295 = vmatpush2.bf16.msra.mxu0 0
        %2296 = vmatprep.subr.bf16.mxu0 0
        %2297 = vmatpush2.bf16.msra.mxu0 0
        %2298 = vmatprep.subr.bf16.mxu0 0
        %2299 = vmatpush2.bf16.msra.mxu0 0
        %2300 = vmatprep.subr.bf16.mxu0 0
        %2301 = vmatpush2.bf16.msra.mxu0 0
        %2302 = vmatprep.mubr.bf16.mxu0 0
        %2303 = vmatmul.mubr.bf16.gmra.mxu0 %v2218
        %v2304 = vpop.f32.mrf.mxu0
        %v2305 = vadd.f32 0.0, %v2304
        %v2306 = vpop.f32.mrf.mxu0
        %v2307 = vpop.f32.mrf.mxu0
        %v2308 = vadd.f32 0.0, %v2307
        %v2309 = vpop.f32.mrf.mxu0
        %2310 = vdwg.mxu0
        %s2311 = scalar_lea.vmem %s39, 16
        %v2312 = vld [vmem:[%s2311] sm:$0xf]
        %v2313 = vld [vmem:[%s2311 + $0x4] sm:$0xf]
        %v2316 = vunpack.c.l.b16 %v2312
        %v2317 = vunpack.c.l.b16 %v2313
        %v2318 = vpack.c.b16 %v2317, %v2316
        %2320 = vmatprep.subr.bf16.mxu0 0
        %2321 = vmatpush1.bf16.msra.mxu0 0
        %2322 = vmatprep.subr.bf16.mxu0 0
        %2323 = vmatpush1.bf16.msra.mxu0 0
        %2324 = vmatprep.subr.bf16.mxu0 0
        %2325 = vmatpush1.bf16.msra.mxu0 0
        %2326 = vmatprep.subr.bf16.mxu0 0
        %2327 = vmatpush1.bf16.msra.mxu0 0
        %2328 = vmatprep.subr.bf16.mxu0 0
        %2329 = vmatpush1.bf16.msra.mxu0 0
        %2330 = vmatprep.subr.bf16.mxu0 0
        %2331 = vmatpush1.bf16.msra.mxu0 0
        %2332 = vmatprep.subr.bf16.mxu0 0
        %2333 = vmatpush1.bf16.msra.mxu0 0
        %2334 = vmatprep.subr.bf16.mxu0 0
        %2335 = vmatpush1.bf16.msra.mxu0 %v2318
        %2336 = vmatprep.subr.bf16.mxu0 0
        %2337 = vmatpush2.bf16.msra.mxu0 0
        %2338 = vmatprep.subr.bf16.mxu0 0
        %2339 = vmatpush2.bf16.msra.mxu0 0
        %2340 = vmatprep.subr.bf16.mxu0 0
        %2341 = vmatpush2.bf16.msra.mxu0 0
        %2342 = vmatprep.subr.bf16.mxu0 0
        %2343 = vmatpush2.bf16.msra.mxu0 0
        %2344 = vmatprep.subr.bf16.mxu0 0
        %2345 = vmatpush2.bf16.msra.mxu0 0
        %2346 = vmatprep.subr.bf16.mxu0 0
        %2347 = vmatpush2.bf16.msra.mxu0 0
        %2348 = vmatprep.subr.bf16.mxu0 0
        %2349 = vmatpush2.bf16.msra.mxu0 0
        %2350 = vmatprep.subr.bf16.mxu0 0
        %2351 = vmatpush2.bf16.msra.mxu0 0
        %2352 = vmatprep.mubr.bf16.mxu0 0
        %2353 = vmatmul.mubr.bf16.gmra.mxu0 %v2218
        %v2354 = vpop.f32.mrf.mxu0
        %v2355 = vadd.f32 0.0, %v2354
        %v2356 = vpop.f32.mrf.mxu0
        %v2357 = vpop.f32.mrf.mxu0
        %v2358 = vadd.f32 0.0, %v2357
        %v2359 = vpop.f32.mrf.mxu0
        %2360 = vdwg.mxu0
        %v2361 = vrot.slane %v2255, 7
        %v2362 = vrot.slane %v2258, 7
        %v2363 = vsel %vm1446, %v2361, %v2362
        %v2364 = vsel %vm1446, %v2362, %v2361
        %v2365 = vsel %vm1451, %v2364, 0.0
        %v2366 = vsel %vm1452, %v2363, 0.0
        %v2367 = vrot.slane %v2355, 1
        %v2368 = vrot.slane %v2358, 1
        %v2369 = vsel %vm1457, %v2367, %v2368
        %v2370 = vsel %vm1457, %v2368, %v2367
        %v2371 = vsel %vm1462, %v2369, 0.0
        %v2372 = vsel %vm1463, %v2370, 0.0
        %v2373 = vadd.f32 %v2365, %v2305
        %v2374 = vadd.f32 %v2366, %v2308
        %v2375 = vadd.f32 %v2373, %v2371
        %v2376 = vadd.f32 %v2374, %v2372
        %v2377 = vld [vmem:[%s41] sm:$0x1]
        %v2379 = vlaneseq
        %v2380 = vshrl.u32 %v2379, 7
        %v2381 = vsub.s32 0, %v2380
        %v2382 = vrot.slane %v2377, %v2381
        %v2384 = vadd.f32 %v2375, %v2382
        %v2385 = vadd.f32 %v2376, %v2382
        %v2386 = vsel %vm1531, %v2384, 0.0
        %2387 = vadd.xlane.f32.xlu0 %v2386
        %v2388 = vpop.xlane.xlu0 %2387
        %v2389 = vsel %vm1531, %v2385, 0.0
        %2390 = vadd.xlane.f32.xlu0 %v2389
        %v2391 = vpop.xlane.xlu0 %2390
        %v2392 = vadd.f32 %v2388, %v2391
        %v2393 = vrot.slane %v2392, 4
        %v2394 = vadd.f32 %v2392, %v2393
        %v2395 = vrot.slane %v2394, 2
        %v2396 = vadd.f32 %v2394, %v2395
        %v2397 = vrot.slane %v2396, 1
        %v2398 = vadd.f32 %v2396, %v2397
        %v2399 = vmul.f32 %v2398, 0.00390625
        %v2400 = vsub.f32 %v2384, %v2399
        %v2401 = vsub.f32 %v2385, %v2399
        %v2402 = vmul.f32 %v2400, %v2400
        %v2403 = vmul.f32 %v2401, %v2401
        %v2404 = vsel %vm1531, %v2402, 0.0
        %2405 = vadd.xlane.f32.xlu0 %v2404
        %v2406 = vpop.xlane.xlu0 %2405
        %v2407 = vsel %vm1531, %v2403, 0.0
        %2408 = vadd.xlane.f32.xlu0 %v2407
        %v2409 = vpop.xlane.xlu0 %2408
        %v2410 = vadd.f32 %v2406, %v2409
        %v2411 = vrot.slane %v2410, 4
        %v2412 = vadd.f32 %v2410, %v2411
        %v2413 = vrot.slane %v2412, 2
        %v2414 = vadd.f32 %v2412, %v2413
        %v2415 = vrot.slane %v2414, 1
        %v2416 = vadd.f32 %v2414, %v2415
        %v2417 = vmul.f32 %v2416, 0.00390625
        %v2418 = vadd.f32 %v2417, 1e-05
        %v2419 = vrsqrt.pop %v2418
        %v2420 = vmul.f32 %v2400, %v2419
        %v2421 = vmul.f32 %v2401, %v2419
        %v2422 = vld [vmem:[%s43] sm:$0x1]
        %v2424 = vlaneseq
        %v2425 = vshrl.u32 %v2424, 7
        %v2426 = vsub.s32 0, %v2425
        %v2427 = vrot.slane %v2422, %v2426
        %v2429 = vmul.f32 %v2420, %v2427
        %v2430 = vmul.f32 %v2421, %v2427
        %v2431 = vld [vmem:[%s45] sm:$0x1]
        %v2433 = vlaneseq
        %v2434 = vshrl.u32 %v2433, 7
        %v2435 = vsub.s32 0, %v2434
        %v2436 = vrot.slane %v2431, %v2435
        %v2438 = vadd.f32 %v2429, %v2436
        %v2439 = vadd.f32 %v2430, %v2436
        %v2440 = vmax.f32 %v2438, 0.0
        %v2441 = vmax.f32 %v2439, 0.0
        %vm2442 = vcmp.ne.f32.partialorder %v2438, %v2438
        %vm2443 = vcmp.ne.f32.partialorder %v2439, %v2439
        %v2444 = vadd.f32 %v2438, 0.0
        %v2445 = vadd.f32 %v2439, 0.0
        %v2446 = vand.u32 2147483647, %v2438
        %v2447 = vand.u32 2147483647, %v2439
        %v2448 = vsub.f32 0.0, %v2446
        %v2449 = vsub.f32 0.0, %v2447
        %v2450 = vmul.f32 %v2448, 1.442695
        %v2451 = vpow.pop %v2450
        %v2452 = vmul.f32 %v2449, 1.442695
        %v2453 = vpow.pop %v2452
        %v2454 = vadd.f32 %v2451, 1.0
        %v2455 = vlog2.pop %v2454
        %v2456 = vmul.f32 %v2455, 0.6931472
        %v2457 = vmul.f32 -0.5, %v2451
        %v2458 = vadd.f32 %v2457, 1.0
        %v2459 = vmul.f32 %v2458, %v2451
        %v2460 = vand.u32 2147483647, %v2451
        %vm2461 = vcmp.lt.f32.partialorder %v2460, 0.0004427343
        %v2462 = vsel %vm2461, %v2459, %v2456
        %v2463 = vadd.f32 %v2453, 1.0
        %v2464 = vlog2.pop %v2463
        %v2465 = vmul.f32 %v2464, 0.6931472
        %v2466 = vmul.f32 -0.5, %v2453
        %v2467 = vadd.f32 %v2466, 1.0
        %v2468 = vmul.f32 %v2467, %v2453
        %v2469 = vand.u32 2147483647, %v2453
        %vm2470 = vcmp.lt.f32.partialorder %v2469, 0.0004427343
        %v2471 = vsel %vm2470, %v2468, %v2465
        %v2472 = vadd.f32 %v2440, %v2462
        %v2473 = vadd.f32 %v2441, %v2471
        %v2474 = vsel %vm2442, %v2444, %v2472
        %v2475 = vsel %vm2443, %v2445, %v2473
        %v2476 = vtanh.pop %v2474
        %v2477 = vtanh.pop %v2475
        %v2478 = vmul.f32 %v2438, %v2476
        %v2479 = vmul.f32 %v2439, %v2477
        %v2480 = vadd.f32 %v2478, %v1916
        %v2481 = vadd.f32 %v2479, %v1917
        %v2482 = vpack.c.bf16 %v2481, %v2480
        %v2483 = vld [vmem:[%s47] sm:$0xf]
        %v2484 = vld [vmem:[%s47 + $0x4] sm:$0xf]
        %v2487 = vunpack.c.l.b16 %v2483
        %v2488 = vunpack.c.l.b16 %v2484
        %v2489 = vpack.c.b16 %v2488, %v2487
        %v2492 = vsel %vm1531, %v2482, 0
        %2494 = vmatprep.subr.bf16.mxu0 0
        %2495 = vmatpush1.bf16.msra.mxu0 0
        %2496 = vmatprep.subr.bf16.mxu0 0
        %2497 = vmatpush1.bf16.msra.mxu0 0
        %2498 = vmatprep.subr.bf16.mxu0 0
        %2499 = vmatpush1.bf16.msra.mxu0 0
        %2500 = vmatprep.subr.bf16.mxu0 0
        %2501 = vmatpush1.bf16.msra.mxu0 0
        %2502 = vmatprep.subr.bf16.mxu0 0
        %2503 = vmatpush1.bf16.msra.mxu0 0
        %2504 = vmatprep.subr.bf16.mxu0 0
        %2505 = vmatpush1.bf16.msra.mxu0 0
        %2506 = vmatprep.subr.bf16.mxu0 0
        %2507 = vmatpush1.bf16.msra.mxu0 0
        %2508 = vmatprep.subr.bf16.mxu0 0
        %2509 = vmatpush1.bf16.msra.mxu0 %v2489
        %2510 = vmatprep.subr.bf16.mxu0 0
        %2511 = vmatpush2.bf16.msra.mxu0 0
        %2512 = vmatprep.subr.bf16.mxu0 0
        %2513 = vmatpush2.bf16.msra.mxu0 0
        %2514 = vmatprep.subr.bf16.mxu0 0
        %2515 = vmatpush2.bf16.msra.mxu0 0
        %2516 = vmatprep.subr.bf16.mxu0 0
        %2517 = vmatpush2.bf16.msra.mxu0 0
        %2518 = vmatprep.subr.bf16.mxu0 0
        %2519 = vmatpush2.bf16.msra.mxu0 0
        %2520 = vmatprep.subr.bf16.mxu0 0
        %2521 = vmatpush2.bf16.msra.mxu0 0
        %2522 = vmatprep.subr.bf16.mxu0 0
        %2523 = vmatpush2.bf16.msra.mxu0 0
        %2524 = vmatprep.subr.bf16.mxu0 0
        %2525 = vmatpush2.bf16.msra.mxu0 0
        %2526 = vmatprep.mubr.bf16.mxu0 0
        %2527 = vmatmul.mubr.bf16.gmra.mxu0 %v2492
        %v2528 = vpop.f32.mrf.mxu0
        %v2529 = vadd.f32 0.0, %v2528
        %v2530 = vpop.f32.mrf.mxu0
        %v2531 = vpop.f32.mrf.mxu0
        %v2532 = vadd.f32 0.0, %v2531
        %v2533 = vpop.f32.mrf.mxu0
        %2534 = vdwg.mxu0
        %s2535 = scalar_lea.vmem %s47, 8
        %v2536 = vld [vmem:[%s2535] sm:$0xf]
        %v2537 = vld [vmem:[%s2535 + $0x4] sm:$0xf]
        %v2540 = vunpack.c.l.b16 %v2536
        %v2541 = vunpack.c.l.b16 %v2537
        %v2542 = vpack.c.b16 %v2541, %v2540
        %2544 = vmatprep.subr.bf16.mxu0 0
        %2545 = vmatpush1.bf16.msra.mxu0 0
        %2546 = vmatprep.subr.bf16.mxu0 0
        %2547 = vmatpush1.bf16.msra.mxu0 0
        %2548 = vmatprep.subr.bf16.mxu0 0
        %2549 = vmatpush1.bf16.msra.mxu0 0
        %2550 = vmatprep.subr.bf16.mxu0 0
        %2551 = vmatpush1.bf16.msra.mxu0 0
        %2552 = vmatprep.subr.bf16.mxu0 0
        %2553 = vmatpush1.bf16.msra.mxu0 0
        %2554 = vmatprep.subr.bf16.mxu0 0
        %2555 = vmatpush1.bf16.msra.mxu0 0
        %2556 = vmatprep.subr.bf16.mxu0 0
        %2557 = vmatpush1.bf16.msra.mxu0 0
        %2558 = vmatprep.subr.bf16.mxu0 0
        %2559 = vmatpush1.bf16.msra.mxu0 %v2542
        %2560 = vmatprep.subr.bf16.mxu0 0
        %2561 = vmatpush2.bf16.msra.mxu0 0
        %2562 = vmatprep.subr.bf16.mxu0 0
        %2563 = vmatpush2.bf16.msra.mxu0 0
        %2564 = vmatprep.subr.bf16.mxu0 0
        %2565 = vmatpush2.bf16.msra.mxu0 0
        %2566 = vmatprep.subr.bf16.mxu0 0
        %2567 = vmatpush2.bf16.msra.mxu0 0
        %2568 = vmatprep.subr.bf16.mxu0 0
        %2569 = vmatpush2.bf16.msra.mxu0 0
        %2570 = vmatprep.subr.bf16.mxu0 0
        %2571 = vmatpush2.bf16.msra.mxu0 0
        %2572 = vmatprep.subr.bf16.mxu0 0
        %2573 = vmatpush2.bf16.msra.mxu0 0
        %2574 = vmatprep.subr.bf16.mxu0 0
        %2575 = vmatpush2.bf16.msra.mxu0 0
        %2576 = vmatprep.mubr.bf16.mxu0 0
        %2577 = vmatmul.mubr.bf16.gmra.mxu0 %v2492
        %v2578 = vpop.f32.mrf.mxu0
        %v2579 = vadd.f32 0.0, %v2578
        %v2580 = vpop.f32.mrf.mxu0
        %v2581 = vpop.f32.mrf.mxu0
        %v2582 = vadd.f32 0.0, %v2581
        %v2583 = vpop.f32.mrf.mxu0
        %2584 = vdwg.mxu0
        %s2585 = scalar_lea.vmem %s47, 16
        %v2586 = vld [vmem:[%s2585] sm:$0xf]
        %v2587 = vld [vmem:[%s2585 + $0x4] sm:$0xf]
        %v2590 = vunpack.c.l.b16 %v2586
        %v2591 = vunpack.c.l.b16 %v2587
        %v2592 = vpack.c.b16 %v2591, %v2590
        %2594 = vmatprep.subr.bf16.mxu0 0
        %2595 = vmatpush1.bf16.msra.mxu0 0
        %2596 = vmatprep.subr.bf16.mxu0 0
        %2597 = vmatpush1.bf16.msra.mxu0 0
        %2598 = vmatprep.subr.bf16.mxu0 0
        %2599 = vmatpush1.bf16.msra.mxu0 0
        %2600 = vmatprep.subr.bf16.mxu0 0
        %2601 = vmatpush1.bf16.msra.mxu0 0
        %2602 = vmatprep.subr.bf16.mxu0 0
        %2603 = vmatpush1.bf16.msra.mxu0 0
        %2604 = vmatprep.subr.bf16.mxu0 0
        %2605 = vmatpush1.bf16.msra.mxu0 0
        %2606 = vmatprep.subr.bf16.mxu0 0
        %2607 = vmatpush1.bf16.msra.mxu0 0
        %2608 = vmatprep.subr.bf16.mxu0 0
        %2609 = vmatpush1.bf16.msra.mxu0 %v2592
        %2610 = vmatprep.subr.bf16.mxu0 0
        %2611 = vmatpush2.bf16.msra.mxu0 0
        %2612 = vmatprep.subr.bf16.mxu0 0
        %2613 = vmatpush2.bf16.msra.mxu0 0
        %2614 = vmatprep.subr.bf16.mxu0 0
        %2615 = vmatpush2.bf16.msra.mxu0 0
        %2616 = vmatprep.subr.bf16.mxu0 0
        %2617 = vmatpush2.bf16.msra.mxu0 0
        %2618 = vmatprep.subr.bf16.mxu0 0
        %2619 = vmatpush2.bf16.msra.mxu0 0
        %2620 = vmatprep.subr.bf16.mxu0 0
        %2621 = vmatpush2.bf16.msra.mxu0 0
        %2622 = vmatprep.subr.bf16.mxu0 0
        %2623 = vmatpush2.bf16.msra.mxu0 0
        %2624 = vmatprep.subr.bf16.mxu0 0
        %2625 = vmatpush2.bf16.msra.mxu0 0
        %2626 = vmatprep.mubr.bf16.mxu0 0
        %2627 = vmatmul.mubr.bf16.gmra.mxu0 %v2492
        %v2628 = vpop.f32.mrf.mxu0
        %v2629 = vadd.f32 0.0, %v2628
        %v2630 = vpop.f32.mrf.mxu0
        %v2631 = vpop.f32.mrf.mxu0
        %v2632 = vadd.f32 0.0, %v2631
        %v2633 = vpop.f32.mrf.mxu0
        %2634 = vdwg.mxu0
        %v2635 = vrot.slane %v2529, 7
        %v2636 = vrot.slane %v2532, 7
        %v2637 = vsel %vm1446, %v2635, %v2636
        %v2638 = vsel %vm1446, %v2636, %v2635
        %v2639 = vsel %vm1451, %v2638, 0.0
        %v2640 = vsel %vm1452, %v2637, 0.0
        %v2641 = vrot.slane %v2629, 1
        %v2642 = vrot.slane %v2632, 1
        %v2643 = vsel %vm1457, %v2641, %v2642
        %v2644 = vsel %vm1457, %v2642, %v2641
        %v2645 = vsel %vm1462, %v2643, 0.0
        %v2646 = vsel %vm1463, %v2644, 0.0
        %v2647 = vadd.f32 %v2639, %v2579
        %v2648 = vadd.f32 %v2640, %v2582
        %v2649 = vadd.f32 %v2647, %v2645
        %v2650 = vadd.f32 %v2648, %v2646
        %v2651 = vld [vmem:[%s49] sm:$0x1]
        %v2653 = vlaneseq
        %v2654 = vshrl.u32 %v2653, 7
        %v2655 = vsub.s32 0, %v2654
        %v2656 = vrot.slane %v2651, %v2655
        %v2658 = vadd.f32 %v2649, %v2656
        %v2659 = vadd.f32 %v2650, %v2656
        %v2660 = vld [vmem:[%s67] sm:$0xf]
        %v2661 = vld [vmem:[%s67 + $0x4] sm:$0xf]
        %v2662 = vld [vmem:[%s69] sm:$0x1]
        %v2664 = vlaneseq
        %v2665 = vshrl.u32 %v2664, 7
        %v2666 = vsub.s32 0, %v2665
        %v2667 = vrot.slane %v2662, %v2666
        %v2671 = vunpack.c.l.b16 %v2660
        %v2672 = vunpack.c.l.b16 %v2661
        %v2673 = vpack.c.b16 %v2672, %v2671
        %2675 = vmatprep.subr.bf16.mxu0 0
        %2676 = vmatpush1.bf16.msra.mxu0 0
        %2677 = vmatprep.subr.bf16.mxu0 0
        %2678 = vmatpush1.bf16.msra.mxu0 0
        %2679 = vmatprep.subr.bf16.mxu0 0
        %2680 = vmatpush1.bf16.msra.mxu0 0
        %2681 = vmatprep.subr.bf16.mxu0 0
        %2682 = vmatpush1.bf16.msra.mxu0 0
        %2683 = vmatprep.subr.bf16.mxu0 0
        %2684 = vmatpush1.bf16.msra.mxu0 0
        %2685 = vmatprep.subr.bf16.mxu0 0
        %2686 = vmatpush1.bf16.msra.mxu0 0
        %2687 = vmatprep.subr.bf16.mxu0 0
        %2688 = vmatpush1.bf16.msra.mxu0 0
        %2689 = vmatprep.subr.bf16.mxu0 0
        %2690 = vmatpush1.bf16.msra.mxu0 %v2673
        %2691 = vmatprep.subr.bf16.mxu0 0
        %2692 = vmatpush2.bf16.msra.mxu0 0
        %2693 = vmatprep.subr.bf16.mxu0 0
        %2694 = vmatpush2.bf16.msra.mxu0 0
        %2695 = vmatprep.subr.bf16.mxu0 0
        %2696 = vmatpush2.bf16.msra.mxu0 0
        %2697 = vmatprep.subr.bf16.mxu0 0
        %2698 = vmatpush2.bf16.msra.mxu0 0
        %2699 = vmatprep.subr.bf16.mxu0 0
        %2700 = vmatpush2.bf16.msra.mxu0 0
        %2701 = vmatprep.subr.bf16.mxu0 0
        %2702 = vmatpush2.bf16.msra.mxu0 0
        %2703 = vmatprep.subr.bf16.mxu0 0
        %2704 = vmatpush2.bf16.msra.mxu0 0
        %2705 = vmatprep.subr.bf16.mxu0 0
        %2706 = vmatpush2.bf16.msra.mxu0 0
        %2707 = vmatprep.mubr.bf16.mxu0 0
        %2708 = vmatmul.mubr.bf16.gmra.mxu0 %v2492
        %v2709 = vpop.f32.mrf.mxu0
        %v2710 = vadd.f32 %v2667, %v2709
        %v2711 = vpop.f32.mrf.mxu0
        %v2712 = vpop.f32.mrf.mxu0
        %v2713 = vadd.f32 %v2667, %v2712
        %v2714 = vpop.f32.mrf.mxu0
        %2715 = vdwg.mxu0
        %v2716 = vsel %vm1303, %v2658, 0.0
        %2717 = vadd.xlane.f32.xlu0 %v2716
        %v2718 = vpop.xlane.xlu0 %2717
        %v2719 = vsel %vm1303, %v2659, 0.0
        %2720 = vadd.xlane.f32.xlu0 %v2719
        %v2721 = vpop.xlane.xlu0 %2720
        %v2722 = vadd.f32 %v2718, %v2721
        %v2723 = vrot.slane %v2722, 4
        %v2724 = vadd.f32 %v2722, %v2723
        %v2725 = vrot.slane %v2724, 2
        %v2726 = vadd.f32 %v2724, %v2725
        %v2727 = vrot.slane %v2726, 1
        %v2728 = vadd.f32 %v2726, %v2727
        %v2729 = vmul.f32 %v2728, 0.015625
        %v2730 = vsub.f32 %v2658, %v2729
        %v2731 = vsub.f32 %v2659, %v2729
        %v2732 = vmul.f32 %v2730, %v2730
        %v2733 = vmul.f32 %v2731, %v2731
        %v2734 = vsel %vm1303, %v2732, 0.0
        %2735 = vadd.xlane.f32.xlu0 %v2734
        %v2736 = vpop.xlane.xlu0 %2735
        %v2737 = vsel %vm1303, %v2733, 0.0
        %2738 = vadd.xlane.f32.xlu0 %v2737
        %v2739 = vpop.xlane.xlu0 %2738
        %v2740 = vadd.f32 %v2736, %v2739
        %v2741 = vrot.slane %v2740, 4
        %v2742 = vadd.f32 %v2740, %v2741
        %v2743 = vrot.slane %v2742, 2
        %v2744 = vadd.f32 %v2742, %v2743
        %v2745 = vrot.slane %v2744, 1
        %v2746 = vadd.f32 %v2744, %v2745
        %v2747 = vmul.f32 %v2746, 0.015625
        %v2748 = vadd.f32 %v2747, 1e-05
        %v2749 = vrsqrt.pop %v2748
        %v2750 = vmul.f32 %v2730, %v2749
        %v2751 = vmul.f32 %v2731, %v2749
        %v2752 = vld [vmem:[%s51] sm:$0x1]
        %v2754 = vlaneseq
        %v2755 = vshrl.u32 %v2754, 7
        %v2756 = vsub.s32 0, %v2755
        %v2757 = vrot.slane %v2752, %v2756
        %v2759 = vmul.f32 %v2750, %v2757
        %v2760 = vmul.f32 %v2751, %v2757
        %v2761 = vld [vmem:[%s53] sm:$0x1]
        %v2763 = vlaneseq
        %v2764 = vshrl.u32 %v2763, 7
        %v2765 = vsub.s32 0, %v2764
        %v2766 = vrot.slane %v2761, %v2765
        %v2768 = vadd.f32 %v2759, %v2766
        %v2769 = vadd.f32 %v2760, %v2766
        %v2770 = vmax.f32 %v2768, 0.0
        %v2771 = vmax.f32 %v2769, 0.0
        %vm2772 = vcmp.ne.f32.partialorder %v2768, %v2768
        %vm2773 = vcmp.ne.f32.partialorder %v2769, %v2769
        %v2774 = vadd.f32 %v2768, 0.0
        %v2775 = vadd.f32 %v2769, 0.0
        %v2776 = vand.u32 2147483647, %v2768
        %v2777 = vand.u32 2147483647, %v2769
        %v2778 = vsub.f32 0.0, %v2776
        %v2779 = vsub.f32 0.0, %v2777
        %v2780 = vmul.f32 %v2778, 1.442695
        %v2781 = vpow.pop %v2780
        %v2782 = vmul.f32 %v2779, 1.442695
        %v2783 = vpow.pop %v2782
        %v2784 = vadd.f32 %v2781, 1.0
        %v2785 = vlog2.pop %v2784
        %v2786 = vmul.f32 %v2785, 0.6931472
        %v2787 = vmul.f32 -0.5, %v2781
        %v2788 = vadd.f32 %v2787, 1.0
        %v2789 = vmul.f32 %v2788, %v2781
        %v2790 = vand.u32 2147483647, %v2781
        %vm2791 = vcmp.lt.f32.partialorder %v2790, 0.0004427343
        %v2792 = vsel %vm2791, %v2789, %v2786
        %v2793 = vadd.f32 %v2783, 1.0
        %v2794 = vlog2.pop %v2793
        %v2795 = vmul.f32 %v2794, 0.6931472
        %v2796 = vmul.f32 -0.5, %v2783
        %v2797 = vadd.f32 %v2796, 1.0
        %v2798 = vmul.f32 %v2797, %v2783
        %v2799 = vand.u32 2147483647, %v2783
        %vm2800 = vcmp.lt.f32.partialorder %v2799, 0.0004427343
        %v2801 = vsel %vm2800, %v2798, %v2795
        %v2802 = vadd.f32 %v2770, %v2792
        %v2803 = vadd.f32 %v2771, %v2801
        %v2804 = vsel %vm2772, %v2774, %v2802
        %v2805 = vsel %vm2773, %v2775, %v2803
        %v2806 = vtanh.pop %v2804
        %v2807 = vtanh.pop %v2805
        %v2808 = vmul.f32 %v2768, %v2806
        %v2809 = vmul.f32 %v2769, %v2807
        %v2810 = vld [vmem:[%s1282] sm:$0x1]
        %v2812 = vlaneseq
        %v2813 = vshrl.u32 %v2812, 7
        %v2814 = vsub.s32 0, %v2813
        %v2815 = vrot.slane %v2810, %v2814
        %v2817 = vmul.f32 %v2815, %v2808
        %v2818 = vmul.f32 %v2815, %v2809
        %v2819 = vld [vmem:[%s1285] sm:$0x1]
        %v2821 = vlaneseq
        %v2822 = vshrl.u32 %v2821, 7
        %v2823 = vsub.s32 0, %v2822
        %v2824 = vrot.slane %v2819, %v2823
        %v2826 = vadd.f32 %v2817, %v2824
        %v2827 = vadd.f32 %v2818, %v2824
        %v2828 = vpack.c.bf16 %v2827, %v2826
        %v2829 = vld [vmem:[%s59] sm:$0x3]
        %v2831 = vsel %vm1303, %v2828, 0
        %v2834 = vsel %vm1307, %v2829, 0
        %2836 = vmatprep.subr.bf16.mxu0 0
        %2837 = vmatpush1.bf16.msra.mxu0 0
        %2838 = vmatprep.subr.bf16.mxu0 0
        %2839 = vmatpush1.bf16.msra.mxu0 0
        %2840 = vmatprep.subr.bf16.mxu0 0
        %2841 = vmatpush1.bf16.msra.mxu0 0
        %2842 = vmatprep.subr.bf16.mxu0 0
        %2843 = vmatpush1.bf16.msra.mxu0 0
        %2844 = vmatprep.subr.bf16.mxu0 0
        %2845 = vmatpush1.bf16.msra.mxu0 0
        %2846 = vmatprep.subr.bf16.mxu0 0
        %2847 = vmatpush1.bf16.msra.mxu0 0
        %2848 = vmatprep.subr.bf16.mxu0 0
        %2849 = vmatpush1.bf16.msra.mxu0 0
        %2850 = vmatprep.subr.bf16.mxu0 0
        %2851 = vmatpush1.bf16.msra.mxu0 %v2834
        %2852 = vmatprep.subr.bf16.mxu0 0
        %2853 = vmatpush2.bf16.msra.mxu0 0
        %2854 = vmatprep.subr.bf16.mxu0 0
        %2855 = vmatpush2.bf16.msra.mxu0 0
        %2856 = vmatprep.subr.bf16.mxu0 0
        %2857 = vmatpush2.bf16.msra.mxu0 0
        %2858 = vmatprep.subr.bf16.mxu0 0
        %2859 = vmatpush2.bf16.msra.mxu0 0
        %2860 = vmatprep.subr.bf16.mxu0 0
        %2861 = vmatpush2.bf16.msra.mxu0 0
        %2862 = vmatprep.subr.bf16.mxu0 0
        %2863 = vmatpush2.bf16.msra.mxu0 0
        %2864 = vmatprep.subr.bf16.mxu0 0
        %2865 = vmatpush2.bf16.msra.mxu0 0
        %2866 = vmatprep.subr.bf16.mxu0 0
        %2867 = vmatpush2.bf16.msra.mxu0 0
        %2868 = vmatprep.mubr.bf16.mxu0 0
        %2869 = vmatmul.mubr.bf16.gmra.mxu0 %v2831
        %v2870 = vpop.f32.mrf.mxu0
        %v2871 = vadd.f32 0.0, %v2870
        %v2872 = vpop.f32.mrf.mxu0
        %v2873 = vpop.f32.mrf.mxu0
        %v2874 = vadd.f32 0.0, %v2873
        %v2875 = vpop.f32.mrf.mxu0
        %2876 = vdwg.mxu0
        %s2877 = scalar_lea.vmem %s59, 2
        %v2878 = vld [vmem:[%s2877] sm:$0x3]
        %v2880 = vsel %vm1307, %v2878, 0
        %2882 = vmatprep.subr.bf16.mxu0 0
        %2883 = vmatpush1.bf16.msra.mxu0 0
        %2884 = vmatprep.subr.bf16.mxu0 0
        %2885 = vmatpush1.bf16.msra.mxu0 0
        %2886 = vmatprep.subr.bf16.mxu0 0
        %2887 = vmatpush1.bf16.msra.mxu0 0
        %2888 = vmatprep.subr.bf16.mxu0 0
        %2889 = vmatpush1.bf16.msra.mxu0 0
        %2890 = vmatprep.subr.bf16.mxu0 0
        %2891 = vmatpush1.bf16.msra.mxu0 0
        %2892 = vmatprep.subr.bf16.mxu0 0
        %2893 = vmatpush1.bf16.msra.mxu0 0
        %2894 = vmatprep.subr.bf16.mxu0 0
        %2895 = vmatpush1.bf16.msra.mxu0 0
        %2896 = vmatprep.subr.bf16.mxu0 0
        %2897 = vmatpush1.bf16.msra.mxu0 %v2880
        %2898 = vmatprep.subr.bf16.mxu0 0
        %2899 = vmatpush2.bf16.msra.mxu0 0
        %2900 = vmatprep.subr.bf16.mxu0 0
        %2901 = vmatpush2.bf16.msra.mxu0 0
        %2902 = vmatprep.subr.bf16.mxu0 0
        %2903 = vmatpush2.bf16.msra.mxu0 0
        %2904 = vmatprep.subr.bf16.mxu0 0
        %2905 = vmatpush2.bf16.msra.mxu0 0
        %2906 = vmatprep.subr.bf16.mxu0 0
        %2907 = vmatpush2.bf16.msra.mxu0 0
        %2908 = vmatprep.subr.bf16.mxu0 0
        %2909 = vmatpush2.bf16.msra.mxu0 0
        %2910 = vmatprep.subr.bf16.mxu0 0
        %2911 = vmatpush2.bf16.msra.mxu0 0
        %2912 = vmatprep.subr.bf16.mxu0 0
        %2913 = vmatpush2.bf16.msra.mxu0 0
        %2914 = vmatprep.mubr.bf16.mxu0 0
        %2915 = vmatmul.mubr.bf16.gmra.mxu0 %v2831
        %v2916 = vpop.f32.mrf.mxu0
        %v2917 = vadd.f32 0.0, %v2916
        %v2918 = vpop.f32.mrf.mxu0
        %v2919 = vpop.f32.mrf.mxu0
        %v2920 = vadd.f32 0.0, %v2919
        %v2921 = vpop.f32.mrf.mxu0
        %2922 = vdwg.mxu0
        %s2923 = scalar_lea.vmem %s59, 4
        %v2924 = vld [vmem:[%s2923] sm:$0x3]
        %v2926 = vsel %vm1307, %v2924, 0
        %2928 = vmatprep.subr.bf16.mxu0 0
        %2929 = vmatpush1.bf16.msra.mxu0 0
        %2930 = vmatprep.subr.bf16.mxu0 0
        %2931 = vmatpush1.bf16.msra.mxu0 0
        %2932 = vmatprep.subr.bf16.mxu0 0
        %2933 = vmatpush1.bf16.msra.mxu0 0
        %2934 = vmatprep.subr.bf16.mxu0 0
        %2935 = vmatpush1.bf16.msra.mxu0 0
        %2936 = vmatprep.subr.bf16.mxu0 0
        %2937 = vmatpush1.bf16.msra.mxu0 0
        %2938 = vmatprep.subr.bf16.mxu0 0
        %2939 = vmatpush1.bf16.msra.mxu0 0
        %2940 = vmatprep.subr.bf16.mxu0 0
        %2941 = vmatpush1.bf16.msra.mxu0 0
        %2942 = vmatprep.subr.bf16.mxu0 0
        %2943 = vmatpush1.bf16.msra.mxu0 %v2926
        %2944 = vmatprep.subr.bf16.mxu0 0
        %2945 = vmatpush2.bf16.msra.mxu0 0
        %2946 = vmatprep.subr.bf16.mxu0 0
        %2947 = vmatpush2.bf16.msra.mxu0 0
        %2948 = vmatprep.subr.bf16.mxu0 0
        %2949 = vmatpush2.bf16.msra.mxu0 0
        %2950 = vmatprep.subr.bf16.mxu0 0
        %2951 = vmatpush2.bf16.msra.mxu0 0
        %2952 = vmatprep.subr.bf16.mxu0 0
        %2953 = vmatpush2.bf16.msra.mxu0 0
        %2954 = vmatprep.subr.bf16.mxu0 0
        %2955 = vmatpush2.bf16.msra.mxu0 0
        %2956 = vmatprep.subr.bf16.mxu0 0
        %2957 = vmatpush2.bf16.msra.mxu0 0
        %2958 = vmatprep.subr.bf16.mxu0 0
        %2959 = vmatpush2.bf16.msra.mxu0 0
        %2960 = vmatprep.mubr.bf16.mxu0 0
        %2961 = vmatmul.mubr.bf16.gmra.mxu0 %v2831
        %v2962 = vpop.f32.mrf.mxu0
        %v2963 = vadd.f32 0.0, %v2962
        %v2964 = vpop.f32.mrf.mxu0
        %v2965 = vpop.f32.mrf.mxu0
        %v2966 = vadd.f32 0.0, %v2965
        %v2967 = vpop.f32.mrf.mxu0
        %2968 = vdwg.mxu0
        %v2969 = vrot.slane %v2871, 7
        %v2970 = vrot.slane %v2874, 7
        %v2971 = vsel %vm1446, %v2969, %v2970
        %v2972 = vsel %vm1446, %v2970, %v2969
        %v2973 = vsel %vm1451, %v2972, 0.0
        %v2974 = vsel %vm1452, %v2971, 0.0
        %v2975 = vrot.slane %v2963, 1
        %v2976 = vrot.slane %v2966, 1
        %v2977 = vsel %vm1457, %v2975, %v2976
        %v2978 = vsel %vm1457, %v2976, %v2975
        %v2979 = vsel %vm1462, %v2977, 0.0
        %v2980 = vsel %vm1463, %v2978, 0.0
        %v2981 = vadd.f32 %v2973, %v2917
        %v2982 = vadd.f32 %v2974, %v2920
        %v2983 = vadd.f32 %v2981, %v2979
        %v2984 = vadd.f32 %v2982, %v2980
        %v2985 = vld [vmem:[%s61] sm:$0x1]
        %v2987 = vlaneseq
        %v2988 = vshrl.u32 %v2987, 7
        %v2989 = vsub.s32 0, %v2988
        %v2990 = vrot.slane %v2985, %v2989
        %v2992 = vadd.f32 %v2983, %v2990
        %v2993 = vadd.f32 %v2984, %v2990
        %v2994 = vsel %vm1303, %v2992, 0.0
        %2995 = vadd.xlane.f32.xlu0 %v2994
        %v2996 = vpop.xlane.xlu0 %2995
        %v2997 = vsel %vm1303, %v2993, 0.0
        %2998 = vadd.xlane.f32.xlu0 %v2997
        %v2999 = vpop.xlane.xlu0 %2998
        %v3000 = vadd.f32 %v2996, %v2999
        %v3001 = vrot.slane %v3000, 4
        %v3002 = vadd.f32 %v3000, %v3001
        %v3003 = vrot.slane %v3002, 2
        %v3004 = vadd.f32 %v3002, %v3003
        %v3005 = vrot.slane %v3004, 1
        %v3006 = vadd.f32 %v3004, %v3005
        %v3007 = vmul.f32 %v3006, 0.015625
        %v3008 = vsub.f32 %v2992, %v3007
        %v3009 = vsub.f32 %v2993, %v3007
        %v3010 = vmul.f32 %v3008, %v3008
        %v3011 = vmul.f32 %v3009, %v3009
        %v3012 = vsel %vm1303, %v3010, 0.0
        %3013 = vadd.xlane.f32.xlu0 %v3012
        %v3014 = vpop.xlane.xlu0 %3013
        %v3015 = vsel %vm1303, %v3011, 0.0
        %3016 = vadd.xlane.f32.xlu0 %v3015
        %v3017 = vpop.xlane.xlu0 %3016
        %v3018 = vadd.f32 %v3014, %v3017
        %v3019 = vrot.slane %v3018, 4
        %v3020 = vadd.f32 %v3018, %v3019
        %v3021 = vrot.slane %v3020, 2
        %v3022 = vadd.f32 %v3020, %v3021
        %v3023 = vrot.slane %v3022, 1
        %v3024 = vadd.f32 %v3022, %v3023
        %v3025 = vmul.f32 %v3024, 0.015625
        %v3026 = vadd.f32 %v3025, 1e-05
        %v3027 = vrsqrt.pop %v3026
        %v3028 = vmul.f32 %v3008, %v3027
        %v3029 = vmul.f32 %v3009, %v3027
        %v3030 = vld [vmem:[%s63] sm:$0x1]
        %v3032 = vlaneseq
        %v3033 = vshrl.u32 %v3032, 7
        %v3034 = vsub.s32 0, %v3033
        %v3035 = vrot.slane %v3030, %v3034
        %v3037 = vmul.f32 %v3028, %v3035
        %v3038 = vmul.f32 %v3029, %v3035
        %v3039 = vld [vmem:[%s65] sm:$0x1]
        %v3041 = vlaneseq
        %v3042 = vshrl.u32 %v3041, 7
        %v3043 = vsub.s32 0, %v3042
        %v3044 = vrot.slane %v3039, %v3043
        %v3046 = vadd.f32 %v3037, %v3044
        %v3047 = vadd.f32 %v3038, %v3044
        %v3048 = vmax.f32 %v3046, 0.0
        %v3049 = vmax.f32 %v3047, 0.0
        %vm3050 = vcmp.ne.f32.partialorder %v3046, %v3046
        %vm3051 = vcmp.ne.f32.partialorder %v3047, %v3047
        %v3052 = vadd.f32 %v3046, 0.0
        %v3053 = vadd.f32 %v3047, 0.0
        %v3054 = vand.u32 2147483647, %v3046
        %v3055 = vand.u32 2147483647, %v3047
        %v3056 = vsub.f32 0.0, %v3054
        %v3057 = vsub.f32 0.0, %v3055
        %v3058 = vmul.f32 %v3056, 1.442695
        %v3059 = vpow.pop %v3058
        %v3060 = vmul.f32 %v3057, 1.442695
        %v3061 = vpow.pop %v3060
        %v3062 = vadd.f32 %v3059, 1.0
        %v3063 = vlog2.pop %v3062
        %v3064 = vmul.f32 %v3063, 0.6931472
        %v3065 = vmul.f32 -0.5, %v3059
        %v3066 = vadd.f32 %v3065, 1.0
        %v3067 = vmul.f32 %v3066, %v3059
        %v3068 = vand.u32 2147483647, %v3059
        %vm3069 = vcmp.lt.f32.partialorder %v3068, 0.0004427343
        %v3070 = vsel %vm3069, %v3067, %v3064
        %v3071 = vadd.f32 %v3061, 1.0
        %v3072 = vlog2.pop %v3071
        %v3073 = vmul.f32 %v3072, 0.6931472
        %v3074 = vmul.f32 -0.5, %v3061
        %v3075 = vadd.f32 %v3074, 1.0
        %v3076 = vmul.f32 %v3075, %v3061
        %v3077 = vand.u32 2147483647, %v3061
        %vm3078 = vcmp.lt.f32.partialorder %v3077, 0.0004427343
        %v3079 = vsel %vm3078, %v3076, %v3073
        %v3080 = vadd.f32 %v3048, %v3070
        %v3081 = vadd.f32 %v3049, %v3079
        %v3082 = vsel %vm3050, %v3052, %v3080
        %v3083 = vsel %vm3051, %v3053, %v3081
        %v3084 = vtanh.pop %v3082
        %v3085 = vtanh.pop %v3083
        %v3086 = vmul.f32 %v3046, %v3084
        %v3087 = vmul.f32 %v3047, %v3085
        %v3088 = vadd.f32 %v3086, %v2710
        %v3089 = vadd.f32 %v3087, %v2713
        %3090 = vst.msk [vmem:[%s1290] sm:$0xff] %vm1303, %v3088
        %3091 = vst.msk [vmem:[%s1290 + $0x8] sm:$0xff] %vm1303, %v3089
        %p3092 = scmp.lt.s32.totalorder %s86, 1
        %s3093 = scalar_select %p3092, %s86, 1
        %s3094 = smul.addr %s3093, 2
        %s3095 = smul.addr %s3094, 8
        %s3096 = scalar_lea.vmem %s71, %s3095
        // Predicated region
        $region201: #{tpu_custom_call.1} parent=159 // pred_check
          %p3097 = pneg %p874
        $region202: #{tpu_custom_call.1} parent=159 // pred_check_branch
          %3099 = sbr.rel (%p3097) target = $region204
        $region203: #{tpu_custom_call.1} parent=159 // pred_region
          _
        $region204: #{tpu_custom_call.1} parent=159 // pred_fallthru
          _
      $region160: #{tpu_custom_call.1} parent=5 // pred_fallthru
        _
      %p3100 = scmp.le.s32.totalorder 2, %s81
      // Predicated region
      $region205: #{tpu_custom_call.1} parent=5 // pred_check
        %p3101 = pneg %p3100
      $region206: #{tpu_custom_call.1} parent=5 // pred_check_branch
        %3103 = sbr.rel (%p3101) target = $region208
      $region207: #{tpu_custom_call.1} parent=5 // pred_region
        %s3104 = ssub.s32 %s81, 2
        // Predicated region
        $region209: #{tpu_custom_call.1} parent=207 // pred_check
          %p3105 = pneg %p880
        $region210: #{tpu_custom_call.1} parent=207 // pred_check_branch
          %3107 = sbr.rel (%p3105) target = $region212
        $region211: #{tpu_custom_call.1} parent=207 // pred_region
          %p3108 = scmp.lt.s32.totalorder %s87, 1
          %s3109 = scalar_select %p3108, %s87, 1
          %s3110 = smul.addr %s3109, 2
          %s3111 = smul.addr %s3110, 8
          %s3112 = scalar_lea.vmem %s71, %s3111
        $region212: #{tpu_custom_call.1} parent=207 // pred_fallthru
          _
      $region208: #{tpu_custom_call.1} parent=5 // pred_fallthru
        _
    $region6: #{tpu_custom_call.1} parent=1 // loop_footer
      %s85 = sadd.s32 1, %s81
    $region7: #{tpu_custom_call.1} parent=1 // loop_footer_branch
      %80 = sbr.rel target = $region3
    $region8: #{tpu_custom_call.1} parent=1 // loop_exit
      _
    %3113 = vsyncpa [#allocation3], 1
    %s3114 = scalar_lea.sflag [#allocation3], 1
    %3115 = vsyncpa %s3114, 1
    %3116 = vsyncpa [#allocation5], 1
    %3117 = vsyncpa [#allocation8], 1
    %3118 = vsyncpa [#allocation14], 1

// kernel: tpu_custom_call.1
$region0: #{tpu_custom_call.1}
  #allocation0 [shape = 'u32[]', space=smem, size = 0x4, offset = 0x4, fixed_abs, tag = 'smem constant byte address 0x4 - core index']
  #allocation1 [shape = 'u32[144,128]{1,0:T(1,128)}', space=vmem, size = 0x12000, scoped, tag = 'internal scratch']
  %s0 = inlined_call_operand.smem [shape: u32[36], index: -1, kind: input, shape index: {}]
  %s1 = sld [smem:[%s0]]
  %s2 = scalar_lea.smem %s0, 1
  %s3 = sld [smem:[%s2]]
  %s4 = scalar_lea.smem %s0, 2
  %s5 = sld [smem:[%s4]]
  %s6 = scalar_lea.smem %s0, 3
  %s7 = sld [smem:[%s6]]
  %s8 = scalar_lea.smem %s0, 4
  %s9 = sld [smem:[%s8]]
  %s10 = scalar_lea.smem %s0, 5
  %s11 = sld [smem:[%s10]]
  %s12 = scalar_lea.smem %s0, 6
  %s13 = sld [smem:[%s12]]
  %s14 = scalar_lea.smem %s0, 7
  %s15 = sld [smem:[%s14]]
  %s16 = scalar_lea.smem %s0, 8
  %s17 = sld [smem:[%s16]]
  %s18 = scalar_lea.smem %s0, 9
  %s19 = sld [smem:[%s18]]
  %s20 = scalar_lea.smem %s0, 10
  %s21 = sld [smem:[%s20]]
  %s22 = scalar_lea.smem %s0, 11
  %s23 = sld [smem:[%s22]]
  %s24 = scalar_lea.smem %s0, 12
  %s25 = sld [smem:[%s24]]
  %s26 = scalar_lea.smem %s0, 13
  %s27 = sld [smem:[%s26]]
  %s28 = scalar_lea.smem %s0, 14
  %s29 = sld [smem:[%s28]]
  %s30 = scalar_lea.smem %s0, 15
  %s31 = sld [smem:[%s30]]
  %s32 = scalar_lea.smem %s0, 16
  %s33 = sld [smem:[%s32]]
  %s34 = scalar_lea.smem %s0, 17
  %s35 = sld [smem:[%s34]]
  %s36 = scalar_lea.smem %s0, 18
  %s37 = sld [smem:[%s36]]
  %s38 = scalar_lea.smem %s0, 19
  %s39 = sld [smem:[%s38]]
  %s40 = scalar_lea.smem %s0, 20
  %s41 = sld [smem:[%s40]]
  %s42 = scalar_lea.smem %s0, 21
  %s43 = sld [smem:[%s42]]
  %s44 = scalar_lea.smem %s0, 22
  %s45 = sld [smem:[%s44]]
  %s46 = scalar_lea.smem %s0, 23
  %s47 = sld [smem:[%s46]]
  %s48 = scalar_lea.smem %s0, 24
  %s49 = sld [smem:[%s48]]
  %s50 = scalar_lea.smem %s0, 25
  %s51 = sld [smem:[%s50]]
  %s52 = scalar_lea.smem %s0, 26
  %s53 = sld [smem:[%s52]]
  %s54 = scalar_lea.smem %s0, 27
  %s55 = sld [smem:[%s54]]
  %s56 = scalar_lea.smem %s0, 28
  %s57 = sld [smem:[%s56]]
  %s58 = scalar_lea.smem %s0, 29
  %s59 = sld [smem:[%s58]]
  %s60 = scalar_lea.smem %s0, 30
  %s61 = sld [smem:[%s60]]
  %s62 = scalar_lea.smem %s0, 31
  %s63 = sld [smem:[%s62]]
  %s64 = scalar_lea.smem %s0, 32
  %s65 = sld [smem:[%s64]]
  %s66 = scalar_lea.smem %s0, 33
  %s67 = sld [smem:[%s66]]
  %s68 = scalar_lea.smem %s0, 34
  %s69 = sld [smem:[%s68]]
  %s70 = scalar_lea.smem %s0, 35
  %s71 = sld [smem:[%s70]]
  %s72 = sld [smem:[#allocation0]]
  $region213: #{tpu_custom_call.1} parent=0
    _
  %s74 = ssub.s32 1, %s72
  %s75 = scalar_select 0, %s74, %s72
  $region1: #{tpu_custom_call.1} parent=0
    #allocation2 [shape = 'u8[3072]{0}', space=vmem, size = 0xc00, scoped, tag = 'input window, operand 1, single buffered']
    #allocation3 [shape = 's32[2]{0}', space=sflag, size = 0x8, scoped, tag = 'scoped memory for tpu_custom_call.1']
    #allocation4 [shape = 'u8[512]{0}', space=vmem, size = 0x400, scoped, tag = 'input window, operand 2, single buffered']
    #allocation5 [shape = 's32[1]{0}', space=sflag, size = 0x4, scoped, tag = 'scoped memory for tpu_custom_call.1']
    #allocation6 [shape = 'u8[512]{0}', space=vmem, size = 0x400, scoped, tag = 'input window, operand 3, single buffered']
    #allocation7 [shape = 'u8[512]{0}', space=vmem, size = 0x400, scoped, tag = 'input window, operand 4, single buffered']
    #allocation8 [shape = 's32[1]{0}', space=sflag, size = 0x4, scoped, tag = 'scoped memory for tpu_custom_call.1']
    #allocation9 [shape = 'u8[1024]{0}', space=vmem, size = 0x400, scoped, tag = 'input window, operand 5']
    #allocation10 [shape = 'u8[1024]{0}', space=vmem, size = 0x400, scoped, tag = 'input window, operand 6']
    #allocation11 [shape = 'u8[512]{0}', space=vmem, size = 0x400, scoped, tag = 'input window, operand 8, single buffered']
    #allocation12 [shape = 'u8[512]{0}', space=vmem, size = 0x400, scoped, tag = 'input window, operand 9, single buffered']
    #allocation13 [shape = 'u8[512]{0}', space=vmem, size = 0x400, scoped, tag = 'input window, operand 10, single buffered']
    #allocation14 [shape = 's32[1]{0}', space=sflag, size = 0x4, scoped, tag = 'scoped memory for tpu_custom_call.1']
    #allocation15 [shape = 'u8[512]{0}', space=vmem, size = 0x400, scoped, tag = 'input window, operand 14, single buffered']
    %76 = vsyncpa [#allocation3], 0
    %77 = vsyncpa [#allocation5], 0
    %78 = vsyncpa [#allocation8], 0
    %79 = vsyncpa [#allocation14], 0
    loop: start=0, step=1, limit=4
    $region2: #{tpu_custom_call.1} parent=1 // loop_pre_header
      _
    $region3: #{tpu_custom_call.1} parent=1 // loop_header
      %s81 = sphi 0, %s85
      %p82 = scmp.ge.s32.totalorder %s81, 4
      %s91 = sphi 0, %s93
      %s94 = sphi 0, %s91
      %s95 = sphi 0, %s94
      %s111 = sphi 0, %s95
      %s115 = sphi 0, %s115
      %s117 = sphi 0, %s115
      %s118 = sphi 0, %s117
      %s132 = sphi 0, %s118
      %s136 = sphi 0, %s136
      %s138 = sphi 0, %s136
      %s139 = sphi 0, %s138
      %s153 = sphi 0, %s139
      %s157 = sphi 0, %s157
      %s159 = sphi 0, %s157
      %s160 = sphi 0, %s159
      %s174 = sphi 0, %s160
      %s178 = sphi 0, %s178
      %s180 = sphi 0, %s178
      %s181 = sphi 0, %s180
      %s195 = sphi 0, %s181
      %s201 = sphi 0, %s203
      %s204 = sphi 0, %s201
      %s205 = sphi 0, %s204
      %s221 = sphi 0, %s205
      %s227 = sphi 0, %s229
      %s230 = sphi 0, %s227
      %s231 = sphi 0, %s230
      %s247 = sphi 0, %s231
      %s251 = sphi 0, %s251
      %s253 = sphi 0, %s251
      %s254 = sphi 0, %s253
      %s268 = sphi 0, %s254
      %s272 = sphi 0, %s272
      %s274 = sphi 0, %s272
      %s275 = sphi 0, %s274
      %s289 = sphi 0, %s275
      %s293 = sphi 0, %s293
      %s295 = sphi 0, %s293
      %s296 = sphi 0, %s295
      %s310 = sphi 0, %s296
      %s314 = sphi 0, %s314
      %s316 = sphi 0, %s314
      %s317 = sphi 0, %s316
      %s331 = sphi 0, %s317
      %s335 = sphi 0, %s335
      %s337 = sphi 0, %s335
      %s338 = sphi 0, %s337
      %s352 = sphi 0, %s338
      %s356 = sphi 0, %s356
      %s358 = sphi 0, %s356
      %s359 = sphi 0, %s358
      %s373 = sphi 0, %s359
      %s377 = sphi 0, %s377
      %s379 = sphi 0, %s377
      %s380 = sphi 0, %s379
      %s394 = sphi 0, %s380
      %s398 = sphi 0, %s398
      %s400 = sphi 0, %s398
      %s401 = sphi 0, %s400
      %s415 = sphi 0, %s401
      %s419 = sphi 0, %s419
      %s421 = sphi 0, %s419
      %s422 = sphi 0, %s421
      %s436 = sphi 0, %s422
      %s440 = sphi 0, %s440
      %s442 = sphi 0, %s440
      %s443 = sphi 0, %s442
      %s457 = sphi 0, %s443
      %s463 = sphi 0, %s465
      %s466 = sphi 0, %s463
      %s467 = sphi 0, %s466
      %s483 = sphi 0, %s467
      %s489 = sphi 0, %s491
      %s492 = sphi 0, %s489
      %s493 = sphi 0, %s492
      %s509 = sphi 0, %s493
      %s513 = sphi 0, %s513
      %s515 = sphi 0, %s513
      %s516 = sphi 0, %s515
      %s530 = sphi 0, %s516
      %s534 = sphi 0, %s534
      %s536 = sphi 0, %s534
      %s537 = sphi 0, %s536
      %s551 = sphi 0, %s537
      %s555 = sphi 0, %s555
      %s557 = sphi 0, %s555
      %s558 = sphi 0, %s557
      %s572 = sphi 0, %s558
      %s576 = sphi 0, %s576
      %s578 = sphi 0, %s576
      %s579 = sphi 0, %s578
      %s593 = sphi 0, %s579
      %s597 = sphi 0, %s597
      %s599 = sphi 0, %s597
      %s600 = sphi 0, %s599
      %s614 = sphi 0, %s600
      %s618 = sphi 0, %s618
      %s620 = sphi 0, %s618
      %s621 = sphi 0, %s620
      %s635 = sphi 0, %s621
      %s639 = sphi 0, %s639
      %s641 = sphi 0, %s639
      %s642 = sphi 0, %s641
      %s656 = sphi 0, %s642
      %s660 = sphi 0, %s660
      %s662 = sphi 0, %s660
      %s663 = sphi 0, %s662
      %s677 = sphi 0, %s663
      %s683 = sphi 0, %s685
      %s686 = sphi 0, %s683
      %s687 = sphi 0, %s686
      %s703 = sphi 0, %s687
      %s709 = sphi 0, %s711
      %s712 = sphi 0, %s709
      %s713 = sphi 0, %s712
      %s729 = sphi 0, %s713
      %s733 = sphi 0, %s733
      %s735 = sphi 0, %s733
      %s736 = sphi 0, %s735
      %s750 = sphi 0, %s736
      %s754 = sphi 0, %s754
      %s756 = sphi 0, %s754
      %s757 = sphi 0, %s756
      %s771 = sphi 0, %s757
      %s775 = sphi 0, %s775
      %s777 = sphi 0, %s775
      %s778 = sphi 0, %s777
      %s792 = sphi 0, %s778
      %s796 = sphi 0, %s796
      %s798 = sphi 0, %s796
      %s799 = sphi 0, %s798
      %s813 = sphi 0, %s799
      %s817 = sphi 0, %s817
      %s819 = sphi 0, %s817
      %s820 = sphi 0, %s819
      %s834 = sphi 0, %s820
      %s838 = sphi 0, %s838
      %s840 = sphi 0, %s838
      %s841 = sphi 0, %s840
      %s855 = sphi 0, %s841
      %s861 = sphi 0, %s863
      %s864 = sphi 0, %s861
      %s865 = sphi 0, %s864
      %s881 = sphi 0, %s865
    $region4: #{tpu_custom_call.1} parent=1 // loop_header_branch
      %84 = sbr.rel (%p82) target = $region8
    $region5: #{tpu_custom_call.1} parent=1 // loop_body
      %s86 = ssub.s32 %s81, 1
      %s87 = ssub.s32 %s81, 2
      %s88 = sadd.s32 %s81, 1
      %s89 = ssub.s32 %s81, %s88
      %p90 = scmp.eq.s32.totalorder %s89, 0
      %s92 = sadd.s32 %s91, 1
      %s93 = scalar_select %p90, %s91, %s92
      %p96 = pneg %p90
      %p97 = scmp.eq.s32.totalorder %s81, 1
      %p98 = por %p96, %p97
      %p99 = scmp.ne.s32.totalorder %s91, %s94
      %p100 = scmp.eq.s32.totalorder %s81, 0
      %p101 = por %p99, %p100
      %p102 = scmp.ne.s32.totalorder %s91, %s94
      %p103 = scmp.eq.s32.totalorder %s86, 1
      %p104 = por %p102, %p103
      %p105 = scmp.ne.s32.totalorder %s94, %s95
      %p106 = scmp.eq.s32.totalorder %s86, 0
      %p107 = por %p105, %p106
      %p108 = scmp.ne.s32.totalorder %s94, %s95
      %p109 = scmp.eq.s32.totalorder %s87, 1
      %p110 = por %p108, %p109
      %p112 = scmp.ne.s32.totalorder %s95, %s111
      %p113 = scmp.eq.s32.totalorder %s87, 0
      %p114 = por %p112, %p113
      %s116 = sadd.s32 %s115, 1
      %p119 = scmp.eq.s32.totalorder %s81, 1
      %p120 = scmp.ne.s32.totalorder %s115, %s117
      %p121 = scmp.eq.s32.totalorder %s81, 0
      %p122 = por %p120, %p121
      %p123 = scmp.ne.s32.totalorder %s115, %s117
      %p124 = scmp.eq.s32.totalorder %s86, 1
      %p125 = por %p123, %p124
      %p126 = scmp.ne.s32.totalorder %s117, %s118
      %p127 = scmp.eq.s32.totalorder %s86, 0
      %p128 = por %p126, %p127
      %p129 = scmp.ne.s32.totalorder %s117, %s118
      %p130 = scmp.eq.s32.totalorder %s87, 1
      %p131 = por %p129, %p130
      %p133 = scmp.ne.s32.totalorder %s118, %s132
      %p134 = scmp.eq.s32.totalorder %s87, 0
      %p135 = por %p133, %p134
      %s137 = sadd.s32 %s136, 1
      %p140 = scmp.eq.s32.totalorder %s81, 1
      %p141 = scmp.ne.s32.totalorder %s136, %s138
      %p142 = scmp.eq.s32.totalorder %s81, 0
      %p143 = por %p141, %p142
      %p144 = scmp.ne.s32.totalorder %s136, %s138
      %p145 = scmp.eq.s32.totalorder %s86, 1
      %p146 = por %p144, %p145
      %p147 = scmp.ne.s32.totalorder %s138, %s139
      %p148 = scmp.eq.s32.totalorder %s86, 0
      %p149 = por %p147, %p148
      %p150 = scmp.ne.s32.totalorder %s138, %s139
      %p151 = scmp.eq.s32.totalorder %s87, 1
      %p152 = por %p150, %p151
      %p154 = scmp.ne.s32.totalorder %s139, %s153
      %p155 = scmp.eq.s32.totalorder %s87, 0
      %p156 = por %p154, %p155
      %s158 = sadd.s32 %s157, 1
      %p161 = scmp.eq.s32.totalorder %s81, 1
      %p162 = scmp.ne.s32.totalorder %s157, %s159
      %p163 = scmp.eq.s32.totalorder %s81, 0
      %p164 = por %p162, %p163
      %p165 = scmp.ne.s32.totalorder %s157, %s159
      %p166 = scmp.eq.s32.totalorder %s86, 1
      %p167 = por %p165, %p166
      %p168 = scmp.ne.s32.totalorder %s159, %s160
      %p169 = scmp.eq.s32.totalorder %s86, 0
      %p170 = por %p168, %p169
      %p171 = scmp.ne.s32.totalorder %s159, %s160
      %p172 = scmp.eq.s32.totalorder %s87, 1
      %p173 = por %p171, %p172
      %p175 = scmp.ne.s32.totalorder %s160, %s174
      %p176 = scmp.eq.s32.totalorder %s87, 0
      %p177 = por %p175, %p176
      %s179 = sadd.s32 %s178, 1
      %p182 = scmp.eq.s32.totalorder %s81, 1
      %p183 = scmp.ne.s32.totalorder %s178, %s180
      %p184 = scmp.eq.s32.totalorder %s81, 0
      %p185 = por %p183, %p184
      %p186 = scmp.ne.s32.totalorder %s178, %s180
      %p187 = scmp.eq.s32.totalorder %s86, 1
      %p188 = por %p186, %p187
      %p189 = scmp.ne.s32.totalorder %s180, %s181
      %p190 = scmp.eq.s32.totalorder %s86, 0
      %p191 = por %p189, %p190
      %p192 = scmp.ne.s32.totalorder %s180, %s181
      %p193 = scmp.eq.s32.totalorder %s87, 1
      %p194 = por %p192, %p193
      %p196 = scmp.ne.s32.totalorder %s181, %s195
      %p197 = scmp.eq.s32.totalorder %s87, 0
      %p198 = por %p196, %p197
      %s199 = ssub.s32 %s81, %s88
      %p200 = scmp.eq.s32.totalorder %s199, 0
      %s202 = sadd.s32 %s201, 1
      %s203 = scalar_select %p200, %s201, %s202
      %p206 = pneg %p200
      %p207 = scmp.eq.s32.totalorder %s81, 1
      %p208 = por %p206, %p207
      %p209 = scmp.ne.s32.totalorder %s201, %s204
      %p210 = scmp.eq.s32.totalorder %s81, 0
      %p211 = por %p209, %p210
      %p212 = scmp.ne.s32.totalorder %s201, %s204
      %p213 = scmp.eq.s32.totalorder %s86, 1
      %p214 = por %p212, %p213
      %p215 = scmp.ne.s32.totalorder %s204, %s205
      %p216 = scmp.eq.s32.totalorder %s86, 0
      %p217 = por %p215, %p216
      %p218 = scmp.ne.s32.totalorder %s204, %s205
      %p219 = scmp.eq.s32.totalorder %s87, 1
      %p220 = por %p218, %p219
      %p222 = scmp.ne.s32.totalorder %s205, %s221
      %p223 = scmp.eq.s32.totalorder %s87, 0
      %p224 = por %p222, %p223
      %s225 = ssub.s32 %s81, %s88
      %p226 = scmp.eq.s32.totalorder %s225, 0
      %s228 = sadd.s32 %s227, 1
      %s229 = scalar_select %p226, %s227, %s228
      %p232 = pneg %p226
      %p233 = scmp.eq.s32.totalorder %s81, 1
      %p234 = por %p232, %p233
      %p235 = scmp.ne.s32.totalorder %s227, %s230
      %p236 = scmp.eq.s32.totalorder %s81, 0
      %p237 = por %p235, %p236
      %p238 = scmp.ne.s32.totalorder %s227, %s230
      %p239 = scmp.eq.s32.totalorder %s86, 1
      %p240 = por %p238, %p239
      %p241 = scmp.ne.s32.totalorder %s230, %s231
      %p242 = scmp.eq.s32.totalorder %s86, 0
      %p243 = por %p241, %p242
      %p244 = scmp.ne.s32.totalorder %s230, %s231
      %p245 = scmp.eq.s32.totalorder %s87, 1
      %p246 = por %p244, %p245
      %p248 = scmp.ne.s32.totalorder %s231, %s247
      %p249 = scmp.eq.s32.totalorder %s87, 0
      %p250 = por %p248, %p249
      %s252 = sadd.s32 %s251, 1
      %p255 = scmp.eq.s32.totalorder %s81, 1
      %p256 = scmp.ne.s32.totalorder %s251, %s253
      %p257 = scmp.eq.s32.totalorder %s81, 0
      %p258 = por %p256, %p257
      %p259 = scmp.ne.s32.totalorder %s251, %s253
      %p260 = scmp.eq.s32.totalorder %s86, 1
      %p261 = por %p259, %p260
      %p262 = scmp.ne.s32.totalorder %s253, %s254
      %p263 = scmp.eq.s32.totalorder %s86, 0
      %p264 = por %p262, %p263
      %p265 = scmp.ne.s32.totalorder %s253, %s254
      %p266 = scmp.eq.s32.totalorder %s87, 1
      %p267 = por %p265, %p266
      %p269 = scmp.ne.s32.totalorder %s254, %s268
      %p270 = scmp.eq.s32.totalorder %s87, 0
      %p271 = por %p269, %p270
      %s273 = sadd.s32 %s272, 1
      %p276 = scmp.eq.s32.totalorder %s81, 1
      %p277 = scmp.ne.s32.totalorder %s272, %s274
      %p278 = scmp.eq.s32.totalorder %s81, 0
      %p279 = por %p277, %p278
      %p280 = scmp.ne.s32.totalorder %s272, %s274
      %p281 = scmp.eq.s32.totalorder %s86, 1
      %p282 = por %p280, %p281
      %p283 = scmp.ne.s32.totalorder %s274, %s275
      %p284 = scmp.eq.s32.totalorder %s86, 0
      %p285 = por %p283, %p284
      %p286 = scmp.ne.s32.totalorder %s274, %s275
      %p287 = scmp.eq.s32.totalorder %s87, 1
      %p288 = por %p286, %p287
      %p290 = scmp.ne.s32.totalorder %s275, %s289
      %p291 = scmp.eq.s32.totalorder %s87, 0
      %p292 = por %p290, %p291
      %s294 = sadd.s32 %s293, 1
      %p297 = scmp.eq.s32.totalorder %s81, 1
      %p298 = scmp.ne.s32.totalorder %s293, %s295
      %p299 = scmp.eq.s32.totalorder %s81, 0
      %p300 = por %p298, %p299
      %p301 = scmp.ne.s32.totalorder %s293, %s295
      %p302 = scmp.eq.s32.totalorder %s86, 1
      %p303 = por %p301, %p302
      %p304 = scmp.ne.s32.totalorder %s295, %s296
      %p305 = scmp.eq.s32.totalorder %s86, 0
      %p306 = por %p304, %p305
      %p307 = scmp.ne.s32.totalorder %s295, %s296
      %p308 = scmp.eq.s32.totalorder %s87, 1
      %p309 = por %p307, %p308
      %p311 = scmp.ne.s32.totalorder %s296, %s310
      %p312 = scmp.eq.s32.totalorder %s87, 0
      %p313 = por %p311, %p312
      %s315 = sadd.s32 %s314, 1
      %p318 = scmp.eq.s32.totalorder %s81, 1
      %p319 = scmp.ne.s32.totalorder %s314, %s316
      %p320 = scmp.eq.s32.totalorder %s81, 0
      %p321 = por %p319, %p320
      %p322 = scmp.ne.s32.totalorder %s314, %s316
      %p323 = scmp.eq.s32.totalorder %s86, 1
      %p324 = por %p322, %p323
      %p325 = scmp.ne.s32.totalorder %s316, %s317
      %p326 = scmp.eq.s32.totalorder %s86, 0
      %p327 = por %p325, %p326
      %p328 = scmp.ne.s32.totalorder %s316, %s317
      %p329 = scmp.eq.s32.totalorder %s87, 1
      %p330 = por %p328, %p329
      %p332 = scmp.ne.s32.totalorder %s317, %s331
      %p333 = scmp.eq.s32.totalorder %s87, 0
      %p334 = por %p332, %p333
      %s336 = sadd.s32 %s335, 1
      %p339 = scmp.eq.s32.totalorder %s81, 1
      %p340 = scmp.ne.s32.totalorder %s335, %s337
      %p341 = scmp.eq.s32.totalorder %s81, 0
      %p342 = por %p340, %p341
      %p343 = scmp.ne.s32.totalorder %s335, %s337
      %p344 = scmp.eq.s32.totalorder %s86, 1
      %p345 = por %p343, %p344
      %p346 = scmp.ne.s32.totalorder %s337, %s338
      %p347 = scmp.eq.s32.totalorder %s86, 0
      %p348 = por %p346, %p347
      %p349 = scmp.ne.s32.totalorder %s337, %s338
      %p350 = scmp.eq.s32.totalorder %s87, 1
      %p351 = por %p349, %p350
      %p353 = scmp.ne.s32.totalorder %s338, %s352
      %p354 = scmp.eq.s32.totalorder %s87, 0
      %p355 = por %p353, %p354
      %s357 = sadd.s32 %s356, 1
      %p360 = scmp.eq.s32.totalorder %s81, 1
      %p361 = scmp.ne.s32.totalorder %s356, %s358
      %p362 = scmp.eq.s32.totalorder %s81, 0
      %p363 = por %p361, %p362
      %p364 = scmp.ne.s32.totalorder %s356, %s358
      %p365 = scmp.eq.s32.totalorder %s86, 1
      %p366 = por %p364, %p365
      %p367 = scmp.ne.s32.totalorder %s358, %s359
      %p368 = scmp.eq.s32.totalorder %s86, 0
      %p369 = por %p367, %p368
      %p370 = scmp.ne.s32.totalorder %s358, %s359
      %p371 = scmp.eq.s32.totalorder %s87, 1
      %p372 = por %p370, %p371
      %p374 = scmp.ne.s32.totalorder %s359, %s373
      %p375 = scmp.eq.s32.totalorder %s87, 0
      %p376 = por %p374, %p375
      %s378 = sadd.s32 %s377, 1
      %p381 = scmp.eq.s32.totalorder %s81, 1
      %p382 = scmp.ne.s32.totalorder %s377, %s379
      %p383 = scmp.eq.s32.totalorder %s81, 0
      %p384 = por %p382, %p383
      %p385 = scmp.ne.s32.totalorder %s377, %s379
      %p386 = scmp.eq.s32.totalorder %s86, 1
      %p387 = por %p385, %p386
      %p388 = scmp.ne.s32.totalorder %s379, %s380
      %p389 = scmp.eq.s32.totalorder %s86, 0
      %p390 = por %p388, %p389
      %p391 = scmp.ne.s32.totalorder %s379, %s380
      %p392 = scmp.eq.s32.totalorder %s87, 1
      %p393 = por %p391, %p392
      %p395 = scmp.ne.s32.totalorder %s380, %s394
      %p396 = scmp.eq.s32.totalorder %s87, 0
      %p397 = por %p395, %p396
      %s399 = sadd.s32 %s398, 1
      %p402 = scmp.eq.s32.totalorder %s81, 1
      %p403 = scmp.ne.s32.totalorder %s398, %s400
      %p404 = scmp.eq.s32.totalorder %s81, 0
      %p405 = por %p403, %p404
      %p406 = scmp.ne.s32.totalorder %s398, %s400
      %p407 = scmp.eq.s32.totalorder %s86, 1
      %p408 = por %p406, %p407
      %p409 = scmp.ne.s32.totalorder %s400, %s401
      %p410 = scmp.eq.s32.totalorder %s86, 0
      %p411 = por %p409, %p410
      %p412 = scmp.ne.s32.totalorder %s400, %s401
      %p413 = scmp.eq.s32.totalorder %s87, 1
      %p414 = por %p412, %p413
      %p416 = scmp.ne.s32.totalorder %s401, %s415
      %p417 = scmp.eq.s32.totalorder %s87, 0
      %p418 = por %p416, %p417
      %s420 = sadd.s32 %s419, 1
      %p423 = scmp.eq.s32.totalorder %s81, 1
      %p424 = scmp.ne.s32.totalorder %s419, %s421
      %p425 = scmp.eq.s32.totalorder %s81, 0
      %p426 = por %p424, %p425
      %p427 = scmp.ne.s32.totalorder %s419, %s421
      %p428 = scmp.eq.s32.totalorder %s86, 1
      %p429 = por %p427, %p428
      %p430 = scmp.ne.s32.totalorder %s421, %s422
      %p431 = scmp.eq.s32.totalorder %s86, 0
      %p432 = por %p430, %p431
      %p433 = scmp.ne.s32.totalorder %s421, %s422
      %p434 = scmp.eq.s32.totalorder %s87, 1
      %p435 = por %p433, %p434
      %p437 = scmp.ne.s32.totalorder %s422, %s436
      %p438 = scmp.eq.s32.totalorder %s87, 0
      %p439 = por %p437, %p438
      %s441 = sadd.s32 %s440, 1
      %p444 = scmp.eq.s32.totalorder %s81, 1
      %p445 = scmp.ne.s32.totalorder %s440, %s442
      %p446 = scmp.eq.s32.totalorder %s81, 0
      %p447 = por %p445, %p446
      %p448 = scmp.ne.s32.totalorder %s440, %s442
      %p449 = scmp.eq.s32.totalorder %s86, 1
      %p450 = por %p448, %p449
      %p451 = scmp.ne.s32.totalorder %s442, %s443
      %p452 = scmp.eq.s32.totalorder %s86, 0
      %p453 = por %p451, %p452
      %p454 = scmp.ne.s32.totalorder %s442, %s443
      %p455 = scmp.eq.s32.totalorder %s87, 1
      %p456 = por %p454, %p455
      %p458 = scmp.ne.s32.totalorder %s443, %s457
      %p459 = scmp.eq.s32.totalorder %s87, 0
      %p460 = por %p458, %p459
      %s461 = ssub.s32 %s81, %s88
      %p462 = scmp.eq.s32.totalorder %s461, 0
      %s464 = sadd.s32 %s463, 1
      %s465 = scalar_select %p462, %s463, %s464
      %p468 = pneg %p462
      %p469 = scmp.eq.s32.totalorder %s81, 1
      %p470 = por %p468, %p469
      %p471 = scmp.ne.s32.totalorder %s463, %s466
      %p472 = scmp.eq.s32.totalorder %s81, 0
      %p473 = por %p471, %p472
      %p474 = scmp.ne.s32.totalorder %s463, %s466
      %p475 = scmp.eq.s32.totalorder %s86, 1
      %p476 = por %p474, %p475
      %p477 = scmp.ne.s32.totalorder %s466, %s467
      %p478 = scmp.eq.s32.totalorder %s86, 0
      %p479 = por %p477, %p478
      %p480 = scmp.ne.s32.totalorder %s466, %s467
      %p481 = scmp.eq.s32.totalorder %s87, 1
      %p482 = por %p480, %p481
      %p484 = scmp.ne.s32.totalorder %s467, %s483
      %p485 = scmp.eq.s32.totalorder %s87, 0
      %p486 = por %p484, %p485
      %s487 = ssub.s32 %s81, %s88
      %p488 = scmp.eq.s32.totalorder %s487, 0
      %s490 = sadd.s32 %s489, 1
      %s491 = scalar_select %p488, %s489, %s490
      %p494 = pneg %p488
      %p495 = scmp.eq.s32.totalorder %s81, 1
      %p496 = por %p494, %p495
      %p497 = scmp.ne.s32.totalorder %s489, %s492
      %p498 = scmp.eq.s32.totalorder %s81, 0
      %p499 = por %p497, %p498
      %p500 = scmp.ne.s32.totalorder %s489, %s492
      %p501 = scmp.eq.s32.totalorder %s86, 1
      %p502 = por %p500, %p501
      %p503 = scmp.ne.s32.totalorder %s492, %s493
      %p504 = scmp.eq.s32.totalorder %s86, 0
      %p505 = por %p503, %p504
      %p506 = scmp.ne.s32.totalorder %s492, %s493
      %p507 = scmp.eq.s32.totalorder %s87, 1
      %p508 = por %p506, %p507
      %p510 = scmp.ne.s32.totalorder %s493, %s509
      %p511 = scmp.eq.s32.totalorder %s87, 0
      %p512 = por %p510, %p511
      %s514 = sadd.s32 %s513, 1
      %p517 = scmp.eq.s32.totalorder %s81, 1
      %p518 = scmp.ne.s32.totalorder %s513, %s515
      %p519 = scmp.eq.s32.totalorder %s81, 0
      %p520 = por %p518, %p519
      %p521 = scmp.ne.s32.totalorder %s513, %s515
      %p522 = scmp.eq.s32.totalorder %s86, 1
      %p523 = por %p521, %p522
      %p524 = scmp.ne.s32.totalorder %s515, %s516
      %p525 = scmp.eq.s32.totalorder %s86, 0
      %p526 = por %p524, %p525
      %p527 = scmp.ne.s32.totalorder %s515, %s516
      %p528 = scmp.eq.s32.totalorder %s87, 1
      %p529 = por %p527, %p528
      %p531 = scmp.ne.s32.totalorder %s516, %s530
      %p532 = scmp.eq.s32.totalorder %s87, 0
      %p533 = por %p531, %p532
      %s535 = sadd.s32 %s534, 1
      %p538 = scmp.eq.s32.totalorder %s81, 1
      %p539 = scmp.ne.s32.totalorder %s534, %s536
      %p540 = scmp.eq.s32.totalorder %s81, 0
      %p541 = por %p539, %p540
      %p542 = scmp.ne.s32.totalorder %s534, %s536
      %p543 = scmp.eq.s32.totalorder %s86, 1
      %p544 = por %p542, %p543
      %p545 = scmp.ne.s32.totalorder %s536, %s537
      %p546 = scmp.eq.s32.totalorder %s86, 0
      %p547 = por %p545, %p546
      %p548 = scmp.ne.s32.totalorder %s536, %s537
      %p549 = scmp.eq.s32.totalorder %s87, 1
      %p550 = por %p548, %p549
      %p552 = scmp.ne.s32.totalorder %s537, %s551
      %p553 = scmp.eq.s32.totalorder %s87, 0
      %p554 = por %p552, %p553
      %s556 = sadd.s32 %s555, 1
      %p559 = scmp.eq.s32.totalorder %s81, 1
      %p560 = scmp.ne.s32.totalorder %s555, %s557
      %p561 = scmp.eq.s32.totalorder %s81, 0
      %p562 = por %p560, %p561
      %p563 = scmp.ne.s32.totalorder %s555, %s557
      %p564 = scmp.eq.s32.totalorder %s86, 1
      %p565 = por %p563, %p564
      %p566 = scmp.ne.s32.totalorder %s557, %s558
      %p567 = scmp.eq.s32.totalorder %s86, 0
      %p568 = por %p566, %p567
      %p569 = scmp.ne.s32.totalorder %s557, %s558
      %p570 = scmp.eq.s32.totalorder %s87, 1
      %p571 = por %p569, %p570
      %p573 = scmp.ne.s32.totalorder %s558, %s572
      %p574 = scmp.eq.s32.totalorder %s87, 0
      %p575 = por %p573, %p574
      %s577 = sadd.s32 %s576, 1
      %p580 = scmp.eq.s32.totalorder %s81, 1
      %p581 = scmp.ne.s32.totalorder %s576, %s578
      %p582 = scmp.eq.s32.totalorder %s81, 0
      %p583 = por %p581, %p582
      %p584 = scmp.ne.s32.totalorder %s576, %s578
      %p585 = scmp.eq.s32.totalorder %s86, 1
      %p586 = por %p584, %p585
      %p587 = scmp.ne.s32.totalorder %s578, %s579
      %p588 = scmp.eq.s32.totalorder %s86, 0
      %p589 = por %p587, %p588
      %p590 = scmp.ne.s32.totalorder %s578, %s579
      %p591 = scmp.eq.s32.totalorder %s87, 1
      %p592 = por %p590, %p591
      %p594 = scmp.ne.s32.totalorder %s579, %s593
      %p595 = scmp.eq.s32.totalorder %s87, 0
      %p596 = por %p594, %p595
      %s598 = sadd.s32 %s597, 1
      %p601 = scmp.eq.s32.totalorder %s81, 1
      %p602 = scmp.ne.s32.totalorder %s597, %s599
      %p603 = scmp.eq.s32.totalorder %s81, 0
      %p604 = por %p602, %p603
      %p605 = scmp.ne.s32.totalorder %s597, %s599
      %p606 = scmp.eq.s32.totalorder %s86, 1
      %p607 = por %p605, %p606
      %p608 = scmp.ne.s32.totalorder %s599, %s600
      %p609 = scmp.eq.s32.totalorder %s86, 0
      %p610 = por %p608, %p609
      %p611 = scmp.ne.s32.totalorder %s599, %s600
      %p612 = scmp.eq.s32.totalorder %s87, 1
      %p613 = por %p611, %p612
      %p615 = scmp.ne.s32.totalorder %s600, %s614
      %p616 = scmp.eq.s32.totalorder %s87, 0
      %p617 = por %p615, %p616
      %s619 = sadd.s32 %s618, 1
      %p622 = scmp.eq.s32.totalorder %s81, 1
      %p623 = scmp.ne.s32.totalorder %s618, %s620
      %p624 = scmp.eq.s32.totalorder %s81, 0
      %p625 = por %p623, %p624
      %p626 = scmp.ne.s32.totalorder %s618, %s620
      %p627 = scmp.eq.s32.totalorder %s86, 1
      %p628 = por %p626, %p627
      %p629 = scmp.ne.s32.totalorder %s620, %s621
      %p630 = scmp.eq.s32.totalorder %s86, 0
      %p631 = por %p629, %p630
      %p632 = scmp.ne.s32.totalorder %s620, %s621
      %p633 = scmp.eq.s32.totalorder %s87, 1
      %p634 = por %p632, %p633
      %p636 = scmp.ne.s32.totalorder %s621, %s635
      %p637 = scmp.eq.s32.totalorder %s87, 0
      %p638 = por %p636, %p637
      %s640 = sadd.s32 %s639, 1
      %p643 = scmp.eq.s32.totalorder %s81, 1
      %p644 = scmp.ne.s32.totalorder %s639, %s641
      %p645 = scmp.eq.s32.totalorder %s81, 0
      %p646 = por %p644, %p645
      %p647 = scmp.ne.s32.totalorder %s639, %s641
      %p648 = scmp.eq.s32.totalorder %s86, 1
      %p649 = por %p647, %p648
      %p650 = scmp.ne.s32.totalorder %s641, %s642
      %p651 = scmp.eq.s32.totalorder %s86, 0
      %p652 = por %p650, %p651
      %p653 = scmp.ne.s32.totalorder %s641, %s642
      %p654 = scmp.eq.s32.totalorder %s87, 1
      %p655 = por %p653, %p654
      %p657 = scmp.ne.s32.totalorder %s642, %s656
      %p658 = scmp.eq.s32.totalorder %s87, 0
      %p659 = por %p657, %p658
      %s661 = sadd.s32 %s660, 1
      %p664 = scmp.eq.s32.totalorder %s81, 1
      %p665 = scmp.ne.s32.totalorder %s660, %s662
      %p666 = scmp.eq.s32.totalorder %s81, 0
      %p667 = por %p665, %p666
      %p668 = scmp.ne.s32.totalorder %s660, %s662
      %p669 = scmp.eq.s32.totalorder %s86, 1
      %p670 = por %p668, %p669
      %p671 = scmp.ne.s32.totalorder %s662, %s663
      %p672 = scmp.eq.s32.totalorder %s86, 0
      %p673 = por %p671, %p672
      %p674 = scmp.ne.s32.totalorder %s662, %s663
      %p675 = scmp.eq.s32.totalorder %s87, 1
      %p676 = por %p674, %p675
      %p678 = scmp.ne.s32.totalorder %s663, %s677
      %p679 = scmp.eq.s32.totalorder %s87, 0
      %p680 = por %p678, %p679
      %s681 = ssub.s32 %s81, %s88
      %p682 = scmp.eq.s32.totalorder %s681, 0
      %s684 = sadd.s32 %s683, 1
      %s685 = scalar_select %p682, %s683, %s684
      %p688 = pneg %p682
      %p689 = scmp.eq.s32.totalorder %s81, 1
      %p690 = por %p688, %p689
      %p691 = scmp.ne.s32.totalorder %s683, %s686
      %p692 = scmp.eq.s32.totalorder %s81, 0
      %p693 = por %p691, %p692
      %p694 = scmp.ne.s32.totalorder %s683, %s686
      %p695 = scmp.eq.s32.totalorder %s86, 1
      %p696 = por %p694, %p695
      %p697 = scmp.ne.s32.totalorder %s686, %s687
      %p698 = scmp.eq.s32.totalorder %s86, 0
      %p699 = por %p697, %p698
      %p700 = scmp.ne.s32.totalorder %s686, %s687
      %p701 = scmp.eq.s32.totalorder %s87, 1
      %p702 = por %p700, %p701
      %p704 = scmp.ne.s32.totalorder %s687, %s703
      %p705 = scmp.eq.s32.totalorder %s87, 0
      %p706 = por %p704, %p705
      %s707 = ssub.s32 %s81, %s88
      %p708 = scmp.eq.s32.totalorder %s707, 0
      %s710 = sadd.s32 %s709, 1
      %s711 = scalar_select %p708, %s709, %s710
      %p714 = pneg %p708
      %p715 = scmp.eq.s32.totalorder %s81, 1
      %p716 = por %p714, %p715
      %p717 = scmp.ne.s32.totalorder %s709, %s712
      %p718 = scmp.eq.s32.totalorder %s81, 0
      %p719 = por %p717, %p718
      %p720 = scmp.ne.s32.totalorder %s709, %s712
      %p721 = scmp.eq.s32.totalorder %s86, 1
      %p722 = por %p720, %p721
      %p723 = scmp.ne.s32.totalorder %s712, %s713
      %p724 = scmp.eq.s32.totalorder %s86, 0
      %p725 = por %p723, %p724
      %p726 = scmp.ne.s32.totalorder %s712, %s713
      %p727 = scmp.eq.s32.totalorder %s87, 1
      %p728 = por %p726, %p727
      %p730 = scmp.ne.s32.totalorder %s713, %s729
      %p731 = scmp.eq.s32.totalorder %s87, 0
      %p732 = por %p730, %p731
      %s734 = sadd.s32 %s733, 1
      %p737 = scmp.eq.s32.totalorder %s81, 1
      %p738 = scmp.ne.s32.totalorder %s733, %s735
      %p739 = scmp.eq.s32.totalorder %s81, 0
      %p740 = por %p738, %p739
      %p741 = scmp.ne.s32.totalorder %s733, %s735
      %p742 = scmp.eq.s32.totalorder %s86, 1
      %p743 = por %p741, %p742
      %p744 = scmp.ne.s32.totalorder %s735, %s736
      %p745 = scmp.eq.s32.totalorder %s86, 0
      %p746 = por %p744, %p745
      %p747 = scmp.ne.s32.totalorder %s735, %s736
      %p748 = scmp.eq.s32.totalorder %s87, 1
      %p749 = por %p747, %p748
      %p751 = scmp.ne.s32.totalorder %s736, %s750
      %p752 = scmp.eq.s32.totalorder %s87, 0
      %p753 = por %p751, %p752
      %s755 = sadd.s32 %s754, 1
      %p758 = scmp.eq.s32.totalorder %s81, 1
      %p759 = scmp.ne.s32.totalorder %s754, %s756
      %p760 = scmp.eq.s32.totalorder %s81, 0
      %p761 = por %p759, %p760
      %p762 = scmp.ne.s32.totalorder %s754, %s756
      %p763 = scmp.eq.s32.totalorder %s86, 1
      %p764 = por %p762, %p763
      %p765 = scmp.ne.s32.totalorder %s756, %s757
      %p766 = scmp.eq.s32.totalorder %s86, 0
      %p767 = por %p765, %p766
      %p768 = scmp.ne.s32.totalorder %s756, %s757
      %p769 = scmp.eq.s32.totalorder %s87, 1
      %p770 = por %p768, %p769
      %p772 = scmp.ne.s32.totalorder %s757, %s771
      %p773 = scmp.eq.s32.totalorder %s87, 0
      %p774 = por %p772, %p773
      %s776 = sadd.s32 %s775, 1
      %p779 = scmp.eq.s32.totalorder %s81, 1
      %p780 = scmp.ne.s32.totalorder %s775, %s777
      %p781 = scmp.eq.s32.totalorder %s81, 0
      %p782 = por %p780, %p781
      %p783 = scmp.ne.s32.totalorder %s775, %s777
      %p784 = scmp.eq.s32.totalorder %s86, 1
      %p785 = por %p783, %p784
      %p786 = scmp.ne.s32.totalorder %s777, %s778
      %p787 = scmp.eq.s32.totalorder %s86, 0
      %p788 = por %p786, %p787
      %p789 = scmp.ne.s32.totalorder %s777, %s778
      %p790 = scmp.eq.s32.totalorder %s87, 1
      %p791 = por %p789, %p790
      %p793 = scmp.ne.s32.totalorder %s778, %s792
      %p794 = scmp.eq.s32.totalorder %s87, 0
      %p795 = por %p793, %p794
      %s797 = sadd.s32 %s796, 1
      %p800 = scmp.eq.s32.totalorder %s81, 1
      %p801 = scmp.ne.s32.totalorder %s796, %s798
      %p802 = scmp.eq.s32.totalorder %s81, 0
      %p803 = por %p801, %p802
      %p804 = scmp.ne.s32.totalorder %s796, %s798
      %p805 = scmp.eq.s32.totalorder %s86, 1
      %p806 = por %p804, %p805
      %p807 = scmp.ne.s32.totalorder %s798, %s799
      %p808 = scmp.eq.s32.totalorder %s86, 0
      %p809 = por %p807, %p808
      %p810 = scmp.ne.s32.totalorder %s798, %s799
      %p811 = scmp.eq.s32.totalorder %s87, 1
      %p812 = por %p810, %p811
      %p814 = scmp.ne.s32.totalorder %s799, %s813
      %p815 = scmp.eq.s32.totalorder %s87, 0
      %p816 = por %p814, %p815
      %s818 = sadd.s32 %s817, 1
      %p821 = scmp.eq.s32.totalorder %s81, 1
      %p822 = scmp.ne.s32.totalorder %s817, %s819
      %p823 = scmp.eq.s32.totalorder %s81, 0
      %p824 = por %p822, %p823
      %p825 = scmp.ne.s32.totalorder %s817, %s819
      %p826 = scmp.eq.s32.totalorder %s86, 1
      %p827 = por %p825, %p826
      %p828 = scmp.ne.s32.totalorder %s819, %s820
      %p829 = scmp.eq.s32.totalorder %s86, 0
      %p830 = por %p828, %p829
      %p831 = scmp.ne.s32.totalorder %s819, %s820
      %p832 = scmp.eq.s32.totalorder %s87, 1
      %p833 = por %p831, %p832
      %p835 = scmp.ne.s32.totalorder %s820, %s834
      %p836 = scmp.eq.s32.totalorder %s87, 0
      %p837 = por %p835, %p836
      %s839 = sadd.s32 %s838, 1
      %p842 = scmp.eq.s32.totalorder %s81, 1
      %p843 = scmp.ne.s32.totalorder %s838, %s840
      %p844 = scmp.eq.s32.totalorder %s81, 0
      %p845 = por %p843, %p844
      %p846 = scmp.ne.s32.totalorder %s838, %s840
      %p847 = scmp.eq.s32.totalorder %s86, 1
      %p848 = por %p846, %p847
      %p849 = scmp.ne.s32.totalorder %s840, %s841
      %p850 = scmp.eq.s32.totalorder %s86, 0
      %p851 = por %p849, %p850
      %p852 = scmp.ne.s32.totalorder %s840, %s841
      %p853 = scmp.eq.s32.totalorder %s87, 1
      %p854 = por %p852, %p853
      %p856 = scmp.ne.s32.totalorder %s841, %s855
      %p857 = scmp.eq.s32.totalorder %s87, 0
      %p858 = por %p856, %p857
      %s859 = ssub.s32 %s81, %s88
      %p860 = scmp.eq.s32.totalorder %s859, 0
      %s862 = sadd.s32 %s861, 1
      %s863 = scalar_select %p860, %s861, %s862
      %p866 = pneg %p860
      %p867 = scmp.eq.s32.totalorder %s81, 1
      %p868 = por %p866, %p867
      %p869 = scmp.ne.s32.totalorder %s861, %s864
      %p870 = scmp.eq.s32.totalorder %s81, 0
      %p871 = por %p869, %p870
      %p872 = scmp.ne.s32.totalorder %s861, %s864
      %p873 = scmp.eq.s32.totalorder %s86, 1
      %p874 = por %p872, %p873
      %p875 = scmp.ne.s32.totalorder %s864, %s865
      %p876 = scmp.eq.s32.totalorder %s86, 0
      %p877 = por %p875, %p876
      %p878 = scmp.ne.s32.totalorder %s864, %s865
      %p879 = scmp.eq.s32.totalorder %s87, 1
      %p880 = por %p878, %p879
      %p882 = scmp.ne.s32.totalorder %s865, %s881
      %p883 = scmp.eq.s32.totalorder %s87, 0
      %p884 = por %p882, %p883
      %p885 = scmp.le.s32.totalorder 1, %s81
      %p886 = scmp.lt.s32.totalorder %s81, 3
      %p887 = pnand %p885, %p886
      %p888 = pneg %p887
      // Predicated region
      $region9: #{tpu_custom_call.1} parent=5 // pred_check
        _
      $region10: #{tpu_custom_call.1} parent=5 // pred_check_branch
        %890 = sbr.rel (%p887) target = $region12
      $region11: #{tpu_custom_call.1} parent=5 // pred_region
        %s891 = ssub.s32 %s81, 1
        // Predicated region
        $region13: #{tpu_custom_call.1} parent=11 // pred_check
          %p892 = pneg %p128
        $region14: #{tpu_custom_call.1} parent=11 // pred_check_branch
          %894 = sbr.rel (%p892) target = $region16
        $region15: #{tpu_custom_call.1} parent=11 // pred_region
          %s896 = ssub.s32 96, 96
          %897 = vsyncadd [#allocation3], %s896
          %s898 = sshll.u32 [#allocation2], 4
          %s899 = int_to_ptr.vmem [resolvable:$true] %s898
          %904 = dma.hbm_to_vmem [thread:$0]  %s3, 96, %s899, [#allocation3], 32, 32, 2
        $region16: #{tpu_custom_call.1} parent=11 // pred_fallthru
          _
        // Predicated region
        $region17: #{tpu_custom_call.1} parent=11 // pred_check
          %p905 = pneg %p149
        $region18: #{tpu_custom_call.1} parent=11 // pred_check_branch
          %907 = sbr.rel (%p905) target = $region20
        $region19: #{tpu_custom_call.1} parent=11 // pred_region
          %s909 = ssub.s32 16, 16
          %910 = vsyncadd [#allocation5], %s909
          %s912 = sshll.u32 [#allocation4], 4
          %s913 = int_to_ptr.vmem [resolvable:$true] %s912
          %915 = dma.hbm_to_vmem [thread:$0]  %s5, 16, %s913, [#allocation5]
        $region20: #{tpu_custom_call.1} parent=11 // pred_fallthru
          _
        // Predicated region
        $region21: #{tpu_custom_call.1} parent=11 // pred_check
          %p916 = pneg %p170
        $region22: #{tpu_custom_call.1} parent=11 // pred_check_branch
          %918 = sbr.rel (%p916) target = $region24
        $region23: #{tpu_custom_call.1} parent=11 // pred_region
          %s920 = ssub.s32 16, 16
          %921 = vsyncadd [#allocation5], %s920
          %s923 = sshll.u32 [#allocation6], 4
          %s924 = int_to_ptr.vmem [resolvable:$true] %s923
          %926 = dma.hbm_to_vmem [thread:$0]  %s7, 16, %s924, [#allocation5]
        $region24: #{tpu_custom_call.1} parent=11 // pred_fallthru
          _
        // Predicated region
        $region25: #{tpu_custom_call.1} parent=11 // pred_check
          %p927 = pneg %p191
        $region26: #{tpu_custom_call.1} parent=11 // pred_check_branch
          %929 = sbr.rel (%p927) target = $region28
        $region27: #{tpu_custom_call.1} parent=11 // pred_region
          %s931 = ssub.s32 16, 16
          %932 = vsyncadd [#allocation8], %s931
          %s934 = sshll.u32 [#allocation7], 4
          %s935 = int_to_ptr.vmem [resolvable:$true] %s934
          %937 = dma.hbm_to_vmem [thread:$0]  %s9, 16, %s935, [#allocation8]
        $region28: #{tpu_custom_call.1} parent=11 // pred_fallthru
          _
        // Predicated region
        $region29: #{tpu_custom_call.1} parent=11 // pred_check
          %p938 = pneg %p264
        $region30: #{tpu_custom_call.1} parent=11 // pred_check_branch
          %940 = sbr.rel (%p938) target = $region32
        $region31: #{tpu_custom_call.1} parent=11 // pred_region
          _
        $region32: #{tpu_custom_call.1} parent=11 // pred_fallthru
          _
        // Predicated region
        $region33: #{tpu_custom_call.1} parent=11 // pred_check
          %p941 = pneg %p285
        $region34: #{tpu_custom_call.1} parent=11 // pred_check_branch
          %943 = sbr.rel (%p941) target = $region36
        $region35: #{tpu_custom_call.1} parent=11 // pred_region
          %s945 = ssub.s32 16, 16
          %946 = vsyncadd [#allocation5], %s945
          %s948 = sshll.u32 [#allocation11], 4
          %s949 = int_to_ptr.vmem [resolvable:$true] %s948
          %951 = dma.hbm_to_vmem [thread:$0]  %s17, 16, %s949, [#allocation5]
        $region36: #{tpu_custom_call.1} parent=11 // pred_fallthru
          _
        // Predicated region
        $region37: #{tpu_custom_call.1} parent=11 // pred_check
          %p952 = pneg %p306
        $region38: #{tpu_custom_call.1} parent=11 // pred_check_branch
          %954 = sbr.rel (%p952) target = $region40
        $region39: #{tpu_custom_call.1} parent=11 // pred_region
          %s956 = ssub.s32 16, 16
          %957 = vsyncadd [#allocation8], %s956
          %s959 = sshll.u32 [#allocation12], 4
          %s960 = int_to_ptr.vmem [resolvable:$true] %s959
          %962 = dma.hbm_to_vmem [thread:$0]  %s19, 16, %s960, [#allocation8]
        $region40: #{tpu_custom_call.1} parent=11 // pred_fallthru
          _
        // Predicated region
        $region41: #{tpu_custom_call.1} parent=11 // pred_check
          %p963 = pneg %p327
        $region42: #{tpu_custom_call.1} parent=11 // pred_check_branch
          %965 = sbr.rel (%p963) target = $region44
        $region43: #{tpu_custom_call.1} parent=11 // pred_region
          %s967 = ssub.s32 16, 16
          %968 = vsyncadd [#allocation14], %s967
          %s970 = sshll.u32 [#allocation13], 4
          %s971 = int_to_ptr.vmem [resolvable:$true] %s970
          %973 = dma.hbm_to_vmem [thread:$0]  %s21, 16, %s971, [#allocation14]
        $region44: #{tpu_custom_call.1} parent=11 // pred_fallthru
          _
        // Predicated region
        $region45: #{tpu_custom_call.1} parent=11 // pred_check
          %p974 = pneg %p348
        $region46: #{tpu_custom_call.1} parent=11 // pred_check_branch
          %976 = sbr.rel (%p974) target = $region48
        $region47: #{tpu_custom_call.1} parent=11 // pred_region
          _
        $region48: #{tpu_custom_call.1} parent=11 // pred_fallthru
          _
        // Predicated region
        $region49: #{tpu_custom_call.1} parent=11 // pred_check
          %p977 = pneg %p369
        $region50: #{tpu_custom_call.1} parent=11 // pred_check_branch
          %979 = sbr.rel (%p977) target = $region52
        $region51: #{tpu_custom_call.1} parent=11 // pred_region
          _
        $region52: #{tpu_custom_call.1} parent=11 // pred_fallthru
          _
        // Predicated region
        $region53: #{tpu_custom_call.1} parent=11 // pred_check
          %p980 = pneg %p390
        $region54: #{tpu_custom_call.1} parent=11 // pred_check_branch
          %982 = sbr.rel (%p980) target = $region56
        $region55: #{tpu_custom_call.1} parent=11 // pred_region
          _
        $region56: #{tpu_custom_call.1} parent=11 // pred_fallthru
          _
        // Predicated region
        $region57: #{tpu_custom_call.1} parent=11 // pred_check
          %p983 = pneg %p411
        $region58: #{tpu_custom_call.1} parent=11 // pred_check_branch
          %985 = sbr.rel (%p983) target = $region60
        $region59: #{tpu_custom_call.1} parent=11 // pred_region
          %s987 = ssub.s32 16, 16
          %988 = vsyncadd [#allocation14], %s987
          %s990 = sshll.u32 [#allocation15], 4
          %s991 = int_to_ptr.vmem [resolvable:$true] %s990
          %993 = dma.hbm_to_vmem [thread:$0]  %s29, 16, %s991, [#allocation14]
        $region60: #{tpu_custom_call.1} parent=11 // pred_fallthru
          _
        // Predicated region
        $region61: #{tpu_custom_call.1} parent=11 // pred_check
          %p994 = pneg %p432
        $region62: #{tpu_custom_call.1} parent=11 // pred_check_branch
          %996 = sbr.rel (%p994) target = $region64
        $region63: #{tpu_custom_call.1} parent=11 // pred_region
          _
        $region64: #{tpu_custom_call.1} parent=11 // pred_fallthru
          _
        // Predicated region
        $region65: #{tpu_custom_call.1} parent=11 // pred_check
          %p997 = pneg %p453
        $region66: #{tpu_custom_call.1} parent=11 // pred_check_branch
          %999 = sbr.rel (%p997) target = $region68
        $region67: #{tpu_custom_call.1} parent=11 // pred_region
          _
        $region68: #{tpu_custom_call.1} parent=11 // pred_fallthru
          _
        // Predicated region
        $region69: #{tpu_custom_call.1} parent=11 // pred_check
          %p1000 = pneg %p526
        $region70: #{tpu_custom_call.1} parent=11 // pred_check_branch
          %1002 = sbr.rel (%p1000) target = $region72
        $region71: #{tpu_custom_call.1} parent=11 // pred_region
          _
        $region72: #{tpu_custom_call.1} parent=11 // pred_fallthru
          _
        // Predicated region
        $region73: #{tpu_custom_call.1} parent=11 // pred_check
          %p1003 = pneg %p547
        $region74: #{tpu_custom_call.1} parent=11 // pred_check_branch
          %1005 = sbr.rel (%p1003) target = $region76
        $region75: #{tpu_custom_call.1} parent=11 // pred_region
          _
        $region76: #{tpu_custom_call.1} parent=11 // pred_fallthru
          _
        // Predicated region
        $region77: #{tpu_custom_call.1} parent=11 // pred_check
          %p1006 = pneg %p568
        $region78: #{tpu_custom_call.1} parent=11 // pred_check_branch
          %1008 = sbr.rel (%p1006) target = $region80
        $region79: #{tpu_custom_call.1} parent=11 // pred_region
          _
        $region80: #{tpu_custom_call.1} parent=11 // pred_fallthru
          _
        // Predicated region
        $region81: #{tpu_custom_call.1} parent=11 // pred_check
          %p1009 = pneg %p589
        $region82: #{tpu_custom_call.1} parent=11 // pred_check_branch
          %1011 = sbr.rel (%p1009) target = $region84
        $region83: #{tpu_custom_call.1} parent=11 // pred_region
          _
        $region84: #{tpu_custom_call.1} parent=11 // pred_fallthru
          _
        // Predicated region
        $region85: #{tpu_custom_call.1} parent=11 // pred_check
          %p1012 = pneg %p610
        $region86: #{tpu_custom_call.1} parent=11 // pred_check_branch
          %1014 = sbr.rel (%p1012) target = $region88
        $region87: #{tpu_custom_call.1} parent=11 // pred_region
          _
        $region88: #{tpu_custom_call.1} parent=11 // pred_fallthru
          _
        // Predicated region
        $region89: #{tpu_custom_call.1} parent=11 // pred_check
          %p1015 = pneg %p631
        $region90: #{tpu_custom_call.1} parent=11 // pred_check_branch
          %1017 = sbr.rel (%p1015) target = $region92
        $region91: #{tpu_custom_call.1} parent=11 // pred_region
          _
        $region92: #{tpu_custom_call.1} parent=11 // pred_fallthru
          _
        // Predicated region
        $region93: #{tpu_custom_call.1} parent=11 // pred_check
          %p1018 = pneg %p652
        $region94: #{tpu_custom_call.1} parent=11 // pred_check_branch
          %1020 = sbr.rel (%p1018) target = $region96
        $region95: #{tpu_custom_call.1} parent=11 // pred_region
          _
        $region96: #{tpu_custom_call.1} parent=11 // pred_fallthru
          _
        // Predicated region
        $region97: #{tpu_custom_call.1} parent=11 // pred_check
          %p1021 = pneg %p673
        $region98: #{tpu_custom_call.1} parent=11 // pred_check_branch
          %1023 = sbr.rel (%p1021) target = $region100
        $region99: #{tpu_custom_call.1} parent=11 // pred_region
          _
        $region100: #{tpu_custom_call.1} parent=11 // pred_fallthru
          _
        // Predicated region
        $region101: #{tpu_custom_call.1} parent=11 // pred_check
          %p1024 = pneg %p746
        $region102: #{tpu_custom_call.1} parent=11 // pred_check_branch
          %1026 = sbr.rel (%p1024) target = $region104
        $region103: #{tpu_custom_call.1} parent=11 // pred_region
          _
        $region104: #{tpu_custom_call.1} parent=11 // pred_fallthru
          _
        // Predicated region
        $region105: #{tpu_custom_call.1} parent=11 // pred_check
          %p1027 = pneg %p767
        $region106: #{tpu_custom_call.1} parent=11 // pred_check_branch
          %1029 = sbr.rel (%p1027) target = $region108
        $region107: #{tpu_custom_call.1} parent=11 // pred_region
          _
        $region108: #{tpu_custom_call.1} parent=11 // pred_fallthru
          _
        // Predicated region
        $region109: #{tpu_custom_call.1} parent=11 // pred_check
          %p1030 = pneg %p788
        $region110: #{tpu_custom_call.1} parent=11 // pred_check_branch
          %1032 = sbr.rel (%p1030) target = $region112
        $region111: #{tpu_custom_call.1} parent=11 // pred_region
          _
        $region112: #{tpu_custom_call.1} parent=11 // pred_fallthru
          _
        // Predicated region
        $region113: #{tpu_custom_call.1} parent=11 // pred_check
          %p1033 = pneg %p809
        $region114: #{tpu_custom_call.1} parent=11 // pred_check_branch
          %1035 = sbr.rel (%p1033) target = $region116
        $region115: #{tpu_custom_call.1} parent=11 // pred_region
          _
        $region116: #{tpu_custom_call.1} parent=11 // pred_fallthru
          _
        // Predicated region
        $region117: #{tpu_custom_call.1} parent=11 // pred_check
          %p1036 = pneg %p830
        $region118: #{tpu_custom_call.1} parent=11 // pred_check_branch
          %1038 = sbr.rel (%p1036) target = $region120
        $region119: #{tpu_custom_call.1} parent=11 // pred_region
          _
        $region120: #{tpu_custom_call.1} parent=11 // pred_fallthru
          _
        // Predicated region
        $region121: #{tpu_custom_call.1} parent=11 // pred_check
          %p1039 = pneg %p851
        $region122: #{tpu_custom_call.1} parent=11 // pred_check_branch
          %1041 = sbr.rel (%p1039) target = $region124
        $region123: #{tpu_custom_call.1} parent=11 // pred_region
          _
        $region124: #{tpu_custom_call.1} parent=11 // pred_fallthru
          _
      $region12: #{tpu_custom_call.1} parent=5 // pred_fallthru
        _
      %p1042 = scmp.lt.s32.totalorder %s81, 2
      // Predicated region
      $region125: #{tpu_custom_call.1} parent=5 // pred_check
        %p1043 = pneg %p1042
      $region126: #{tpu_custom_call.1} parent=5 // pred_check_branch
        %1045 = sbr.rel (%p1043) target = $region128
      $region127: #{tpu_custom_call.1} parent=5 // pred_region
        // Predicated region
        $region129: #{tpu_custom_call.1} parent=127 // pred_check
          %p1046 = pneg %p101
        $region130: #{tpu_custom_call.1} parent=127 // pred_check_branch
          %1048 = sbr.rel (%p1046) target = $region132
        $region131: #{tpu_custom_call.1} parent=127 // pred_region
          %p1049 = scmp.lt.s32.totalorder %s81, 1
          %s1050 = scalar_select %p1049, %s81, 1
          %s1051 = smul.addr %s1050, 2
          %s1052 = smul.addr %s1051, 8
          %s1053 = scalar_lea.vmem %s1, %s1052
        $region132: #{tpu_custom_call.1} parent=127 // pred_fallthru
          _
        // Predicated region
        $region133: #{tpu_custom_call.1} parent=127 // pred_check
          %p1054 = pneg %p211
        $region134: #{tpu_custom_call.1} parent=127 // pred_check_branch
          %1056 = sbr.rel (%p1054) target = $region136
        $region135: #{tpu_custom_call.1} parent=127 // pred_region
          %s1057 = sand.u32 %s81, 1
          %s1058 = scalar_lea.sflag [#allocation3], %s1057
          %s1059 = sand.u32 %s201, 1
          %s1060 = scalar_lea.vmem [#allocation9], %s1059
          %s1062 = ssub.s32 16, 16
          %1063 = vsyncadd %s1058, %s1062
          %s1064 = smul.addr %s81, 16
          %s1065 = scalar_lea.hbm %s11, %s1064
          %s1067 = sshll.u32 %s1060, 4
          %s1068 = int_to_ptr.vmem [resolvable:$true] %s1067
          %1070 = dma.hbm_to_vmem [thread:$0]  %s1065, 16, %s1068, %s1058
        $region136: #{tpu_custom_call.1} parent=127 // pred_fallthru
          _
        // Predicated region
        $region137: #{tpu_custom_call.1} parent=127 // pred_check
          %p1071 = pneg %p237
        $region138: #{tpu_custom_call.1} parent=127 // pred_check_branch
          %1073 = sbr.rel (%p1071) target = $region140
        $region139: #{tpu_custom_call.1} parent=127 // pred_region
          %s1074 = sand.u32 %s81, 1
          %s1075 = scalar_lea.sflag [#allocation3], %s1074
          %s1076 = sand.u32 %s227, 1
          %s1077 = scalar_lea.vmem [#allocation10], %s1076
          %s1079 = ssub.s32 16, 16
          %1080 = vsyncadd %s1075, %s1079
          %s1081 = smul.addr %s81, 16
          %s1082 = scalar_lea.hbm %s13, %s1081
          %s1084 = sshll.u32 %s1077, 4
          %s1085 = int_to_ptr.vmem [resolvable:$true] %s1084
          %1087 = dma.hbm_to_vmem [thread:$0]  %s1082, 16, %s1085, %s1075
        $region140: #{tpu_custom_call.1} parent=127 // pred_fallthru
          _
        // Predicated region
        $region141: #{tpu_custom_call.1} parent=127 // pred_check
          %p1088 = pneg %p473
        $region142: #{tpu_custom_call.1} parent=127 // pred_check_branch
          %1090 = sbr.rel (%p1088) target = $region144
        $region143: #{tpu_custom_call.1} parent=127 // pred_region
          %p1091 = scmp.lt.s32.totalorder %s81, 1
          %s1092 = scalar_select %p1091, %s81, 1
          %s1093 = scalar_lea.vmem %s35, %s1092
        $region144: #{tpu_custom_call.1} parent=127 // pred_fallthru
          _
        // Predicated region
        $region145: #{tpu_custom_call.1} parent=127 // pred_check
          %p1094 = pneg %p499
        $region146: #{tpu_custom_call.1} parent=127 // pred_check_branch
          %1096 = sbr.rel (%p1094) target = $region148
        $region147: #{tpu_custom_call.1} parent=127 // pred_region
          %p1097 = scmp.lt.s32.totalorder %s81, 1
          %s1098 = scalar_select %p1097, %s81, 1
          %s1099 = scalar_lea.vmem %s37, %s1098
        $region148: #{tpu_custom_call.1} parent=127 // pred_fallthru
          _
        // Predicated region
        $region149: #{tpu_custom_call.1} parent=127 // pred_check
          %p1100 = pneg %p693
        $region150: #{tpu_custom_call.1} parent=127 // pred_check_branch
          %1102 = sbr.rel (%p1100) target = $region152
        $region151: #{tpu_custom_call.1} parent=127 // pred_region
          %p1103 = scmp.lt.s32.totalorder %s81, 1
          %s1104 = scalar_select %p1103, %s81, 1
          %s1105 = scalar_lea.vmem %s55, %s1104
        $region152: #{tpu_custom_call.1} parent=127 // pred_fallthru
          _
        // Predicated region
        $region153: #{tpu_custom_call.1} parent=127 // pred_check
          %p1106 = pneg %p719
        $region154: #{tpu_custom_call.1} parent=127 // pred_check_branch
          %1108 = sbr.rel (%p1106) target = $region156
        $region155: #{tpu_custom_call.1} parent=127 // pred_region
          %p1109 = scmp.lt.s32.totalorder %s81, 1
          %s1110 = scalar_select %p1109, %s81, 1
          %s1111 = scalar_lea.vmem %s57, %s1110
        $region156: #{tpu_custom_call.1} parent=127 // pred_fallthru
          _
      $region128: #{tpu_custom_call.1} parent=5 // pred_fallthru
        _
      %p1112 = scmp.le.s32.totalorder 1, %s81
      %p1113 = scmp.lt.s32.totalorder %s81, 3
      %p1114 = pnand %p1112, %p1113
      %p1115 = pneg %p1114
      // Predicated region
      $region157: #{tpu_custom_call.1} parent=5 // pred_check
        _
      $region158: #{tpu_custom_call.1} parent=5 // pred_check_branch
        %1117 = sbr.rel (%p1114) target = $region160
      $region159: #{tpu_custom_call.1} parent=5 // pred_region
        %s1118 = ssub.s32 %s81, 1
        // Predicated region
        $region161: #{tpu_custom_call.1} parent=159 // pred_check
          %p1119 = pneg %p128
        $region162: #{tpu_custom_call.1} parent=159 // pred_check_branch
          %1121 = sbr.rel (%p1119) target = $region164
        $region163: #{tpu_custom_call.1} parent=159 // pred_region
          %1122 = dma.done [#allocation3], 96
        $region164: #{tpu_custom_call.1} parent=159 // pred_fallthru
          _
        // Predicated region
        $region165: #{tpu_custom_call.1} parent=159 // pred_check
          %p1123 = pneg %p149
        $region166: #{tpu_custom_call.1} parent=159 // pred_check_branch
          %1125 = sbr.rel (%p1123) target = $region168
        $region167: #{tpu_custom_call.1} parent=159 // pred_region
          %1126 = dma.done [#allocation5], 16
        $region168: #{tpu_custom_call.1} parent=159 // pred_fallthru
          _
        // Predicated region
        $region169: #{tpu_custom_call.1} parent=159 // pred_check
          %p1127 = pneg %p170
        $region170: #{tpu_custom_call.1} parent=159 // pred_check_branch
          %1129 = sbr.rel (%p1127) target = $region172
        $region171: #{tpu_custom_call.1} parent=159 // pred_region
          %1130 = dma.done [#allocation5], 16
        $region172: #{tpu_custom_call.1} parent=159 // pred_fallthru
          _
        // Predicated region
        $region173: #{tpu_custom_call.1} parent=159 // pred_check
          %p1131 = pneg %p191
        $region174: #{tpu_custom_call.1} parent=159 // pred_check_branch
          %1133 = sbr.rel (%p1131) target = $region176
        $region175: #{tpu_custom_call.1} parent=159 // pred_region
          %1134 = dma.done [#allocation8], 16
        $region176: #{tpu_custom_call.1} parent=159 // pred_fallthru
          _
        %s1135 = sand.u32 %s86, 1
        %s1136 = scalar_lea.sflag [#allocation3], %s1135
        %s1137 = sand.u32 %s204, 1
        %s1138 = scalar_lea.vmem [#allocation9], %s1137
        // Predicated region
        $region177: #{tpu_custom_call.1} parent=159 // pred_check
          %p1139 = pneg %p217
        $region178: #{tpu_custom_call.1} parent=159 // pred_check_branch
          %1141 = sbr.rel (%p1139) target = $region180
        $region179: #{tpu_custom_call.1} parent=159 // pred_region
          %1142 = dma.done %s1136, 16
        $region180: #{tpu_custom_call.1} parent=159 // pred_fallthru
          _
        %s1143 = sand.u32 %s86, 1
        %s1144 = scalar_lea.sflag [#allocation3], %s1143
        %s1145 = sand.u32 %s230, 1
        %s1146 = scalar_lea.vmem [#allocation10], %s1145
        // Predicated region
        $region181: #{tpu_custom_call.1} parent=159 // pred_check
          %p1147 = pneg %p243
        $region182: #{tpu_custom_call.1} parent=159 // pred_check_branch
          %1149 = sbr.rel (%p1147) target = $region184
        $region183: #{tpu_custom_call.1} parent=159 // pred_region
          %1150 = dma.done %s1144, 16
        $region184: #{tpu_custom_call.1} parent=159 // pred_fallthru
          _
        // Predicated region
        $region185: #{tpu_custom_call.1} parent=159 // pred_check
          %p1151 = pneg %p285
        $region186: #{tpu_custom_call.1} parent=159 // pred_check_branch
          %1153 = sbr.rel (%p1151) target = $region188
        $region187: #{tpu_custom_call.1} parent=159 // pred_region
          %1154 = dma.done [#allocation5], 16
        $region188: #{tpu_custom_call.1} parent=159 // pred_fallthru
          _
        // Predicated region
        $region189: #{tpu_custom_call.1} parent=159 // pred_check
          %p1155 = pneg %p306
        $region190: #{tpu_custom_call.1} parent=159 // pred_check_branch
          %1157 = sbr.rel (%p1155) target = $region192
        $region191: #{tpu_custom_call.1} parent=159 // pred_region
          %1158 = dma.done [#allocation8], 16
        $region192: #{tpu_custom_call.1} parent=159 // pred_fallthru
          _
        // Predicated region
        $region193: #{tpu_custom_call.1} parent=159 // pred_check
          %p1159 = pneg %p327
        $region194: #{tpu_custom_call.1} parent=159 // pred_check_branch
          %1161 = sbr.rel (%p1159) target = $region196
        $region195: #{tpu_custom_call.1} parent=159 // pred_region
          %1162 = dma.done [#allocation14], 16
        $region196: #{tpu_custom_call.1} parent=159 // pred_fallthru
          _
        // Predicated region
        $region197: #{tpu_custom_call.1} parent=159 // pred_check
          %p1163 = pneg %p411
        $region198: #{tpu_custom_call.1} parent=159 // pred_check_branch
          %1165 = sbr.rel (%p1163) target = $region200
        $region199: #{tpu_custom_call.1} parent=159 // pred_region
          %1166 = dma.done [#allocation14], 16
        $region200: #{tpu_custom_call.1} parent=159 // pred_fallthru
          _
        %p1167 = scmp.lt.s32.totalorder %s86, 1
        %s1168 = scalar_select %p1167, %s86, 1
        %s1169 = smul.addr %s1168, 2
        %s1170 = smul.addr %s1169, 8
        %s1171 = scalar_lea.vmem %s1, %s1170
        %p1172 = pneg %p107
        %p1173 = pneg %p104
        %p1174 = pneg %p128
        %p1175 = pneg %p125
        %p1176 = pneg %p149
        %p1177 = pneg %p146
        %p1178 = pneg %p170
        %p1179 = pneg %p167
        %p1180 = pneg %p191
        %p1181 = pneg %p188
        %s1182 = sand.u32 %s86, 1
        %s1183 = scalar_lea.sflag [#allocation3], %s1182
        %s1184 = sand.u32 %s204, 1
        %s1185 = scalar_lea.vmem [#allocation9], %s1184
        %p1186 = pneg %p217
        %p1187 = pneg %p214
        %s1188 = sand.u32 %s86, 1
        %s1189 = scalar_lea.sflag [#allocation3], %s1188
        %s1190 = sand.u32 %s230, 1
        %s1191 = scalar_lea.vmem [#allocation10], %s1190
        %p1192 = pneg %p243
        %p1193 = pneg %p240
        %p1194 = pneg %p264
        %p1195 = pneg %p261
        %p1196 = pneg %p285
        %p1197 = pneg %p282
        %p1198 = pneg %p306
        %p1199 = pneg %p303
        %p1200 = pneg %p327
        %p1201 = pneg %p324
        %p1202 = pneg %p348
        %p1203 = pneg %p345
        %p1204 = pneg %p369
        %p1205 = pneg %p366
        %p1206 = pneg %p390
        %p1207 = pneg %p387
        %p1208 = pneg %p411
        %p1209 = pneg %p408
        %p1210 = pneg %p432
        %p1211 = pneg %p429
        %p1212 = pneg %p453
        %p1213 = pneg %p450
        %p1214 = scmp.lt.s32.totalorder %s86, 1
        %s1215 = scalar_select %p1214, %s86, 1
        %s1216 = scalar_lea.vmem %s35, %s1215
        %p1217 = pneg %p479
        %p1218 = pneg %p476
        %p1219 = scmp.lt.s32.totalorder %s86, 1
        %s1220 = scalar_select %p1219, %s86, 1
        %s1221 = scalar_lea.vmem %s37, %s1220
        %p1222 = pneg %p505
        %p1223 = pneg %p502
        %p1224 = pneg %p526
        %p1225 = pneg %p523
        %p1226 = pneg %p547
        %p1227 = pneg %p544
        %p1228 = pneg %p568
        %p1229 = pneg %p565
        %p1230 = pneg %p589
        %p1231 = pneg %p586
        %p1232 = pneg %p610
        %p1233 = pneg %p607
        %p1234 = pneg %p631
        %p1235 = pneg %p628
        %p1236 = pneg %p652
        %p1237 = pneg %p649
        %p1238 = pneg %p673
        %p1239 = pneg %p670
        %p1240 = scmp.lt.s32.totalorder %s86, 1
        %s1241 = scalar_select %p1240, %s86, 1
        %s1242 = scalar_lea.vmem %s55, %s1241
        %p1243 = pneg %p699
        %p1244 = pneg %p696
        %p1245 = scmp.lt.s32.totalorder %s86, 1
        %s1246 = scalar_select %p1245, %s86, 1
        %s1247 = scalar_lea.vmem %s57, %s1246
        %p1248 = pneg %p725
        %p1249 = pneg %p722
        %p1250 = pneg %p746
        %p1251 = pneg %p743
        %p1252 = pneg %p767
        %p1253 = pneg %p764
        %p1254 = pneg %p788
        %p1255 = pneg %p785
        %p1256 = pneg %p809
        %p1257 = pneg %p806
        %p1258 = pneg %p830
        %p1259 = pneg %p827
        %p1260 = pneg %p851
        %p1261 = pneg %p848
        %p1262 = pneg %p877
        %p1263 = pneg %p874
        %p1264 = scmp.lt.s32.totalorder %s86, 1
        %s1265 = scalar_select %p1264, %s86, 1
        %s1266 = smul.addr %s1265, 2
        %s1267 = smul.addr %s1266, 8
        %s1268 = scalar_lea.vmem %s71, %s1267
        %p1269 = scmp.lt.s32.totalorder %s86, 1
        %s1270 = scalar_select %p1269, %s86, 1
        %s1271 = smul.addr %s1270, 2
        %s1272 = smul.addr %s1271, 8
        %s1273 = scalar_lea.vmem %s1, %s1272
        %p1274 = scmp.lt.s32.totalorder %s86, 1
        %s1275 = scalar_select %p1274, %s86, 1
        %s1276 = scalar_lea.vmem %s35, %s1275
        %p1277 = scmp.lt.s32.totalorder %s86, 1
        %s1278 = scalar_select %p1277, %s86, 1
        %s1279 = scalar_lea.vmem %s37, %s1278
        %p1280 = scmp.lt.s32.totalorder %s86, 1
        %s1281 = scalar_select %p1280, %s86, 1
        %s1282 = scalar_lea.vmem %s55, %s1281
        %p1283 = scmp.lt.s32.totalorder %s86, 1
        %s1284 = scalar_select %p1283, %s86, 1
        %s1285 = scalar_lea.vmem %s57, %s1284
        %p1286 = scmp.lt.s32.totalorder %s86, 1
        %s1287 = scalar_select %p1286, %s86, 1
        %s1288 = smul.addr %s1287, 2
        %s1289 = smul.addr %s1288, 8
        %s1290 = scalar_lea.vmem %s71, %s1289
        %v1292 = vlaneseq
        %v1293 = vshrl.u32 %v1292, 7
        %v1294 = vadd.s32 %v1293, 8
        %vm1295 = vcmp.ne.s32.totalorder %v1293, 0
        %vm1296 = vcmp.ne.s32.totalorder %v1294, 0
        %vm1297 = vcmp.ne.s32.totalorder %v1293, 15
        %vm1298 = vcmp.ne.s32.totalorder %v1294, 15
        %v1299 = vld [vmem:[%s1273] sm:$0xff]
        %v1300 = vld [vmem:[%s1273 + $0x8] sm:$0xff]
        %v1301 = vpack.c.bf16 %v1300, %v1299
        %v1302 = vld [vmem:[#allocation2] sm:$0x3]
        %vm1303 = vcmask 31744
        %v1305 = vsel %vm1303, %v1301, 0
        %vm1307 = vcmask 1041408
        %v1309 = vsel %vm1307, %v1302, 0
        %1311 = vmatprep.subr.bf16.mxu0 0
        %1312 = vmatpush1.bf16.msra.mxu0 0
        %1313 = vmatprep.subr.bf16.mxu0 0
        %1314 = vmatpush1.bf16.msra.mxu0 0
        %1315 = vmatprep.subr.bf16.mxu0 0
        %1316 = vmatpush1.bf16.msra.mxu0 0
        %1317 = vmatprep.subr.bf16.mxu0 0
        %1318 = vmatpush1.bf16.msra.mxu0 0
        %1319 = vmatprep.subr.bf16.mxu0 0
        %1320 = vmatpush1.bf16.msra.mxu0 0
        %1321 = vmatprep.subr.bf16.mxu0 0
        %1322 = vmatpush1.bf16.msra.mxu0 0
        %1323 = vmatprep.subr.bf16.mxu0 0
        %1324 = vmatpush1.bf16.msra.mxu0 0
        %1325 = vmatprep.subr.bf16.mxu0 0
        %1326 = vmatpush1.bf16.msra.mxu0 %v1309
        %1327 = vmatprep.subr.bf16.mxu0 0
        %1328 = vmatpush2.bf16.msra.mxu0 0
        %1329 = vmatprep.subr.bf16.mxu0 0
        %1330 = vmatpush2.bf16.msra.mxu0 0
        %1331 = vmatprep.subr.bf16.mxu0 0
        %1332 = vmatpush2.bf16.msra.mxu0 0
        %1333 = vmatprep.subr.bf16.mxu0 0
        %1334 = vmatpush2.bf16.msra.mxu0 0
        %1335 = vmatprep.subr.bf16.mxu0 0
        %1336 = vmatpush2.bf16.msra.mxu0 0
        %1337 = vmatprep.subr.bf16.mxu0 0
        %1338 = vmatpush2.bf16.msra.mxu0 0
        %1339 = vmatprep.subr.bf16.mxu0 0
        %1340 = vmatpush2.bf16.msra.mxu0 0
        %1341 = vmatprep.subr.bf16.mxu0 0
        %1342 = vmatpush2.bf16.msra.mxu0 0
        %1343 = vmatprep.mubr.bf16.mxu0 0
        %1344 = vmatmul.mubr.bf16.gmra.mxu0 %v1305
        %v1345 = vpop.f32.mrf.mxu0
        %v1346 = vadd.f32 0.0, %v1345
        %v1347 = vpop.f32.mrf.mxu0
        %v1348 = vpop.f32.mrf.mxu0
        %v1349 = vadd.f32 0.0, %v1348
        %v1350 = vpop.f32.mrf.mxu0
        %1351 = vdwg.mxu0
        %s1352 = scalar_lea.vmem [#allocation2], 2
        %v1353 = vld [vmem:[%s1352] sm:$0x3]
        %v1355 = vsel %vm1307, %v1353, 0
        %1357 = vmatprep.subr.bf16.mxu0 0
        %1358 = vmatpush1.bf16.msra.mxu0 0
        %1359 = vmatprep.subr.bf16.mxu0 0
        %1360 = vmatpush1.bf16.msra.mxu0 0
        %1361 = vmatprep.subr.bf16.mxu0 0
        %1362 = vmatpush1.bf16.msra.mxu0 0
        %1363 = vmatprep.subr.bf16.mxu0 0
        %1364 = vmatpush1.bf16.msra.mxu0 0
        %1365 = vmatprep.subr.bf16.mxu0 0
        %1366 = vmatpush1.bf16.msra.mxu0 0
        %1367 = vmatprep.subr.bf16.mxu0 0
        %1368 = vmatpush1.bf16.msra.mxu0 0
        %1369 = vmatprep.subr.bf16.mxu0 0
        %1370 = vmatpush1.bf16.msra.mxu0 0
        %1371 = vmatprep.subr.bf16.mxu0 0
        %1372 = vmatpush1.bf16.msra.mxu0 %v1355
        %1373 = vmatprep.subr.bf16.mxu0 0
        %1374 = vmatpush2.bf16.msra.mxu0 0
        %1375 = vmatprep.subr.bf16.mxu0 0
        %1376 = vmatpush2.bf16.msra.mxu0 0
        %1377 = vmatprep.subr.bf16.mxu0 0
        %1378 = vmatpush2.bf16.msra.mxu0 0
        %1379 = vmatprep.subr.bf16.mxu0 0
        %1380 = vmatpush2.bf16.msra.mxu0 0
        %1381 = vmatprep.subr.bf16.mxu0 0
        %1382 = vmatpush2.bf16.msra.mxu0 0
        %1383 = vmatprep.subr.bf16.mxu0 0
        %1384 = vmatpush2.bf16.msra.mxu0 0
        %1385 = vmatprep.subr.bf16.mxu0 0
        %1386 = vmatpush2.bf16.msra.mxu0 0
        %1387 = vmatprep.subr.bf16.mxu0 0
        %1388 = vmatpush2.bf16.msra.mxu0 0
        %1389 = vmatprep.mubr.bf16.mxu0 0
        %1390 = vmatmul.mubr.bf16.gmra.mxu0 %v1305
        %v1391 = vpop.f32.mrf.mxu0
        %v1392 = vadd.f32 0.0, %v1391
        %v1393 = vpop.f32.mrf.mxu0
        %v1394 = vpop.f32.mrf.mxu0
        %v1395 = vadd.f32 0.0, %v1394
        %v1396 = vpop.f32.mrf.mxu0
        %1397 = vdwg.mxu0
        %s1398 = scalar_lea.vmem [#allocation2], 4
        %v1399 = vld [vmem:[%s1398] sm:$0x3]
        %v1401 = vsel %vm1307, %v1399, 0
        %1403 = vmatprep.subr.bf16.mxu0 0
        %1404 = vmatpush1.bf16.msra.mxu0 0
        %1405 = vmatprep.subr.bf16.mxu0 0
        %1406 = vmatpush1.bf16.msra.mxu0 0
        %1407 = vmatprep.subr.bf16.mxu0 0
        %1408 = vmatpush1.bf16.msra.mxu0 0
        %1409 = vmatprep.subr.bf16.mxu0 0
        %1410 = vmatpush1.bf16.msra.mxu0 0
        %1411 = vmatprep.subr.bf16.mxu0 0
        %1412 = vmatpush1.bf16.msra.mxu0 0
        %1413 = vmatprep.subr.bf16.mxu0 0
        %1414 = vmatpush1.bf16.msra.mxu0 0
        %1415 = vmatprep.subr.bf16.mxu0 0
        %1416 = vmatpush1.bf16.msra.mxu0 0
        %1417 = vmatprep.subr.bf16.mxu0 0
        %1418 = vmatpush1.bf16.msra.mxu0 %v1401
        %1419 = vmatprep.subr.bf16.mxu0 0
        %1420 = vmatpush2.bf16.msra.mxu0 0
        %1421 = vmatprep.subr.bf16.mxu0 0
        %1422 = vmatpush2.bf16.msra.mxu0 0
        %1423 = vmatprep.subr.bf16.mxu0 0
        %1424 = vmatpush2.bf16.msra.mxu0 0
        %1425 = vmatprep.subr.bf16.mxu0 0
        %1426 = vmatpush2.bf16.msra.mxu0 0
        %1427 = vmatprep.subr.bf16.mxu0 0
        %1428 = vmatpush2.bf16.msra.mxu0 0
        %1429 = vmatprep.subr.bf16.mxu0 0
        %1430 = vmatpush2.bf16.msra.mxu0 0
        %1431 = vmatprep.subr.bf16.mxu0 0
        %1432 = vmatpush2.bf16.msra.mxu0 0
        %1433 = vmatprep.subr.bf16.mxu0 0
        %1434 = vmatpush2.bf16.msra.mxu0 0
        %1435 = vmatprep.mubr.bf16.mxu0 0
        %1436 = vmatmul.mubr.bf16.gmra.mxu0 %v1305
        %v1437 = vpop.f32.mrf.mxu0
        %v1438 = vadd.f32 0.0, %v1437
        %v1439 = vpop.f32.mrf.mxu0
        %v1440 = vpop.f32.mrf.mxu0
        %v1441 = vadd.f32 0.0, %v1440
        %v1442 = vpop.f32.mrf.mxu0
        %1443 = vdwg.mxu0
        %v1444 = vrot.slane %v1346, 7
        %v1445 = vrot.slane %v1349, 7
        %vm1446 = vcmp.lt.s32.totalorder %v1293, 1
        %v1447 = vsel %vm1446, %v1444, %v1445
        %v1448 = vsel %vm1446, %v1445, %v1444
        %v1449 = vsel %vm1295, 1, 0
        %v1450 = vsel %vm1296, 1, 0
        %vm1451 = vcmp.eq.s32.totalorder %v1449, 1
        %vm1452 = vcmp.eq.s32.totalorder %v1450, 1
        %v1453 = vsel %vm1451, %v1448, 0.0
        %v1454 = vsel %vm1452, %v1447, 0.0
        %v1455 = vrot.slane %v1438, 1
        %v1456 = vrot.slane %v1441, 1
        %vm1457 = vcmp.lt.s32.totalorder %v1293, 7
        %v1458 = vsel %vm1457, %v1455, %v1456
        %v1459 = vsel %vm1457, %v1456, %v1455
        %v1460 = vsel %vm1297, 1, 0
        %v1461 = vsel %vm1298, 1, 0
        %vm1462 = vcmp.eq.s32.totalorder %v1460, 1
        %vm1463 = vcmp.eq.s32.totalorder %v1461, 1
        %v1464 = vsel %vm1462, %v1458, 0.0
        %v1465 = vsel %vm1463, %v1459, 0.0
        %v1466 = vadd.f32 %v1453, %v1392
        %v1467 = vadd.f32 %v1454, %v1395
        %v1468 = vadd.f32 %v1466, %v1464
        %v1469 = vadd.f32 %v1467, %v1465
        %v1470 = vld [vmem:[#allocation4] sm:$0x1]
        %v1472 = vlaneseq
        %v1473 = vshrl.u32 %v1472, 7
        %v1474 = vsub.s32 0, %v1473
        %v1475 = vrot.slane %v1470, %v1474
        %v1477 = vadd.f32 %v1468, %v1475
        %v1478 = vadd.f32 %v1469, %v1475
        %v1479 = vld [vmem:[%s23] sm:$0x3]
        %v1480 = vld [vmem:[%s25] sm:$0x1]
        %v1482 = vlaneseq
        %v1483 = vshrl.u32 %v1482, 7
        %v1484 = vsub.s32 0, %v1483
        %v1485 = vrot.slane %v1480, %v1484
        %v1488 = vsel %vm1307, %v1479, 0
        %1490 = vmatprep.subr.bf16.mxu0 0
        %1491 = vmatpush1.bf16.msra.mxu0 0
        %1492 = vmatprep.subr.bf16.mxu0 0
        %1493 = vmatpush1.bf16.msra.mxu0 0
        %1494 = vmatprep.subr.bf16.mxu0 0
        %1495 = vmatpush1.bf16.msra.mxu0 0
        %1496 = vmatprep.subr.bf16.mxu0 0
        %1497 = vmatpush1.bf16.msra.mxu0 0
        %1498 = vmatprep.subr.bf16.mxu0 0
        %1499 = vmatpush1.bf16.msra.mxu0 0
        %1500 = vmatprep.subr.bf16.mxu0 0
        %1501 = vmatpush1.bf16.msra.mxu0 0
        %1502 = vmatprep.subr.bf16.mxu0 0
        %1503 = vmatpush1.bf16.msra.mxu0 0
        %1504 = vmatprep.subr.bf16.mxu0 0
        %1505 = vmatpush1.bf16.msra.mxu0 %v1488
        %1506 = vmatprep.subr.bf16.mxu0 0
        %1507 = vmatpush2.bf16.msra.mxu0 0
        %1508 = vmatprep.subr.bf16.mxu0 0
        %1509 = vmatpush2.bf16.msra.mxu0 0
        %1510 = vmatprep.subr.bf16.mxu0 0
        %1511 = vmatpush2.bf16.msra.mxu0 0
        %1512 = vmatprep.subr.bf16.mxu0 0
        %1513 = vmatpush2.bf16.msra.mxu0 0
        %1514 = vmatprep.subr.bf16.mxu0 0
        %1515 = vmatpush2.bf16.msra.mxu0 0
        %1516 = vmatprep.subr.bf16.mxu0 0
        %1517 = vmatpush2.bf16.msra.mxu0 0
        %1518 = vmatprep.subr.bf16.mxu0 0
        %1519 = vmatpush2.bf16.msra.mxu0 0
        %1520 = vmatprep.subr.bf16.mxu0 0
        %1521 = vmatpush2.bf16.msra.mxu0 0
        %1522 = vmatprep.mubr.bf16.mxu0 0
        %1523 = vmatmul.mubr.bf16.gmra.mxu0 %v1305
        %v1524 = vpop.f32.mrf.mxu0
        %v1525 = vadd.f32 %v1485, %v1524
        %v1526 = vpop.f32.mrf.mxu0
        %v1527 = vpop.f32.mrf.mxu0
        %v1528 = vadd.f32 %v1485, %v1527
        %v1529 = vpop.f32.mrf.mxu0
        %1530 = vdwg.mxu0
        %vm1531 = vcmask 130048
        %v1532 = vsel %vm1531, %v1477, 0.0
        %1533 = vadd.xlane.f32.xlu0 %v1532
        %v1534 = vpop.xlane.xlu0 %1533
        %v1535 = vsel %vm1531, %v1478, 0.0
        %1536 = vadd.xlane.f32.xlu0 %v1535
        %v1537 = vpop.xlane.xlu0 %1536
        %v1538 = vadd.f32 %v1534, %v1537
        %v1539 = vrot.slane %v1538, 4
        %v1540 = vadd.f32 %v1538, %v1539
        %v1541 = vrot.slane %v1540, 2
        %v1542 = vadd.f32 %v1540, %v1541
        %v1543 = vrot.slane %v1542, 1
        %v1544 = vadd.f32 %v1542, %v1543
        %v1545 = vmul.f32 %v1544, 0.00390625
        %v1546 = vsub.f32 %v1477, %v1545
        %v1547 = vsub.f32 %v1478, %v1545
        %v1548 = vmul.f32 %v1546, %v1546
        %v1549 = vmul.f32 %v1547, %v1547
        %v1550 = vsel %vm1531, %v1548, 0.0
        %1551 = vadd.xlane.f32.xlu0 %v1550
        %v1552 = vpop.xlane.xlu0 %1551
        %v1553 = vsel %vm1531, %v1549, 0.0
        %1554 = vadd.xlane.f32.xlu0 %v1553
        %v1555 = vpop.xlane.xlu0 %1554
        %v1556 = vadd.f32 %v1552, %v1555
        %v1557 = vrot.slane %v1556, 4
        %v1558 = vadd.f32 %v1556, %v1557
        %v1559 = vrot.slane %v1558, 2
        %v1560 = vadd.f32 %v1558, %v1559
        %v1561 = vrot.slane %v1560, 1
        %v1562 = vadd.f32 %v1560, %v1561
        %v1563 = vmul.f32 %v1562, 0.00390625
        %v1564 = vadd.f32 %v1563, 1e-05
        %v1565 = vrsqrt.pop %v1564
        %v1566 = vmul.f32 %v1546, %v1565
        %v1567 = vmul.f32 %v1547, %v1565
        %v1568 = vld [vmem:[#allocation6] sm:$0x1]
        %v1570 = vlaneseq
        %v1571 = vshrl.u32 %v1570, 7
        %v1572 = vsub.s32 0, %v1571
        %v1573 = vrot.slane %v1568, %v1572
        %v1575 = vmul.f32 %v1566, %v1573
        %v1576 = vmul.f32 %v1567, %v1573
        %v1577 = vld [vmem:[#allocation7] sm:$0x1]
        %v1579 = vlaneseq
        %v1580 = vshrl.u32 %v1579, 7
        %v1581 = vsub.s32 0, %v1580
        %v1582 = vrot.slane %v1577, %v1581
        %v1584 = vadd.f32 %v1575, %v1582
        %v1585 = vadd.f32 %v1576, %v1582
        %v1586 = vmax.f32 %v1584, 0.0
        %v1587 = vmax.f32 %v1585, 0.0
        %vm1588 = vcmp.ne.f32.partialorder %v1584, %v1584
        %vm1589 = vcmp.ne.f32.partialorder %v1585, %v1585
        %v1590 = vadd.f32 %v1584, 0.0
        %v1591 = vadd.f32 %v1585, 0.0
        %v1592 = vand.u32 2147483647, %v1584
        %v1593 = vand.u32 2147483647, %v1585
        %v1594 = vsub.f32 0.0, %v1592
        %v1595 = vsub.f32 0.0, %v1593
        %v1596 = vmul.f32 %v1594, 1.442695
        %v1597 = vpow.pop %v1596
        %v1598 = vmul.f32 %v1595, 1.442695
        %v1599 = vpow.pop %v1598
        %v1600 = vadd.f32 %v1597, 1.0
        %v1601 = vlog2.pop %v1600
        %v1602 = vmul.f32 %v1601, 0.6931472
        %v1603 = vmul.f32 -0.5, %v1597
        %v1604 = vadd.f32 %v1603, 1.0
        %v1605 = vmul.f32 %v1604, %v1597
        %v1606 = vand.u32 2147483647, %v1597
        %vm1607 = vcmp.lt.f32.partialorder %v1606, 0.0004427343
        %v1608 = vsel %vm1607, %v1605, %v1602
        %v1609 = vadd.f32 %v1599, 1.0
        %v1610 = vlog2.pop %v1609
        %v1611 = vmul.f32 %v1610, 0.6931472
        %v1612 = vmul.f32 -0.5, %v1599
        %v1613 = vadd.f32 %v1612, 1.0
        %v1614 = vmul.f32 %v1613, %v1599
        %v1615 = vand.u32 2147483647, %v1599
        %vm1616 = vcmp.lt.f32.partialorder %v1615, 0.0004427343
        %v1617 = vsel %vm1616, %v1614, %v1611
        %v1618 = vadd.f32 %v1586, %v1608
        %v1619 = vadd.f32 %v1587, %v1617
        %v1620 = vsel %vm1588, %v1590, %v1618
        %v1621 = vsel %vm1589, %v1591, %v1619
        %v1622 = vtanh.pop %v1620
        %v1623 = vtanh.pop %v1621
        %v1624 = vmul.f32 %v1584, %v1622
        %v1625 = vmul.f32 %v1585, %v1623
        %v1626 = vld [vmem:[%s1138] sm:$0x1]
        %v1628 = vlaneseq
        %v1629 = vshrl.u32 %v1628, 7
        %v1630 = vsub.s32 0, %v1629
        %v1631 = vrot.slane %v1626, %v1630
        %v1633 = vmul.f32 %v1631, %v1624
        %v1634 = vmul.f32 %v1631, %v1625
        %v1635 = vld [vmem:[%s1146] sm:$0x1]
        %v1637 = vlaneseq
        %v1638 = vshrl.u32 %v1637, 7
        %v1639 = vsub.s32 0, %v1638
        %v1640 = vrot.slane %v1635, %v1639
        %v1642 = vadd.f32 %v1633, %v1640
        %v1643 = vadd.f32 %v1634, %v1640
        %v1644 = vpack.c.bf16 %v1643, %v1642
        %v1645 = vld [vmem:[%s15] sm:$0xf]
        %v1646 = vld [vmem:[%s15 + $0x4] sm:$0xf]
        %v1649 = vunpack.c.l.b16 %v1645
        %v1650 = vunpack.c.l.b16 %v1646
        %v1651 = vpack.c.b16 %v1650, %v1649
        %v1654 = vsel %vm1531, %v1644, 0
        %1656 = vmatprep.subr.bf16.mxu0 0
        %1657 = vmatpush1.bf16.msra.mxu0 0
        %1658 = vmatprep.subr.bf16.mxu0 0
        %1659 = vmatpush1.bf16.msra.mxu0 0
        %1660 = vmatprep.subr.bf16.mxu0 0
        %1661 = vmatpush1.bf16.msra.mxu0 0
        %1662 = vmatprep.subr.bf16.mxu0 0
        %1663 = vmatpush1.bf16.msra.mxu0 0
        %1664 = vmatprep.subr.bf16.mxu0 0
        %1665 = vmatpush1.bf16.msra.mxu0 0
        %1666 = vmatprep.subr.bf16.mxu0 0
        %1667 = vmatpush1.bf16.msra.mxu0 0
        %1668 = vmatprep.subr.bf16.mxu0 0
        %1669 = vmatpush1.bf16.msra.mxu0 0
        %1670 = vmatprep.subr.bf16.mxu0 0
        %1671 = vmatpush1.bf16.msra.mxu0 %v1651
        %1672 = vmatprep.subr.bf16.mxu0 0
        %1673 = vmatpush2.bf16.msra.mxu0 0
        %1674 = vmatprep.subr.bf16.mxu0 0
        %1675 = vmatpush2.bf16.msra.mxu0 0
        %1676 = vmatprep.subr.bf16.mxu0 0
        %1677 = vmatpush2.bf16.msra.mxu0 0
        %1678 = vmatprep.subr.bf16.mxu0 0
        %1679 = vmatpush2.bf16.msra.mxu0 0
        %1680 = vmatprep.subr.bf16.mxu0 0
        %1681 = vmatpush2.bf16.msra.mxu0 0
        %1682 = vmatprep.subr.bf16.mxu0 0
        %1683 = vmatpush2.bf16.msra.mxu0 0
        %1684 = vmatprep.subr.bf16.mxu0 0
        %1685 = vmatpush2.bf16.msra.mxu0 0
        %1686 = vmatprep.subr.bf16.mxu0 0
        %1687 = vmatpush2.bf16.msra.mxu0 0
        %1688 = vmatprep.mubr.bf16.mxu0 0
        %1689 = vmatmul.mubr.bf16.gmra.mxu0 %v1654
        %v1690 = vpop.f32.mrf.mxu0
        %v1691 = vadd.f32 0.0, %v1690
        %v1692 = vpop.f32.mrf.mxu0
        %v1693 = vpop.f32.mrf.mxu0
        %v1694 = vadd.f32 0.0, %v1693
        %v1695 = vpop.f32.mrf.mxu0
        %1696 = vdwg.mxu0
        %s1697 = scalar_lea.vmem %s15, 8
        %v1698 = vld [vmem:[%s1697] sm:$0xf]
        %v1699 = vld [vmem:[%s1697 + $0x4] sm:$0xf]
        %v1702 = vunpack.c.l.b16 %v1698
        %v1703 = vunpack.c.l.b16 %v1699
        %v1704 = vpack.c.b16 %v1703, %v1702
        %1706 = vmatprep.subr.bf16.mxu0 0
        %1707 = vmatpush1.bf16.msra.mxu0 0
        %1708 = vmatprep.subr.bf16.mxu0 0
        %1709 = vmatpush1.bf16.msra.mxu0 0
        %1710 = vmatprep.subr.bf16.mxu0 0
        %1711 = vmatpush1.bf16.msra.mxu0 0
        %1712 = vmatprep.subr.bf16.mxu0 0
        %1713 = vmatpush1.bf16.msra.mxu0 0
        %1714 = vmatprep.subr.bf16.mxu0 0
        %1715 = vmatpush1.bf16.msra.mxu0 0
        %1716 = vmatprep.subr.bf16.mxu0 0
        %1717 = vmatpush1.bf16.msra.mxu0 0
        %1718 = vmatprep.subr.bf16.mxu0 0
        %1719 = vmatpush1.bf16.msra.mxu0 0
        %1720 = vmatprep.subr.bf16.mxu0 0
        %1721 = vmatpush1.bf16.msra.mxu0 %v1704
        %1722 = vmatprep.subr.bf16.mxu0 0
        %1723 = vmatpush2.bf16.msra.mxu0 0
        %1724 = vmatprep.subr.bf16.mxu0 0
        %1725 = vmatpush2.bf16.msra.mxu0 0
        %1726 = vmatprep.subr.bf16.mxu0 0
        %1727 = vmatpush2.bf16.msra.mxu0 0
        %1728 = vmatprep.subr.bf16.mxu0 0
        %1729 = vmatpush2.bf16.msra.mxu0 0
        %1730 = vmatprep.subr.bf16.mxu0 0
        %1731 = vmatpush2.bf16.msra.mxu0 0
        %1732 = vmatprep.subr.bf16.mxu0 0
        %1733 = vmatpush2.bf16.msra.mxu0 0
        %1734 = vmatprep.subr.bf16.mxu0 0
        %1735 = vmatpush2.bf16.msra.mxu0 0
        %1736 = vmatprep.subr.bf16.mxu0 0
        %1737 = vmatpush2.bf16.msra.mxu0 0
        %1738 = vmatprep.mubr.bf16.mxu0 0
        %1739 = vmatmul.mubr.bf16.gmra.mxu0 %v1654
        %v1740 = vpop.f32.mrf.mxu0
        %v1741 = vadd.f32 0.0, %v1740
        %v1742 = vpop.f32.mrf.mxu0
        %v1743 = vpop.f32.mrf.mxu0
        %v1744 = vadd.f32 0.0, %v1743
        %v1745 = vpop.f32.mrf.mxu0
        %1746 = vdwg.mxu0
        %s1747 = scalar_lea.vmem %s15, 16
        %v1748 = vld [vmem:[%s1747] sm:$0xf]
        %v1749 = vld [vmem:[%s1747 + $0x4] sm:$0xf]
        %v1752 = vunpack.c.l.b16 %v1748
        %v1753 = vunpack.c.l.b16 %v1749
        %v1754 = vpack.c.b16 %v1753, %v1752
        %1756 = vmatprep.subr.bf16.mxu0 0
        %1757 = vmatpush1.bf16.msra.mxu0 0
        %1758 = vmatprep.subr.bf16.mxu0 0
        %1759 = vmatpush1.bf16.msra.mxu0 0
        %1760 = vmatprep.subr.bf16.mxu0 0
        %1761 = vmatpush1.bf16.msra.mxu0 0
        %1762 = vmatprep.subr.bf16.mxu0 0
        %1763 = vmatpush1.bf16.msra.mxu0 0
        %1764 = vmatprep.subr.bf16.mxu0 0
        %1765 = vmatpush1.bf16.msra.mxu0 0
        %1766 = vmatprep.subr.bf16.mxu0 0
        %1767 = vmatpush1.bf16.msra.mxu0 0
        %1768 = vmatprep.subr.bf16.mxu0 0
        %1769 = vmatpush1.bf16.msra.mxu0 0
        %1770 = vmatprep.subr.bf16.mxu0 0
        %1771 = vmatpush1.bf16.msra.mxu0 %v1754
        %1772 = vmatprep.subr.bf16.mxu0 0
        %1773 = vmatpush2.bf16.msra.mxu0 0
        %1774 = vmatprep.subr.bf16.mxu0 0
        %1775 = vmatpush2.bf16.msra.mxu0 0
        %1776 = vmatprep.subr.bf16.mxu0 0
        %1777 = vmatpush2.bf16.msra.mxu0 0
        %1778 = vmatprep.subr.bf16.mxu0 0
        %1779 = vmatpush2.bf16.msra.mxu0 0
        %1780 = vmatprep.subr.bf16.mxu0 0
        %1781 = vmatpush2.bf16.msra.mxu0 0
        %1782 = vmatprep.subr.bf16.mxu0 0
        %1783 = vmatpush2.bf16.msra.mxu0 0
        %1784 = vmatprep.subr.bf16.mxu0 0
        %1785 = vmatpush2.bf16.msra.mxu0 0
        %1786 = vmatprep.subr.bf16.mxu0 0
        %1787 = vmatpush2.bf16.msra.mxu0 0
        %1788 = vmatprep.mubr.bf16.mxu0 0
        %1789 = vmatmul.mubr.bf16.gmra.mxu0 %v1654
        %v1790 = vpop.f32.mrf.mxu0
        %v1791 = vadd.f32 0.0, %v1790
        %v1792 = vpop.f32.mrf.mxu0
        %v1793 = vpop.f32.mrf.mxu0
        %v1794 = vadd.f32 0.0, %v1793
        %v1795 = vpop.f32.mrf.mxu0
        %1796 = vdwg.mxu0
        %v1797 = vrot.slane %v1691, 7
        %v1798 = vrot.slane %v1694, 7
        %v1799 = vsel %vm1446, %v1797, %v1798
        %v1800 = vsel %vm1446, %v1798, %v1797
        %v1801 = vsel %vm1451, %v1800, 0.0
        %v1802 = vsel %vm1452, %v1799, 0.0
        %v1803 = vrot.slane %v1791, 1
        %v1804 = vrot.slane %v1794, 1
        %v1805 = vsel %vm1457, %v1803, %v1804
        %v1806 = vsel %vm1457, %v1804, %v1803
        %v1807 = vsel %vm1462, %v1805, 0.0
        %v1808 = vsel %vm1463, %v1806, 0.0
        %v1809 = vadd.f32 %v1801, %v1741
        %v1810 = vadd.f32 %v1802, %v1744
        %v1811 = vadd.f32 %v1809, %v1807
        %v1812 = vadd.f32 %v1810, %v1808
        %v1813 = vld [vmem:[#allocation11] sm:$0x1]
        %v1815 = vlaneseq
        %v1816 = vshrl.u32 %v1815, 7
        %v1817 = vsub.s32 0, %v1816
        %v1818 = vrot.slane %v1813, %v1817
        %v1820 = vadd.f32 %v1811, %v1818
        %v1821 = vadd.f32 %v1812, %v1818
        %v1822 = vsel %vm1531, %v1820, 0.0
        %1823 = vadd.xlane.f32.xlu0 %v1822
        %v1824 = vpop.xlane.xlu0 %1823
        %v1825 = vsel %vm1531, %v1821, 0.0
        %1826 = vadd.xlane.f32.xlu0 %v1825
        %v1827 = vpop.xlane.xlu0 %1826
        %v1828 = vadd.f32 %v1824, %v1827
        %v1829 = vrot.slane %v1828, 4
        %v1830 = vadd.f32 %v1828, %v1829
        %v1831 = vrot.slane %v1830, 2
        %v1832 = vadd.f32 %v1830, %v1831
        %v1833 = vrot.slane %v1832, 1
        %v1834 = vadd.f32 %v1832, %v1833
        %v1835 = vmul.f32 %v1834, 0.00390625
        %v1836 = vsub.f32 %v1820, %v1835
        %v1837 = vsub.f32 %v1821, %v1835
        %v1838 = vmul.f32 %v1836, %v1836
        %v1839 = vmul.f32 %v1837, %v1837
        %v1840 = vsel %vm1531, %v1838, 0.0
        %1841 = vadd.xlane.f32.xlu0 %v1840
        %v1842 = vpop.xlane.xlu0 %1841
        %v1843 = vsel %vm1531, %v1839, 0.0
        %1844 = vadd.xlane.f32.xlu0 %v1843
        %v1845 = vpop.xlane.xlu0 %1844
        %v1846 = vadd.f32 %v1842, %v1845
        %v1847 = vrot.slane %v1846, 4
        %v1848 = vadd.f32 %v1846, %v1847
        %v1849 = vrot.slane %v1848, 2
        %v1850 = vadd.f32 %v1848, %v1849
        %v1851 = vrot.slane %v1850, 1
        %v1852 = vadd.f32 %v1850, %v1851
        %v1853 = vmul.f32 %v1852, 0.00390625
        %v1854 = vadd.f32 %v1853, 1e-05
        %v1855 = vrsqrt.pop %v1854
        %v1856 = vmul.f32 %v1836, %v1855
        %v1857 = vmul.f32 %v1837, %v1855
        %v1858 = vld [vmem:[#allocation12] sm:$0x1]
        %v1860 = vlaneseq
        %v1861 = vshrl.u32 %v1860, 7
        %v1862 = vsub.s32 0, %v1861
        %v1863 = vrot.slane %v1858, %v1862
        %v1865 = vmul.f32 %v1856, %v1863
        %v1866 = vmul.f32 %v1857, %v1863
        %v1867 = vld [vmem:[#allocation13] sm:$0x1]
        %v1869 = vlaneseq
        %v1870 = vshrl.u32 %v1869, 7
        %v1871 = vsub.s32 0, %v1870
        %v1872 = vrot.slane %v1867, %v1871
        %v1874 = vadd.f32 %v1865, %v1872
        %v1875 = vadd.f32 %v1866, %v1872
        %v1876 = vmax.f32 %v1874, 0.0
        %v1877 = vmax.f32 %v1875, 0.0
        %vm1878 = vcmp.ne.f32.partialorder %v1874, %v1874
        %vm1879 = vcmp.ne.f32.partialorder %v1875, %v1875
        %v1880 = vadd.f32 %v1874, 0.0
        %v1881 = vadd.f32 %v1875, 0.0
        %v1882 = vand.u32 2147483647, %v1874
        %v1883 = vand.u32 2147483647, %v1875
        %v1884 = vsub.f32 0.0, %v1882
        %v1885 = vsub.f32 0.0, %v1883
        %v1886 = vmul.f32 %v1884, 1.442695
        %v1887 = vpow.pop %v1886
        %v1888 = vmul.f32 %v1885, 1.442695
        %v1889 = vpow.pop %v1888
        %v1890 = vadd.f32 %v1887, 1.0
        %v1891 = vlog2.pop %v1890
        %v1892 = vmul.f32 %v1891, 0.6931472
        %v1893 = vmul.f32 -0.5, %v1887
        %v1894 = vadd.f32 %v1893, 1.0
        %v1895 = vmul.f32 %v1894, %v1887
        %v1896 = vand.u32 2147483647, %v1887
        %vm1897 = vcmp.lt.f32.partialorder %v1896, 0.0004427343
        %v1898 = vsel %vm1897, %v1895, %v1892
        %v1899 = vadd.f32 %v1889, 1.0
        %v1900 = vlog2.pop %v1899
        %v1901 = vmul.f32 %v1900, 0.6931472
        %v1902 = vmul.f32 -0.5, %v1889
        %v1903 = vadd.f32 %v1902, 1.0
        %v1904 = vmul.f32 %v1903, %v1889
        %v1905 = vand.u32 2147483647, %v1889
        %vm1906 = vcmp.lt.f32.partialorder %v1905, 0.0004427343
        %v1907 = vsel %vm1906, %v1904, %v1901
        %v1908 = vadd.f32 %v1876, %v1898
        %v1909 = vadd.f32 %v1877, %v1907
        %v1910 = vsel %vm1878, %v1880, %v1908
        %v1911 = vsel %vm1879, %v1881, %v1909
        %v1912 = vtanh.pop %v1910
        %v1913 = vtanh.pop %v1911
        %v1914 = vmul.f32 %v1874, %v1912
        %v1915 = vmul.f32 %v1875, %v1913
        %v1916 = vadd.f32 %v1914, %v1525
        %v1917 = vadd.f32 %v1915, %v1528
        %v1918 = vpack.c.bf16 %v1917, %v1916
        %v1919 = vld [vmem:[%s27] sm:$0xf]
        %v1920 = vld [vmem:[%s27 + $0x4] sm:$0xf]
        %v1923 = vunpack.c.l.b16 %v1919
        %v1924 = vunpack.c.l.b16 %v1920
        %v1925 = vpack.c.b16 %v1924, %v1923
        %v1928 = vsel %vm1531, %v1918, 0
        %1930 = vmatprep.subr.bf16.mxu0 0
        %1931 = vmatpush1.bf16.msra.mxu0 0
        %1932 = vmatprep.subr.bf16.mxu0 0
        %1933 = vmatpush1.bf16.msra.mxu0 0
        %1934 = vmatprep.subr.bf16.mxu0 0
        %1935 = vmatpush1.bf16.msra.mxu0 0
        %1936 = vmatprep.subr.bf16.mxu0 0
        %1937 = vmatpush1.bf16.msra.mxu0 0
        %1938 = vmatprep.subr.bf16.mxu0 0
        %1939 = vmatpush1.bf16.msra.mxu0 0
        %1940 = vmatprep.subr.bf16.mxu0 0
        %1941 = vmatpush1.bf16.msra.mxu0 0
        %1942 = vmatprep.subr.bf16.mxu0 0
        %1943 = vmatpush1.bf16.msra.mxu0 0
        %1944 = vmatprep.subr.bf16.mxu0 0
        %1945 = vmatpush1.bf16.msra.mxu0 %v1925
        %1946 = vmatprep.subr.bf16.mxu0 0
        %1947 = vmatpush2.bf16.msra.mxu0 0
        %1948 = vmatprep.subr.bf16.mxu0 0
        %1949 = vmatpush2.bf16.msra.mxu0 0
        %1950 = vmatprep.subr.bf16.mxu0 0
        %1951 = vmatpush2.bf16.msra.mxu0 0
        %1952 = vmatprep.subr.bf16.mxu0 0
        %1953 = vmatpush2.bf16.msra.mxu0 0
        %1954 = vmatprep.subr.bf16.mxu0 0
        %1955 = vmatpush2.bf16.msra.mxu0 0
        %1956 = vmatprep.subr.bf16.mxu0 0
        %1957 = vmatpush2.bf16.msra.mxu0 0
        %1958 = vmatprep.subr.bf16.mxu0 0
        %1959 = vmatpush2.bf16.msra.mxu0 0
        %1960 = vmatprep.subr.bf16.mxu0 0
        %1961 = vmatpush2.bf16.msra.mxu0 0
        %1962 = vmatprep.mubr.bf16.mxu0 0
        %1963 = vmatmul.mubr.bf16.gmra.mxu0 %v1928
        %v1964 = vpop.f32.mrf.mxu0
        %v1965 = vadd.f32 0.0, %v1964
        %v1966 = vpop.f32.mrf.mxu0
        %v1967 = vpop.f32.mrf.mxu0
        %v1968 = vadd.f32 0.0, %v1967
        %v1969 = vpop.f32.mrf.mxu0
        %1970 = vdwg.mxu0
        %s1971 = scalar_lea.vmem %s27, 8
        %v1972 = vld [vmem:[%s1971] sm:$0xf]
        %v1973 = vld [vmem:[%s1971 + $0x4] sm:$0xf]
        %v1976 = vunpack.c.l.b16 %v1972
        %v1977 = vunpack.c.l.b16 %v1973
        %v1978 = vpack.c.b16 %v1977, %v1976
        %1980 = vmatprep.subr.bf16.mxu0 0
        %1981 = vmatpush1.bf16.msra.mxu0 0
        %1982 = vmatprep.subr.bf16.mxu0 0
        %1983 = vmatpush1.bf16.msra.mxu0 0
        %1984 = vmatprep.subr.bf16.mxu0 0
        %1985 = vmatpush1.bf16.msra.mxu0 0
        %1986 = vmatprep.subr.bf16.mxu0 0
        %1987 = vmatpush1.bf16.msra.mxu0 0
        %1988 = vmatprep.subr.bf16.mxu0 0
        %1989 = vmatpush1.bf16.msra.mxu0 0
        %1990 = vmatprep.subr.bf16.mxu0 0
        %1991 = vmatpush1.bf16.msra.mxu0 0
        %1992 = vmatprep.subr.bf16.mxu0 0
        %1993 = vmatpush1.bf16.msra.mxu0 0
        %1994 = vmatprep.subr.bf16.mxu0 0
        %1995 = vmatpush1.bf16.msra.mxu0 %v1978
        %1996 = vmatprep.subr.bf16.mxu0 0
        %1997 = vmatpush2.bf16.msra.mxu0 0
        %1998 = vmatprep.subr.bf16.mxu0 0
        %1999 = vmatpush2.bf16.msra.mxu0 0
        %2000 = vmatprep.subr.bf16.mxu0 0
        %2001 = vmatpush2.bf16.msra.mxu0 0
        %2002 = vmatprep.subr.bf16.mxu0 0
        %2003 = vmatpush2.bf16.msra.mxu0 0
        %2004 = vmatprep.subr.bf16.mxu0 0
        %2005 = vmatpush2.bf16.msra.mxu0 0
        %2006 = vmatprep.subr.bf16.mxu0 0
        %2007 = vmatpush2.bf16.msra.mxu0 0
        %2008 = vmatprep.subr.bf16.mxu0 0
        %2009 = vmatpush2.bf16.msra.mxu0 0
        %2010 = vmatprep.subr.bf16.mxu0 0
        %2011 = vmatpush2.bf16.msra.mxu0 0
        %2012 = vmatprep.mubr.bf16.mxu0 0
        %2013 = vmatmul.mubr.bf16.gmra.mxu0 %v1928
        %v2014 = vpop.f32.mrf.mxu0
        %v2015 = vadd.f32 0.0, %v2014
        %v2016 = vpop.f32.mrf.mxu0
        %v2017 = vpop.f32.mrf.mxu0
        %v2018 = vadd.f32 0.0, %v2017
        %v2019 = vpop.f32.mrf.mxu0
        %2020 = vdwg.mxu0
        %s2021 = scalar_lea.vmem %s27, 16
        %v2022 = vld [vmem:[%s2021] sm:$0xf]
        %v2023 = vld [vmem:[%s2021 + $0x4] sm:$0xf]
        %v2026 = vunpack.c.l.b16 %v2022
        %v2027 = vunpack.c.l.b16 %v2023
        %v2028 = vpack.c.b16 %v2027, %v2026
        %2030 = vmatprep.subr.bf16.mxu0 0
        %2031 = vmatpush1.bf16.msra.mxu0 0
        %2032 = vmatprep.subr.bf16.mxu0 0
        %2033 = vmatpush1.bf16.msra.mxu0 0
        %2034 = vmatprep.subr.bf16.mxu0 0
        %2035 = vmatpush1.bf16.msra.mxu0 0
        %2036 = vmatprep.subr.bf16.mxu0 0
        %2037 = vmatpush1.bf16.msra.mxu0 0
        %2038 = vmatprep.subr.bf16.mxu0 0
        %2039 = vmatpush1.bf16.msra.mxu0 0
        %2040 = vmatprep.subr.bf16.mxu0 0
        %2041 = vmatpush1.bf16.msra.mxu0 0
        %2042 = vmatprep.subr.bf16.mxu0 0
        %2043 = vmatpush1.bf16.msra.mxu0 0
        %2044 = vmatprep.subr.bf16.mxu0 0
        %2045 = vmatpush1.bf16.msra.mxu0 %v2028
        %2046 = vmatprep.subr.bf16.mxu0 0
        %2047 = vmatpush2.bf16.msra.mxu0 0
        %2048 = vmatprep.subr.bf16.mxu0 0
        %2049 = vmatpush2.bf16.msra.mxu0 0
        %2050 = vmatprep.subr.bf16.mxu0 0
        %2051 = vmatpush2.bf16.msra.mxu0 0
        %2052 = vmatprep.subr.bf16.mxu0 0
        %2053 = vmatpush2.bf16.msra.mxu0 0
        %2054 = vmatprep.subr.bf16.mxu0 0
        %2055 = vmatpush2.bf16.msra.mxu0 0
        %2056 = vmatprep.subr.bf16.mxu0 0
        %2057 = vmatpush2.bf16.msra.mxu0 0
        %2058 = vmatprep.subr.bf16.mxu0 0
        %2059 = vmatpush2.bf16.msra.mxu0 0
        %2060 = vmatprep.subr.bf16.mxu0 0
        %2061 = vmatpush2.bf16.msra.mxu0 0
        %2062 = vmatprep.mubr.bf16.mxu0 0
        %2063 = vmatmul.mubr.bf16.gmra.mxu0 %v1928
        %v2064 = vpop.f32.mrf.mxu0
        %v2065 = vadd.f32 0.0, %v2064
        %v2066 = vpop.f32.mrf.mxu0
        %v2067 = vpop.f32.mrf.mxu0
        %v2068 = vadd.f32 0.0, %v2067
        %v2069 = vpop.f32.mrf.mxu0
        %2070 = vdwg.mxu0
        %v2071 = vrot.slane %v1965, 7
        %v2072 = vrot.slane %v1968, 7
        %v2073 = vsel %vm1446, %v2071, %v2072
        %v2074 = vsel %vm1446, %v2072, %v2071
        %v2075 = vsel %vm1451, %v2074, 0.0
        %v2076 = vsel %vm1452, %v2073, 0.0
        %v2077 = vrot.slane %v2065, 1
        %v2078 = vrot.slane %v2068, 1
        %v2079 = vsel %vm1457, %v2077, %v2078
        %v2080 = vsel %vm1457, %v2078, %v2077
        %v2081 = vsel %vm1462, %v2079, 0.0
        %v2082 = vsel %vm1463, %v2080, 0.0
        %v2083 = vadd.f32 %v2075, %v2015
        %v2084 = vadd.f32 %v2076, %v2018
        %v2085 = vadd.f32 %v2083, %v2081
        %v2086 = vadd.f32 %v2084, %v2082
        %v2087 = vld [vmem:[#allocation15] sm:$0x1]
        %v2089 = vlaneseq
        %v2090 = vshrl.u32 %v2089, 7
        %v2091 = vsub.s32 0, %v2090
        %v2092 = vrot.slane %v2087, %v2091
        %v2094 = vadd.f32 %v2085, %v2092
        %v2095 = vadd.f32 %v2086, %v2092
        %v2096 = vsel %vm1531, %v2094, 0.0
        %2097 = vadd.xlane.f32.xlu0 %v2096
        %v2098 = vpop.xlane.xlu0 %2097
        %v2099 = vsel %vm1531, %v2095, 0.0
        %2100 = vadd.xlane.f32.xlu0 %v2099
        %v2101 = vpop.xlane.xlu0 %2100
        %v2102 = vadd.f32 %v2098, %v2101
        %v2103 = vrot.slane %v2102, 4
        %v2104 = vadd.f32 %v2102, %v2103
        %v2105 = vrot.slane %v2104, 2
        %v2106 = vadd.f32 %v2104, %v2105
        %v2107 = vrot.slane %v2106, 1
        %v2108 = vadd.f32 %v2106, %v2107
        %v2109 = vmul.f32 %v2108, 0.00390625
        %v2110 = vsub.f32 %v2094, %v2109
        %v2111 = vsub.f32 %v2095, %v2109
        %v2112 = vmul.f32 %v2110, %v2110
        %v2113 = vmul.f32 %v2111, %v2111
        %v2114 = vsel %vm1531, %v2112, 0.0
        %2115 = vadd.xlane.f32.xlu0 %v2114
        %v2116 = vpop.xlane.xlu0 %2115
        %v2117 = vsel %vm1531, %v2113, 0.0
        %2118 = vadd.xlane.f32.xlu0 %v2117
        %v2119 = vpop.xlane.xlu0 %2118
        %v2120 = vadd.f32 %v2116, %v2119
        %v2121 = vrot.slane %v2120, 4
        %v2122 = vadd.f32 %v2120, %v2121
        %v2123 = vrot.slane %v2122, 2
        %v2124 = vadd.f32 %v2122, %v2123
        %v2125 = vrot.slane %v2124, 1
        %v2126 = vadd.f32 %v2124, %v2125
        %v2127 = vmul.f32 %v2126, 0.00390625
        %v2128 = vadd.f32 %v2127, 1e-05
        %v2129 = vrsqrt.pop %v2128
        %v2130 = vmul.f32 %v2110, %v2129
        %v2131 = vmul.f32 %v2111, %v2129
        %v2132 = vld [vmem:[%s31] sm:$0x1]
        %v2134 = vlaneseq
        %v2135 = vshrl.u32 %v2134, 7
        %v2136 = vsub.s32 0, %v2135
        %v2137 = vrot.slane %v2132, %v2136
        %v2139 = vmul.f32 %v2130, %v2137
        %v2140 = vmul.f32 %v2131, %v2137
        %v2141 = vld [vmem:[%s33] sm:$0x1]
        %v2143 = vlaneseq
        %v2144 = vshrl.u32 %v2143, 7
        %v2145 = vsub.s32 0, %v2144
        %v2146 = vrot.slane %v2141, %v2145
        %v2148 = vadd.f32 %v2139, %v2146
        %v2149 = vadd.f32 %v2140, %v2146
        %v2150 = vmax.f32 %v2148, 0.0
        %v2151 = vmax.f32 %v2149, 0.0
        %vm2152 = vcmp.ne.f32.partialorder %v2148, %v2148
        %vm2153 = vcmp.ne.f32.partialorder %v2149, %v2149
        %v2154 = vadd.f32 %v2148, 0.0
        %v2155 = vadd.f32 %v2149, 0.0
        %v2156 = vand.u32 2147483647, %v2148
        %v2157 = vand.u32 2147483647, %v2149
        %v2158 = vsub.f32 0.0, %v2156
        %v2159 = vsub.f32 0.0, %v2157
        %v2160 = vmul.f32 %v2158, 1.442695
        %v2161 = vpow.pop %v2160
        %v2162 = vmul.f32 %v2159, 1.442695
        %v2163 = vpow.pop %v2162
        %v2164 = vadd.f32 %v2161, 1.0
        %v2165 = vlog2.pop %v2164
        %v2166 = vmul.f32 %v2165, 0.6931472
        %v2167 = vmul.f32 -0.5, %v2161
        %v2168 = vadd.f32 %v2167, 1.0
        %v2169 = vmul.f32 %v2168, %v2161
        %v2170 = vand.u32 2147483647, %v2161
        %vm2171 = vcmp.lt.f32.partialorder %v2170, 0.0004427343
        %v2172 = vsel %vm2171, %v2169, %v2166
        %v2173 = vadd.f32 %v2163, 1.0
        %v2174 = vlog2.pop %v2173
        %v2175 = vmul.f32 %v2174, 0.6931472
        %v2176 = vmul.f32 -0.5, %v2163
        %v2177 = vadd.f32 %v2176, 1.0
        %v2178 = vmul.f32 %v2177, %v2163
        %v2179 = vand.u32 2147483647, %v2163
        %vm2180 = vcmp.lt.f32.partialorder %v2179, 0.0004427343
        %v2181 = vsel %vm2180, %v2178, %v2175
        %v2182 = vadd.f32 %v2150, %v2172
        %v2183 = vadd.f32 %v2151, %v2181
        %v2184 = vsel %vm2152, %v2154, %v2182
        %v2185 = vsel %vm2153, %v2155, %v2183
        %v2186 = vtanh.pop %v2184
        %v2187 = vtanh.pop %v2185
        %v2188 = vmul.f32 %v2148, %v2186
        %v2189 = vmul.f32 %v2149, %v2187
        %v2190 = vld [vmem:[%s1276] sm:$0x1]
        %v2192 = vlaneseq
        %v2193 = vshrl.u32 %v2192, 7
        %v2194 = vsub.s32 0, %v2193
        %v2195 = vrot.slane %v2190, %v2194
        %v2197 = vmul.f32 %v2195, %v2188
        %v2198 = vmul.f32 %v2195, %v2189
        %v2199 = vld [vmem:[%s1279] sm:$0x1]
        %v2201 = vlaneseq
        %v2202 = vshrl.u32 %v2201, 7
        %v2203 = vsub.s32 0, %v2202
        %v2204 = vrot.slane %v2199, %v2203
        %v2206 = vadd.f32 %v2197, %v2204
        %v2207 = vadd.f32 %v2198, %v2204
        %v2208 = vpack.c.bf16 %v2207, %v2206
        %v2209 = vld [vmem:[%s39] sm:$0xf]
        %v2210 = vld [vmem:[%s39 + $0x4] sm:$0xf]
        %v2213 = vunpack.c.l.b16 %v2209
        %v2214 = vunpack.c.l.b16 %v2210
        %v2215 = vpack.c.b16 %v2214, %v2213
        %v2218 = vsel %vm1531, %v2208, 0
        %2220 = vmatprep.subr.bf16.mxu0 0
        %2221 = vmatpush1.bf16.msra.mxu0 0
        %2222 = vmatprep.subr.bf16.mxu0 0
        %2223 = vmatpush1.bf16.msra.mxu0 0
        %2224 = vmatprep.subr.bf16.mxu0 0
        %2225 = vmatpush1.bf16.msra.mxu0 0
        %2226 = vmatprep.subr.bf16.mxu0 0
        %2227 = vmatpush1.bf16.msra.mxu0 0
        %2228 = vmatprep.subr.bf16.mxu0 0
        %2229 = vmatpush1.bf16.msra.mxu0 0
        %2230 = vmatprep.subr.bf16.mxu0 0
        %2231 = vmatpush1.bf16.msra.mxu0 0
        %2232 = vmatprep.subr.bf16.mxu0 0
        %2233 = vmatpush1.bf16.msra.mxu0 0
        %2234 = vmatprep.subr.bf16.mxu0 0
        %2235 = vmatpush1.bf16.msra.mxu0 %v2215
        %2236 = vmatprep.subr.bf16.mxu0 0
        %2237 = vmatpush2.bf16.msra.mxu0 0
        %2238 = vmatprep.subr.bf16.mxu0 0
        %2239 = vmatpush2.bf16.msra.mxu0 0
        %2240 = vmatprep.subr.bf16.mxu0 0
        %2241 = vmatpush2.bf16.msra.mxu0 0
        %2242 = vmatprep.subr.bf16.mxu0 0
        %2243 = vmatpush2.bf16.msra.mxu0 0
        %2244 = vmatprep.subr.bf16.mxu0 0
        %2245 = vmatpush2.bf16.msra.mxu0 0
        %2246 = vmatprep.subr.bf16.mxu0 0
        %2247 = vmatpush2.bf16.msra.mxu0 0
        %2248 = vmatprep.subr.bf16.mxu0 0
        %2249 = vmatpush2.bf16.msra.mxu0 0
        %2250 = vmatprep.subr.bf16.mxu0 0
        %2251 = vmatpush2.bf16.msra.mxu0 0
        %2252 = vmatprep.mubr.bf16.mxu0 0
        %2253 = vmatmul.mubr.bf16.gmra.mxu0 %v2218
        %v2254 = vpop.f32.mrf.mxu0
        %v2255 = vadd.f32 0.0, %v2254
        %v2256 = vpop.f32.mrf.mxu0
        %v2257 = vpop.f32.mrf.mxu0
        %v2258 = vadd.f32 0.0, %v2257
        %v2259 = vpop.f32.mrf.mxu0
        %2260 = vdwg.mxu0
        %s2261 = scalar_lea.vmem %s39, 8
        %v2262 = vld [vmem:[%s2261] sm:$0xf]
        %v2263 = vld [vmem:[%s2261 + $0x4] sm:$0xf]
        %v2266 = vunpack.c.l.b16 %v2262
        %v2267 = vunpack.c.l.b16 %v2263
        %v2268 = vpack.c.b16 %v2267, %v2266
        %2270 = vmatprep.subr.bf16.mxu0 0
        %2271 = vmatpush1.bf16.msra.mxu0 0
        %2272 = vmatprep.subr.bf16.mxu0 0
        %2273 = vmatpush1.bf16.msra.mxu0 0
        %2274 = vmatprep.subr.bf16.mxu0 0
        %2275 = vmatpush1.bf16.msra.mxu0 0
        %2276 = vmatprep.subr.bf16.mxu0 0
        %2277 = vmatpush1.bf16.msra.mxu0 0
        %2278 = vmatprep.subr.bf16.mxu0 0
        %2279 = vmatpush1.bf16.msra.mxu0 0
        %2280 = vmatprep.subr.bf16.mxu0 0
        %2281 = vmatpush1.bf16.msra.mxu0 0
        %2282 = vmatprep.subr.bf16.mxu0 0
        %2283 = vmatpush1.bf16.msra.mxu0 0
        %2284 = vmatprep.subr.bf16.mxu0 0
        %2285 = vmatpush1.bf16.msra.mxu0 %v2268
        %2286 = vmatprep.subr.bf16.mxu0 0
        %2287 = vmatpush2.bf16.msra.mxu0 0
        %2288 = vmatprep.subr.bf16.mxu0 0
        %2289 = vmatpush2.bf16.msra.mxu0 0
        %2290 = vmatprep.subr.bf16.mxu0 0
        %2291 = vmatpush2.bf16.msra.mxu0 0
        %2292 = vmatprep.subr.bf16.mxu0 0
        %2293 = vmatpush2.bf16.msra.mxu0 0
        %2294 = vmatprep.subr.bf16.mxu0 0
        %2295 = vmatpush2.bf16.msra.mxu0 0
        %2296 = vmatprep.subr.bf16.mxu0 0
        %2297 = vmatpush2.bf16.msra.mxu0 0
        %2298 = vmatprep.subr.bf16.mxu0 0
        %2299 = vmatpush2.bf16.msra.mxu0 0
        %2300 = vmatprep.subr.bf16.mxu0 0
        %2301 = vmatpush2.bf16.msra.mxu0 0
        %2302 = vmatprep.mubr.bf16.mxu0 0
        %2303 = vmatmul.mubr.bf16.gmra.mxu0 %v2218
        %v2304 = vpop.f32.mrf.mxu0
        %v2305 = vadd.f32 0.0, %v2304
        %v2306 = vpop.f32.mrf.mxu0
        %v2307 = vpop.f32.mrf.mxu0
        %v2308 = vadd.f32 0.0, %v2307
        %v2309 = vpop.f32.mrf.mxu0
        %2310 = vdwg.mxu0
        %s2311 = scalar_lea.vmem %s39, 16
        %v2312 = vld [vmem:[%s2311] sm:$0xf]
        %v2313 = vld [vmem:[%s2311 + $0x4] sm:$0xf]
        %v2316 = vunpack.c.l.b16 %v2312
        %v2317 = vunpack.c.l.b16 %v2313
        %v2318 = vpack.c.b16 %v2317, %v2316
        %2320 = vmatprep.subr.bf16.mxu0 0
        %2321 = vmatpush1.bf16.msra.mxu0 0
        %2322 = vmatprep.subr.bf16.mxu0 0
        %2323 = vmatpush1.bf16.msra.mxu0 0
        %2324 = vmatprep.subr.bf16.mxu0 0
        %2325 = vmatpush1.bf16.msra.mxu0 0
        %2326 = vmatprep.subr.bf16.mxu0 0
        %2327 = vmatpush1.bf16.msra.mxu0 0
        %2328 = vmatprep.subr.bf16.mxu0 0
        %2329 = vmatpush1.bf16.msra.mxu0 0
        %2330 = vmatprep.subr.bf16.mxu0 0
        %2331 = vmatpush1.bf16.msra.mxu0 0
        %2332 = vmatprep.subr.bf16.mxu0 0
        %2333 = vmatpush1.bf16.msra.mxu0 0
        %2334 = vmatprep.subr.bf16.mxu0 0
        %2335 = vmatpush1.bf16.msra.mxu0 %v2318
        %2336 = vmatprep.subr.bf16.mxu0 0
        %2337 = vmatpush2.bf16.msra.mxu0 0
        %2338 = vmatprep.subr.bf16.mxu0 0
        %2339 = vmatpush2.bf16.msra.mxu0 0
        %2340 = vmatprep.subr.bf16.mxu0 0
        %2341 = vmatpush2.bf16.msra.mxu0 0
        %2342 = vmatprep.subr.bf16.mxu0 0
        %2343 = vmatpush2.bf16.msra.mxu0 0
        %2344 = vmatprep.subr.bf16.mxu0 0
        %2345 = vmatpush2.bf16.msra.mxu0 0
        %2346 = vmatprep.subr.bf16.mxu0 0
        %2347 = vmatpush2.bf16.msra.mxu0 0
        %2348 = vmatprep.subr.bf16.mxu0 0
        %2349 = vmatpush2.bf16.msra.mxu0 0
        %2350 = vmatprep.subr.bf16.mxu0 0
        %2351 = vmatpush2.bf16.msra.mxu0 0
        %2352 = vmatprep.mubr.bf16.mxu0 0
        %2353 = vmatmul.mubr.bf16.gmra.mxu0 %v2218
        %v2354 = vpop.f32.mrf.mxu0
        %v2355 = vadd.f32 0.0, %v2354
        %v2356 = vpop.f32.mrf.mxu0
        %v2357 = vpop.f32.mrf.mxu0
        %v2358 = vadd.f32 0.0, %v2357
        %v2359 = vpop.f32.mrf.mxu0
        %2360 = vdwg.mxu0
        %v2361 = vrot.slane %v2255, 7
        %v2362 = vrot.slane %v2258, 7
        %v2363 = vsel %vm1446, %v2361, %v2362
        %v2364 = vsel %vm1446, %v2362, %v2361
        %v2365 = vsel %vm1451, %v2364, 0.0
        %v2366 = vsel %vm1452, %v2363, 0.0
        %v2367 = vrot.slane %v2355, 1
        %v2368 = vrot.slane %v2358, 1
        %v2369 = vsel %vm1457, %v2367, %v2368
        %v2370 = vsel %vm1457, %v2368, %v2367
        %v2371 = vsel %vm1462, %v2369, 0.0
        %v2372 = vsel %vm1463, %v2370, 0.0
        %v2373 = vadd.f32 %v2365, %v2305
        %v2374 = vadd.f32 %v2366, %v2308
        %v2375 = vadd.f32 %v2373, %v2371
        %v2376 = vadd.f32 %v2374, %v2372
        %v2377 = vld [vmem:[%s41] sm:$0x1]
        %v2379 = vlaneseq
        %v2380 = vshrl.u32 %v2379, 7
        %v2381 = vsub.s32 0, %v2380
        %v2382 = vrot.slane %v2377, %v2381
        %v2384 = vadd.f32 %v2375, %v2382
        %v2385 = vadd.f32 %v2376, %v2382
        %v2386 = vsel %vm1531, %v2384, 0.0
        %2387 = vadd.xlane.f32.xlu0 %v2386
        %v2388 = vpop.xlane.xlu0 %2387
        %v2389 = vsel %vm1531, %v2385, 0.0
        %2390 = vadd.xlane.f32.xlu0 %v2389
        %v2391 = vpop.xlane.xlu0 %2390
        %v2392 = vadd.f32 %v2388, %v2391
        %v2393 = vrot.slane %v2392, 4
        %v2394 = vadd.f32 %v2392, %v2393
        %v2395 = vrot.slane %v2394, 2
        %v2396 = vadd.f32 %v2394, %v2395
        %v2397 = vrot.slane %v2396, 1
        %v2398 = vadd.f32 %v2396, %v2397
        %v2399 = vmul.f32 %v2398, 0.00390625
        %v2400 = vsub.f32 %v2384, %v2399
        %v2401 = vsub.f32 %v2385, %v2399
        %v2402 = vmul.f32 %v2400, %v2400
        %v2403 = vmul.f32 %v2401, %v2401
        %v2404 = vsel %vm1531, %v2402, 0.0
        %2405 = vadd.xlane.f32.xlu0 %v2404
        %v2406 = vpop.xlane.xlu0 %2405
        %v2407 = vsel %vm1531, %v2403, 0.0
        %2408 = vadd.xlane.f32.xlu0 %v2407
        %v2409 = vpop.xlane.xlu0 %2408
        %v2410 = vadd.f32 %v2406, %v2409
        %v2411 = vrot.slane %v2410, 4
        %v2412 = vadd.f32 %v2410, %v2411
        %v2413 = vrot.slane %v2412, 2
        %v2414 = vadd.f32 %v2412, %v2413
        %v2415 = vrot.slane %v2414, 1
        %v2416 = vadd.f32 %v2414, %v2415
        %v2417 = vmul.f32 %v2416, 0.00390625
        %v2418 = vadd.f32 %v2417, 1e-05
        %v2419 = vrsqrt.pop %v2418
        %v2420 = vmul.f32 %v2400, %v2419
        %v2421 = vmul.f32 %v2401, %v2419
        %v2422 = vld [vmem:[%s43] sm:$0x1]
        %v2424 = vlaneseq
        %v2425 = vshrl.u32 %v2424, 7
        %v2426 = vsub.s32 0, %v2425
        %v2427 = vrot.slane %v2422, %v2426
        %v2429 = vmul.f32 %v2420, %v2427
        %v2430 = vmul.f32 %v2421, %v2427
        %v2431 = vld [vmem:[%s45] sm:$0x1]
        %v2433 = vlaneseq
        %v2434 = vshrl.u32 %v2433, 7
        %v2435 = vsub.s32 0, %v2434
        %v2436 = vrot.slane %v2431, %v2435
        %v2438 = vadd.f32 %v2429, %v2436
        %v2439 = vadd.f32 %v2430, %v2436
        %v2440 = vmax.f32 %v2438, 0.0
        %v2441 = vmax.f32 %v2439, 0.0
        %vm2442 = vcmp.ne.f32.partialorder %v2438, %v2438
        %vm2443 = vcmp.ne.f32.partialorder %v2439, %v2439
        %v2444 = vadd.f32 %v2438, 0.0
        %v2445 = vadd.f32 %v2439, 0.0
        %v2446 = vand.u32 2147483647, %v2438
        %v2447 = vand.u32 2147483647, %v2439
        %v2448 = vsub.f32 0.0, %v2446
        %v2449 = vsub.f32 0.0, %v2447
        %v2450 = vmul.f32 %v2448, 1.442695
        %v2451 = vpow.pop %v2450
        %v2452 = vmul.f32 %v2449, 1.442695
        %v2453 = vpow.pop %v2452
        %v2454 = vadd.f32 %v2451, 1.0
        %v2455 = vlog2.pop %v2454
        %v2456 = vmul.f32 %v2455, 0.6931472
        %v2457 = vmul.f32 -0.5, %v2451
        %v2458 = vadd.f32 %v2457, 1.0
        %v2459 = vmul.f32 %v2458, %v2451
        %v2460 = vand.u32 2147483647, %v2451
        %vm2461 = vcmp.lt.f32.partialorder %v2460, 0.0004427343
        %v2462 = vsel %vm2461, %v2459, %v2456
        %v2463 = vadd.f32 %v2453, 1.0
        %v2464 = vlog2.pop %v2463
        %v2465 = vmul.f32 %v2464, 0.6931472
        %v2466 = vmul.f32 -0.5, %v2453
        %v2467 = vadd.f32 %v2466, 1.0
        %v2468 = vmul.f32 %v2467, %v2453
        %v2469 = vand.u32 2147483647, %v2453
        %vm2470 = vcmp.lt.f32.partialorder %v2469, 0.0004427343
        %v2471 = vsel %vm2470, %v2468, %v2465
        %v2472 = vadd.f32 %v2440, %v2462
        %v2473 = vadd.f32 %v2441, %v2471
        %v2474 = vsel %vm2442, %v2444, %v2472
        %v2475 = vsel %vm2443, %v2445, %v2473
        %v2476 = vtanh.pop %v2474
        %v2477 = vtanh.pop %v2475
        %v2478 = vmul.f32 %v2438, %v2476
        %v2479 = vmul.f32 %v2439, %v2477
        %v2480 = vadd.f32 %v2478, %v1916
        %v2481 = vadd.f32 %v2479, %v1917
        %v2482 = vpack.c.bf16 %v2481, %v2480
        %v2483 = vld [vmem:[%s47] sm:$0xf]
        %v2484 = vld [vmem:[%s47 + $0x4] sm:$0xf]
        %v2487 = vunpack.c.l.b16 %v2483
        %v2488 = vunpack.c.l.b16 %v2484
        %v2489 = vpack.c.b16 %v2488, %v2487
        %v2492 = vsel %vm1531, %v2482, 0
        %2494 = vmatprep.subr.bf16.mxu0 0
        %2495 = vmatpush1.bf16.msra.mxu0 0
        %2496 = vmatprep.subr.bf16.mxu0 0
        %2497 = vmatpush1.bf16.msra.mxu0 0
        %2498 = vmatprep.subr.bf16.mxu0 0
        %2499 = vmatpush1.bf16.msra.mxu0 0
        %2500 = vmatprep.subr.bf16.mxu0 0
        %2501 = vmatpush1.bf16.msra.mxu0 0
        %2502 = vmatprep.subr.bf16.mxu0 0
        %2503 = vmatpush1.bf16.msra.mxu0 0
        %2504 = vmatprep.subr.bf16.mxu0 0
        %2505 = vmatpush1.bf16.msra.mxu0 0
        %2506 = vmatprep.subr.bf16.mxu0 0
        %2507 = vmatpush1.bf16.msra.mxu0 0
        %2508 = vmatprep.subr.bf16.mxu0 0
        %2509 = vmatpush1.bf16.msra.mxu0 %v2489
        %2510 = vmatprep.subr.bf16.mxu0 0
        %2511 = vmatpush2.bf16.msra.mxu0 0
        %2512 = vmatprep.subr.bf16.mxu0 0
        %2513 = vmatpush2.bf16.msra.mxu0 0
        %2514 = vmatprep.subr.bf16.mxu0 0
        %2515 = vmatpush2.bf16.msra.mxu0 0
        %2516 = vmatprep.subr.bf16.mxu0 0
        %2517 = vmatpush2.bf16.msra.mxu0 0
        %2518 = vmatprep.subr.bf16.mxu0 0
        %2519 = vmatpush2.bf16.msra.mxu0 0
        %2520 = vmatprep.subr.bf16.mxu0 0
        %2521 = vmatpush2.bf16.msra.mxu0 0
        %2522 = vmatprep.subr.bf16.mxu0 0
        %2523 = vmatpush2.bf16.msra.mxu0 0
        %2524 = vmatprep.subr.bf16.mxu0 0
        %2525 = vmatpush2.bf16.msra.mxu0 0
        %2526 = vmatprep.mubr.bf16.mxu0 0
        %2527 = vmatmul.mubr.bf16.gmra.mxu0 %v2492
        %v2528 = vpop.f32.mrf.mxu0
        %v2529 = vadd.f32 0.0, %v2528
        %v2530 = vpop.f32.mrf.mxu0
        %v2531 = vpop.f32.mrf.mxu0
        %v2532 = vadd.f32 0.0, %v2531
        %v2533 = vpop.f32.mrf.mxu0
        %2534 = vdwg.mxu0
        %s2535 = scalar_lea.vmem %s47, 8
        %v2536 = vld [vmem:[%s2535] sm:$0xf]
        %v2537 = vld [vmem:[%s2535 + $0x4] sm:$0xf]
        %v2540 = vunpack.c.l.b16 %v2536
        %v2541 = vunpack.c.l.b16 %v2537
        %v2542 = vpack.c.b16 %v2541, %v2540
        %2544 = vmatprep.subr.bf16.mxu0 0
        %2545 = vmatpush1.bf16.msra.mxu0 0
        %2546 = vmatprep.subr.bf16.mxu0 0
        %2547 = vmatpush1.bf16.msra.mxu0 0
        %2548 = vmatprep.subr.bf16.mxu0 0
        %2549 = vmatpush1.bf16.msra.mxu0 0
        %2550 = vmatprep.subr.bf16.mxu0 0
        %2551 = vmatpush1.bf16.msra.mxu0 0
        %2552 = vmatprep.subr.bf16.mxu0 0
        %2553 = vmatpush1.bf16.msra.mxu0 0
        %2554 = vmatprep.subr.bf16.mxu0 0
        %2555 = vmatpush1.bf16.msra.mxu0 0
        %2556 = vmatprep.subr.bf16.mxu0 0
        %2557 = vmatpush1.bf16.msra.mxu0 0
        %2558 = vmatprep.subr.bf16.mxu0 0
        %2559 = vmatpush1.bf16.msra.mxu0 %v2542
        %2560 = vmatprep.subr.bf16.mxu0 0
        %2561 = vmatpush2.bf16.msra.mxu0 0
        %2562 = vmatprep.subr.bf16.mxu0 0
        %2563 = vmatpush2.bf16.msra.mxu0 0
        %2564 = vmatprep.subr.bf16.mxu0 0
        %2565 = vmatpush2.bf16.msra.mxu0 0
        %2566 = vmatprep.subr.bf16.mxu0 0
        %2567 = vmatpush2.bf16.msra.mxu0 0
        %2568 = vmatprep.subr.bf16.mxu0 0
        %2569 = vmatpush2.bf16.msra.mxu0 0
        %2570 = vmatprep.subr.bf16.mxu0 0
        %2571 = vmatpush2.bf16.msra.mxu0 0
        %2572 = vmatprep.subr.bf16.mxu0 0
        %2573 = vmatpush2.bf16.msra.mxu0 0
        %2574 = vmatprep.subr.bf16.mxu0 0
        %2575 = vmatpush2.bf16.msra.mxu0 0
        %2576 = vmatprep.mubr.bf16.mxu0 0
        %2577 = vmatmul.mubr.bf16.gmra.mxu0 %v2492
        %v2578 = vpop.f32.mrf.mxu0
        %v2579 = vadd.f32 0.0, %v2578
        %v2580 = vpop.f32.mrf.mxu0
        %v2581 = vpop.f32.mrf.mxu0
        %v2582 = vadd.f32 0.0, %v2581
        %v2583 = vpop.f32.mrf.mxu0
        %2584 = vdwg.mxu0
        %s2585 = scalar_lea.vmem %s47, 16
        %v2586 = vld [vmem:[%s2585] sm:$0xf]
        %v2587 = vld [vmem:[%s2585 + $0x4] sm:$0xf]
        %v2590 = vunpack.c.l.b16 %v2586
        %v2591 = vunpack.c.l.b16 %v2587
        %v2592 = vpack.c.b16 %v2591, %v2590
        %2594 = vmatprep.subr.bf16.mxu0 0
        %2595 = vmatpush1.bf16.msra.mxu0 0
        %2596 = vmatprep.subr.bf16.mxu0 0
        %2597 = vmatpush1.bf16.msra.mxu0 0
        %2598 = vmatprep.subr.bf16.mxu0 0
        %2599 = vmatpush1.bf16.msra.mxu0 0
        %2600 = vmatprep.subr.bf16.mxu0 0
        %2601 = vmatpush1.bf16.msra.mxu0 0
        %2602 = vmatprep.subr.bf16.mxu0 0
        %2603 = vmatpush1.bf16.msra.mxu0 0
        %2604 = vmatprep.subr.bf16.mxu0 0
        %2605 = vmatpush1.bf16.msra.mxu0 0
        %2606 = vmatprep.subr.bf16.mxu0 0
        %2607 = vmatpush1.bf16.msra.mxu0 0
        %2608 = vmatprep.subr.bf16.mxu0 0
        %2609 = vmatpush1.bf16.msra.mxu0 %v2592
        %2610 = vmatprep.subr.bf16.mxu0 0
        %2611 = vmatpush2.bf16.msra.mxu0 0
        %2612 = vmatprep.subr.bf16.mxu0 0
        %2613 = vmatpush2.bf16.msra.mxu0 0
        %2614 = vmatprep.subr.bf16.mxu0 0
        %2615 = vmatpush2.bf16.msra.mxu0 0
        %2616 = vmatprep.subr.bf16.mxu0 0
        %2617 = vmatpush2.bf16.msra.mxu0 0
        %2618 = vmatprep.subr.bf16.mxu0 0
        %2619 = vmatpush2.bf16.msra.mxu0 0
        %2620 = vmatprep.subr.bf16.mxu0 0
        %2621 = vmatpush2.bf16.msra.mxu0 0
        %2622 = vmatprep.subr.bf16.mxu0 0
        %2623 = vmatpush2.bf16.msra.mxu0 0
        %2624 = vmatprep.subr.bf16.mxu0 0
        %2625 = vmatpush2.bf16.msra.mxu0 0
        %2626 = vmatprep.mubr.bf16.mxu0 0
        %2627 = vmatmul.mubr.bf16.gmra.mxu0 %v2492
        %v2628 = vpop.f32.mrf.mxu0
        %v2629 = vadd.f32 0.0, %v2628
        %v2630 = vpop.f32.mrf.mxu0
        %v2631 = vpop.f32.mrf.mxu0
        %v2632 = vadd.f32 0.0, %v2631
        %v2633 = vpop.f32.mrf.mxu0
        %2634 = vdwg.mxu0
        %v2635 = vrot.slane %v2529, 7
        %v2636 = vrot.slane %v2532, 7
        %v2637 = vsel %vm1446, %v2635, %v2636
        %v2638 = vsel %vm1446, %v2636, %v2635
        %v2639 = vsel %vm1451, %v2638, 0.0
        %v2640 = vsel %vm1452, %v2637, 0.0
        %v2641 = vrot.slane %v2629, 1
        %v2642 = vrot.slane %v2632, 1
        %v2643 = vsel %vm1457, %v2641, %v2642
        %v2644 = vsel %vm1457, %v2642, %v2641
        %v2645 = vsel %vm1462, %v2643, 0.0
        %v2646 = vsel %vm1463, %v2644, 0.0
        %v2647 = vadd.f32 %v2639, %v2579
        %v2648 = vadd.f32 %v2640, %v2582
        %v2649 = vadd.f32 %v2647, %v2645
        %v2650 = vadd.f32 %v2648, %v2646
        %v2651 = vld [vmem:[%s49] sm:$0x1]
        %v2653 = vlaneseq
        %v2654 = vshrl.u32 %v2653, 7
        %v2655 = vsub.s32 0, %v2654
        %v2656 = vrot.slane %v2651, %v2655
        %v2658 = vadd.f32 %v2649, %v2656
        %v2659 = vadd.f32 %v2650, %v2656
        %v2660 = vld [vmem:[%s67] sm:$0xf]
        %v2661 = vld [vmem:[%s67 + $0x4] sm:$0xf]
        %v2662 = vld [vmem:[%s69] sm:$0x1]
        %v2664 = vlaneseq
        %v2665 = vshrl.u32 %v2664, 7
        %v2666 = vsub.s32 0, %v2665
        %v2667 = vrot.slane %v2662, %v2666
        %v2671 = vunpack.c.l.b16 %v2660
        %v2672 = vunpack.c.l.b16 %v2661
        %v2673 = vpack.c.b16 %v2672, %v2671
        %2675 = vmatprep.subr.bf16.mxu0 0
        %2676 = vmatpush1.bf16.msra.mxu0 0
        %2677 = vmatprep.subr.bf16.mxu0 0
        %2678 = vmatpush1.bf16.msra.mxu0 0
        %2679 = vmatprep.subr.bf16.mxu0 0
        %2680 = vmatpush1.bf16.msra.mxu0 0
        %2681 = vmatprep.subr.bf16.mxu0 0
        %2682 = vmatpush1.bf16.msra.mxu0 0
        %2683 = vmatprep.subr.bf16.mxu0 0
        %2684 = vmatpush1.bf16.msra.mxu0 0
        %2685 = vmatprep.subr.bf16.mxu0 0
        %2686 = vmatpush1.bf16.msra.mxu0 0
        %2687 = vmatprep.subr.bf16.mxu0 0
        %2688 = vmatpush1.bf16.msra.mxu0 0
        %2689 = vmatprep.subr.bf16.mxu0 0
        %2690 = vmatpush1.bf16.msra.mxu0 %v2673
        %2691 = vmatprep.subr.bf16.mxu0 0
        %2692 = vmatpush2.bf16.msra.mxu0 0
        %2693 = vmatprep.subr.bf16.mxu0 0
        %2694 = vmatpush2.bf16.msra.mxu0 0
        %2695 = vmatprep.subr.bf16.mxu0 0
        %2696 = vmatpush2.bf16.msra.mxu0 0
        %2697 = vmatprep.subr.bf16.mxu0 0
        %2698 = vmatpush2.bf16.msra.mxu0 0
        %2699 = vmatprep.subr.bf16.mxu0 0
        %2700 = vmatpush2.bf16.msra.mxu0 0
        %2701 = vmatprep.subr.bf16.mxu0 0
        %2702 = vmatpush2.bf16.msra.mxu0 0
        %2703 = vmatprep.subr.bf16.mxu0 0
        %2704 = vmatpush2.bf16.msra.mxu0 0
        %2705 = vmatprep.subr.bf16.mxu0 0
        %2706 = vmatpush2.bf16.msra.mxu0 0
        %2707 = vmatprep.mubr.bf16.mxu0 0
        %2708 = vmatmul.mubr.bf16.gmra.mxu0 %v2492
        %v2709 = vpop.f32.mrf.mxu0
        %v2710 = vadd.f32 %v2667, %v2709
        %v2711 = vpop.f32.mrf.mxu0
        %v2712 = vpop.f32.mrf.mxu0
        %v2713 = vadd.f32 %v2667, %v2712
        %v2714 = vpop.f32.mrf.mxu0
        %2715 = vdwg.mxu0
        %v2716 = vsel %vm1303, %v2658, 0.0
        %2717 = vadd.xlane.f32.xlu0 %v2716
        %v2718 = vpop.xlane.xlu0 %2717
        %v2719 = vsel %vm1303, %v2659, 0.0
        %2720 = vadd.xlane.f32.xlu0 %v2719
        %v2721 = vpop.xlane.xlu0 %2720
        %v2722 = vadd.f32 %v2718, %v2721
        %v2723 = vrot.slane %v2722, 4
        %v2724 = vadd.f32 %v2722, %v2723
        %v2725 = vrot.slane %v2724, 2
        %v2726 = vadd.f32 %v2724, %v2725
        %v2727 = vrot.slane %v2726, 1
        %v2728 = vadd.f32 %v2726, %v2727
        %v2729 = vmul.f32 %v2728, 0.015625
        %v2730 = vsub.f32 %v2658, %v2729
        %v2731 = vsub.f32 %v2659, %v2729
        %v2732 = vmul.f32 %v2730, %v2730
        %v2733 = vmul.f32 %v2731, %v2731
        %v2734 = vsel %vm1303, %v2732, 0.0
        %2735 = vadd.xlane.f32.xlu0 %v2734
        %v2736 = vpop.xlane.xlu0 %2735
        %v2737 = vsel %vm1303, %v2733, 0.0
        %2738 = vadd.xlane.f32.xlu0 %v2737
        %v2739 = vpop.xlane.xlu0 %2738
        %v2740 = vadd.f32 %v2736, %v2739
        %v2741 = vrot.slane %v2740, 4
        %v2742 = vadd.f32 %v2740, %v2741
        %v2743 = vrot.slane %v2742, 2
        %v2744 = vadd.f32 %v2742, %v2743
        %v2745 = vrot.slane %v2744, 1
        %v2746 = vadd.f32 %v2744, %v2745
        %v2747 = vmul.f32 %v2746, 0.015625
        %v2748 = vadd.f32 %v2747, 1e-05
        %v2749 = vrsqrt.pop %v2748
        %v2750 = vmul.f32 %v2730, %v2749
        %v2751 = vmul.f32 %v2731, %v2749
        %v2752 = vld [vmem:[%s51] sm:$0x1]
        %v2754 = vlaneseq
        %v2755 = vshrl.u32 %v2754, 7
        %v2756 = vsub.s32 0, %v2755
        %v2757 = vrot.slane %v2752, %v2756
        %v2759 = vmul.f32 %v2750, %v2757
        %v2760 = vmul.f32 %v2751, %v2757
        %v2761 = vld [vmem:[%s53] sm:$0x1]
        %v2763 = vlaneseq
        %v2764 = vshrl.u32 %v2763, 7
        %v2765 = vsub.s32 0, %v2764
        %v2766 = vrot.slane %v2761, %v2765
        %v2768 = vadd.f32 %v2759, %v2766
        %v2769 = vadd.f32 %v2760, %v2766
        %v2770 = vmax.f32 %v2768, 0.0
        %v2771 = vmax.f32 %v2769, 0.0
        %vm2772 = vcmp.ne.f32.partialorder %v2768, %v2768
        %vm2773 = vcmp.ne.f32.partialorder %v2769, %v2769
        %v2774 = vadd.f32 %v2768, 0.0
        %v2775 = vadd.f32 %v2769, 0.0
        %v2776 = vand.u32 2147483647, %v2768
        %v2777 = vand.u32 2147483647, %v2769
        %v2778 = vsub.f32 0.0, %v2776
        %v2779 = vsub.f32 0.0, %v2777
        %v2780 = vmul.f32 %v2778, 1.442695
        %v2781 = vpow.pop %v2780
        %v2782 = vmul.f32 %v2779, 1.442695
        %v2783 = vpow.pop %v2782
        %v2784 = vadd.f32 %v2781, 1.0
        %v2785 = vlog2.pop %v2784
        %v2786 = vmul.f32 %v2785, 0.6931472
        %v2787 = vmul.f32 -0.5, %v2781
        %v2788 = vadd.f32 %v2787, 1.0
        %v2789 = vmul.f32 %v2788, %v2781
        %v2790 = vand.u32 2147483647, %v2781
        %vm2791 = vcmp.lt.f32.partialorder %v2790, 0.0004427343
        %v2792 = vsel %vm2791, %v2789, %v2786
        %v2793 = vadd.f32 %v2783, 1.0
        %v2794 = vlog2.pop %v2793
        %v2795 = vmul.f32 %v2794, 0.6931472
        %v2796 = vmul.f32 -0.5, %v2783
        %v2797 = vadd.f32 %v2796, 1.0
        %v2798 = vmul.f32 %v2797, %v2783
        %v2799 = vand.u32 2147483647, %v2783
        %vm2800 = vcmp.lt.f32.partialorder %v2799, 0.0004427343
        %v2801 = vsel %vm2800, %v2798, %v2795
        %v2802 = vadd.f32 %v2770, %v2792
        %v2803 = vadd.f32 %v2771, %v2801
        %v2804 = vsel %vm2772, %v2774, %v2802
        %v2805 = vsel %vm2773, %v2775, %v2803
        %v2806 = vtanh.pop %v2804
        %v2807 = vtanh.pop %v2805
        %v2808 = vmul.f32 %v2768, %v2806
        %v2809 = vmul.f32 %v2769, %v2807
        %v2810 = vld [vmem:[%s1282] sm:$0x1]
        %v2812 = vlaneseq
        %v2813 = vshrl.u32 %v2812, 7
        %v2814 = vsub.s32 0, %v2813
        %v2815 = vrot.slane %v2810, %v2814
        %v2817 = vmul.f32 %v2815, %v2808
        %v2818 = vmul.f32 %v2815, %v2809
        %v2819 = vld [vmem:[%s1285] sm:$0x1]
        %v2821 = vlaneseq
        %v2822 = vshrl.u32 %v2821, 7
        %v2823 = vsub.s32 0, %v2822
        %v2824 = vrot.slane %v2819, %v2823
        %v2826 = vadd.f32 %v2817, %v2824
        %v2827 = vadd.f32 %v2818, %v2824
        %v2828 = vpack.c.bf16 %v2827, %v2826
        %v2829 = vld [vmem:[%s59] sm:$0x3]
        %v2831 = vsel %vm1303, %v2828, 0
        %v2834 = vsel %vm1307, %v2829, 0
        %2836 = vmatprep.subr.bf16.mxu0 0
        %2837 = vmatpush1.bf16.msra.mxu0 0
        %2838 = vmatprep.subr.bf16.mxu0 0
        %2839 = vmatpush1.bf16.msra.mxu0 0
        %2840 = vmatprep.subr.bf16.mxu0 0
        %2841 = vmatpush1.bf16.msra.mxu0 0
        %2842 = vmatprep.subr.bf16.mxu0 0
        %2843 = vmatpush1.bf16.msra.mxu0 0
        %2844 = vmatprep.subr.bf16.mxu0 0
        %2845 = vmatpush1.bf16.msra.mxu0 0
        %2846 = vmatprep.subr.bf16.mxu0 0
        %2847 = vmatpush1.bf16.msra.mxu0 0
        %2848 = vmatprep.subr.bf16.mxu0 0
        %2849 = vmatpush1.bf16.msra.mxu0 0
        %2850 = vmatprep.subr.bf16.mxu0 0
        %2851 = vmatpush1.bf16.msra.mxu0 %v2834
        %2852 = vmatprep.subr.bf16.mxu0 0
        %2853 = vmatpush2.bf16.msra.mxu0 0
        %2854 = vmatprep.subr.bf16.mxu0 0
        %2855 = vmatpush2.bf16.msra.mxu0 0
        %2856 = vmatprep.subr.bf16.mxu0 0
        %2857 = vmatpush2.bf16.msra.mxu0 0
        %2858 = vmatprep.subr.bf16.mxu0 0
        %2859 = vmatpush2.bf16.msra.mxu0 0
        %2860 = vmatprep.subr.bf16.mxu0 0
        %2861 = vmatpush2.bf16.msra.mxu0 0
        %2862 = vmatprep.subr.bf16.mxu0 0
        %2863 = vmatpush2.bf16.msra.mxu0 0
        %2864 = vmatprep.subr.bf16.mxu0 0
        %2865 = vmatpush2.bf16.msra.mxu0 0
        %2866 = vmatprep.subr.bf16.mxu0 0
        %2867 = vmatpush2.bf16.msra.mxu0 0
        %2868 = vmatprep.mubr.bf16.mxu0 0
        %2869 = vmatmul.mubr.bf16.gmra.mxu0 %v2831
        %v2870 = vpop.f32.mrf.mxu0
        %v2871 = vadd.f32 0.0, %v2870
        %v2872 = vpop.f32.mrf.mxu0
        %v2873 = vpop.f32.mrf.mxu0
        %v2874 = vadd.f32 0.0, %v2873
        %v2875 = vpop.f32.mrf.mxu0
        %2876 = vdwg.mxu0
        %s2877 = scalar_lea.vmem %s59, 2
        %v2878 = vld [vmem:[%s2877] sm:$0x3]
        %v2880 = vsel %vm1307, %v2878, 0
        %2882 = vmatprep.subr.bf16.mxu0 0
        %2883 = vmatpush1.bf16.msra.mxu0 0
        %2884 = vmatprep.subr.bf16.mxu0 0
        %2885 = vmatpush1.bf16.msra.mxu0 0
        %2886 = vmatprep.subr.bf16.mxu0 0
        %2887 = vmatpush1.bf16.msra.mxu0 0
        %2888 = vmatprep.subr.bf16.mxu0 0
        %2889 = vmatpush1.bf16.msra.mxu0 0
        %2890 = vmatprep.subr.bf16.mxu0 0
        %2891 = vmatpush1.bf16.msra.mxu0 0
        %2892 = vmatprep.subr.bf16.mxu0 0
        %2893 = vmatpush1.bf16.msra.mxu0 0
        %2894 = vmatprep.subr.bf16.mxu0 0
        %2895 = vmatpush1.bf16.msra.mxu0 0
        %2896 = vmatprep.subr.bf16.mxu0 0
        %2897 = vmatpush1.bf16.msra.mxu0 %v2880
        %2898 = vmatprep.subr.bf16.mxu0 0
        %2899 = vmatpush2.bf16.msra.mxu0 0
        %2900 = vmatprep.subr.bf16.mxu0 0
        %2901 = vmatpush2.bf16.msra.mxu0 0
        %2902 = vmatprep.subr.bf16.mxu0 0
        %2903 = vmatpush2.bf16.msra.mxu0 0
        %2904 = vmatprep.subr.bf16.mxu0 0
        %2905 = vmatpush2.bf16.msra.mxu0 0
        %2906 = vmatprep.subr.bf16.mxu0 0
        %2907 = vmatpush2.bf16.msra.mxu0 0
        %2908 = vmatprep.subr.bf16.mxu0 0
        %2909 = vmatpush2.bf16.msra.mxu0 0
        %2910 = vmatprep.subr.bf16.mxu0 0
        %2911 = vmatpush2.bf16.msra.mxu0 0
        %2912 = vmatprep.subr.bf16.mxu0 0
        %2913 = vmatpush2.bf16.msra.mxu0 0
        %2914 = vmatprep.mubr.bf16.mxu0 0
        %2915 = vmatmul.mubr.bf16.gmra.mxu0 %v2831
        %v2916 = vpop.f32.mrf.mxu0
        %v2917 = vadd.f32 0.0, %v2916
        %v2918 = vpop.f32.mrf.mxu0
        %v2919 = vpop.f32.mrf.mxu0
        %v2920 = vadd.f32 0.0, %v2919
        %v2921 = vpop.f32.mrf.mxu0
        %2922 = vdwg.mxu0
        %s2923 = scalar_lea.vmem %s59, 4
        %v2924 = vld [vmem:[%s2923] sm:$0x3]
        %v2926 = vsel %vm1307, %v2924, 0
        %2928 = vmatprep.subr.bf16.mxu0 0
        %2929 = vmatpush1.bf16.msra.mxu0 0
        %2930 = vmatprep.subr.bf16.mxu0 0
        %2931 = vmatpush1.bf16.msra.mxu0 0
        %2932 = vmatprep.subr.bf16.mxu0 0
        %2933 = vmatpush1.bf16.msra.mxu0 0
        %2934 = vmatprep.subr.bf16.mxu0 0
        %2935 = vmatpush1.bf16.msra.mxu0 0
        %2936 = vmatprep.subr.bf16.mxu0 0
        %2937 = vmatpush1.bf16.msra.mxu0 0
        %2938 = vmatprep.subr.bf16.mxu0 0
        %2939 = vmatpush1.bf16.msra.mxu0 0
        %2940 = vmatprep.subr.bf16.mxu0 0
        %2941 = vmatpush1.bf16.msra.mxu0 0
        %2942 = vmatprep.subr.bf16.mxu0 0
        %2943 = vmatpush1.bf16.msra.mxu0 %v2926
        %2944 = vmatprep.subr.bf16.mxu0 0
        %2945 = vmatpush2.bf16.msra.mxu0 0
        %2946 = vmatprep.subr.bf16.mxu0 0
        %2947 = vmatpush2.bf16.msra.mxu0 0
        %2948 = vmatprep.subr.bf16.mxu0 0
        %2949 = vmatpush2.bf16.msra.mxu0 0
        %2950 = vmatprep.subr.bf16.mxu0 0
        %2951 = vmatpush2.bf16.msra.mxu0 0
        %2952 = vmatprep.subr.bf16.mxu0 0
        %2953 = vmatpush2.bf16.msra.mxu0 0
        %2954 = vmatprep.subr.bf16.mxu0 0
        %2955 = vmatpush2.bf16.msra.mxu0 0
        %2956 = vmatprep.subr.bf16.mxu0 0
        %2957 = vmatpush2.bf16.msra.mxu0 0
        %2958 = vmatprep.subr.bf16.mxu0 0
        %2959 = vmatpush2.bf16.msra.mxu0 0
        %2960 = vmatprep.mubr.bf16.mxu0 0
        %2961 = vmatmul.mubr.bf16.gmra.mxu0 %v2831
        %v2962 = vpop.f32.mrf.mxu0
        %v2963 = vadd.f32 0.0, %v2962
        %v2964 = vpop.f32.mrf.mxu0
        %v2965 = vpop.f32.mrf.mxu0
        %v2966 = vadd.f32 0.0, %v2965
        %v2967 = vpop.f32.mrf.mxu0
        %2968 = vdwg.mxu0
        %v2969 = vrot.slane %v2871, 7
        %v2970 = vrot.slane %v2874, 7
        %v2971 = vsel %vm1446, %v2969, %v2970
        %v2972 = vsel %vm1446, %v2970, %v2969
        %v2973 = vsel %vm1451, %v2972, 0.0
        %v2974 = vsel %vm1452, %v2971, 0.0
        %v2975 = vrot.slane %v2963, 1
        %v2976 = vrot.slane %v2966, 1
        %v2977 = vsel %vm1457, %v2975, %v2976
        %v2978 = vsel %vm1457, %v2976, %v2975
        %v2979 = vsel %vm1462, %v2977, 0.0
        %v2980 = vsel %vm1463, %v2978, 0.0
        %v2981 = vadd.f32 %v2973, %v2917
        %v2982 = vadd.f32 %v2974, %v2920
        %v2983 = vadd.f32 %v2981, %v2979
        %v2984 = vadd.f32 %v2982, %v2980
        %v2985 = vld [vmem:[%s61] sm:$0x1]
        %v2987 = vlaneseq
        %v2988 = vshrl.u32 %v2987, 7
        %v2989 = vsub.s32 0, %v2988
        %v2990 = vrot.slane %v2985, %v2989
        %v2992 = vadd.f32 %v2983, %v2990
        %v2993 = vadd.f32 %v2984, %v2990
        %v2994 = vsel %vm1303, %v2992, 0.0
        %2995 = vadd.xlane.f32.xlu0 %v2994
        %v2996 = vpop.xlane.xlu0 %2995
        %v2997 = vsel %vm1303, %v2993, 0.0
        %2998 = vadd.xlane.f32.xlu0 %v2997
        %v2999 = vpop.xlane.xlu0 %2998
        %v3000 = vadd.f32 %v2996, %v2999
        %v3001 = vrot.slane %v3000, 4
        %v3002 = vadd.f32 %v3000, %v3001
        %v3003 = vrot.slane %v3002, 2
        %v3004 = vadd.f32 %v3002, %v3003
        %v3005 = vrot.slane %v3004, 1
        %v3006 = vadd.f32 %v3004, %v3005
        %v3007 = vmul.f32 %v3006, 0.015625
        %v3008 = vsub.f32 %v2992, %v3007
        %v3009 = vsub.f32 %v2993, %v3007
        %v3010 = vmul.f32 %v3008, %v3008
        %v3011 = vmul.f32 %v3009, %v3009
        %v3012 = vsel %vm1303, %v3010, 0.0
        %3013 = vadd.xlane.f32.xlu0 %v3012
        %v3014 = vpop.xlane.xlu0 %3013
        %v3015 = vsel %vm1303, %v3011, 0.0
        %3016 = vadd.xlane.f32.xlu0 %v3015
        %v3017 = vpop.xlane.xlu0 %3016
        %v3018 = vadd.f32 %v3014, %v3017
        %v3019 = vrot.slane %v3018, 4
        %v3020 = vadd.f32 %v3018, %v3019
        %v3021 = vrot.slane %v3020, 2
        %v3022 = vadd.f32 %v3020, %v3021
        %v3023 = vrot.slane %v3022, 1
        %v3024 = vadd.f32 %v3022, %v3023
        %v3025 = vmul.f32 %v3024, 0.015625
        %v3026 = vadd.f32 %v3025, 1e-05
        %v3027 = vrsqrt.pop %v3026
        %v3028 = vmul.f32 %v3008, %v3027
        %v3029 = vmul.f32 %v3009, %v3027
        %v3030 = vld [vmem:[%s63] sm:$0x1]
        %v3032 = vlaneseq
        %v3033 = vshrl.u32 %v3032, 7
        %v3034 = vsub.s32 0, %v3033
        %v3035 = vrot.slane %v3030, %v3034
        %v3037 = vmul.f32 %v3028, %v3035
        %v3038 = vmul.f32 %v3029, %v3035
        %v3039 = vld [vmem:[%s65] sm:$0x1]
        %v3041 = vlaneseq
        %v3042 = vshrl.u32 %v3041, 7
        %v3043 = vsub.s32 0, %v3042
        %v3044 = vrot.slane %v3039, %v3043
        %v3046 = vadd.f32 %v3037, %v3044
        %v3047 = vadd.f32 %v3038, %v3044
        %v3048 = vmax.f32 %v3046, 0.0
        %v3049 = vmax.f32 %v3047, 0.0
        %vm3050 = vcmp.ne.f32.partialorder %v3046, %v3046
        %vm3051 = vcmp.ne.f32.partialorder %v3047, %v3047
        %v3052 = vadd.f32 %v3046, 0.0
        %v3053 = vadd.f32 %v3047, 0.0
        %v3054 = vand.u32 2147483647, %v3046
        %v3055 = vand.u32 2147483647, %v3047
        %v3056 = vsub.f32 0.0, %v3054
        %v3057 = vsub.f32 0.0, %v3055
        %v3058 = vmul.f32 %v3056, 1.442695
        %v3059 = vpow.pop %v3058
        %v3060 = vmul.f32 %v3057, 1.442695
        %v3061 = vpow.pop %v3060
        %v3062 = vadd.f32 %v3059, 1.0
        %v3063 = vlog2.pop %v3062
        %v3064 = vmul.f32 %v3063, 0.6931472
        %v3065 = vmul.f32 -0.5, %v3059
        %v3066 = vadd.f32 %v3065, 1.0
        %v3067 = vmul.f32 %v3066, %v3059
        %v3068 = vand.u32 2147483647, %v3059
        %vm3069 = vcmp.lt.f32.partialorder %v3068, 0.0004427343
        %v3070 = vsel %vm3069, %v3067, %v3064
        %v3071 = vadd.f32 %v3061, 1.0
        %v3072 = vlog2.pop %v3071
        %v3073 = vmul.f32 %v3072, 0.6931472
        %v3074 = vmul.f32 -0.5, %v3061
        %v3075 = vadd.f32 %v3074, 1.0
        %v3076 = vmul.f32 %v3075, %v3061
        %v3077 = vand.u32 2147483647, %v3061
        %vm3078 = vcmp.lt.f32.partialorder %v3077, 0.0004427343
        %v3079 = vsel %vm3078, %v3076, %v3073
        %v3080 = vadd.f32 %v3048, %v3070
        %v3081 = vadd.f32 %v3049, %v3079
        %v3082 = vsel %vm3050, %v3052, %v3080
        %v3083 = vsel %vm3051, %v3053, %v3081
        %v3084 = vtanh.pop %v3082
        %v3085 = vtanh.pop %v3083
        %v3086 = vmul.f32 %v3046, %v3084
        %v3087 = vmul.f32 %v3047, %v3085
        %v3088 = vadd.f32 %v3086, %v2710
        %v3089 = vadd.f32 %v3087, %v2713
        %3090 = vst.msk [vmem:[%s1290] sm:$0xff] %vm1303, %v3088
        %3091 = vst.msk [vmem:[%s1290 + $0x8] sm:$0xff] %vm1303, %v3089
        %p3092 = scmp.lt.s32.totalorder %s86, 1
        %s3093 = scalar_select %p3092, %s86, 1
        %s3094 = smul.addr %s3093, 2
        %s3095 = smul.addr %s3094, 8
        %s3096 = scalar_lea.vmem %s71, %s3095
        // Predicated region
        $region201: #{tpu_custom_call.1} parent=159 // pred_check
          %p3097 = pneg %p874
        $region202: #{tpu_custom_call.1} parent=159 // pred_check_branch
          %3099 = sbr.rel (%p3097) target = $region204
        $region203: #{tpu_custom_call.1} parent=159 // pred_region
          _
        $region204: #{tpu_custom_call.1} parent=159 // pred_fallthru
          _
      $region160: #{tpu_custom_call.1} parent=5 // pred_fallthru
        _
      %p3100 = scmp.le.s32.totalorder 2, %s81
      // Predicated region
      $region205: #{tpu_custom_call.1} parent=5 // pred_check
        %p3101 = pneg %p3100
      $region206: #{tpu_custom_call.1} parent=5 // pred_check_branch
        %3103 = sbr.rel (%p3101) target = $region208
      $region207: #{tpu_custom_call.1} parent=5 // pred_region
        %s3104 = ssub.s32 %s81, 2
        // Predicated region
        $region209: #{tpu_custom_call.1} parent=207 // pred_check
          %p3105 = pneg %p880
        $region210: #{tpu_custom_call.1} parent=207 // pred_check_branch
          %3107 = sbr.rel (%p3105) target = $region212
        $region211: #{tpu_custom_call.1} parent=207 // pred_region
          %p3108 = scmp.lt.s32.totalorder %s87, 1
          %s3109 = scalar_select %p3108, %s87, 1
          %s3110 = smul.addr %s3109, 2
          %s3111 = smul.addr %s3110, 8
          %s3112 = scalar_lea.vmem %s71, %s3111
        $region212: #{tpu_custom_call.1} parent=207 // pred_fallthru
          _
      $region208: #{tpu_custom_call.1} parent=5 // pred_fallthru
        _
    $region6: #{tpu_custom_call.1} parent=1 // loop_footer
      %s85 = sadd.s32 1, %s81
    $region7: #{tpu_custom_call.1} parent=1 // loop_footer_branch
      %80 = sbr.rel target = $region3
    $region8: #{tpu_custom_call.1} parent=1 // loop_exit
      _
    %3113 = vsyncpa [#allocation3], 1
    %s3114 = scalar_lea.sflag [#allocation3], 1
    %3115 = vsyncpa %s3114, 1
    %3116 = vsyncpa [#allocation5], 1
    %3117 = vsyncpa [#allocation8], 1
    %3118 = vsyncpa [#allocation14], 1

</llo_original>
